<compile_context>
chip_gen: v7x
topology: tpu7x:2x2x1
jax: 0.10.0
libtpu: 0.0.40
codegen_flags: <defaults>
</compile_context>

<pallas_src>
import functools

import jax
import jax.numpy as jnp
from jax import lax
from jax.experimental import pallas as pl
from jax.experimental.pallas import tpu as pltpu

INPUT_MEAN = (0.2788, 0.2657, 0.2629)
INPUT_STD = (0.2064, 0.1944, 0.2252)
BN_EPS = 1e-5

CONV_GEOM = ((5, 2, 2), (3, 2, 1), (3, 2, 1), (3, 2, 1))   # (kernel, stride, pad)
CONV_CIO = ((3, 32), (32, 64), (64, 128), (128, 256))       # real (Cin, Cout)
IMG_C_PAD = 8                        # image channels padded 3 -> 8 for lane layout
_VMEM_LIMIT = 32 * 1024 * 1024       # safe on v5e / v6e / v7x
_VMEM = pl.BlockSpec(memory_space=pltpu.MemorySpace.VMEM)


# ------------------------------ static geometry ------------------------------

def _geometry(h, w):
    """Per-layer static conv geometry for stride-2 convolutions.

    Phase-plane layout: ph[py, px, yq*wq + xq, :] == x_padded[2*yq+py, 2*xq+px, :]
    so every conv tap is a CONTIGUOUS slice of the flattened phase plane.
    """
    geoms = []
    cin = IMG_C_PAD
    for (k, _s, p), (_ci, cout) in zip(CONV_GEOM, CONV_CIO):
        hp, wp = h + 2 * p, w + 2 * p
        ho, wo = (hp - k) // 2 + 1, (wp - k) // 2 + 1
        hq, wq = (hp + 1) // 2 + 1, (wp + 1) // 2       # phase-plane extents
        geoms.append(dict(k=k, p=p, h=h, w=w, ho=ho, wo=wo, hq=hq, wq=wq,
                          rows=ho * wq, cin=cin, cout=cout))
        h, w, cin = ho, wo, cout
    return geoms


def _sel_matrix(src_w, valid_w, dst_wq, pad, dtype):
    """(2*dst_wq, src_w) 0/1 selection matrix for the W-axis stride-2 phase split.

    Row j encodes (px = j // dst_wq, xq = j % dst_wq) and selects source column
    ox = 2*xq + px - pad when 0 <= ox < valid_w (all-zero row otherwise), so
    (S @ slab)[px*dst_wq + xq, :] == zero_padded_slab[2*xq + px, :] and garbage
    run-over columns (ox >= valid_w) are explicitly zeroed.
    """
    j = lax.broadcasted_iota(jnp.int32, (2 * dst_wq, src_w), 0)
    src = lax.broadcasted_iota(jnp.int32, (2 * dst_wq, src_w), 1)
    px = (j >= dst_wq).astype(jnp.int32)
    xq = j - px * dst_wq
    tgt = 2 * xq + px - pad
    keep = (src == tgt) & (tgt >= 0) & (tgt < valid_w)
    return jnp.where(keep, 1.0, 0.0).astype(dtype)


# ------------------------------ Pallas kernels -------------------------------

def _encoder_kernel(img_ref, mean_ref, istd_ref,
                    w1_ref, b1_ref, w2_ref, b2_ref, w3_ref, b3_ref, w4_ref, b4_ref,
                    out_ref,
                    ph1, col1, yb1, ph2, col2, yb2, ph3, col3, yb3, ph4, col4,
                    *, geoms, img_h, img_w):
    """Whole encoder for ONE image: normalize -> 4x (conv+BN+ReLU) -> avg-pool."""
    f32, bf16 = jnp.float32, jnp.bfloat16
    w_refs = (w1_ref, w2_ref, w3_ref, w4_ref)
    b_refs = (b1_ref, b2_ref, b3_ref, b4_ref)
    phs = (ph1, ph2, ph3, ph4)
    cols = (col1, col2, col3, col4)
    ybufs = (yb1, yb2, yb3, None)

    def scatter_rows(dst_ph, both, yy, wq_dst):
        """Store the two W-phases of one padded row into a phase buffer."""
        py, yq = yy & 1, yy >> 1
        dst_ph[py, 0, yq * wq_dst:(yq + 1) * wq_dst, :] = both[:wq_dst].astype(bf16)
        dst_ph[py, 1, yq * wq_dst:(yq + 1) * wq_dst, :] = both[wq_dst:].astype(bf16)

    # ---- stage 0: normalize (BEFORE padding, so pad pixels are exactly 0),
    #      then zero-pad + space-to-depth into conv1's phase buffer.
    g1 = geoms[0]
    ph1[...] = jnp.zeros_like(ph1)
    sel0 = _sel_matrix(img_w, img_w, g1["wq"], g1["p"], bf16)
    mean = mean_ref[...]
    istd = istd_ref[...]
    for h in range(img_h):
        row = ((img_ref[0, h] - mean) * istd).astype(bf16)            # (W, 8)
        both = jnp.dot(sel0, row, preferred_element_type=f32)         # (2*Wq1, 8)
        scatter_rows(ph1, both, h + g1["p"], g1["wq"])

    # ---- conv1..conv4: im2col pack -> ONE matmul -> folded-BN bias + ReLU
    for li, g in enumerate(geoms):
        k, wq, rows, cin = g["k"], g["wq"], g["rows"], g["cin"]
        ph, col = phs[li], cols[li]
        # pack (rows, k*k*cin) im2col: one contiguous phase-plane slice per tap
        for dy in range(k):
            for dx in range(k):
                t = dy * k + dx
                start = (dy // 2) * wq + (dx // 2)
                col[:, t * cin:(t + 1) * cin] = ph[dy & 1, dx & 1,
                                                   start:start + rows, :]
        # single deep-K matmul per layer (bf16 operands, f32 accumulation)
        y = jnp.dot(col[...], w_refs[li][...], preferred_element_type=f32)
        y = jnp.maximum(y + b_refs[li][...], 0.0)

        if li + 1 < len(geoms):
            # repack for the next layer: crop run-over cols, zero-pad, and
            # space-to-depth — all inside VMEM (no HBM round trip).
            gn = geoms[li + 1]
            yb, ph_next = ybufs[li], phs[li + 1]
            yb[...] = y.astype(bf16)
            ph_next[...] = jnp.zeros_like(ph_next)
            sel = _sel_matrix(wq, g["wo"], gn["wq"], gn["p"], bf16)
            # TODO(synk): block several output rows per selection matmul to cut
            # per-row loop overhead for large images (correctness-neutral).
            for oy in range(g["ho"]):
                slab = yb[oy * wq:(oy + 1) * wq, :]                    # (Wq, Cout)
                both = jnp.dot(sel, slab, preferred_element_type=f32)  # (2*Wq', C)
                scatter_rows(ph_next, both, oy + gn["p"], gn["wq"])
        else:
            # conv4 epilogue: AdaptiveAvgPool2d((1,1)) over the VALID outputs only
            acc = jnp.zeros((1, g["cout"]), f32)
            for oy in range(g["ho"]):
                acc = acc + jnp.sum(y[oy * wq:oy * wq + g["wo"], :],
                                    axis=0, keepdims=True)
            out_ref[0] = acc * (1.0 / (g["ho"] * g["wo"]))


def _head_kernel(x_ref, w1_ref, b1_ref, w2_ref, b2_ref, w3_ref, b3_ref, o_ref):
    """Flatten + Linear(256,256)/ReLU/[Dropout=id]/Linear(256,128)/ReLU/Linear."""
    pooled = x_ref[:, 0, :]                                            # (B, 256) f32
    h = jnp.dot(pooled.astype(jnp.bfloat16), w1_ref[...],
                preferred_element_type=jnp.float32) + b1_ref[...]
    h = jnp.maximum(h, 0.0)
    # TODO(synk): nn.Dropout(0.3) is identity in eval mode; train-mode stochastic
    # masking not implemented.
    h = jnp.dot(h.astype(jnp.bfloat16), w2_ref[...],
                preferred_element_type=jnp.float32) + b2_ref[...]
    h = jnp.maximum(h, 0.0)
    o_ref[...] = jnp.dot(h.astype(jnp.bfloat16), w3_ref[...],
                         preferred_element_type=jnp.float32) + b3_ref[...]


# ------------------------------ kernel wrappers -------------------------------

def encoder_forward(x, packed):
    """x: (B, H, W, IMG_C_PAD) f32 -> pooled features (B, 1, 256) f32."""
    B, H, W, C = x.shape
    geoms = _geometry(H, W)
    convs = packed["convs"]

    in_specs = [pl.BlockSpec((1, H, W, C), lambda b: (b, 0, 0, 0))]
    args = [x]
    for arr in (packed["mean"], packed["istd"]):
        in_specs.append(pl.BlockSpec(arr.shape, lambda b: (0, 0)))
        args.append(arr)
    for cv in convs:
        in_specs.append(pl.BlockSpec(cv["w"].shape, lambda b: (0, 0)))
        args.append(cv["w"])
        in_specs.append(pl.BlockSpec(cv["b"].shape, lambda b: (0, 0)))
        args.append(cv["b"])

    scratch = []
    for li, g in enumerate(geoms):
        scratch.append(pltpu.VMEM((2, 2, g["hq"] * g["wq"], g["cin"]), jnp.bfloat16))
        scratch.append(pltpu.VMEM((g["rows"], g["k"] * g["k"] * g["cin"]), jnp.bfloat16))
        if li + 1 < len(geoms):
            scratch.append(pltpu.VMEM((g["rows"], g["cout"]), jnp.bfloat16))

    kern = functools.partial(_encoder_kernel, geoms=tuple(geoms), img_h=H, img_w=W)
    cout_last = geoms[-1]["cout"]
    return pl.pallas_call(
        kern,
        grid=(B,),
        in_specs=in_specs,
        out_specs=pl.BlockSpec((1, 1, cout_last), lambda b: (b, 0, 0)),
        out_shape=jax.ShapeDtypeStruct((B, 1, cout_last), jnp.float32),
        scratch_shapes=scratch,
        compiler_params=pltpu.CompilerParams(
            dimension_semantics=("parallel",),     # batch images across cores (v7x)
            vmem_limit_bytes=_VMEM_LIMIT,
        ),
    )(*args)


def head_forward(pooled, head):
    """pooled: (B, 1, 256) f32 -> (B, 2*n_waypoints) f32, one fused pallas_call."""
    B = pooled.shape[0]
    n_out = head[2]["w"].shape[-1]
    return pl.pallas_call(
        _head_kernel,
        in_specs=[_VMEM] * 7,
        out_specs=_VMEM,
        out_shape=jax.ShapeDtypeStruct((B, n_out), jnp.float32),
        compiler_params=pltpu.CompilerParams(vmem_limit_bytes=_VMEM_LIMIT),
    )(pooled, head[0]["w"], head[0]["b"], head[1]["w"], head[1]["b"],
      head[2]["w"], head[2]["b"])


# --------------------------------- parameters ---------------------------------

def init_params(key, n_waypoints=3):
    """Random parameters with the same layout as the PyTorch module."""
    params = {"convs": [], "head": []}
    for (cin, cout), (k, _s, _p) in zip(CONV_CIO, CONV_GEOM):
        key, k1, k2, k3, k4, k5, k6 = jax.random.split(key, 7)
        params["convs"].append(dict(
            w=0.05 * jax.random.normal(k1, (cout, cin, k, k), jnp.float32),
            b=0.01 * jax.random.normal(k2, (cout,), jnp.float32),
            gamma=1.0 + 0.1 * jax.random.normal(k3, (cout,), jnp.float32),
            beta=0.05 * jax.random.normal(k4, (cout,), jnp.float32),
            rmean=0.02 * jax.random.normal(k5, (cout,), jnp.float32),
            rvar=1.0 + 0.1 * jax.random.uniform(k6, (cout,), jnp.float32),
        ))
    for fin, fout in [(256, 256), (256, 128), (128, n_waypoints * 2)]:
        key, k1, k2 = jax.random.split(key, 3)
        params["head"].append(dict(
            w=0.05 * jax.random.normal(k1, (fout, fin), jnp.float32),
            b=0.01 * jax.random.normal(k2, (fout,), jnp.float32),
        ))
    return params


def prepare_params(params):
    """One-time weight prep (outside the jitted forward):
      * fold eval-mode BatchNorm (running stats) into each conv's weight/bias,
      * flatten conv weights to (k*k*Cin, Cout) bf16 matching the in-kernel
        im2col column order (tap-major, channel-minor); conv1's 3 input
        channels are zero-padded to IMG_C_PAD,
      * transpose Linear weights to (in, out) bf16,
      * normalization constants as (1, IMG_C_PAD) f32 vectors (mean, 1/std).
    """
    packed = {"convs": [], "head": []}
    for i, cp in enumerate(params["convs"]):
        k = CONV_GEOM[i][0]
        cout, cin = cp["w"].shape[0], cp["w"].shape[1]
        scale = cp["gamma"] / jnp.sqrt(cp["rvar"] + BN_EPS)
        w = cp["w"].astype(jnp.float32) * scale[:, None, None, None]
        bias = scale * (cp["b"].astype(jnp.float32) - cp["rmean"]) + cp["beta"]
        # (Cout, Cin, kh, kw) -> (kh, kw, Cin, Cout) -> (k*k, Cin, Cout)
        wp = jnp.transpose(w, (2, 3, 1, 0)).reshape(k * k, cin, cout)
        if i == 0:
            wp = jnp.pad(wp, ((0, 0), (0, IMG_C_PAD - cin), (0, 0)))
            cin = IMG_C_PAD
        packed["convs"].append(dict(
            w=wp.reshape(k * k * cin, cout).astype(jnp.bfloat16),
            b=bias.reshape(1, cout).astype(jnp.float32),
        ))
    for hp in params["head"]:
        packed["head"].append(dict(
            w=hp["w"].T.astype(jnp.bfloat16),
            b=hp["b"].reshape(1, -1).astype(jnp.float32),
        ))
    mean = jnp.zeros((1, IMG_C_PAD), jnp.float32).at[0, :3].set(
        jnp.asarray(INPUT_MEAN, jnp.float32))
    istd = jnp.ones((1, IMG_C_PAD), jnp.float32).at[0, :3].set(
        1.0 / jnp.asarray(INPUT_STD, jnp.float32))
    packed["mean"] = mean
    packed["istd"] = istd
    return packed


# --------------------------------- forward pass --------------------------------

@jax.jit
def cnn_planner_forward(image, packed):
    """image: (b, 3, h, w) float32 in [0, 1] (NCHW).  Returns (b, n_waypoints, 2)."""
    B, C, H, W = image.shape
    # Only wrapper-side glue left: NCHW -> NHWC of the raw 3-channel image.
    x = jnp.transpose(image, (0, 2, 3, 1))
    x = jnp.pad(x, ((0, 0), (0, 0), (0, 0), (0, IMG_C_PAD - C)))
    pooled = encoder_forward(x, packed)                # (B, 1, 256) f32, one kernel
    out = head_forward(pooled, packed["head"])         # (B, 2*n_wp) f32, one kernel
    return out.reshape(B, -1, 2)


if __name__ == "__main__":
    key = jax.random.PRNGKey(0)
    pkey, xkey = jax.random.split(key)
    params = init_params(pkey, n_waypoints=3)
    packed = prepare_params(params)
    image = jax.random.uniform(xkey, (2, 3, 16, 16), dtype=jnp.float32)  # vals in [0, 1]
    waypoints = cnn_planner_forward(image, packed)
    jax.block_until_ready(waypoints)
    assert waypoints.shape == (2, 3, 2), waypoints.shape
    assert waypoints.dtype == jnp.float32
    print("KERNEL_OK")
</pallas_src>

<mosaic_0001>
module attributes {stable_mosaic.version = 11 : i64} {
  func.func @_head_kernel(%arg0: memref<2x1x256xf32, #tpu.memory_space<vmem>>, %arg1: memref<256x256xbf16, #tpu.memory_space<vmem>>, %arg2: memref<1x256xf32, #tpu.memory_space<vmem>>, %arg3: memref<256x128xbf16, #tpu.memory_space<vmem>>, %arg4: memref<1x128xf32, #tpu.memory_space<vmem>>, %arg5: memref<128x6xbf16, #tpu.memory_space<vmem>>, %arg6: memref<1x6xf32, #tpu.memory_space<vmem>>, %arg7: memref<2x6xf32, #tpu.memory_space<vmem>>) attributes {dimension_semantics = [], scalar_prefetch = 0 : i64, scratch_operands = 0 : i64, tpu.core_type = #tpu.core_type<tc>} {
    %c0 = arith.constant 0 : index
    %c0_0 = arith.constant 0 : index
    %c0_1 = arith.constant 0 : index
    %0 = vector.load %arg0[%c0, %c0_0, %c0_1] : memref<2x1x256xf32, #tpu.memory_space<vmem>>, vector<2x1x256xf32>
    %1 = vector.shape_cast %0 : vector<2x1x256xf32> to vector<2x256xf32>
    %2 = arith.truncf %1 : vector<2x256xf32> to vector<2x256xbf16>
    %c0_2 = arith.constant 0 : index
    %c0_3 = arith.constant 0 : index
    %3 = vector.load %arg1[%c0_2, %c0_3] : memref<256x256xbf16, #tpu.memory_space<vmem>>, vector<256x256xbf16>
    %cst = arith.constant dense<0.000000e+00> : vector<2x256xf32>
    %4 = tpu.matmul %2, %3, %cst {dimension_numbers = #tpu.dot_dimension_numbers<[1], [0], [0], [1], [0, 0, 1, 1], [], []>} : vector<2x256xbf16>, vector<256x256xbf16>, vector<2x256xf32> -> vector<2x256xf32>
    %c0_4 = arith.constant 0 : index
    %c0_5 = arith.constant 0 : index
    %5 = vector.load %arg2[%c0_4, %c0_5] : memref<1x256xf32, #tpu.memory_space<vmem>>, vector<1x256xf32>
    %6 = vector.broadcast %5 : vector<1x256xf32> to vector<2x256xf32>
    %7 = arith.addf %4, %6 : vector<2x256xf32>
    %cst_6 = arith.constant 0.000000e+00 : f32
    %8 = vector.broadcast %cst_6 : f32 to vector<2x256xf32>
    %9 = arith.maximumf %7, %8 : vector<2x256xf32>
    %10 = arith.truncf %9 : vector<2x256xf32> to vector<2x256xbf16>
    %c0_7 = arith.constant 0 : index
    %c0_8 = arith.constant 0 : index
    %11 = vector.load %arg3[%c0_7, %c0_8] : memref<256x128xbf16, #tpu.memory_space<vmem>>, vector<256x128xbf16>
    %cst_9 = arith.constant dense<0.000000e+00> : vector<2x128xf32>
    %12 = tpu.matmul %10, %11, %cst_9 {dimension_numbers = #tpu.dot_dimension_numbers<[1], [0], [0], [1], [0, 0, 1, 1], [], []>} : vector<2x256xbf16>, vector<256x128xbf16>, vector<2x128xf32> -> vector<2x128xf32>
    %c0_10 = arith.constant 0 : index
    %c0_11 = arith.constant 0 : index
    %13 = vector.load %arg4[%c0_10, %c0_11] : memref<1x128xf32, #tpu.memory_space<vmem>>, vector<1x128xf32>
    %14 = vector.broadcast %13 : vector<1x128xf32> to vector<2x128xf32>
    %15 = arith.addf %12, %14 : vector<2x128xf32>
    %cst_12 = arith.constant 0.000000e+00 : f32
    %16 = vector.broadcast %cst_12 : f32 to vector<2x128xf32>
    %17 = arith.maximumf %15, %16 : vector<2x128xf32>
    %18 = arith.truncf %17 : vector<2x128xf32> to vector<2x128xbf16>
    %c0_13 = arith.constant 0 : index
    %c0_14 = arith.constant 0 : index
    %19 = vector.load %arg5[%c0_13, %c0_14] : memref<128x6xbf16, #tpu.memory_space<vmem>>, vector<128x6xbf16>
    %cst_15 = arith.constant dense<0.000000e+00> : vector<2x6xf32>
    %20 = tpu.matmul %18, %19, %cst_15 {dimension_numbers = #tpu.dot_dimension_numbers<[1], [0], [0], [1], [0, 0, 1, 1], [], []>} : vector<2x128xbf16>, vector<128x6xbf16>, vector<2x6xf32> -> vector<2x6xf32>
    %c0_16 = arith.constant 0 : index
    %c0_17 = arith.constant 0 : index
    %21 = vector.load %arg6[%c0_16, %c0_17] : memref<1x6xf32, #tpu.memory_space<vmem>>, vector<1x6xf32>
    %22 = vector.broadcast %21 : vector<1x6xf32> to vector<2x6xf32>
    %23 = arith.addf %20, %22 : vector<2x6xf32>
    %c0_18 = arith.constant 0 : index
    %c0_19 = arith.constant 0 : index
    %24 = vector.load %arg7[%c0_18, %c0_19] : memref<2x6xf32, #tpu.memory_space<vmem>>, vector<2x6xf32>
    tpu.vector_store %arg7[%c0_18, %c0_19], %23 {strides = array<i32>} : memref<2x6xf32, #tpu.memory_space<vmem>>, vector<2x6xf32>,
    return
  }
}

module attributes {stable_mosaic.version = 11 : i64} {
  func.func @_encoder_kernel(%arg0: i32, %arg1: memref<1x16x16x8xf32, #tpu.memory_space<vmem>>, %arg2: memref<1x8xf32, #tpu.memory_space<vmem>>, %arg3: memref<1x8xf32, #tpu.memory_space<vmem>>, %arg4: memref<200x32xbf16, #tpu.memory_space<vmem>>, %arg5: memref<1x32xf32, #tpu.memory_space<vmem>>, %arg6: memref<288x64xbf16, #tpu.memory_space<vmem>>, %arg7: memref<1x64xf32, #tpu.memory_space<vmem>>, %arg8: memref<576x128xbf16, #tpu.memory_space<vmem>>, %arg9: memref<1x128xf32, #tpu.memory_space<vmem>>, %arg10: memref<1152x256xbf16, #tpu.memory_space<vmem>>, %arg11: memref<1x256xf32, #tpu.memory_space<vmem>>, %arg12: memref<1x1x256xf32, #tpu.memory_space<vmem>>, %arg13: memref<2x2x110x8xbf16, #tpu.memory_space<vmem>>, %arg14: memref<80x200xbf16, #tpu.memory_space<vmem>>, %arg15: memref<80x32xbf16, #tpu.memory_space<vmem>>, %arg16: memref<2x2x30x32xbf16, #tpu.memory_space<vmem>>, %arg17: memref<20x288xbf16, #tpu.memory_space<vmem>>, %arg18: memref<20x64xbf16, #tpu.memory_space<vmem>>, %arg19: memref<2x2x12x64xbf16, #tpu.memory_space<vmem>>, %arg20: memref<6x576xbf16, #tpu.memory_space<vmem>>, %arg21: memref<6x128xbf16, #tpu.memory_space<vmem>>, %arg22: memref<2x2x6x128xbf16, #tpu.memory_space<vmem>>, %arg23: memref<2x1152xbf16, #tpu.memory_space<vmem>>) attributes {dimension_semantics = [#tpu.dimension_semantics<parallel>], iteration_bounds = array<i64: 2>, scalar_prefetch = 0 : i64, scratch_operands = 11 : i64, tpu.core_type = #tpu.core_type<tc>, window_params = [{transform_indices = @transform_0, window_bounds = array<i64: 1, 16, 16, 8>}, {pipeline_mode = #tpu.pipeline_mode<synchronous>, transform_indices = @transform_1, window_bounds = array<i64: 1, 8>}, {pipeline_mode = #tpu.pipeline_mode<synchronous>, transform_indices = @transform_2, window_bounds = array<i64: 1, 8>}, {pipeline_mode = #tpu.pipeline_mode<synchronous>, transform_indices = @transform_3, window_bounds = array<i64: 200, 32>}, {pipeline_mode = #tpu.pipeline_mode<synchronous>, transform_indices = @transform_4, window_bounds = array<i64: 1, 32>}, {pipeline_mode = #tpu.pipeline_mode<synchronous>, transform_indices = @transform_5, window_bounds = array<i64: 288, 64>}, {pipeline_mode = #tpu.pipeline_mode<synchronous>, transform_indices = @transform_6, window_bounds = array<i64: 1, 64>}, {pipeline_mode = #tpu.pipeline_mode<synchronous>, transform_indices = @transform_7, window_bounds = array<i64: 576, 128>}, {pipeline_mode = #tpu.pipeline_mode<synchronous>, transform_indices = @transform_8, window_bounds = array<i64: 1, 128>}, {pipeline_mode = #tpu.pipeline_mode<synchronous>, transform_indices = @transform_9, window_bounds = array<i64: 1152, 256>}, {pipeline_mode = #tpu.pipeline_mode<synchronous>, transform_indices = @transform_10, window_bounds = array<i64: 1, 256>}, {transform_indices = @transform_11, window_bounds = array<i64: 1, 1, 256>}]} {
    %cst = arith.constant 0.000000e+00 : bf16
    %0 = vector.broadcast %cst : bf16 to vector<2x2x110x8xbf16>
    %c0 = arith.constant 0 : index
    %c0_0 = arith.constant 0 : index
    %c0_1 = arith.constant 0 : index
    %c0_2 = arith.constant 0 : index
    %1 = vector.load %arg13[%c0, %c0_0, %c0_1, %c0_2] : memref<2x2x110x8xbf16, #tpu.memory_space<vmem>>, vector<2x2x110x8xbf16>
    tpu.vector_store %arg13[%c0, %c0_0, %c0_1, %c0_2], %0 {strides = array<i32>} : memref<2x2x110x8xbf16, #tpu.memory_space<vmem>>, vector<2x2x110x8xbf16>,
    %2 = tpu.iota {dimensions = array<i32: 0>} : vector<20x16xi32>
    %3 = tpu.iota {dimensions = array<i32: 1>} : vector<20x16xi32>
    %c10_i32 = arith.constant 10 : i32
    %4 = vector.broadcast %c10_i32 : i32 to vector<20x16xi32>
    %5 = arith.cmpi sge, %2, %4 : vector<20x16xi32>
    %6 = arith.extui %5 : vector<20x16xi1> to vector<20x16xi32>
    %c10_i32_3 = arith.constant 10 : i32
    %7 = vector.broadcast %c10_i32_3 : i32 to vector<20x16xi32>
    %8 = arith.muli %6, %7 : vector<20x16xi32>
    %9 = arith.subi %2, %8 : vector<20x16xi32>
    %c2_i32 = arith.constant 2 : i32
    %10 = vector.broadcast %c2_i32 : i32 to vector<20x16xi32>
    %11 = arith.muli %10, %9 : vector<20x16xi32>
    %12 = arith.addi %11, %6 : vector<20x16xi32>
    %c2_i32_4 = arith.constant 2 : i32
    %13 = vector.broadcast %c2_i32_4 : i32 to vector<20x16xi32>
    %14 = arith.subi %12, %13 : vector<20x16xi32>
    %15 = arith.cmpi eq, %3, %14 : vector<20x16xi32>
    %c0_i32 = arith.constant 0 : i32
    %16 = vector.broadcast %c0_i32 : i32 to vector<20x16xi32>
    %17 = arith.cmpi sge, %14, %16 : vector<20x16xi32>
    %18 = arith.andi %15, %17 : vector<20x16xi1>
    %c16_i32 = arith.constant 16 : i32
    %19 = vector.broadcast %c16_i32 : i32 to vector<20x16xi32>
    %20 = arith.cmpi slt, %14, %19 : vector<20x16xi32>
    %21 = arith.andi %18, %20 : vector<20x16xi1>
    %cst_5 = arith.constant 1.000000e+00 : f32
    %cst_6 = arith.constant 0.000000e+00 : f32
    %22 = vector.broadcast %cst_5 : f32 to vector<20x16xf32>
    %23 = vector.broadcast %cst_6 : f32 to vector<20x16xf32>
    %24 = arith.select %21, %22, %23 : vector<20x16xi1>, vector<20x16xf32>
    %25 = arith.truncf %24 : vector<20x16xf32> to vector<20x16xbf16>
    %c0_7 = arith.constant 0 : index
    %c0_8 = arith.constant 0 : index
    %26 = vector.load %arg2[%c0_7, %c0_8] : memref<1x8xf32, #tpu.memory_space<vmem>>, vector<1x8xf32>
    %c0_9 = arith.constant 0 : index
    %c0_10 = arith.constant 0 : index
    %27 = vector.load %arg3[%c0_9, %c0_10] : memref<1x8xf32, #tpu.memory_space<vmem>>, vector<1x8xf32>
    %c0_11 = arith.constant 0 : index
    %c0_12 = arith.constant 0 : index
    %c0_13 = arith.constant 0 : index
    %c0_14 = arith.constant 0 : index
    %28 = vector.load %arg1[%c0_11, %c0_12, %c0_13, %c0_14] : memref<1x16x16x8xf32, #tpu.memory_space<vmem>>, vector<1x1x16x8xf32>
    %29 = vector.shape_cast %28 : vector<1x1x16x8xf32> to vector<16x8xf32>
    %30 = vector.broadcast %26 : vector<1x8xf32> to vector<16x8xf32>
    %31 = arith.subf %29, %30 : vector<16x8xf32>
    %32 = vector.broadcast %27 : vector<1x8xf32> to vector<16x8xf32>
    %33 = arith.mulf %31, %32 : vector<16x8xf32>
    %34 = arith.truncf %33 : vector<16x8xf32> to vector<16x8xbf16>
    %cst_15 = arith.constant dense<0.000000e+00> : vector<20x8xf32>
    %35 = tpu.matmul %25, %34, %cst_15 {dimension_numbers = #tpu.dot_dimension_numbers<[1], [0], [0], [1], [0, 0, 1, 1], [], []>} : vector<20x16xbf16>, vector<16x8xbf16>, vector<20x8xf32> -> vector<20x8xf32>
    %36 = vector.extract_strided_slice %35 {offsets = [0, 0], sizes = [10, 8], strides = [1, 1]} : vector<20x8xf32> to vector<10x8xf32>
    %37 = arith.truncf %36 : vector<10x8xf32> to vector<10x8xbf16>
    %c0_16 = arith.constant 0 : index
    %c0_17 = arith.constant 0 : index
    %c10 = arith.constant 10 : index
    %c0_18 = arith.constant 0 : index
    %38 = vector.load %arg13[%c0_16, %c0_17, %c10, %c0_18] : memref<2x2x110x8xbf16, #tpu.memory_space<vmem>>, vector<1x1x10x8xbf16>
    %39 = vector.shape_cast %38 : vector<1x1x10x8xbf16> to vector<10x8xbf16>
    %40 = vector.shape_cast %37 : vector<10x8xbf16> to vector<1x1x10x8xbf16>
    tpu.vector_store %arg13[%c0_16, %c0_17, %c10, %c0_18], %40 {strides = array<i32>} : memref<2x2x110x8xbf16, #tpu.memory_space<vmem>>, vector<1x1x10x8xbf16>,
    %41 = vector.extract_strided_slice %35 {offsets = [10, 0], sizes = [10, 8], strides = [1, 1]} : vector<20x8xf32> to vector<10x8xf32>
    %42 = arith.truncf %41 : vector<10x8xf32> to vector<10x8xbf16>
    %c0_19 = arith.constant 0 : index
    %c1 = arith.constant 1 : index
    %c10_20 = arith.constant 10 : index
    %c0_21 = arith.constant 0 : index
    %43 = vector.load %arg13[%c0_19, %c1, %c10_20, %c0_21] : memref<2x2x110x8xbf16, #tpu.memory_space<vmem>>, vector<1x1x10x8xbf16>
    %44 = vector.shape_cast %43 : vector<1x1x10x8xbf16> to vector<10x8xbf16>
    %45 = vector.shape_cast %42 : vector<10x8xbf16> to vector<1x1x10x8xbf16>
    tpu.vector_store %arg13[%c0_19, %c1, %c10_20, %c0_21], %45 {strides = array<i32>} : memref<2x2x110x8xbf16, #tpu.memory_space<vmem>>, vector<1x1x10x8xbf16>,
    %c0_22 = arith.constant 0 : index
    %c1_23 = arith.constant 1 : index
    %c0_24 = arith.constant 0 : index
    %c0_25 = arith.constant 0 : index
    %46 = vector.load %arg1[%c0_22, %c1_23, %c0_24, %c0_25] : memref<1x16x16x8xf32, #tpu.memory_space<vmem>>, vector<1x1x16x8xf32>
    %47 = vector.shape_cast %46 : vector<1x1x16x8xf32> to vector<16x8xf32>
    %48 = vector.broadcast %26 : vector<1x8xf32> to vector<16x8xf32>
    %49 = arith.subf %47, %48 : vector<16x8xf32>
    %50 = vector.broadcast %27 : vector<1x8xf32> to vector<16x8xf32>
    %51 = arith.mulf %49, %50 : vector<16x8xf32>
    %52 = arith.truncf %51 : vector<16x8xf32> to vector<16x8xbf16>
    %cst_26 = arith.constant dense<0.000000e+00> : vector<20x8xf32>
    %53 = tpu.matmul %25, %52, %cst_26 {dimension_numbers = #tpu.dot_dimension_numbers<[1], [0], [0], [1], [0, 0, 1, 1], [], []>} : vector<20x16xbf16>, vector<16x8xbf16>, vector<20x8xf32> -> vector<20x8xf32>
    %54 = vector.extract_strided_slice %53 {offsets = [0, 0], sizes = [10, 8], strides = [1, 1]} : vector<20x8xf32> to vector<10x8xf32>
    %55 = arith.truncf %54 : vector<10x8xf32> to vector<10x8xbf16>
    %c1_27 = arith.constant 1 : index
    %c0_28 = arith.constant 0 : index
    %c10_29 = arith.constant 10 : index
    %c0_30 = arith.constant 0 : index
    %56 = vector.load %arg13[%c1_27, %c0_28, %c10_29, %c0_30] : memref<2x2x110x8xbf16, #tpu.memory_space<vmem>>, vector<1x1x10x8xbf16>
    %57 = vector.shape_cast %56 : vector<1x1x10x8xbf16> to vector<10x8xbf16>
    %58 = vector.shape_cast %55 : vector<10x8xbf16> to vector<1x1x10x8xbf16>
    tpu.vector_store %arg13[%c1_27, %c0_28, %c10_29, %c0_30], %58 {strides = array<i32>} : memref<2x2x110x8xbf16, #tpu.memory_space<vmem>>, vector<1x1x10x8xbf16>,
    %59 = vector.extract_strided_slice %53 {offsets = [10, 0], sizes = [10, 8], strides = [1, 1]} : vector<20x8xf32> to vector<10x8xf32>
    %60 = arith.truncf %59 : vector<10x8xf32> to vector<10x8xbf16>
    %c1_31 = arith.constant 1 : index
    %c1_32 = arith.constant 1 : index
    %c10_33 = arith.constant 10 : index
    %c0_34 = arith.constant 0 : index
    %61 = vector.load %arg13[%c1_31, %c1_32, %c10_33, %c0_34] : memref<2x2x110x8xbf16, #tpu.memory_space<vmem>>, vector<1x1x10x8xbf16>
    %62 = vector.shape_cast %61 : vector<1x1x10x8xbf16> to vector<10x8xbf16>
    %63 = vector.shape_cast %60 : vector<10x8xbf16> to vector<1x1x10x8xbf16>
    tpu.vector_store %arg13[%c1_31, %c1_32, %c10_33, %c0_34], %63 {strides = array<i32>} : memref<2x2x110x8xbf16, #tpu.memory_space<vmem>>, vector<1x1x10x8xbf16>,
    %c0_35 = arith.constant 0 : index
    %c2 = arith.constant 2 : index
    %c0_36 = arith.constant 0 : index
    %c0_37 = arith.constant 0 : index
    %64 = vector.load %arg1[%c0_35, %c2, %c0_36, %c0_37] : memref<1x16x16x8xf32, #tpu.memory_space<vmem>>, vector<1x1x16x8xf32>
    %65 = vector.shape_cast %64 : vector<1x1x16x8xf32> to vector<16x8xf32>
    %66 = vector.broadcast %26 : vector<1x8xf32> to vector<16x8xf32>
    %67 = arith.subf %65, %66 : vector<16x8xf32>
    %68 = vector.broadcast %27 : vector<1x8xf32> to vector<16x8xf32>
    %69 = arith.mulf %67, %68 : vector<16x8xf32>
    %70 = arith.truncf %69 : vector<16x8xf32> to vector<16x8xbf16>
    %cst_38 = arith.constant dense<0.000000e+00> : vector<20x8xf32>
    %71 = tpu.matmul %25, %70, %cst_38 {dimension_numbers = #tpu.dot_dimension_numbers<[1], [0], [0], [1], [0, 0, 1, 1], [], []>} : vector<20x16xbf16>, vector<16x8xbf16>, vector<20x8xf32> -> vector<20x8xf32>
    %72 = vector.extract_strided_slice %71 {offsets = [0, 0], sizes = [10, 8], strides = [1, 1]} : vector<20x8xf32> to vector<10x8xf32>
    %73 = arith.truncf %72 : vector<10x8xf32> to vector<10x8xbf16>
    %c0_39 = arith.constant 0 : index
    %c0_40 = arith.constant 0 : index
    %c20 = arith.constant 20 : index
    %c0_41 = arith.constant 0 : index
    %74 = vector.load %arg13[%c0_39, %c0_40, %c20, %c0_41] : memref<2x2x110x8xbf16, #tpu.memory_space<vmem>>, vector<1x1x10x8xbf16>
    %75 = vector.shape_cast %74 : vector<1x1x10x8xbf16> to vector<10x8xbf16>
    %76 = vector.shape_cast %73 : vector<10x8xbf16> to vector<1x1x10x8xbf16>
    tpu.vector_store %arg13[%c0_39, %c0_40, %c20, %c0_41], %76 {strides = array<i32>} : memref<2x2x110x8xbf16, #tpu.memory_space<vmem>>, vector<1x1x10x8xbf16>,
    %77 = vector.extract_strided_slice %71 {offsets = [10, 0], sizes = [10, 8], strides = [1, 1]} : vector<20x8xf32> to vector<10x8xf32>
    %78 = arith.truncf %77 : vector<10x8xf32> to vector<10x8xbf16>
    %c0_42 = arith.constant 0 : index
    %c1_43 = arith.constant 1 : index
    %c20_44 = arith.constant 20 : index
    %c0_45 = arith.constant 0 : index
    %79 = vector.load %arg13[%c0_42, %c1_43, %c20_44, %c0_45] : memref<2x2x110x8xbf16, #tpu.memory_space<vmem>>, vector<1x1x10x8xbf16>
    %80 = vector.shape_cast %79 : vector<1x1x10x8xbf16> to vector<10x8xbf16>
    %81 = vector.shape_cast %78 : vector<10x8xbf16> to vector<1x1x10x8xbf16>
    tpu.vector_store %arg13[%c0_42, %c1_43, %c20_44, %c0_45], %81 {strides = array<i32>} : memref<2x2x110x8xbf16, #tpu.memory_space<vmem>>, vector<1x1x10x8xbf16>,
    %c0_46 = arith.constant 0 : index
    %c3 = arith.constant 3 : index
    %c0_47 = arith.constant 0 : index
    %c0_48 = arith.constant 0 : index
    %82 = vector.load %arg1[%c0_46, %c3, %c0_47, %c0_48] : memref<1x16x16x8xf32, #tpu.memory_space<vmem>>, vector<1x1x16x8xf32>
    %83 = vector.shape_cast %82 : vector<1x1x16x8xf32> to vector<16x8xf32>
    %84 = vector.broadcast %26 : vector<1x8xf32> to vector<16x8xf32>
    %85 = arith.subf %83, %84 : vector<16x8xf32>
    %86 = vector.broadcast %27 : vector<1x8xf32> to vector<16x8xf32>
    %87 = arith.mulf %85, %86 : vector<16x8xf32>
    %88 = arith.truncf %87 : vector<16x8xf32> to vector<16x8xbf16>
    %cst_49 = arith.constant dense<0.000000e+00> : vector<20x8xf32>
    %89 = tpu.matmul %25, %88, %cst_49 {dimension_numbers = #tpu.dot_dimension_numbers<[1], [0], [0], [1], [0, 0, 1, 1], [], []>} : vector<20x16xbf16>, vector<16x8xbf16>, vector<20x8xf32> -> vector<20x8xf32>
    %90 = vector.extract_strided_slice %89 {offsets = [0, 0], sizes = [10, 8], strides = [1, 1]} : vector<20x8xf32> to vector<10x8xf32>
    %91 = arith.truncf %90 : vector<10x8xf32> to vector<10x8xbf16>
    %c1_50 = arith.constant 1 : index
    %c0_51 = arith.constant 0 : index
    %c20_52 = arith.constant 20 : index
    %c0_53 = arith.constant 0 : index
    %92 = vector.load %arg13[%c1_50, %c0_51, %c20_52, %c0_53] : memref<2x2x110x8xbf16, #tpu.memory_space<vmem>>, vector<1x1x10x8xbf16>
    %93 = vector.shape_cast %92 : vector<1x1x10x8xbf16> to vector<10x8xbf16>
    %94 = vector.shape_cast %91 : vector<10x8xbf16> to vector<1x1x10x8xbf16>
    tpu.vector_store %arg13[%c1_50, %c0_51, %c20_52, %c0_53], %94 {strides = array<i32>} : memref<2x2x110x8xbf16, #tpu.memory_space<vmem>>, vector<1x1x10x8xbf16>,
    %95 = vector.extract_strided_slice %89 {offsets = [10, 0], sizes = [10, 8], strides = [1, 1]} : vector<20x8xf32> to vector<10x8xf32>
    %96 = arith.truncf %95 : vector<10x8xf32> to vector<10x8xbf16>
    %c1_54 = arith.constant 1 : index
    %c1_55 = arith.constant 1 : index
    %c20_56 = arith.constant 20 : index
    %c0_57 = arith.constant 0 : index
    %97 = vector.load %arg13[%c1_54, %c1_55, %c20_56, %c0_57] : memref<2x2x110x8xbf16, #tpu.memory_space<vmem>>, vector<1x1x10x8xbf16>
    %98 = vector.shape_cast %97 : vector<1x1x10x8xbf16> to vector<10x8xbf16>
    %99 = vector.shape_cast %96 : vector<10x8xbf16> to vector<1x1x10x8xbf16>
    tpu.vector_store %arg13[%c1_54, %c1_55, %c20_56, %c0_57], %99 {strides = array<i32>} : memref<2x2x110x8xbf16, #tpu.memory_space<vmem>>, vector<1x1x10x8xbf16>,
    %c0_58 = arith.constant 0 : index
    %c4 = arith.constant 4 : index
    %c0_59 = arith.constant 0 : index
    %c0_60 = arith.constant 0 : index
    %100 = vector.load %arg1[%c0_58, %c4, %c0_59, %c0_60] : memref<1x16x16x8xf32, #tpu.memory_space<vmem>>, vector<1x1x16x8xf32>
    %101 = vector.shape_cast %100 : vector<1x1x16x8xf32> to vector<16x8xf32>
    %102 = vector.broadcast %26 : vector<1x8xf32> to vector<16x8xf32>
    %103 = arith.subf %101, %102 : vector<16x8xf32>
    %104 = vector.broadcast %27 : vector<1x8xf32> to vector<16x8xf32>
    %105 = arith.mulf %103, %104 : vector<16x8xf32>
    %106 = arith.truncf %105 : vector<16x8xf32> to vector<16x8xbf16>
    %cst_61 = arith.constant dense<0.000000e+00> : vector<20x8xf32>
    %107 = tpu.matmul %25, %106, %cst_61 {dimension_numbers = #tpu.dot_dimension_numbers<[1], [0], [0], [1], [0, 0, 1, 1], [], []>} : vector<20x16xbf16>, vector<16x8xbf16>, vector<20x8xf32> -> vector<20x8xf32>
    %108 = vector.extract_strided_slice %107 {offsets = [0, 0], sizes = [10, 8], strides = [1, 1]} : vector<20x8xf32> to vector<10x8xf32>
    %109 = arith.truncf %108 : vector<10x8xf32> to vector<10x8xbf16>
    %c0_62 = arith.constant 0 : index
    %c0_63 = arith.constant 0 : index
    %c30 = arith.constant 30 : index
    %c0_64 = arith.constant 0 : index
    %110 = vector.load %arg13[%c0_62, %c0_63, %c30, %c0_64] : memref<2x2x110x8xbf16, #tpu.memory_space<vmem>>, vector<1x1x10x8xbf16>
    %111 = vector.shape_cast %110 : vector<1x1x10x8xbf16> to vector<10x8xbf16>
    %112 = vector.shape_cast %109 : vector<10x8xbf16> to vector<1x1x10x8xbf16>
    tpu.vector_store %arg13[%c0_62, %c0_63, %c30, %c0_64], %112 {strides = array<i32>} : memref<2x2x110x8xbf16, #tpu.memory_space<vmem>>, vector<1x1x10x8xbf16>,
    %113 = vector.extract_strided_slice %107 {offsets = [10, 0], sizes = [10, 8], strides = [1, 1]} : vector<20x8xf32> to vector<10x8xf32>
    %114 = arith.truncf %113 : vector<10x8xf32> to vector<10x8xbf16>
    %c0_65 = arith.constant 0 : index
    %c1_66 = arith.constant 1 : index
    %c30_67 = arith.constant 30 : index
    %c0_68 = arith.constant 0 : index
    %115 = vector.load %arg13[%c0_65, %c1_66, %c30_67, %c0_68] : memref<2x2x110x8xbf16, #tpu.memory_space<vmem>>, vector<1x1x10x8xbf16>
    %116 = vector.shape_cast %115 : vector<1x1x10x8xbf16> to vector<10x8xbf16>
    %117 = vector.shape_cast %114 : vector<10x8xbf16> to vector<1x1x10x8xbf16>
    tpu.vector_store %arg13[%c0_65, %c1_66, %c30_67, %c0_68], %117 {strides = array<i32>} : memref<2x2x110x8xbf16, #tpu.memory_space<vmem>>, vector<1x1x10x8xbf16>,
    %c0_69 = arith.constant 0 : index
    %c5 = arith.constant 5 : index
    %c0_70 = arith.constant 0 : index
    %c0_71 = arith.constant 0 : index
    %118 = vector.load %arg1[%c0_69, %c5, %c0_70, %c0_71] : memref<1x16x16x8xf32, #tpu.memory_space<vmem>>, vector<1x1x16x8xf32>
    %119 = vector.shape_cast %118 : vector<1x1x16x8xf32> to vector<16x8xf32>
    %120 = vector.broadcast %26 : vector<1x8xf32> to vector<16x8xf32>
    %121 = arith.subf %119, %120 : vector<16x8xf32>
    %122 = vector.broadcast %27 : vector<1x8xf32> to vector<16x8xf32>
    %123 = arith.mulf %121, %122 : vector<16x8xf32>
    %124 = arith.truncf %123 : vector<16x8xf32> to vector<16x8xbf16>
    %cst_72 = arith.constant dense<0.000000e+00> : vector<20x8xf32>
    %125 = tpu.matmul %25, %124, %cst_72 {dimension_numbers = #tpu.dot_dimension_numbers<[1], [0], [0], [1], [0, 0, 1, 1], [], []>} : vector<20x16xbf16>, vector<16x8xbf16>, vector<20x8xf32> -> vector<20x8xf32>
    %126 = vector.extract_strided_slice %125 {offsets = [0, 0], sizes = [10, 8], strides = [1, 1]} : vector<20x8xf32> to vector<10x8xf32>
    %127 = arith.truncf %126 : vector<10x8xf32> to vector<10x8xbf16>
    %c1_73 = arith.constant 1 : index
    %c0_74 = arith.constant 0 : index
    %c30_75 = arith.constant 30 : index
    %c0_76 = arith.constant 0 : index
    %128 = vector.load %arg13[%c1_73, %c0_74, %c30_75, %c0_76] : memref<2x2x110x8xbf16, #tpu.memory_space<vmem>>, vector<1x1x10x8xbf16>
    %129 = vector.shape_cast %128 : vector<1x1x10x8xbf16> to vector<10x8xbf16>
    %130 = vector.shape_cast %127 : vector<10x8xbf16> to vector<1x1x10x8xbf16>
    tpu.vector_store %arg13[%c1_73, %c0_74, %c30_75, %c0_76], %130 {strides = array<i32>} : memref<2x2x110x8xbf16, #tpu.memory_space<vmem>>, vector<1x1x10x8xbf16>,
    %131 = vector.extract_strided_slice %125 {offsets = [10, 0], sizes = [10, 8], strides = [1, 1]} : vector<20x8xf32> to vector<10x8xf32>
    %132 = arith.truncf %131 : vector<10x8xf32> to vector<10x8xbf16>
    %c1_77 = arith.constant 1 : index
    %c1_78 = arith.constant 1 : index
    %c30_79 = arith.constant 30 : index
    %c0_80 = arith.constant 0 : index
    %133 = vector.load %arg13[%c1_77, %c1_78, %c30_79, %c0_80] : memref<2x2x110x8xbf16, #tpu.memory_space<vmem>>, vector<1x1x10x8xbf16>
    %134 = vector.shape_cast %133 : vector<1x1x10x8xbf16> to vector<10x8xbf16>
    %135 = vector.shape_cast %132 : vector<10x8xbf16> to vector<1x1x10x8xbf16>
    tpu.vector_store %arg13[%c1_77, %c1_78, %c30_79, %c0_80], %135 {strides = array<i32>} : memref<2x2x110x8xbf16, #tpu.memory_space<vmem>>, vector<1x1x10x8xbf16>,
    %c0_81 = arith.constant 0 : index
    %c6 = arith.constant 6 : index
    %c0_82 = arith.constant 0 : index
    %c0_83 = arith.constant 0 : index
    %136 = vector.load %arg1[%c0_81, %c6, %c0_82, %c0_83] : memref<1x16x16x8xf32, #tpu.memory_space<vmem>>, vector<1x1x16x8xf32>
    %137 = vector.shape_cast %136 : vector<1x1x16x8xf32> to vector<16x8xf32>
    %138 = vector.broadcast %26 : vector<1x8xf32> to vector<16x8xf32>
    %139 = arith.subf %137, %138 : vector<16x8xf32>
    %140 = vector.broadcast %27 : vector<1x8xf32> to vector<16x8xf32>
    %141 = arith.mulf %139, %140 : vector<16x8xf32>
    %142 = arith.truncf %141 : vector<16x8xf32> to vector<16x8xbf16>
    %cst_84 = arith.constant dense<0.000000e+00> : vector<20x8xf32>
    %143 = tpu.matmul %25, %142, %cst_84 {dimension_numbers = #tpu.dot_dimension_numbers<[1], [0], [0], [1], [0, 0, 1, 1], [], []>} : vector<20x16xbf16>, vector<16x8xbf16>, vector<20x8xf32> -> vector<20x8xf32>
    %144 = vector.extract_strided_slice %143 {offsets = [0, 0], sizes = [10, 8], strides = [1, 1]} : vector<20x8xf32> to vector<10x8xf32>
    %145 = arith.truncf %144 : vector<10x8xf32> to vector<10x8xbf16>
    %c0_85 = arith.constant 0 : index
    %c0_86 = arith.constant 0 : index
    %c40 = arith.constant 40 : index
    %c0_87 = arith.constant 0 : index
    %146 = vector.load %arg13[%c0_85, %c0_86, %c40, %c0_87] : memref<2x2x110x8xbf16, #tpu.memory_space<vmem>>, vector<1x1x10x8xbf16>
    %147 = vector.shape_cast %146 : vector<1x1x10x8xbf16> to vector<10x8xbf16>
    %148 = vector.shape_cast %145 : vector<10x8xbf16> to vector<1x1x10x8xbf16>
    tpu.vector_store %arg13[%c0_85, %c0_86, %c40, %c0_87], %148 {strides = array<i32>} : memref<2x2x110x8xbf16, #tpu.memory_space<vmem>>, vector<1x1x10x8xbf16>,
    %149 = vector.extract_strided_slice %143 {offsets = [10, 0], sizes = [10, 8], strides = [1, 1]} : vector<20x8xf32> to vector<10x8xf32>
    %150 = arith.truncf %149 : vector<10x8xf32> to vector<10x8xbf16>
    %c0_88 = arith.constant 0 : index
    %c1_89 = arith.constant 1 : index
    %c40_90 = arith.constant 40 : index
    %c0_91 = arith.constant 0 : index
    %151 = vector.load %arg13[%c0_88, %c1_89, %c40_90, %c0_91] : memref<2x2x110x8xbf16, #tpu.memory_space<vmem>>, vector<1x1x10x8xbf16>
    %152 = vector.shape_cast %151 : vector<1x1x10x8xbf16> to vector<10x8xbf16>
    %153 = vector.shape_cast %150 : vector<10x8xbf16> to vector<1x1x10x8xbf16>
    tpu.vector_store %arg13[%c0_88, %c1_89, %c40_90, %c0_91], %153 {strides = array<i32>} : memref<2x2x110x8xbf16, #tpu.memory_space<vmem>>, vector<1x1x10x8xbf16>,
    %c0_92 = arith.constant 0 : index
    %c7 = arith.constant 7 : index
    %c0_93 = arith.constant 0 : index
    %c0_94 = arith.constant 0 : index
    %154 = vector.load %arg1[%c0_92, %c7, %c0_93, %c0_94] : memref<1x16x16x8xf32, #tpu.memory_space<vmem>>, vector<1x1x16x8xf32>
    %155 = vector.shape_cast %154 : vector<1x1x16x8xf32> to vector<16x8xf32>
    %156 = vector.broadcast %26 : vector<1x8xf32> to vector<16x8xf32>
    %157 = arith.subf %155, %156 : vector<16x8xf32>
    %158 = vector.broadcast %27 : vector<1x8xf32> to vector<16x8xf32>
    %159 = arith.mulf %157, %158 : vector<16x8xf32>
    %160 = arith.truncf %159 : vector<16x8xf32> to vector<16x8xbf16>
    %cst_95 = arith.constant dense<0.000000e+00> : vector<20x8xf32>
    %161 = tpu.matmul %25, %160, %cst_95 {dimension_numbers = #tpu.dot_dimension_numbers<[1], [0], [0], [1], [0, 0, 1, 1], [], []>} : vector<20x16xbf16>, vector<16x8xbf16>, vector<20x8xf32> -> vector<20x8xf32>
    %162 = vector.extract_strided_slice %161 {offsets = [0, 0], sizes = [10, 8], strides = [1, 1]} : vector<20x8xf32> to vector<10x8xf32>
    %163 = arith.truncf %162 : vector<10x8xf32> to vector<10x8xbf16>
    %c1_96 = arith.constant 1 : index
    %c0_97 = arith.constant 0 : index
    %c40_98 = arith.constant 40 : index
    %c0_99 = arith.constant 0 : index
    %164 = vector.load %arg13[%c1_96, %c0_97, %c40_98, %c0_99] : memref<2x2x110x8xbf16, #tpu.memory_space<vmem>>, vector<1x1x10x8xbf16>
    %165 = vector.shape_cast %164 : vector<1x1x10x8xbf16> to vector<10x8xbf16>
    %166 = vector.shape_cast %163 : vector<10x8xbf16> to vector<1x1x10x8xbf16>
    tpu.vector_store %arg13[%c1_96, %c0_97, %c40_98, %c0_99], %166 {strides = array<i32>} : memref<2x2x110x8xbf16, #tpu.memory_space<vmem>>, vector<1x1x10x8xbf16>,
    %167 = vector.extract_strided_slice %161 {offsets = [10, 0], sizes = [10, 8], strides = [1, 1]} : vector<20x8xf32> to vector<10x8xf32>
    %168 = arith.truncf %167 : vector<10x8xf32> to vector<10x8xbf16>
    %c1_100 = arith.constant 1 : index
    %c1_101 = arith.constant 1 : index
    %c40_102 = arith.constant 40 : index
    %c0_103 = arith.constant 0 : index
    %169 = vector.load %arg13[%c1_100, %c1_101, %c40_102, %c0_103] : memref<2x2x110x8xbf16, #tpu.memory_space<vmem>>, vector<1x1x10x8xbf16>
    %170 = vector.shape_cast %169 : vector<1x1x10x8xbf16> to vector<10x8xbf16>
    %171 = vector.shape_cast %168 : vector<10x8xbf16> to vector<1x1x10x8xbf16>
    tpu.vector_store %arg13[%c1_100, %c1_101, %c40_102, %c0_103], %171 {strides = array<i32>} : memref<2x2x110x8xbf16, #tpu.memory_space<vmem>>, vector<1x1x10x8xbf16>,
    %c0_104 = arith.constant 0 : index
    %c8 = arith.constant 8 : index
    %c0_105 = arith.constant 0 : index
    %c0_106 = arith.constant 0 : index
    %172 = vector.load %arg1[%c0_104, %c8, %c0_105, %c0_106] : memref<1x16x16x8xf32, #tpu.memory_space<vmem>>, vector<1x1x16x8xf32>
    %173 = vector.shape_cast %172 : vector<1x1x16x8xf32> to vector<16x8xf32>
    %174 = vector.broadcast %26 : vector<1x8xf32> to vector<16x8xf32>
    %175 = arith.subf %173, %174 : vector<16x8xf32>
    %176 = vector.broadcast %27 : vector<1x8xf32> to vector<16x8xf32>
    %177 = arith.mulf %175, %176 : vector<16x8xf32>
    %178 = arith.truncf %177 : vector<16x8xf32> to vector<16x8xbf16>
    %cst_107 = arith.constant dense<0.000000e+00> : vector<20x8xf32>
    %179 = tpu.matmul %25, %178, %cst_107 {dimension_numbers = #tpu.dot_dimension_numbers<[1], [0], [0], [1], [0, 0, 1, 1], [], []>} : vector<20x16xbf16>, vector<16x8xbf16>, vector<20x8xf32> -> vector<20x8xf32>
    %180 = vector.extract_strided_slice %179 {offsets = [0, 0], sizes = [10, 8], strides = [1, 1]} : vector<20x8xf32> to vector<10x8xf32>
    %181 = arith.truncf %180 : vector<10x8xf32> to vector<10x8xbf16>
    %c0_108 = arith.constant 0 : index
    %c0_109 = arith.constant 0 : index
    %c50 = arith.constant 50 : index
    %c0_110 = arith.constant 0 : index
    %182 = vector.load %arg13[%c0_108, %c0_109, %c50, %c0_110] : memref<2x2x110x8xbf16, #tpu.memory_space<vmem>>, vector<1x1x10x8xbf16>
    %183 = vector.shape_cast %182 : vector<1x1x10x8xbf16> to vector<10x8xbf16>
    %184 = vector.shape_cast %181 : vector<10x8xbf16> to vector<1x1x10x8xbf16>
    tpu.vector_store %arg13[%c0_108, %c0_109, %c50, %c0_110], %184 {strides = array<i32>} : memref<2x2x110x8xbf16, #tpu.memory_space<vmem>>, vector<1x1x10x8xbf16>,
    %185 = vector.extract_strided_slice %179 {offsets = [10, 0], sizes = [10, 8], strides = [1, 1]} : vector<20x8xf32> to vector<10x8xf32>
    %186 = arith.truncf %185 : vector<10x8xf32> to vector<10x8xbf16>
    %c0_111 = arith.constant 0 : index
    %c1_112 = arith.constant 1 : index
    %c50_113 = arith.constant 50 : index
    %c0_114 = arith.constant 0 : index
    %187 = vector.load %arg13[%c0_111, %c1_112, %c50_113, %c0_114] : memref<2x2x110x8xbf16, #tpu.memory_space<vmem>>, vector<1x1x10x8xbf16>
    %188 = vector.shape_cast %187 : vector<1x1x10x8xbf16> to vector<10x8xbf16>
    %189 = vector.shape_cast %186 : vector<10x8xbf16> to vector<1x1x10x8xbf16>
    tpu.vector_store %arg13[%c0_111, %c1_112, %c50_113, %c0_114], %189 {strides = array<i32>} : memref<2x2x110x8xbf16, #tpu.memory_space<vmem>>, vector<1x1x10x8xbf16>,
    %c0_115 = arith.constant 0 : index
    %c9 = arith.constant 9 : index
    %c0_116 = arith.constant 0 : index
    %c0_117 = arith.constant 0 : index
    %190 = vector.load %arg1[%c0_115, %c9, %c0_116, %c0_117] : memref<1x16x16x8xf32, #tpu.memory_space<vmem>>, vector<1x1x16x8xf32>
    %191 = vector.shape_cast %190 : vector<1x1x16x8xf32> to vector<16x8xf32>
    %192 = vector.broadcast %26 : vector<1x8xf32> to vector<16x8xf32>
    %193 = arith.subf %191, %192 : vector<16x8xf32>
    %194 = vector.broadcast %27 : vector<1x8xf32> to vector<16x8xf32>
    %195 = arith.mulf %193, %194 : vector<16x8xf32>
    %196 = arith.truncf %195 : vector<16x8xf32> to vector<16x8xbf16>
    %cst_118 = arith.constant dense<0.000000e+00> : vector<20x8xf32>
    %197 = tpu.matmul %25, %196, %cst_118 {dimension_numbers = #tpu.dot_dimension_numbers<[1], [0], [0], [1], [0, 0, 1, 1], [], []>} : vector<20x16xbf16>, vector<16x8xbf16>, vector<20x8xf32> -> vector<20x8xf32>
    %198 = vector.extract_strided_slice %197 {offsets = [0, 0], sizes = [10, 8], strides = [1, 1]} : vector<20x8xf32> to vector<10x8xf32>
    %199 = arith.truncf %198 : vector<10x8xf32> to vector<10x8xbf16>
    %c1_119 = arith.constant 1 : index
    %c0_120 = arith.constant 0 : index
    %c50_121 = arith.constant 50 : index
    %c0_122 = arith.constant 0 : index
    %200 = vector.load %arg13[%c1_119, %c0_120, %c50_121, %c0_122] : memref<2x2x110x8xbf16, #tpu.memory_space<vmem>>, vector<1x1x10x8xbf16>
    %201 = vector.shape_cast %200 : vector<1x1x10x8xbf16> to vector<10x8xbf16>
    %202 = vector.shape_cast %199 : vector<10x8xbf16> to vector<1x1x10x8xbf16>
    tpu.vector_store %arg13[%c1_119, %c0_120, %c50_121, %c0_122], %202 {strides = array<i32>} : memref<2x2x110x8xbf16, #tpu.memory_space<vmem>>, vector<1x1x10x8xbf16>,
    %203 = vector.extract_strided_slice %197 {offsets = [10, 0], sizes = [10, 8], strides = [1, 1]} : vector<20x8xf32> to vector<10x8xf32>
    %204 = arith.truncf %203 : vector<10x8xf32> to vector<10x8xbf16>
    %c1_123 = arith.constant 1 : index
    %c1_124 = arith.constant 1 : index
    %c50_125 = arith.constant 50 : index
    %c0_126 = arith.constant 0 : index
    %205 = vector.load %arg13[%c1_123, %c1_124, %c50_125, %c0_126] : memref<2x2x110x8xbf16, #tpu.memory_space<vmem>>, vector<1x1x10x8xbf16>
    %206 = vector.shape_cast %205 : vector<1x1x10x8xbf16> to vector<10x8xbf16>
    %207 = vector.shape_cast %204 : vector<10x8xbf16> to vector<1x1x10x8xbf16>
    tpu.vector_store %arg13[%c1_123, %c1_124, %c50_125, %c0_126], %207 {strides = array<i32>} : memref<2x2x110x8xbf16, #tpu.memory_space<vmem>>, vector<1x1x10x8xbf16>,
    %c0_127 = arith.constant 0 : index
    %c10_128 = arith.constant 10 : index
    %c0_129 = arith.constant 0 : index
    %c0_130 = arith.constant 0 : index
    %208 = vector.load %arg1[%c0_127, %c10_128, %c0_129, %c0_130] : memref<1x16x16x8xf32, #tpu.memory_space<vmem>>, vector<1x1x16x8xf32>
    %209 = vector.shape_cast %208 : vector<1x1x16x8xf32> to vector<16x8xf32>
    %210 = vector.broadcast %26 : vector<1x8xf32> to vector<16x8xf32>
    %211 = arith.subf %209, %210 : vector<16x8xf32>
    %212 = vector.broadcast %27 : vector<1x8xf32> to vector<16x8xf32>
    %213 = arith.mulf %211, %212 : vector<16x8xf32>
    %214 = arith.truncf %213 : vector<16x8xf32> to vector<16x8xbf16>
    %cst_131 = arith.constant dense<0.000000e+00> : vector<20x8xf32>
    %215 = tpu.matmul %25, %214, %cst_131 {dimension_numbers = #tpu.dot_dimension_numbers<[1], [0], [0], [1], [0, 0, 1, 1], [], []>} : vector<20x16xbf16>, vector<16x8xbf16>, vector<20x8xf32> -> vector<20x8xf32>
    %216 = vector.extract_strided_slice %215 {offsets = [0, 0], sizes = [10, 8], strides = [1, 1]} : vector<20x8xf32> to vector<10x8xf32>
    %217 = arith.truncf %216 : vector<10x8xf32> to vector<10x8xbf16>
    %c0_132 = arith.constant 0 : index
    %c0_133 = arith.constant 0 : index
    %c60 = arith.constant 60 : index
    %c0_134 = arith.constant 0 : index
    %218 = vector.load %arg13[%c0_132, %c0_133, %c60, %c0_134] : memref<2x2x110x8xbf16, #tpu.memory_space<vmem>>, vector<1x1x10x8xbf16>
    %219 = vector.shape_cast %218 : vector<1x1x10x8xbf16> to vector<10x8xbf16>
    %220 = vector.shape_cast %217 : vector<10x8xbf16> to vector<1x1x10x8xbf16>
    tpu.vector_store %arg13[%c0_132, %c0_133, %c60, %c0_134], %220 {strides = array<i32>} : memref<2x2x110x8xbf16, #tpu.memory_space<vmem>>, vector<1x1x10x8xbf16>,
    %221 = vector.extract_strided_slice %215 {offsets = [10, 0], sizes = [10, 8], strides = [1, 1]} : vector<20x8xf32> to vector<10x8xf32>
    %222 = arith.truncf %221 : vector<10x8xf32> to vector<10x8xbf16>
    %c0_135 = arith.constant 0 : index
    %c1_136 = arith.constant 1 : index
    %c60_137 = arith.constant 60 : index
    %c0_138 = arith.constant 0 : index
    %223 = vector.load %arg13[%c0_135, %c1_136, %c60_137, %c0_138] : memref<2x2x110x8xbf16, #tpu.memory_space<vmem>>, vector<1x1x10x8xbf16>
    %224 = vector.shape_cast %223 : vector<1x1x10x8xbf16> to vector<10x8xbf16>
    %225 = vector.shape_cast %222 : vector<10x8xbf16> to vector<1x1x10x8xbf16>
    tpu.vector_store %arg13[%c0_135, %c1_136, %c60_137, %c0_138], %225 {strides = array<i32>} : memref<2x2x110x8xbf16, #tpu.memory_space<vmem>>, vector<1x1x10x8xbf16>,
    %c0_139 = arith.constant 0 : index
    %c11 = arith.constant 11 : index
    %c0_140 = arith.constant 0 : index
    %c0_141 = arith.constant 0 : index
    %226 = vector.load %arg1[%c0_139, %c11, %c0_140, %c0_141] : memref<1x16x16x8xf32, #tpu.memory_space<vmem>>, vector<1x1x16x8xf32>
    %227 = vector.shape_cast %226 : vector<1x1x16x8xf32> to vector<16x8xf32>
    %228 = vector.broadcast %26 : vector<1x8xf32> to vector<16x8xf32>
    %229 = arith.subf %227, %228 : vector<16x8xf32>
    %230 = vector.broadcast %27 : vector<1x8xf32> to vector<16x8xf32>
    %231 = arith.mulf %229, %230 : vector<16x8xf32>
    %232 = arith.truncf %231 : vector<16x8xf32> to vector<16x8xbf16>
    %cst_142 = arith.constant dense<0.000000e+00> : vector<20x8xf32>
    %233 = tpu.matmul %25, %232, %cst_142 {dimension_numbers = #tpu.dot_dimension_numbers<[1], [0], [0], [1], [0, 0, 1, 1], [], []>} : vector<20x16xbf16>, vector<16x8xbf16>, vector<20x8xf32> -> vector<20x8xf32>
    %234 = vector.extract_strided_slice %233 {offsets = [0, 0], sizes = [10, 8], strides = [1, 1]} : vector<20x8xf32> to vector<10x8xf32>
    %235 = arith.truncf %234 : vector<10x8xf32> to vector<10x8xbf16>
    %c1_143 = arith.constant 1 : index
    %c0_144 = arith.constant 0 : index
    %c60_145 = arith.constant 60 : index
    %c0_146 = arith.constant 0 : index
    %236 = vector.load %arg13[%c1_143, %c0_144, %c60_145, %c0_146] : memref<2x2x110x8xbf16, #tpu.memory_space<vmem>>, vector<1x1x10x8xbf16>
    %237 = vector.shape_cast %236 : vector<1x1x10x8xbf16> to vector<10x8xbf16>
    %238 = vector.shape_cast %235 : vector<10x8xbf16> to vector<1x1x10x8xbf16>
    tpu.vector_store %arg13[%c1_143, %c0_144, %c60_145, %c0_146], %238 {strides = array<i32>} : memref<2x2x110x8xbf16, #tpu.memory_space<vmem>>, vector<1x1x10x8xbf16>,
    %239 = vector.extract_strided_slice %233 {offsets = [10, 0], sizes = [10, 8], strides = [1, 1]} : vector<20x8xf32> to vector<10x8xf32>
    %240 = arith.truncf %239 : vector<10x8xf32> to vector<10x8xbf16>
    %c1_147 = arith.constant 1 : index
    %c1_148 = arith.constant 1 : index
    %c60_149 = arith.constant 60 : index
    %c0_150 = arith.constant 0 : index
    %241 = vector.load %arg13[%c1_147, %c1_148, %c60_149, %c0_150] : memref<2x2x110x8xbf16, #tpu.memory_space<vmem>>, vector<1x1x10x8xbf16>
    %242 = vector.shape_cast %241 : vector<1x1x10x8xbf16> to vector<10x8xbf16>
    %243 = vector.shape_cast %240 : vector<10x8xbf16> to vector<1x1x10x8xbf16>
    tpu.vector_store %arg13[%c1_147, %c1_148, %c60_149, %c0_150], %243 {strides = array<i32>} : memref<2x2x110x8xbf16, #tpu.memory_space<vmem>>, vector<1x1x10x8xbf16>,
    %c0_151 = arith.constant 0 : index
    %c12 = arith.constant 12 : index
    %c0_152 = arith.constant 0 : index
    %c0_153 = arith.constant 0 : index
    %244 = vector.load %arg1[%c0_151, %c12, %c0_152, %c0_153] : memref<1x16x16x8xf32, #tpu.memory_space<vmem>>, vector<1x1x16x8xf32>
    %245 = vector.shape_cast %244 : vector<1x1x16x8xf32> to vector<16x8xf32>
    %246 = vector.broadcast %26 : vector<1x8xf32> to vector<16x8xf32>
    %247 = arith.subf %245, %246 : vector<16x8xf32>
    %248 = vector.broadcast %27 : vector<1x8xf32> to vector<16x8xf32>
    %249 = arith.mulf %247, %248 : vector<16x8xf32>
    %250 = arith.truncf %249 : vector<16x8xf32> to vector<16x8xbf16>
    %cst_154 = arith.constant dense<0.000000e+00> : vector<20x8xf32>
    %251 = tpu.matmul %25, %250, %cst_154 {dimension_numbers = #tpu.dot_dimension_numbers<[1], [0], [0], [1], [0, 0, 1, 1], [], []>} : vector<20x16xbf16>, vector<16x8xbf16>, vector<20x8xf32> -> vector<20x8xf32>
    %252 = vector.extract_strided_slice %251 {offsets = [0, 0], sizes = [10, 8], strides = [1, 1]} : vector<20x8xf32> to vector<10x8xf32>
    %253 = arith.truncf %252 : vector<10x8xf32> to vector<10x8xbf16>
    %c0_155 = arith.constant 0 : index
    %c0_156 = arith.constant 0 : index
    %c70 = arith.constant 70 : index
    %c0_157 = arith.constant 0 : index
    %254 = vector.load %arg13[%c0_155, %c0_156, %c70, %c0_157] : memref<2x2x110x8xbf16, #tpu.memory_space<vmem>>, vector<1x1x10x8xbf16>
    %255 = vector.shape_cast %254 : vector<1x1x10x8xbf16> to vector<10x8xbf16>
    %256 = vector.shape_cast %253 : vector<10x8xbf16> to vector<1x1x10x8xbf16>
    tpu.vector_store %arg13[%c0_155, %c0_156, %c70, %c0_157], %256 {strides = array<i32>} : memref<2x2x110x8xbf16, #tpu.memory_space<vmem>>, vector<1x1x10x8xbf16>,
    %257 = vector.extract_strided_slice %251 {offsets = [10, 0], sizes = [10, 8], strides = [1, 1]} : vector<20x8xf32> to vector<10x8xf32>
    %258 = arith.truncf %257 : vector<10x8xf32> to vector<10x8xbf16>
    %c0_158 = arith.constant 0 : index
    %c1_159 = arith.constant 1 : index
    %c70_160 = arith.constant 70 : index
    %c0_161 = arith.constant 0 : index
    %259 = vector.load %arg13[%c0_158, %c1_159, %c70_160, %c0_161] : memref<2x2x110x8xbf16, #tpu.memory_space<vmem>>, vector<1x1x10x8xbf16>
    %260 = vector.shape_cast %259 : vector<1x1x10x8xbf16> to vector<10x8xbf16>
    %261 = vector.shape_cast %258 : vector<10x8xbf16> to vector<1x1x10x8xbf16>
    tpu.vector_store %arg13[%c0_158, %c1_159, %c70_160, %c0_161], %261 {strides = array<i32>} : memref<2x2x110x8xbf16, #tpu.memory_space<vmem>>, vector<1x1x10x8xbf16>,
    %c0_162 = arith.constant 0 : index
    %c13 = arith.constant 13 : index
    %c0_163 = arith.constant 0 : index
    %c0_164 = arith.constant 0 : index
    %262 = vector.load %arg1[%c0_162, %c13, %c0_163, %c0_164] : memref<1x16x16x8xf32, #tpu.memory_space<vmem>>, vector<1x1x16x8xf32>
    %263 = vector.shape_cast %262 : vector<1x1x16x8xf32> to vector<16x8xf32>
    %264 = vector.broadcast %26 : vector<1x8xf32> to vector<16x8xf32>
    %265 = arith.subf %263, %264 : vector<16x8xf32>
    %266 = vector.broadcast %27 : vector<1x8xf32> to vector<16x8xf32>
    %267 = arith.mulf %265, %266 : vector<16x8xf32>
    %268 = arith.truncf %267 : vector<16x8xf32> to vector<16x8xbf16>
    %cst_165 = arith.constant dense<0.000000e+00> : vector<20x8xf32>
    %269 = tpu.matmul %25, %268, %cst_165 {dimension_numbers = #tpu.dot_dimension_numbers<[1], [0], [0], [1], [0, 0, 1, 1], [], []>} : vector<20x16xbf16>, vector<16x8xbf16>, vector<20x8xf32> -> vector<20x8xf32>
    %270 = vector.extract_strided_slice %269 {offsets = [0, 0], sizes = [10, 8], strides = [1, 1]} : vector<20x8xf32> to vector<10x8xf32>
    %271 = arith.truncf %270 : vector<10x8xf32> to vector<10x8xbf16>
    %c1_166 = arith.constant 1 : index
    %c0_167 = arith.constant 0 : index
    %c70_168 = arith.constant 70 : index
    %c0_169 = arith.constant 0 : index
    %272 = vector.load %arg13[%c1_166, %c0_167, %c70_168, %c0_169] : memref<2x2x110x8xbf16, #tpu.memory_space<vmem>>, vector<1x1x10x8xbf16>
    %273 = vector.shape_cast %272 : vector<1x1x10x8xbf16> to vector<10x8xbf16>
    %274 = vector.shape_cast %271 : vector<10x8xbf16> to vector<1x1x10x8xbf16>
    tpu.vector_store %arg13[%c1_166, %c0_167, %c70_168, %c0_169], %274 {strides = array<i32>} : memref<2x2x110x8xbf16, #tpu.memory_space<vmem>>, vector<1x1x10x8xbf16>,
    %275 = vector.extract_strided_slice %269 {offsets = [10, 0], sizes = [10, 8], strides = [1, 1]} : vector<20x8xf32> to vector<10x8xf32>
    %276 = arith.truncf %275 : vector<10x8xf32> to vector<10x8xbf16>
    %c1_170 = arith.constant 1 : index
    %c1_171 = arith.constant 1 : index
    %c70_172 = arith.constant 70 : index
    %c0_173 = arith.constant 0 : index
    %277 = vector.load %arg13[%c1_170, %c1_171, %c70_172, %c0_173] : memref<2x2x110x8xbf16, #tpu.memory_space<vmem>>, vector<1x1x10x8xbf16>
    %278 = vector.shape_cast %277 : vector<1x1x10x8xbf16> to vector<10x8xbf16>
    %279 = vector.shape_cast %276 : vector<10x8xbf16> to vector<1x1x10x8xbf16>
    tpu.vector_store %arg13[%c1_170, %c1_171, %c70_172, %c0_173], %279 {strides = array<i32>} : memref<2x2x110x8xbf16, #tpu.memory_space<vmem>>, vector<1x1x10x8xbf16>,
    %c0_174 = arith.constant 0 : index
    %c14 = arith.constant 14 : index
    %c0_175 = arith.constant 0 : index
    %c0_176 = arith.constant 0 : index
    %280 = vector.load %arg1[%c0_174, %c14, %c0_175, %c0_176] : memref<1x16x16x8xf32, #tpu.memory_space<vmem>>, vector<1x1x16x8xf32>
    %281 = vector.shape_cast %280 : vector<1x1x16x8xf32> to vector<16x8xf32>
    %282 = vector.broadcast %26 : vector<1x8xf32> to vector<16x8xf32>
    %283 = arith.subf %281, %282 : vector<16x8xf32>
    %284 = vector.broadcast %27 : vector<1x8xf32> to vector<16x8xf32>
    %285 = arith.mulf %283, %284 : vector<16x8xf32>
    %286 = arith.truncf %285 : vector<16x8xf32> to vector<16x8xbf16>
    %cst_177 = arith.constant dense<0.000000e+00> : vector<20x8xf32>
    %287 = tpu.matmul %25, %286, %cst_177 {dimension_numbers = #tpu.dot_dimension_numbers<[1], [0], [0], [1], [0, 0, 1, 1], [], []>} : vector<20x16xbf16>, vector<16x8xbf16>, vector<20x8xf32> -> vector<20x8xf32>
    %288 = vector.extract_strided_slice %287 {offsets = [0, 0], sizes = [10, 8], strides = [1, 1]} : vector<20x8xf32> to vector<10x8xf32>
    %289 = arith.truncf %288 : vector<10x8xf32> to vector<10x8xbf16>
    %c0_178 = arith.constant 0 : index
    %c0_179 = arith.constant 0 : index
    %c80 = arith.constant 80 : index
    %c0_180 = arith.constant 0 : index
    %290 = vector.load %arg13[%c0_178, %c0_179, %c80, %c0_180] : memref<2x2x110x8xbf16, #tpu.memory_space<vmem>>, vector<1x1x10x8xbf16>
    %291 = vector.shape_cast %290 : vector<1x1x10x8xbf16> to vector<10x8xbf16>
    %292 = vector.shape_cast %289 : vector<10x8xbf16> to vector<1x1x10x8xbf16>
    tpu.vector_store %arg13[%c0_178, %c0_179, %c80, %c0_180], %292 {strides = array<i32>} : memref<2x2x110x8xbf16, #tpu.memory_space<vmem>>, vector<1x1x10x8xbf16>,
    %293 = vector.extract_strided_slice %287 {offsets = [10, 0], sizes = [10, 8], strides = [1, 1]} : vector<20x8xf32> to vector<10x8xf32>
    %294 = arith.truncf %293 : vector<10x8xf32> to vector<10x8xbf16>
    %c0_181 = arith.constant 0 : index
    %c1_182 = arith.constant 1 : index
    %c80_183 = arith.constant 80 : index
    %c0_184 = arith.constant 0 : index
    %295 = vector.load %arg13[%c0_181, %c1_182, %c80_183, %c0_184] : memref<2x2x110x8xbf16, #tpu.memory_space<vmem>>, vector<1x1x10x8xbf16>
    %296 = vector.shape_cast %295 : vector<1x1x10x8xbf16> to vector<10x8xbf16>
    %297 = vector.shape_cast %294 : vector<10x8xbf16> to vector<1x1x10x8xbf16>
    tpu.vector_store %arg13[%c0_181, %c1_182, %c80_183, %c0_184], %297 {strides = array<i32>} : memref<2x2x110x8xbf16, #tpu.memory_space<vmem>>, vector<1x1x10x8xbf16>,
    %c0_185 = arith.constant 0 : index
    %c15 = arith.constant 15 : index
    %c0_186 = arith.constant 0 : index
    %c0_187 = arith.constant 0 : index
    %298 = vector.load %arg1[%c0_185, %c15, %c0_186, %c0_187] : memref<1x16x16x8xf32, #tpu.memory_space<vmem>>, vector<1x1x16x8xf32>
    %299 = vector.shape_cast %298 : vector<1x1x16x8xf32> to vector<16x8xf32>
    %300 = vector.broadcast %26 : vector<1x8xf32> to vector<16x8xf32>
    %301 = arith.subf %299, %300 : vector<16x8xf32>
    %302 = vector.broadcast %27 : vector<1x8xf32> to vector<16x8xf32>
    %303 = arith.mulf %301, %302 : vector<16x8xf32>
    %304 = arith.truncf %303 : vector<16x8xf32> to vector<16x8xbf16>
    %cst_188 = arith.constant dense<0.000000e+00> : vector<20x8xf32>
    %305 = tpu.matmul %25, %304, %cst_188 {dimension_numbers = #tpu.dot_dimension_numbers<[1], [0], [0], [1], [0, 0, 1, 1], [], []>} : vector<20x16xbf16>, vector<16x8xbf16>, vector<20x8xf32> -> vector<20x8xf32>
    %306 = vector.extract_strided_slice %305 {offsets = [0, 0], sizes = [10, 8], strides = [1, 1]} : vector<20x8xf32> to vector<10x8xf32>
    %307 = arith.truncf %306 : vector<10x8xf32> to vector<10x8xbf16>
    %c1_189 = arith.constant 1 : index
    %c0_190 = arith.constant 0 : index
    %c80_191 = arith.constant 80 : index
    %c0_192 = arith.constant 0 : index
    %308 = vector.load %arg13[%c1_189, %c0_190, %c80_191, %c0_192] : memref<2x2x110x8xbf16, #tpu.memory_space<vmem>>, vector<1x1x10x8xbf16>
    %309 = vector.shape_cast %308 : vector<1x1x10x8xbf16> to vector<10x8xbf16>
    %310 = vector.shape_cast %307 : vector<10x8xbf16> to vector<1x1x10x8xbf16>
    tpu.vector_store %arg13[%c1_189, %c0_190, %c80_191, %c0_192], %310 {strides = array<i32>} : memref<2x2x110x8xbf16, #tpu.memory_space<vmem>>, vector<1x1x10x8xbf16>,
    %311 = vector.extract_strided_slice %305 {offsets = [10, 0], sizes = [10, 8], strides = [1, 1]} : vector<20x8xf32> to vector<10x8xf32>
    %312 = arith.truncf %311 : vector<10x8xf32> to vector<10x8xbf16>
    %c1_193 = arith.constant 1 : index
    %c1_194 = arith.constant 1 : index
    %c80_195 = arith.constant 80 : index
    %c0_196 = arith.constant 0 : index
    %313 = vector.load %arg13[%c1_193, %c1_194, %c80_195, %c0_196] : memref<2x2x110x8xbf16, #tpu.memory_space<vmem>>, vector<1x1x10x8xbf16>
    %314 = vector.shape_cast %313 : vector<1x1x10x8xbf16> to vector<10x8xbf16>
    %315 = vector.shape_cast %312 : vector<10x8xbf16> to vector<1x1x10x8xbf16>
    tpu.vector_store %arg13[%c1_193, %c1_194, %c80_195, %c0_196], %315 {strides = array<i32>} : memref<2x2x110x8xbf16, #tpu.memory_space<vmem>>, vector<1x1x10x8xbf16>,
    %c0_197 = arith.constant 0 : index
    %c0_198 = arith.constant 0 : index
    %c0_199 = arith.constant 0 : index
    %c0_200 = arith.constant 0 : index
    %316 = vector.load %arg13[%c0_197, %c0_198, %c0_199, %c0_200] : memref<2x2x110x8xbf16, #tpu.memory_space<vmem>>, vector<1x1x80x8xbf16>
    %317 = vector.shape_cast %316 : vector<1x1x80x8xbf16> to vector<80x8xbf16>
    %c0_201 = arith.constant 0 : index
    %c0_202 = arith.constant 0 : index
    %318 = vector.load %arg14[%c0_201, %c0_202] : memref<80x200xbf16, #tpu.memory_space<vmem>>, vector<80x8xbf16>
    tpu.vector_store %arg14[%c0_201, %c0_202], %317 {strides = array<i32>} : memref<80x200xbf16, #tpu.memory_space<vmem>>, vector<80x8xbf16>,
    %c0_203 = arith.constant 0 : index
    %c1_204 = arith.constant 1 : index
    %c0_205 = arith.constant 0 : index
    %c0_206 = arith.constant 0 : index
    %319 = vector.load %arg13[%c0_203, %c1_204, %c0_205, %c0_206] : memref<2x2x110x8xbf16, #tpu.memory_space<vmem>>, vector<1x1x80x8xbf16>
    %320 = vector.shape_cast %319 : vector<1x1x80x8xbf16> to vector<80x8xbf16>
    %c0_207 = arith.constant 0 : index
    %c8_208 = arith.constant 8 : index
    %321 = vector.load %arg14[%c0_207, %c8_208] : memref<80x200xbf16, #tpu.memory_space<vmem>>, vector<80x8xbf16>
    tpu.vector_store %arg14[%c0_207, %c8_208], %320 {strides = array<i32>} : memref<80x200xbf16, #tpu.memory_space<vmem>>, vector<80x8xbf16>,
    %c0_209 = arith.constant 0 : index
    %c0_210 = arith.constant 0 : index
    %c1_211 = arith.constant 1 : index
    %c0_212 = arith.constant 0 : index
    %322 = vector.load %arg13[%c0_209, %c0_210, %c1_211, %c0_212] : memref<2x2x110x8xbf16, #tpu.memory_space<vmem>>, vector<1x1x80x8xbf16>
    %323 = vector.shape_cast %322 : vector<1x1x80x8xbf16> to vector<80x8xbf16>
    %c0_213 = arith.constant 0 : index
    %c16 = arith.constant 16 : index
    %324 = vector.load %arg14[%c0_213, %c16] : memref<80x200xbf16, #tpu.memory_space<vmem>>, vector<80x8xbf16>
    tpu.vector_store %arg14[%c0_213, %c16], %323 {strides = array<i32>} : memref<80x200xbf16, #tpu.memory_space<vmem>>, vector<80x8xbf16>,
    %c0_214 = arith.constant 0 : index
    %c1_215 = arith.constant 1 : index
    %c1_216 = arith.constant 1 : index
    %c0_217 = arith.constant 0 : index
    %325 = vector.load %arg13[%c0_214, %c1_215, %c1_216, %c0_217] : memref<2x2x110x8xbf16, #tpu.memory_space<vmem>>, vector<1x1x80x8xbf16>
    %326 = vector.shape_cast %325 : vector<1x1x80x8xbf16> to vector<80x8xbf16>
    %c0_218 = arith.constant 0 : index
    %c24 = arith.constant 24 : index
    %327 = vector.load %arg14[%c0_218, %c24] : memref<80x200xbf16, #tpu.memory_space<vmem>>, vector<80x8xbf16>
    tpu.vector_store %arg14[%c0_218, %c24], %326 {strides = array<i32>} : memref<80x200xbf16, #tpu.memory_space<vmem>>, vector<80x8xbf16>,
    %c0_219 = arith.constant 0 : index
    %c0_220 = arith.constant 0 : index
    %c2_221 = arith.constant 2 : index
    %c0_222 = arith.constant 0 : index
    %328 = vector.load %arg13[%c0_219, %c0_220, %c2_221, %c0_222] : memref<2x2x110x8xbf16, #tpu.memory_space<vmem>>, vector<1x1x80x8xbf16>
    %329 = vector.shape_cast %328 : vector<1x1x80x8xbf16> to vector<80x8xbf16>
    %c0_223 = arith.constant 0 : index
    %c32 = arith.constant 32 : index
    %330 = vector.load %arg14[%c0_223, %c32] : memref<80x200xbf16, #tpu.memory_space<vmem>>, vector<80x8xbf16>
    tpu.vector_store %arg14[%c0_223, %c32], %329 {strides = array<i32>} : memref<80x200xbf16, #tpu.memory_space<vmem>>, vector<80x8xbf16>,
    %c1_224 = arith.constant 1 : index
    %c0_225 = arith.constant 0 : index
    %c0_226 = arith.constant 0 : index
    %c0_227 = arith.constant 0 : index
    %331 = vector.load %arg13[%c1_224, %c0_225, %c0_226, %c0_227] : memref<2x2x110x8xbf16, #tpu.memory_space<vmem>>, vector<1x1x80x8xbf16>
    %332 = vector.shape_cast %331 : vector<1x1x80x8xbf16> to vector<80x8xbf16>
    %c0_228 = arith.constant 0 : index
    %c40_229 = arith.constant 40 : index
    %333 = vector.load %arg14[%c0_228, %c40_229] : memref<80x200xbf16, #tpu.memory_space<vmem>>, vector<80x8xbf16>
    tpu.vector_store %arg14[%c0_228, %c40_229], %332 {strides = array<i32>} : memref<80x200xbf16, #tpu.memory_space<vmem>>, vector<80x8xbf16>,
    %c1_230 = arith.constant 1 : index
    %c1_231 = arith.constant 1 : index
    %c0_232 = arith.constant 0 : index
    %c0_233 = arith.constant 0 : index
    %334 = vector.load %arg13[%c1_230, %c1_231, %c0_232, %c0_233] : memref<2x2x110x8xbf16, #tpu.memory_space<vmem>>, vector<1x1x80x8xbf16>
    %335 = vector.shape_cast %334 : vector<1x1x80x8xbf16> to vector<80x8xbf16>
    %c0_234 = arith.constant 0 : index
    %c48 = arith.constant 48 : index
    %336 = vector.load %arg14[%c0_234, %c48] : memref<80x200xbf16, #tpu.memory_space<vmem>>, vector<80x8xbf16>
    tpu.vector_store %arg14[%c0_234, %c48], %335 {strides = array<i32>} : memref<80x200xbf16, #tpu.memory_space<vmem>>, vector<80x8xbf16>,
    %c1_235 = arith.constant 1 : index
    %c0_236 = arith.constant 0 : index
    %c1_237 = arith.constant 1 : index
    %c0_238 = arith.constant 0 : index
    %337 = vector.load %arg13[%c1_235, %c0_236, %c1_237, %c0_238] : memref<2x2x110x8xbf16, #tpu.memory_space<vmem>>, vector<1x1x80x8xbf16>
    %338 = vector.shape_cast %337 : vector<1x1x80x8xbf16> to vector<80x8xbf16>
    %c0_239 = arith.constant 0 : index
    %c56 = arith.constant 56 : index
    %339 = vector.load %arg14[%c0_239, %c56] : memref<80x200xbf16, #tpu.memory_space<vmem>>, vector<80x8xbf16>
    tpu.vector_store %arg14[%c0_239, %c56], %338 {strides = array<i32>} : memref<80x200xbf16, #tpu.memory_space<vmem>>, vector<80x8xbf16>,
    %c1_240 = arith.constant 1 : index
    %c1_241 = arith.constant 1 : index
    %c1_242 = arith.constant 1 : index
    %c0_243 = arith.constant 0 : index
    %340 = vector.load %arg13[%c1_240, %c1_241, %c1_242, %c0_243] : memref<2x2x110x8xbf16, #tpu.memory_space<vmem>>, vector<1x1x80x8xbf16>
    %341 = vector.shape_cast %340 : vector<1x1x80x8xbf16> to vector<80x8xbf16>
    %c0_244 = arith.constant 0 : index
    %c64 = arith.constant 64 : index
    %342 = vector.load %arg14[%c0_244, %c64] : memref<80x200xbf16, #tpu.memory_space<vmem>>, vector<80x8xbf16>
    tpu.vector_store %arg14[%c0_244, %c64], %341 {strides = array<i32>} : memref<80x200xbf16, #tpu.memory_space<vmem>>, vector<80x8xbf16>,
    %c1_245 = arith.constant 1 : index
    %c0_246 = arith.constant 0 : index
    %c2_247 = arith.constant 2 : index
    %c0_248 = arith.constant 0 : index
    %343 = vector.load %arg13[%c1_245, %c0_246, %c2_247, %c0_248] : memref<2x2x110x8xbf16, #tpu.memory_space<vmem>>, vector<1x1x80x8xbf16>
    %344 = vector.shape_cast %343 : vector<1x1x80x8xbf16> to vector<80x8xbf16>
    %c0_249 = arith.constant 0 : index
    %c72 = arith.constant 72 : index
    %345 = vector.load %arg14[%c0_249, %c72] : memref<80x200xbf16, #tpu.memory_space<vmem>>, vector<80x8xbf16>
    tpu.vector_store %arg14[%c0_249, %c72], %344 {strides = array<i32>} : memref<80x200xbf16, #tpu.memory_space<vmem>>, vector<80x8xbf16>,
    %c0_250 = arith.constant 0 : index
    %c0_251 = arith.constant 0 : index
    %c10_252 = arith.constant 10 : index
    %c0_253 = arith.constant 0 : index
    %346 = vector.load %arg13[%c0_250, %c0_251, %c10_252, %c0_253] : memref<2x2x110x8xbf16, #tpu.memory_space<vmem>>, vector<1x1x80x8xbf16>
    %347 = vector.shape_cast %346 : vector<1x1x80x8xbf16> to vector<80x8xbf16>
    %c0_254 = arith.constant 0 : index
    %c80_255 = arith.constant 80 : index
    %348 = vector.load %arg14[%c0_254, %c80_255] : memref<80x200xbf16, #tpu.memory_space<vmem>>, vector<80x8xbf16>
    tpu.vector_store %arg14[%c0_254, %c80_255], %347 {strides = array<i32>} : memref<80x200xbf16, #tpu.memory_space<vmem>>, vector<80x8xbf16>,
    %c0_256 = arith.constant 0 : index
    %c1_257 = arith.constant 1 : index
    %c10_258 = arith.constant 10 : index
    %c0_259 = arith.constant 0 : index
    %349 = vector.load %arg13[%c0_256, %c1_257, %c10_258, %c0_259] : memref<2x2x110x8xbf16, #tpu.memory_space<vmem>>, vector<1x1x80x8xbf16>
    %350 = vector.shape_cast %349 : vector<1x1x80x8xbf16> to vector<80x8xbf16>
    %c0_260 = arith.constant 0 : index
    %c88 = arith.constant 88 : index
    %351 = vector.load %arg14[%c0_260, %c88] : memref<80x200xbf16, #tpu.memory_space<vmem>>, vector<80x8xbf16>
    tpu.vector_store %arg14[%c0_260, %c88], %350 {strides = array<i32>} : memref<80x200xbf16, #tpu.memory_space<vmem>>, vector<80x8xbf16>,
    %c0_261 = arith.constant 0 : index
    %c0_262 = arith.constant 0 : index
    %c11_263 = arith.constant 11 : index
    %c0_264 = arith.constant 0 : index
    %352 = vector.load %arg13[%c0_261, %c0_262, %c11_263, %c0_264] : memref<2x2x110x8xbf16, #tpu.memory_space<vmem>>, vector<1x1x80x8xbf16>
    %353 = vector.shape_cast %352 : vector<1x1x80x8xbf16> to vector<80x8xbf16>
    %c0_265 = arith.constant 0 : index
    %c96 = arith.constant 96 : index
    %354 = vector.load %arg14[%c0_265, %c96] : memref<80x200xbf16, #tpu.memory_space<vmem>>, vector<80x8xbf16>
    tpu.vector_store %arg14[%c0_265, %c96], %353 {strides = array<i32>} : memref<80x200xbf16, #tpu.memory_space<vmem>>, vector<80x8xbf16>,
    %c0_266 = arith.constant 0 : index
    %c1_267 = arith.constant 1 : index
    %c11_268 = arith.constant 11 : index
    %c0_269 = arith.constant 0 : index
    %355 = vector.load %arg13[%c0_266, %c1_267, %c11_268, %c0_269] : memref<2x2x110x8xbf16, #tpu.memory_space<vmem>>, vector<1x1x80x8xbf16>
    %356 = vector.shape_cast %355 : vector<1x1x80x8xbf16> to vector<80x8xbf16>
    %c0_270 = arith.constant 0 : index
    %c104 = arith.constant 104 : index
    %357 = vector.load %arg14[%c0_270, %c104] : memref<80x200xbf16, #tpu.memory_space<vmem>>, vector<80x8xbf16>
    tpu.vector_store %arg14[%c0_270, %c104], %356 {strides = array<i32>} : memref<80x200xbf16, #tpu.memory_space<vmem>>, vector<80x8xbf16>,
    %c0_271 = arith.constant 0 : index
    %c0_272 = arith.constant 0 : index
    %c12_273 = arith.constant 12 : index
    %c0_274 = arith.constant 0 : index
    %358 = vector.load %arg13[%c0_271, %c0_272, %c12_273, %c0_274] : memref<2x2x110x8xbf16, #tpu.memory_space<vmem>>, vector<1x1x80x8xbf16>
    %359 = vector.shape_cast %358 : vector<1x1x80x8xbf16> to vector<80x8xbf16>
    %c0_275 = arith.constant 0 : index
    %c112 = arith.constant 112 : index
    %360 = vector.load %arg14[%c0_275, %c112] : memref<80x200xbf16, #tpu.memory_space<vmem>>, vector<80x8xbf16>
    tpu.vector_store %arg14[%c0_275, %c112], %359 {strides = array<i32>} : memref<80x200xbf16, #tpu.memory_space<vmem>>, vector<80x8xbf16>,
    %c1_276 = arith.constant 1 : index
    %c0_277 = arith.constant 0 : index
    %c10_278 = arith.constant 10 : index
    %c0_279 = arith.constant 0 : index
    %361 = vector.load %arg13[%c1_276, %c0_277, %c10_278, %c0_279] : memref<2x2x110x8xbf16, #tpu.memory_space<vmem>>, vector<1x1x80x8xbf16>
    %362 = vector.shape_cast %361 : vector<1x1x80x8xbf16> to vector<80x8xbf16>
    %c0_280 = arith.constant 0 : index
    %c120 = arith.constant 120 : index
    %363 = vector.load %arg14[%c0_280, %c120] : memref<80x200xbf16, #tpu.memory_space<vmem>>, vector<80x8xbf16>
    tpu.vector_store %arg14[%c0_280, %c120], %362 {strides = array<i32>} : memref<80x200xbf16, #tpu.memory_space<vmem>>, vector<80x8xbf16>,
    %c1_281 = arith.constant 1 : index
    %c1_282 = arith.constant 1 : index
    %c10_283 = arith.constant 10 : index
    %c0_284 = arith.constant 0 : index
    %364 = vector.load %arg13[%c1_281, %c1_282, %c10_283, %c0_284] : memref<2x2x110x8xbf16, #tpu.memory_space<vmem>>, vector<1x1x80x8xbf16>
    %365 = vector.shape_cast %364 : vector<1x1x80x8xbf16> to vector<80x8xbf16>
    %c0_285 = arith.constant 0 : index
    %c128 = arith.constant 128 : index
    %366 = vector.load %arg14[%c0_285, %c128] : memref<80x200xbf16, #tpu.memory_space<vmem>>, vector<80x8xbf16>
    tpu.vector_store %arg14[%c0_285, %c128], %365 {strides = array<i32>} : memref<80x200xbf16, #tpu.memory_space<vmem>>, vector<80x8xbf16>,
    %c1_286 = arith.constant 1 : index
    %c0_287 = arith.constant 0 : index
    %c11_288 = arith.constant 11 : index
    %c0_289 = arith.constant 0 : index
    %367 = vector.load %arg13[%c1_286, %c0_287, %c11_288, %c0_289] : memref<2x2x110x8xbf16, #tpu.memory_space<vmem>>, vector<1x1x80x8xbf16>
    %368 = vector.shape_cast %367 : vector<1x1x80x8xbf16> to vector<80x8xbf16>
    %c0_290 = arith.constant 0 : index
    %c136 = arith.constant 136 : index
    %369 = vector.load %arg14[%c0_290, %c136] : memref<80x200xbf16, #tpu.memory_space<vmem>>, vector<80x8xbf16>
    tpu.vector_store %arg14[%c0_290, %c136], %368 {strides = array<i32>} : memref<80x200xbf16, #tpu.memory_space<vmem>>, vector<80x8xbf16>,
    %c1_291 = arith.constant 1 : index
    %c1_292 = arith.constant 1 : index
    %c11_293 = arith.constant 11 : index
    %c0_294 = arith.constant 0 : index
    %370 = vector.load %arg13[%c1_291, %c1_292, %c11_293, %c0_294] : memref<2x2x110x8xbf16, #tpu.memory_space<vmem>>, vector<1x1x80x8xbf16>
    %371 = vector.shape_cast %370 : vector<1x1x80x8xbf16> to vector<80x8xbf16>
    %c0_295 = arith.constant 0 : index
    %c144 = arith.constant 144 : index
    %372 = vector.load %arg14[%c0_295, %c144] : memref<80x200xbf16, #tpu.memory_space<vmem>>, vector<80x8xbf16>
    tpu.vector_store %arg14[%c0_295, %c144], %371 {strides = array<i32>} : memref<80x200xbf16, #tpu.memory_space<vmem>>, vector<80x8xbf16>,
    %c1_296 = arith.constant 1 : index
    %c0_297 = arith.constant 0 : index
    %c12_298 = arith.constant 12 : index
    %c0_299 = arith.constant 0 : index
    %373 = vector.load %arg13[%c1_296, %c0_297, %c12_298, %c0_299] : memref<2x2x110x8xbf16, #tpu.memory_space<vmem>>, vector<1x1x80x8xbf16>
    %374 = vector.shape_cast %373 : vector<1x1x80x8xbf16> to vector<80x8xbf16>
    %c0_300 = arith.constant 0 : index
    %c152 = arith.constant 152 : index
    %375 = vector.load %arg14[%c0_300, %c152] : memref<80x200xbf16, #tpu.memory_space<vmem>>, vector<80x8xbf16>
    tpu.vector_store %arg14[%c0_300, %c152], %374 {strides = array<i32>} : memref<80x200xbf16, #tpu.memory_space<vmem>>, vector<80x8xbf16>,
    %c0_301 = arith.constant 0 : index
    %c0_302 = arith.constant 0 : index
    %c20_303 = arith.constant 20 : index
    %c0_304 = arith.constant 0 : index
    %376 = vector.load %arg13[%c0_301, %c0_302, %c20_303, %c0_304] : memref<2x2x110x8xbf16, #tpu.memory_space<vmem>>, vector<1x1x80x8xbf16>
    %377 = vector.shape_cast %376 : vector<1x1x80x8xbf16> to vector<80x8xbf16>
    %c0_305 = arith.constant 0 : index
    %c160 = arith.constant 160 : index
    %378 = vector.load %arg14[%c0_305, %c160] : memref<80x200xbf16, #tpu.memory_space<vmem>>, vector<80x8xbf16>
    tpu.vector_store %arg14[%c0_305, %c160], %377 {strides = array<i32>} : memref<80x200xbf16, #tpu.memory_space<vmem>>, vector<80x8xbf16>,
    %c0_306 = arith.constant 0 : index
    %c1_307 = arith.constant 1 : index
    %c20_308 = arith.constant 20 : index
    %c0_309 = arith.constant 0 : index
    %379 = vector.load %arg13[%c0_306, %c1_307, %c20_308, %c0_309] : memref<2x2x110x8xbf16, #tpu.memory_space<vmem>>, vector<1x1x80x8xbf16>
    %380 = vector.shape_cast %379 : vector<1x1x80x8xbf16> to vector<80x8xbf16>
    %c0_310 = arith.constant 0 : index
    %c168 = arith.constant 168 : index
    %381 = vector.load %arg14[%c0_310, %c168] : memref<80x200xbf16, #tpu.memory_space<vmem>>, vector<80x8xbf16>
    tpu.vector_store %arg14[%c0_310, %c168], %380 {strides = array<i32>} : memref<80x200xbf16, #tpu.memory_space<vmem>>, vector<80x8xbf16>,
    %c0_311 = arith.constant 0 : index
    %c0_312 = arith.constant 0 : index
    %c21 = arith.constant 21 : index
    %c0_313 = arith.constant 0 : index
    %382 = vector.load %arg13[%c0_311, %c0_312, %c21, %c0_313] : memref<2x2x110x8xbf16, #tpu.memory_space<vmem>>, vector<1x1x80x8xbf16>
    %383 = vector.shape_cast %382 : vector<1x1x80x8xbf16> to vector<80x8xbf16>
    %c0_314 = arith.constant 0 : index
    %c176 = arith.constant 176 : index
    %384 = vector.load %arg14[%c0_314, %c176] : memref<80x200xbf16, #tpu.memory_space<vmem>>, vector<80x8xbf16>
    tpu.vector_store %arg14[%c0_314, %c176], %383 {strides = array<i32>} : memref<80x200xbf16, #tpu.memory_space<vmem>>, vector<80x8xbf16>,
    %c0_315 = arith.constant 0 : index
    %c1_316 = arith.constant 1 : index
    %c21_317 = arith.constant 21 : index
    %c0_318 = arith.constant 0 : index
    %385 = vector.load %arg13[%c0_315, %c1_316, %c21_317, %c0_318] : memref<2x2x110x8xbf16, #tpu.memory_space<vmem>>, vector<1x1x80x8xbf16>
    %386 = vector.shape_cast %385 : vector<1x1x80x8xbf16> to vector<80x8xbf16>
    %c0_319 = arith.constant 0 : index
    %c184 = arith.constant 184 : index
    %387 = vector.load %arg14[%c0_319, %c184] : memref<80x200xbf16, #tpu.memory_space<vmem>>, vector<80x8xbf16>
    tpu.vector_store %arg14[%c0_319, %c184], %386 {strides = array<i32>} : memref<80x200xbf16, #tpu.memory_space<vmem>>, vector<80x8xbf16>,
    %c0_320 = arith.constant 0 : index
    %c0_321 = arith.constant 0 : index
    %c22 = arith.constant 22 : index
    %c0_322 = arith.constant 0 : index
    %388 = vector.load %arg13[%c0_320, %c0_321, %c22, %c0_322] : memref<2x2x110x8xbf16, #tpu.memory_space<vmem>>, vector<1x1x80x8xbf16>
    %389 = vector.shape_cast %388 : vector<1x1x80x8xbf16> to vector<80x8xbf16>
    %c0_323 = arith.constant 0 : index
    %c192 = arith.constant 192 : index
    %390 = vector.load %arg14[%c0_323, %c192] : memref<80x200xbf16, #tpu.memory_space<vmem>>, vector<80x8xbf16>
    tpu.vector_store %arg14[%c0_323, %c192], %389 {strides = array<i32>} : memref<80x200xbf16, #tpu.memory_space<vmem>>, vector<80x8xbf16>,
    %c0_324 = arith.constant 0 : index
    %c0_325 = arith.constant 0 : index
    %391 = vector.load %arg14[%c0_324, %c0_325] : memref<80x200xbf16, #tpu.memory_space<vmem>>, vector<80x200xbf16>
    %c0_326 = arith.constant 0 : index
    %c0_327 = arith.constant 0 : index
    %392 = vector.load %arg4[%c0_326, %c0_327] : memref<200x32xbf16, #tpu.memory_space<vmem>>, vector<200x32xbf16>
    %cst_328 = arith.constant dense<0.000000e+00> : vector<80x32xf32>
    %393 = tpu.matmul %391, %392, %cst_328 {dimension_numbers = #tpu.dot_dimension_numbers<[1], [0], [0], [1], [0, 0, 1, 1], [], []>} : vector<80x200xbf16>, vector<200x32xbf16>, vector<80x32xf32> -> vector<80x32xf32>
    %c0_329 = arith.constant 0 : index
    %c0_330 = arith.constant 0 : index
    %394 = vector.load %arg5[%c0_329, %c0_330] : memref<1x32xf32, #tpu.memory_space<vmem>>, vector<1x32xf32>
    %395 = vector.broadcast %394 : vector<1x32xf32> to vector<80x32xf32>
    %396 = arith.addf %393, %395 : vector<80x32xf32>
    %cst_331 = arith.constant 0.000000e+00 : f32
    %397 = vector.broadcast %cst_331 : f32 to vector<80x32xf32>
    %398 = arith.maximumf %396, %397 : vector<80x32xf32>
    %399 = arith.truncf %398 : vector<80x32xf32> to vector<80x32xbf16>
    %c0_332 = arith.constant 0 : index
    %c0_333 = arith.constant 0 : index
    %400 = vector.load %arg15[%c0_332, %c0_333] : memref<80x32xbf16, #tpu.memory_space<vmem>>, vector<80x32xbf16>
    tpu.vector_store %arg15[%c0_332, %c0_333], %399 {strides = array<i32>} : memref<80x32xbf16, #tpu.memory_space<vmem>>, vector<80x32xbf16>,
    %cst_334 = arith.constant 0.000000e+00 : bf16
    %401 = vector.broadcast %cst_334 : bf16 to vector<2x2x30x32xbf16>
    %c0_335 = arith.constant 0 : index
    %c0_336 = arith.constant 0 : index
    %c0_337 = arith.constant 0 : index
    %c0_338 = arith.constant 0 : index
    %402 = vector.load %arg16[%c0_335, %c0_336, %c0_337, %c0_338] : memref<2x2x30x32xbf16, #tpu.memory_space<vmem>>, vector<2x2x30x32xbf16>
    tpu.vector_store %arg16[%c0_335, %c0_336, %c0_337, %c0_338], %401 {strides = array<i32>} : memref<2x2x30x32xbf16, #tpu.memory_space<vmem>>, vector<2x2x30x32xbf16>,
    %403 = tpu.iota {dimensions = array<i32: 0>} : vector<10x10xi32>
    %404 = tpu.iota {dimensions = array<i32: 1>} : vector<10x10xi32>
    %c5_i32 = arith.constant 5 : i32
    %405 = vector.broadcast %c5_i32 : i32 to vector<10x10xi32>
    %406 = arith.cmpi sge, %403, %405 : vector<10x10xi32>
    %407 = arith.extui %406 : vector<10x10xi1> to vector<10x10xi32>
    %c5_i32_339 = arith.constant 5 : i32
    %408 = vector.broadcast %c5_i32_339 : i32 to vector<10x10xi32>
    %409 = arith.muli %407, %408 : vector<10x10xi32>
    %410 = arith.subi %403, %409 : vector<10x10xi32>
    %c2_i32_340 = arith.constant 2 : i32
    %411 = vector.broadcast %c2_i32_340 : i32 to vector<10x10xi32>
    %412 = arith.muli %411, %410 : vector<10x10xi32>
    %413 = arith.addi %412, %407 : vector<10x10xi32>
    %c1_i32 = arith.constant 1 : i32
    %414 = vector.broadcast %c1_i32 : i32 to vector<10x10xi32>
    %415 = arith.subi %413, %414 : vector<10x10xi32>
    %416 = arith.cmpi eq, %404, %415 : vector<10x10xi32>
    %c0_i32_341 = arith.constant 0 : i32
    %417 = vector.broadcast %c0_i32_341 : i32 to vector<10x10xi32>
    %418 = arith.cmpi sge, %415, %417 : vector<10x10xi32>
    %419 = arith.andi %416, %418 : vector<10x10xi1>
    %c8_i32 = arith.constant 8 : i32
    %420 = vector.broadcast %c8_i32 : i32 to vector<10x10xi32>
    %421 = arith.cmpi slt, %415, %420 : vector<10x10xi32>
    %422 = arith.andi %419, %421 : vector<10x10xi1>
    %cst_342 = arith.constant 1.000000e+00 : f32
    %cst_343 = arith.constant 0.000000e+00 : f32
    %423 = vector.broadcast %cst_342 : f32 to vector<10x10xf32>
    %424 = vector.broadcast %cst_343 : f32 to vector<10x10xf32>
    %425 = arith.select %422, %423, %424 : vector<10x10xi1>, vector<10x10xf32>
    %426 = arith.truncf %425 : vector<10x10xf32> to vector<10x10xbf16>
    %c0_344 = arith.constant 0 : index
    %c0_345 = arith.constant 0 : index
    %427 = vector.load %arg15[%c0_344, %c0_345] : memref<80x32xbf16, #tpu.memory_space<vmem>>, vector<10x32xbf16>
    %cst_346 = arith.constant dense<0.000000e+00> : vector<10x32xf32>
    %428 = tpu.matmul %426, %427, %cst_346 {dimension_numbers = #tpu.dot_dimension_numbers<[1], [0], [0], [1], [0, 0, 1, 1], [], []>} : vector<10x10xbf16>, vector<10x32xbf16>, vector<10x32xf32> -> vector<10x32xf32>
    %429 = vector.extract_strided_slice %428 {offsets = [0, 0], sizes = [5, 32], strides = [1, 1]} : vector<10x32xf32> to vector<5x32xf32>
    %430 = arith.truncf %429 : vector<5x32xf32> to vector<5x32xbf16>
    %c1_347 = arith.constant 1 : index
    %c0_348 = arith.constant 0 : index
    %c0_349 = arith.constant 0 : index
    %c0_350 = arith.constant 0 : index
    %431 = vector.load %arg16[%c1_347, %c0_348, %c0_349, %c0_350] : memref<2x2x30x32xbf16, #tpu.memory_space<vmem>>, vector<1x1x5x32xbf16>
    %432 = vector.shape_cast %431 : vector<1x1x5x32xbf16> to vector<5x32xbf16>
    %433 = vector.shape_cast %430 : vector<5x32xbf16> to vector<1x1x5x32xbf16>
    tpu.vector_store %arg16[%c1_347, %c0_348, %c0_349, %c0_350], %433 {strides = array<i32>} : memref<2x2x30x32xbf16, #tpu.memory_space<vmem>>, vector<1x1x5x32xbf16>,
    %434 = vector.extract_strided_slice %428 {offsets = [5, 0], sizes = [5, 32], strides = [1, 1]} : vector<10x32xf32> to vector<5x32xf32>
    %435 = arith.truncf %434 : vector<5x32xf32> to vector<5x32xbf16>
    %c1_351 = arith.constant 1 : index
    %c1_352 = arith.constant 1 : index
    %c0_353 = arith.constant 0 : index
    %c0_354 = arith.constant 0 : index
    %436 = vector.load %arg16[%c1_351, %c1_352, %c0_353, %c0_354] : memref<2x2x30x32xbf16, #tpu.memory_space<vmem>>, vector<1x1x5x32xbf16>
    %437 = vector.shape_cast %436 : vector<1x1x5x32xbf16> to vector<5x32xbf16>
    %438 = vector.shape_cast %435 : vector<5x32xbf16> to vector<1x1x5x32xbf16>
    tpu.vector_store %arg16[%c1_351, %c1_352, %c0_353, %c0_354], %438 {strides = array<i32>} : memref<2x2x30x32xbf16, #tpu.memory_space<vmem>>, vector<1x1x5x32xbf16>,
    %c10_355 = arith.constant 10 : index
    %c0_356 = arith.constant 0 : index
    %439 = vector.load %arg15[%c10_355, %c0_356] : memref<80x32xbf16, #tpu.memory_space<vmem>>, vector<10x32xbf16>
    %cst_357 = arith.constant dense<0.000000e+00> : vector<10x32xf32>
    %440 = tpu.matmul %426, %439, %cst_357 {dimension_numbers = #tpu.dot_dimension_numbers<[1], [0], [0], [1], [0, 0, 1, 1], [], []>} : vector<10x10xbf16>, vector<10x32xbf16>, vector<10x32xf32> -> vector<10x32xf32>
    %441 = vector.extract_strided_slice %440 {offsets = [0, 0], sizes = [5, 32], strides = [1, 1]} : vector<10x32xf32> to vector<5x32xf32>
    %442 = arith.truncf %441 : vector<5x32xf32> to vector<5x32xbf16>
    %c0_358 = arith.constant 0 : index
    %c0_359 = arith.constant 0 : index
    %c5_360 = arith.constant 5 : index
    %c0_361 = arith.constant 0 : index
    %443 = vector.load %arg16[%c0_358, %c0_359, %c5_360, %c0_361] : memref<2x2x30x32xbf16, #tpu.memory_space<vmem>>, vector<1x1x5x32xbf16>
    %444 = vector.shape_cast %443 : vector<1x1x5x32xbf16> to vector<5x32xbf16>
    %445 = vector.shape_cast %442 : vector<5x32xbf16> to vector<1x1x5x32xbf16>
    tpu.vector_store %arg16[%c0_358, %c0_359, %c5_360, %c0_361], %445 {strides = array<i32>} : memref<2x2x30x32xbf16, #tpu.memory_space<vmem>>, vector<1x1x5x32xbf16>,
    %446 = vector.extract_strided_slice %440 {offsets = [5, 0], sizes = [5, 32], strides = [1, 1]} : vector<10x32xf32> to vector<5x32xf32>
    %447 = arith.truncf %446 : vector<5x32xf32> to vector<5x32xbf16>
    %c0_362 = arith.constant 0 : index
    %c1_363 = arith.constant 1 : index
    %c5_364 = arith.constant 5 : index
    %c0_365 = arith.constant 0 : index
    %448 = vector.load %arg16[%c0_362, %c1_363, %c5_364, %c0_365] : memref<2x2x30x32xbf16, #tpu.memory_space<vmem>>, vector<1x1x5x32xbf16>
    %449 = vector.shape_cast %448 : vector<1x1x5x32xbf16> to vector<5x32xbf16>
    %450 = vector.shape_cast %447 : vector<5x32xbf16> to vector<1x1x5x32xbf16>
    tpu.vector_store %arg16[%c0_362, %c1_363, %c5_364, %c0_365], %450 {strides = array<i32>} : memref<2x2x30x32xbf16, #tpu.memory_space<vmem>>, vector<1x1x5x32xbf16>,
    %c20_366 = arith.constant 20 : index
    %c0_367 = arith.constant 0 : index
    %451 = vector.load %arg15[%c20_366, %c0_367] : memref<80x32xbf16, #tpu.memory_space<vmem>>, vector<10x32xbf16>
    %cst_368 = arith.constant dense<0.000000e+00> : vector<10x32xf32>
    %452 = tpu.matmul %426, %451, %cst_368 {dimension_numbers = #tpu.dot_dimension_numbers<[1], [0], [0], [1], [0, 0, 1, 1], [], []>} : vector<10x10xbf16>, vector<10x32xbf16>, vector<10x32xf32> -> vector<10x32xf32>
    %453 = vector.extract_strided_slice %452 {offsets = [0, 0], sizes = [5, 32], strides = [1, 1]} : vector<10x32xf32> to vector<5x32xf32>
    %454 = arith.truncf %453 : vector<5x32xf32> to vector<5x32xbf16>
    %c1_369 = arith.constant 1 : index
    %c0_370 = arith.constant 0 : index
    %c5_371 = arith.constant 5 : index
    %c0_372 = arith.constant 0 : index
    %455 = vector.load %arg16[%c1_369, %c0_370, %c5_371, %c0_372] : memref<2x2x30x32xbf16, #tpu.memory_space<vmem>>, vector<1x1x5x32xbf16>
    %456 = vector.shape_cast %455 : vector<1x1x5x32xbf16> to vector<5x32xbf16>
    %457 = vector.shape_cast %454 : vector<5x32xbf16> to vector<1x1x5x32xbf16>
    tpu.vector_store %arg16[%c1_369, %c0_370, %c5_371, %c0_372], %457 {strides = array<i32>} : memref<2x2x30x32xbf16, #tpu.memory_space<vmem>>, vector<1x1x5x32xbf16>,
    %458 = vector.extract_strided_slice %452 {offsets = [5, 0], sizes = [5, 32], strides = [1, 1]} : vector<10x32xf32> to vector<5x32xf32>
    %459 = arith.truncf %458 : vector<5x32xf32> to vector<5x32xbf16>
    %c1_373 = arith.constant 1 : index
    %c1_374 = arith.constant 1 : index
    %c5_375 = arith.constant 5 : index
    %c0_376 = arith.constant 0 : index
    %460 = vector.load %arg16[%c1_373, %c1_374, %c5_375, %c0_376] : memref<2x2x30x32xbf16, #tpu.memory_space<vmem>>, vector<1x1x5x32xbf16>
    %461 = vector.shape_cast %460 : vector<1x1x5x32xbf16> to vector<5x32xbf16>
    %462 = vector.shape_cast %459 : vector<5x32xbf16> to vector<1x1x5x32xbf16>
    tpu.vector_store %arg16[%c1_373, %c1_374, %c5_375, %c0_376], %462 {strides = array<i32>} : memref<2x2x30x32xbf16, #tpu.memory_space<vmem>>, vector<1x1x5x32xbf16>,
    %c30_377 = arith.constant 30 : index
    %c0_378 = arith.constant 0 : index
    %463 = vector.load %arg15[%c30_377, %c0_378] : memref<80x32xbf16, #tpu.memory_space<vmem>>, vector<10x32xbf16>
    %cst_379 = arith.constant dense<0.000000e+00> : vector<10x32xf32>
    %464 = tpu.matmul %426, %463, %cst_379 {dimension_numbers = #tpu.dot_dimension_numbers<[1], [0], [0], [1], [0, 0, 1, 1], [], []>} : vector<10x10xbf16>, vector<10x32xbf16>, vector<10x32xf32> -> vector<10x32xf32>
    %465 = vector.extract_strided_slice %464 {offsets = [0, 0], sizes = [5, 32], strides = [1, 1]} : vector<10x32xf32> to vector<5x32xf32>
    %466 = arith.truncf %465 : vector<5x32xf32> to vector<5x32xbf16>
    %c0_380 = arith.constant 0 : index
    %c0_381 = arith.constant 0 : index
    %c10_382 = arith.constant 10 : index
    %c0_383 = arith.constant 0 : index
    %467 = vector.load %arg16[%c0_380, %c0_381, %c10_382, %c0_383] : memref<2x2x30x32xbf16, #tpu.memory_space<vmem>>, vector<1x1x5x32xbf16>
    %468 = vector.shape_cast %467 : vector<1x1x5x32xbf16> to vector<5x32xbf16>
    %469 = vector.shape_cast %466 : vector<5x32xbf16> to vector<1x1x5x32xbf16>
    tpu.vector_store %arg16[%c0_380, %c0_381, %c10_382, %c0_383], %469 {strides = array<i32>} : memref<2x2x30x32xbf16, #tpu.memory_space<vmem>>, vector<1x1x5x32xbf16>,
    %470 = vector.extract_strided_slice %464 {offsets = [5, 0], sizes = [5, 32], strides = [1, 1]} : vector<10x32xf32> to vector<5x32xf32>
    %471 = arith.truncf %470 : vector<5x32xf32> to vector<5x32xbf16>
    %c0_384 = arith.constant 0 : index
    %c1_385 = arith.constant 1 : index
    %c10_386 = arith.constant 10 : index
    %c0_387 = arith.constant 0 : index
    %472 = vector.load %arg16[%c0_384, %c1_385, %c10_386, %c0_387] : memref<2x2x30x32xbf16, #tpu.memory_space<vmem>>, vector<1x1x5x32xbf16>
    %473 = vector.shape_cast %472 : vector<1x1x5x32xbf16> to vector<5x32xbf16>
    %474 = vector.shape_cast %471 : vector<5x32xbf16> to vector<1x1x5x32xbf16>
    tpu.vector_store %arg16[%c0_384, %c1_385, %c10_386, %c0_387], %474 {strides = array<i32>} : memref<2x2x30x32xbf16, #tpu.memory_space<vmem>>, vector<1x1x5x32xbf16>,
    %c40_388 = arith.constant 40 : index
    %c0_389 = arith.constant 0 : index
    %475 = vector.load %arg15[%c40_388, %c0_389] : memref<80x32xbf16, #tpu.memory_space<vmem>>, vector<10x32xbf16>
    %cst_390 = arith.constant dense<0.000000e+00> : vector<10x32xf32>
    %476 = tpu.matmul %426, %475, %cst_390 {dimension_numbers = #tpu.dot_dimension_numbers<[1], [0], [0], [1], [0, 0, 1, 1], [], []>} : vector<10x10xbf16>, vector<10x32xbf16>, vector<10x32xf32> -> vector<10x32xf32>
    %477 = vector.extract_strided_slice %476 {offsets = [0, 0], sizes = [5, 32], strides = [1, 1]} : vector<10x32xf32> to vector<5x32xf32>
    %478 = arith.truncf %477 : vector<5x32xf32> to vector<5x32xbf16>
    %c1_391 = arith.constant 1 : index
    %c0_392 = arith.constant 0 : index
    %c10_393 = arith.constant 10 : index
    %c0_394 = arith.constant 0 : index
    %479 = vector.load %arg16[%c1_391, %c0_392, %c10_393, %c0_394] : memref<2x2x30x32xbf16, #tpu.memory_space<vmem>>, vector<1x1x5x32xbf16>
    %480 = vector.shape_cast %479 : vector<1x1x5x32xbf16> to vector<5x32xbf16>
    %481 = vector.shape_cast %478 : vector<5x32xbf16> to vector<1x1x5x32xbf16>
    tpu.vector_store %arg16[%c1_391, %c0_392, %c10_393, %c0_394], %481 {strides = array<i32>} : memref<2x2x30x32xbf16, #tpu.memory_space<vmem>>, vector<1x1x5x32xbf16>,
    %482 = vector.extract_strided_slice %476 {offsets = [5, 0], sizes = [5, 32], strides = [1, 1]} : vector<10x32xf32> to vector<5x32xf32>
    %483 = arith.truncf %482 : vector<5x32xf32> to vector<5x32xbf16>
    %c1_395 = arith.constant 1 : index
    %c1_396 = arith.constant 1 : index
    %c10_397 = arith.constant 10 : index
    %c0_398 = arith.constant 0 : index
    %484 = vector.load %arg16[%c1_395, %c1_396, %c10_397, %c0_398] : memref<2x2x30x32xbf16, #tpu.memory_space<vmem>>, vector<1x1x5x32xbf16>
    %485 = vector.shape_cast %484 : vector<1x1x5x32xbf16> to vector<5x32xbf16>
    %486 = vector.shape_cast %483 : vector<5x32xbf16> to vector<1x1x5x32xbf16>
    tpu.vector_store %arg16[%c1_395, %c1_396, %c10_397, %c0_398], %486 {strides = array<i32>} : memref<2x2x30x32xbf16, #tpu.memory_space<vmem>>, vector<1x1x5x32xbf16>,
    %c50_399 = arith.constant 50 : index
    %c0_400 = arith.constant 0 : index
    %487 = vector.load %arg15[%c50_399, %c0_400] : memref<80x32xbf16, #tpu.memory_space<vmem>>, vector<10x32xbf16>
    %cst_401 = arith.constant dense<0.000000e+00> : vector<10x32xf32>
    %488 = tpu.matmul %426, %487, %cst_401 {dimension_numbers = #tpu.dot_dimension_numbers<[1], [0], [0], [1], [0, 0, 1, 1], [], []>} : vector<10x10xbf16>, vector<10x32xbf16>, vector<10x32xf32> -> vector<10x32xf32>
    %489 = vector.extract_strided_slice %488 {offsets = [0, 0], sizes = [5, 32], strides = [1, 1]} : vector<10x32xf32> to vector<5x32xf32>
    %490 = arith.truncf %489 : vector<5x32xf32> to vector<5x32xbf16>
    %c0_402 = arith.constant 0 : index
    %c0_403 = arith.constant 0 : index
    %c15_404 = arith.constant 15 : index
    %c0_405 = arith.constant 0 : index
    %491 = vector.load %arg16[%c0_402, %c0_403, %c15_404, %c0_405] : memref<2x2x30x32xbf16, #tpu.memory_space<vmem>>, vector<1x1x5x32xbf16>
    %492 = vector.shape_cast %491 : vector<1x1x5x32xbf16> to vector<5x32xbf16>
    %493 = vector.shape_cast %490 : vector<5x32xbf16> to vector<1x1x5x32xbf16>
    tpu.vector_store %arg16[%c0_402, %c0_403, %c15_404, %c0_405], %493 {strides = array<i32>} : memref<2x2x30x32xbf16, #tpu.memory_space<vmem>>, vector<1x1x5x32xbf16>,
    %494 = vector.extract_strided_slice %488 {offsets = [5, 0], sizes = [5, 32], strides = [1, 1]} : vector<10x32xf32> to vector<5x32xf32>
    %495 = arith.truncf %494 : vector<5x32xf32> to vector<5x32xbf16>
    %c0_406 = arith.constant 0 : index
    %c1_407 = arith.constant 1 : index
    %c15_408 = arith.constant 15 : index
    %c0_409 = arith.constant 0 : index
    %496 = vector.load %arg16[%c0_406, %c1_407, %c15_408, %c0_409] : memref<2x2x30x32xbf16, #tpu.memory_space<vmem>>, vector<1x1x5x32xbf16>
    %497 = vector.shape_cast %496 : vector<1x1x5x32xbf16> to vector<5x32xbf16>
    %498 = vector.shape_cast %495 : vector<5x32xbf16> to vector<1x1x5x32xbf16>
    tpu.vector_store %arg16[%c0_406, %c1_407, %c15_408, %c0_409], %498 {strides = array<i32>} : memref<2x2x30x32xbf16, #tpu.memory_space<vmem>>, vector<1x1x5x32xbf16>,
    %c60_410 = arith.constant 60 : index
    %c0_411 = arith.constant 0 : index
    %499 = vector.load %arg15[%c60_410, %c0_411] : memref<80x32xbf16, #tpu.memory_space<vmem>>, vector<10x32xbf16>
    %cst_412 = arith.constant dense<0.000000e+00> : vector<10x32xf32>
    %500 = tpu.matmul %426, %499, %cst_412 {dimension_numbers = #tpu.dot_dimension_numbers<[1], [0], [0], [1], [0, 0, 1, 1], [], []>} : vector<10x10xbf16>, vector<10x32xbf16>, vector<10x32xf32> -> vector<10x32xf32>
    %501 = vector.extract_strided_slice %500 {offsets = [0, 0], sizes = [5, 32], strides = [1, 1]} : vector<10x32xf32> to vector<5x32xf32>
    %502 = arith.truncf %501 : vector<5x32xf32> to vector<5x32xbf16>
    %c1_413 = arith.constant 1 : index
    %c0_414 = arith.constant 0 : index
    %c15_415 = arith.constant 15 : index
    %c0_416 = arith.constant 0 : index
    %503 = vector.load %arg16[%c1_413, %c0_414, %c15_415, %c0_416] : memref<2x2x30x32xbf16, #tpu.memory_space<vmem>>, vector<1x1x5x32xbf16>
    %504 = vector.shape_cast %503 : vector<1x1x5x32xbf16> to vector<5x32xbf16>
    %505 = vector.shape_cast %502 : vector<5x32xbf16> to vector<1x1x5x32xbf16>
    tpu.vector_store %arg16[%c1_413, %c0_414, %c15_415, %c0_416], %505 {strides = array<i32>} : memref<2x2x30x32xbf16, #tpu.memory_space<vmem>>, vector<1x1x5x32xbf16>,
    %506 = vector.extract_strided_slice %500 {offsets = [5, 0], sizes = [5, 32], strides = [1, 1]} : vector<10x32xf32> to vector<5x32xf32>
    %507 = arith.truncf %506 : vector<5x32xf32> to vector<5x32xbf16>
    %c1_417 = arith.constant 1 : index
    %c1_418 = arith.constant 1 : index
    %c15_419 = arith.constant 15 : index
    %c0_420 = arith.constant 0 : index
    %508 = vector.load %arg16[%c1_417, %c1_418, %c15_419, %c0_420] : memref<2x2x30x32xbf16, #tpu.memory_space<vmem>>, vector<1x1x5x32xbf16>
    %509 = vector.shape_cast %508 : vector<1x1x5x32xbf16> to vector<5x32xbf16>
    %510 = vector.shape_cast %507 : vector<5x32xbf16> to vector<1x1x5x32xbf16>
    tpu.vector_store %arg16[%c1_417, %c1_418, %c15_419, %c0_420], %510 {strides = array<i32>} : memref<2x2x30x32xbf16, #tpu.memory_space<vmem>>, vector<1x1x5x32xbf16>,
    %c70_421 = arith.constant 70 : index
    %c0_422 = arith.constant 0 : index
    %511 = vector.load %arg15[%c70_421, %c0_422] : memref<80x32xbf16, #tpu.memory_space<vmem>>, vector<10x32xbf16>
    %cst_423 = arith.constant dense<0.000000e+00> : vector<10x32xf32>
    %512 = tpu.matmul %426, %511, %cst_423 {dimension_numbers = #tpu.dot_dimension_numbers<[1], [0], [0], [1], [0, 0, 1, 1], [], []>} : vector<10x10xbf16>, vector<10x32xbf16>, vector<10x32xf32> -> vector<10x32xf32>
    %513 = vector.extract_strided_slice %512 {offsets = [0, 0], sizes = [5, 32], strides = [1, 1]} : vector<10x32xf32> to vector<5x32xf32>
    %514 = arith.truncf %513 : vector<5x32xf32> to vector<5x32xbf16>
    %c0_424 = arith.constant 0 : index
    %c0_425 = arith.constant 0 : index
    %c20_426 = arith.constant 20 : index
    %c0_427 = arith.constant 0 : index
    %515 = vector.load %arg16[%c0_424, %c0_425, %c20_426, %c0_427] : memref<2x2x30x32xbf16, #tpu.memory_space<vmem>>, vector<1x1x5x32xbf16>
    %516 = vector.shape_cast %515 : vector<1x1x5x32xbf16> to vector<5x32xbf16>
    %517 = vector.shape_cast %514 : vector<5x32xbf16> to vector<1x1x5x32xbf16>
    tpu.vector_store %arg16[%c0_424, %c0_425, %c20_426, %c0_427], %517 {strides = array<i32>} : memref<2x2x30x32xbf16, #tpu.memory_space<vmem>>, vector<1x1x5x32xbf16>,
    %518 = vector.extract_strided_slice %512 {offsets = [5, 0], sizes = [5, 32], strides = [1, 1]} : vector<10x32xf32> to vector<5x32xf32>
    %519 = arith.truncf %518 : vector<5x32xf32> to vector<5x32xbf16>
    %c0_428 = arith.constant 0 : index
    %c1_429 = arith.constant 1 : index
    %c20_430 = arith.constant 20 : index
    %c0_431 = arith.constant 0 : index
    %520 = vector.load %arg16[%c0_428, %c1_429, %c20_430, %c0_431] : memref<2x2x30x32xbf16, #tpu.memory_space<vmem>>, vector<1x1x5x32xbf16>
    %521 = vector.shape_cast %520 : vector<1x1x5x32xbf16> to vector<5x32xbf16>
    %522 = vector.shape_cast %519 : vector<5x32xbf16> to vector<1x1x5x32xbf16>
    tpu.vector_store %arg16[%c0_428, %c1_429, %c20_430, %c0_431], %522 {strides = array<i32>} : memref<2x2x30x32xbf16, #tpu.memory_space<vmem>>, vector<1x1x5x32xbf16>,
    %c0_432 = arith.constant 0 : index
    %c0_433 = arith.constant 0 : index
    %c0_434 = arith.constant 0 : index
    %c0_435 = arith.constant 0 : index
    %523 = vector.load %arg16[%c0_432, %c0_433, %c0_434, %c0_435] : memref<2x2x30x32xbf16, #tpu.memory_space<vmem>>, vector<1x1x20x32xbf16>
    %524 = vector.shape_cast %523 : vector<1x1x20x32xbf16> to vector<20x32xbf16>
    %c0_436 = arith.constant 0 : index
    %c0_437 = arith.constant 0 : index
    %525 = vector.load %arg17[%c0_436, %c0_437] : memref<20x288xbf16, #tpu.memory_space<vmem>>, vector<20x32xbf16>
    tpu.vector_store %arg17[%c0_436, %c0_437], %524 {strides = array<i32>} : memref<20x288xbf16, #tpu.memory_space<vmem>>, vector<20x32xbf16>,
    %c0_438 = arith.constant 0 : index
    %c1_439 = arith.constant 1 : index
    %c0_440 = arith.constant 0 : index
    %c0_441 = arith.constant 0 : index
    %526 = vector.load %arg16[%c0_438, %c1_439, %c0_440, %c0_441] : memref<2x2x30x32xbf16, #tpu.memory_space<vmem>>, vector<1x1x20x32xbf16>
    %527 = vector.shape_cast %526 : vector<1x1x20x32xbf16> to vector<20x32xbf16>
    %c0_442 = arith.constant 0 : index
    %c32_443 = arith.constant 32 : index
    %528 = vector.load %arg17[%c0_442, %c32_443] : memref<20x288xbf16, #tpu.memory_space<vmem>>, vector<20x32xbf16>
    tpu.vector_store %arg17[%c0_442, %c32_443], %527 {strides = array<i32>} : memref<20x288xbf16, #tpu.memory_space<vmem>>, vector<20x32xbf16>,
    %c0_444 = arith.constant 0 : index
    %c0_445 = arith.constant 0 : index
    %c1_446 = arith.constant 1 : index
    %c0_447 = arith.constant 0 : index
    %529 = vector.load %arg16[%c0_444, %c0_445, %c1_446, %c0_447] : memref<2x2x30x32xbf16, #tpu.memory_space<vmem>>, vector<1x1x20x32xbf16>
    %530 = vector.shape_cast %529 : vector<1x1x20x32xbf16> to vector<20x32xbf16>
    %c0_448 = arith.constant 0 : index
    %c64_449 = arith.constant 64 : index
    %531 = vector.load %arg17[%c0_448, %c64_449] : memref<20x288xbf16, #tpu.memory_space<vmem>>, vector<20x32xbf16>
    tpu.vector_store %arg17[%c0_448, %c64_449], %530 {strides = array<i32>} : memref<20x288xbf16, #tpu.memory_space<vmem>>, vector<20x32xbf16>,
    %c1_450 = arith.constant 1 : index
    %c0_451 = arith.constant 0 : index
    %c0_452 = arith.constant 0 : index
    %c0_453 = arith.constant 0 : index
    %532 = vector.load %arg16[%c1_450, %c0_451, %c0_452, %c0_453] : memref<2x2x30x32xbf16, #tpu.memory_space<vmem>>, vector<1x1x20x32xbf16>
    %533 = vector.shape_cast %532 : vector<1x1x20x32xbf16> to vector<20x32xbf16>
    %c0_454 = arith.constant 0 : index
    %c96_455 = arith.constant 96 : index
    %534 = vector.load %arg17[%c0_454, %c96_455] : memref<20x288xbf16, #tpu.memory_space<vmem>>, vector<20x32xbf16>
    tpu.vector_store %arg17[%c0_454, %c96_455], %533 {strides = array<i32>} : memref<20x288xbf16, #tpu.memory_space<vmem>>, vector<20x32xbf16>,
    %c1_456 = arith.constant 1 : index
    %c1_457 = arith.constant 1 : index
    %c0_458 = arith.constant 0 : index
    %c0_459 = arith.constant 0 : index
    %535 = vector.load %arg16[%c1_456, %c1_457, %c0_458, %c0_459] : memref<2x2x30x32xbf16, #tpu.memory_space<vmem>>, vector<1x1x20x32xbf16>
    %536 = vector.shape_cast %535 : vector<1x1x20x32xbf16> to vector<20x32xbf16>
    %c0_460 = arith.constant 0 : index
    %c128_461 = arith.constant 128 : index
    %537 = vector.load %arg17[%c0_460, %c128_461] : memref<20x288xbf16, #tpu.memory_space<vmem>>, vector<20x32xbf16>
    tpu.vector_store %arg17[%c0_460, %c128_461], %536 {strides = array<i32>} : memref<20x288xbf16, #tpu.memory_space<vmem>>, vector<20x32xbf16>,
    %c1_462 = arith.constant 1 : index
    %c0_463 = arith.constant 0 : index
    %c1_464 = arith.constant 1 : index
    %c0_465 = arith.constant 0 : index
    %538 = vector.load %arg16[%c1_462, %c0_463, %c1_464, %c0_465] : memref<2x2x30x32xbf16, #tpu.memory_space<vmem>>, vector<1x1x20x32xbf16>
    %539 = vector.shape_cast %538 : vector<1x1x20x32xbf16> to vector<20x32xbf16>
    %c0_466 = arith.constant 0 : index
    %c160_467 = arith.constant 160 : index
    %540 = vector.load %arg17[%c0_466, %c160_467] : memref<20x288xbf16, #tpu.memory_space<vmem>>, vector<20x32xbf16>
    tpu.vector_store %arg17[%c0_466, %c160_467], %539 {strides = array<i32>} : memref<20x288xbf16, #tpu.memory_space<vmem>>, vector<20x32xbf16>,
    %c0_468 = arith.constant 0 : index
    %c0_469 = arith.constant 0 : index
    %c5_470 = arith.constant 5 : index
    %c0_471 = arith.constant 0 : index
    %541 = vector.load %arg16[%c0_468, %c0_469, %c5_470, %c0_471] : memref<2x2x30x32xbf16, #tpu.memory_space<vmem>>, vector<1x1x20x32xbf16>
    %542 = vector.shape_cast %541 : vector<1x1x20x32xbf16> to vector<20x32xbf16>
    %c0_472 = arith.constant 0 : index
    %c192_473 = arith.constant 192 : index
    %543 = vector.load %arg17[%c0_472, %c192_473] : memref<20x288xbf16, #tpu.memory_space<vmem>>, vector<20x32xbf16>
    tpu.vector_store %arg17[%c0_472, %c192_473], %542 {strides = array<i32>} : memref<20x288xbf16, #tpu.memory_space<vmem>>, vector<20x32xbf16>,
    %c0_474 = arith.constant 0 : index
    %c1_475 = arith.constant 1 : index
    %c5_476 = arith.constant 5 : index
    %c0_477 = arith.constant 0 : index
    %544 = vector.load %arg16[%c0_474, %c1_475, %c5_476, %c0_477] : memref<2x2x30x32xbf16, #tpu.memory_space<vmem>>, vector<1x1x20x32xbf16>
    %545 = vector.shape_cast %544 : vector<1x1x20x32xbf16> to vector<20x32xbf16>
    %c0_478 = arith.constant 0 : index
    %c224 = arith.constant 224 : index
    %546 = vector.load %arg17[%c0_478, %c224] : memref<20x288xbf16, #tpu.memory_space<vmem>>, vector<20x32xbf16>
    tpu.vector_store %arg17[%c0_478, %c224], %545 {strides = array<i32>} : memref<20x288xbf16, #tpu.memory_space<vmem>>, vector<20x32xbf16>,
    %c0_479 = arith.constant 0 : index
    %c0_480 = arith.constant 0 : index
    %c6_481 = arith.constant 6 : index
    %c0_482 = arith.constant 0 : index
    %547 = vector.load %arg16[%c0_479, %c0_480, %c6_481, %c0_482] : memref<2x2x30x32xbf16, #tpu.memory_space<vmem>>, vector<1x1x20x32xbf16>
    %548 = vector.shape_cast %547 : vector<1x1x20x32xbf16> to vector<20x32xbf16>
    %c0_483 = arith.constant 0 : index
    %c256 = arith.constant 256 : index
    %549 = vector.load %arg17[%c0_483, %c256] : memref<20x288xbf16, #tpu.memory_space<vmem>>, vector<20x32xbf16>
    tpu.vector_store %arg17[%c0_483, %c256], %548 {strides = array<i32>} : memref<20x288xbf16, #tpu.memory_space<vmem>>, vector<20x32xbf16>,
    %c0_484 = arith.constant 0 : index
    %c0_485 = arith.constant 0 : index
    %550 = vector.load %arg17[%c0_484, %c0_485] : memref<20x288xbf16, #tpu.memory_space<vmem>>, vector<20x288xbf16>
    %c0_486 = arith.constant 0 : index
    %c0_487 = arith.constant 0 : index
    %551 = vector.load %arg6[%c0_486, %c0_487] : memref<288x64xbf16, #tpu.memory_space<vmem>>, vector<288x64xbf16>
    %cst_488 = arith.constant dense<0.000000e+00> : vector<20x64xf32>
    %552 = tpu.matmul %550, %551, %cst_488 {dimension_numbers = #tpu.dot_dimension_numbers<[1], [0], [0], [1], [0, 0, 1, 1], [], []>} : vector<20x288xbf16>, vector<288x64xbf16>, vector<20x64xf32> -> vector<20x64xf32>
    %c0_489 = arith.constant 0 : index
    %c0_490 = arith.constant 0 : index
    %553 = vector.load %arg7[%c0_489, %c0_490] : memref<1x64xf32, #tpu.memory_space<vmem>>, vector<1x64xf32>
    %554 = vector.broadcast %553 : vector<1x64xf32> to vector<20x64xf32>
    %555 = arith.addf %552, %554 : vector<20x64xf32>
    %cst_491 = arith.constant 0.000000e+00 : f32
    %556 = vector.broadcast %cst_491 : f32 to vector<20x64xf32>
    %557 = arith.maximumf %555, %556 : vector<20x64xf32>
    %558 = arith.truncf %557 : vector<20x64xf32> to vector<20x64xbf16>
    %c0_492 = arith.constant 0 : index
    %c0_493 = arith.constant 0 : index
    %559 = vector.load %arg18[%c0_492, %c0_493] : memref<20x64xbf16, #tpu.memory_space<vmem>>, vector<20x64xbf16>
    tpu.vector_store %arg18[%c0_492, %c0_493], %558 {strides = array<i32>} : memref<20x64xbf16, #tpu.memory_space<vmem>>, vector<20x64xbf16>,
    %cst_494 = arith.constant 0.000000e+00 : bf16
    %560 = vector.broadcast %cst_494 : bf16 to vector<2x2x12x64xbf16>
    %c0_495 = arith.constant 0 : index
    %c0_496 = arith.constant 0 : index
    %c0_497 = arith.constant 0 : index
    %c0_498 = arith.constant 0 : index
    %561 = vector.load %arg19[%c0_495, %c0_496, %c0_497, %c0_498] : memref<2x2x12x64xbf16, #tpu.memory_space<vmem>>, vector<2x2x12x64xbf16>
    tpu.vector_store %arg19[%c0_495, %c0_496, %c0_497, %c0_498], %560 {strides = array<i32>} : memref<2x2x12x64xbf16, #tpu.memory_space<vmem>>, vector<2x2x12x64xbf16>,
    %562 = tpu.iota {dimensions = array<i32: 0>} : vector<6x5xi32>
    %563 = tpu.iota {dimensions = array<i32: 1>} : vector<6x5xi32>
    %c3_i32 = arith.constant 3 : i32
    %564 = vector.broadcast %c3_i32 : i32 to vector<6x5xi32>
    %565 = arith.cmpi sge, %562, %564 : vector<6x5xi32>
    %566 = arith.extui %565 : vector<6x5xi1> to vector<6x5xi32>
    %c3_i32_499 = arith.constant 3 : i32
    %567 = vector.broadcast %c3_i32_499 : i32 to vector<6x5xi32>
    %568 = arith.muli %566, %567 : vector<6x5xi32>
    %569 = arith.subi %562, %568 : vector<6x5xi32>
    %c2_i32_500 = arith.constant 2 : i32
    %570 = vector.broadcast %c2_i32_500 : i32 to vector<6x5xi32>
    %571 = arith.muli %570, %569 : vector<6x5xi32>
    %572 = arith.addi %571, %566 : vector<6x5xi32>
    %c1_i32_501 = arith.constant 1 : i32
    %573 = vector.broadcast %c1_i32_501 : i32 to vector<6x5xi32>
    %574 = arith.subi %572, %573 : vector<6x5xi32>
    %575 = arith.cmpi eq, %563, %574 : vector<6x5xi32>
    %c0_i32_502 = arith.constant 0 : i32
    %576 = vector.broadcast %c0_i32_502 : i32 to vector<6x5xi32>
    %577 = arith.cmpi sge, %574, %576 : vector<6x5xi32>
    %578 = arith.andi %575, %577 : vector<6x5xi1>
    %c4_i32 = arith.constant 4 : i32
    %579 = vector.broadcast %c4_i32 : i32 to vector<6x5xi32>
    %580 = arith.cmpi slt, %574, %579 : vector<6x5xi32>
    %581 = arith.andi %578, %580 : vector<6x5xi1>
    %cst_503 = arith.constant 1.000000e+00 : f32
    %cst_504 = arith.constant 0.000000e+00 : f32
    %582 = vector.broadcast %cst_503 : f32 to vector<6x5xf32>
    %583 = vector.broadcast %cst_504 : f32 to vector<6x5xf32>
    %584 = arith.select %581, %582, %583 : vector<6x5xi1>, vector<6x5xf32>
    %585 = arith.truncf %584 : vector<6x5xf32> to vector<6x5xbf16>
    %c0_505 = arith.constant 0 : index
    %c0_506 = arith.constant 0 : index
    %586 = vector.load %arg18[%c0_505, %c0_506] : memref<20x64xbf16, #tpu.memory_space<vmem>>, vector<5x64xbf16>
    %cst_507 = arith.constant dense<0.000000e+00> : vector<6x64xf32>
    %587 = tpu.matmul %585, %586, %cst_507 {dimension_numbers = #tpu.dot_dimension_numbers<[1], [0], [0], [1], [0, 0, 1, 1], [], []>} : vector<6x5xbf16>, vector<5x64xbf16>, vector<6x64xf32> -> vector<6x64xf32>
    %588 = vector.extract_strided_slice %587 {offsets = [0, 0], sizes = [3, 64], strides = [1, 1]} : vector<6x64xf32> to vector<3x64xf32>
    %589 = arith.truncf %588 : vector<3x64xf32> to vector<3x64xbf16>
    %c1_508 = arith.constant 1 : index
    %c0_509 = arith.constant 0 : index
    %c0_510 = arith.constant 0 : index
    %c0_511 = arith.constant 0 : index
    %590 = vector.load %arg19[%c1_508, %c0_509, %c0_510, %c0_511] : memref<2x2x12x64xbf16, #tpu.memory_space<vmem>>, vector<1x1x3x64xbf16>
    %591 = vector.shape_cast %590 : vector<1x1x3x64xbf16> to vector<3x64xbf16>
    %592 = vector.shape_cast %589 : vector<3x64xbf16> to vector<1x1x3x64xbf16>
    tpu.vector_store %arg19[%c1_508, %c0_509, %c0_510, %c0_511], %592 {strides = array<i32>} : memref<2x2x12x64xbf16, #tpu.memory_space<vmem>>, vector<1x1x3x64xbf16>,
    %593 = vector.extract_strided_slice %587 {offsets = [3, 0], sizes = [3, 64], strides = [1, 1]} : vector<6x64xf32> to vector<3x64xf32>
    %594 = arith.truncf %593 : vector<3x64xf32> to vector<3x64xbf16>
    %c1_512 = arith.constant 1 : index
    %c1_513 = arith.constant 1 : index
    %c0_514 = arith.constant 0 : index
    %c0_515 = arith.constant 0 : index
    %595 = vector.load %arg19[%c1_512, %c1_513, %c0_514, %c0_515] : memref<2x2x12x64xbf16, #tpu.memory_space<vmem>>, vector<1x1x3x64xbf16>
    %596 = vector.shape_cast %595 : vector<1x1x3x64xbf16> to vector<3x64xbf16>
    %597 = vector.shape_cast %594 : vector<3x64xbf16> to vector<1x1x3x64xbf16>
    tpu.vector_store %arg19[%c1_512, %c1_513, %c0_514, %c0_515], %597 {strides = array<i32>} : memref<2x2x12x64xbf16, #tpu.memory_space<vmem>>, vector<1x1x3x64xbf16>,
    %c5_516 = arith.constant 5 : index
    %c0_517 = arith.constant 0 : index
    %598 = vector.load %arg18[%c5_516, %c0_517] : memref<20x64xbf16, #tpu.memory_space<vmem>>, vector<5x64xbf16>
    %cst_518 = arith.constant dense<0.000000e+00> : vector<6x64xf32>
    %599 = tpu.matmul %585, %598, %cst_518 {dimension_numbers = #tpu.dot_dimension_numbers<[1], [0], [0], [1], [0, 0, 1, 1], [], []>} : vector<6x5xbf16>, vector<5x64xbf16>, vector<6x64xf32> -> vector<6x64xf32>
    %600 = vector.extract_strided_slice %599 {offsets = [0, 0], sizes = [3, 64], strides = [1, 1]} : vector<6x64xf32> to vector<3x64xf32>
    %601 = arith.truncf %600 : vector<3x64xf32> to vector<3x64xbf16>
    %c0_519 = arith.constant 0 : index
    %c0_520 = arith.constant 0 : index
    %c3_521 = arith.constant 3 : index
    %c0_522 = arith.constant 0 : index
    %602 = vector.load %arg19[%c0_519, %c0_520, %c3_521, %c0_522] : memref<2x2x12x64xbf16, #tpu.memory_space<vmem>>, vector<1x1x3x64xbf16>
    %603 = vector.shape_cast %602 : vector<1x1x3x64xbf16> to vector<3x64xbf16>
    %604 = vector.shape_cast %601 : vector<3x64xbf16> to vector<1x1x3x64xbf16>
    tpu.vector_store %arg19[%c0_519, %c0_520, %c3_521, %c0_522], %604 {strides = array<i32>} : memref<2x2x12x64xbf16, #tpu.memory_space<vmem>>, vector<1x1x3x64xbf16>,
    %605 = vector.extract_strided_slice %599 {offsets = [3, 0], sizes = [3, 64], strides = [1, 1]} : vector<6x64xf32> to vector<3x64xf32>
    %606 = arith.truncf %605 : vector<3x64xf32> to vector<3x64xbf16>
    %c0_523 = arith.constant 0 : index
    %c1_524 = arith.constant 1 : index
    %c3_525 = arith.constant 3 : index
    %c0_526 = arith.constant 0 : index
    %607 = vector.load %arg19[%c0_523, %c1_524, %c3_525, %c0_526] : memref<2x2x12x64xbf16, #tpu.memory_space<vmem>>, vector<1x1x3x64xbf16>
    %608 = vector.shape_cast %607 : vector<1x1x3x64xbf16> to vector<3x64xbf16>
    %609 = vector.shape_cast %606 : vector<3x64xbf16> to vector<1x1x3x64xbf16>
    tpu.vector_store %arg19[%c0_523, %c1_524, %c3_525, %c0_526], %609 {strides = array<i32>} : memref<2x2x12x64xbf16, #tpu.memory_space<vmem>>, vector<1x1x3x64xbf16>,
    %c10_527 = arith.constant 10 : index
    %c0_528 = arith.constant 0 : index
    %610 = vector.load %arg18[%c10_527, %c0_528] : memref<20x64xbf16, #tpu.memory_space<vmem>>, vector<5x64xbf16>
    %cst_529 = arith.constant dense<0.000000e+00> : vector<6x64xf32>
    %611 = tpu.matmul %585, %610, %cst_529 {dimension_numbers = #tpu.dot_dimension_numbers<[1], [0], [0], [1], [0, 0, 1, 1], [], []>} : vector<6x5xbf16>, vector<5x64xbf16>, vector<6x64xf32> -> vector<6x64xf32>
    %612 = vector.extract_strided_slice %611 {offsets = [0, 0], sizes = [3, 64], strides = [1, 1]} : vector<6x64xf32> to vector<3x64xf32>
    %613 = arith.truncf %612 : vector<3x64xf32> to vector<3x64xbf16>
    %c1_530 = arith.constant 1 : index
    %c0_531 = arith.constant 0 : index
    %c3_532 = arith.constant 3 : index
    %c0_533 = arith.constant 0 : index
    %614 = vector.load %arg19[%c1_530, %c0_531, %c3_532, %c0_533] : memref<2x2x12x64xbf16, #tpu.memory_space<vmem>>, vector<1x1x3x64xbf16>
    %615 = vector.shape_cast %614 : vector<1x1x3x64xbf16> to vector<3x64xbf16>
    %616 = vector.shape_cast %613 : vector<3x64xbf16> to vector<1x1x3x64xbf16>
    tpu.vector_store %arg19[%c1_530, %c0_531, %c3_532, %c0_533], %616 {strides = array<i32>} : memref<2x2x12x64xbf16, #tpu.memory_space<vmem>>, vector<1x1x3x64xbf16>,
    %617 = vector.extract_strided_slice %611 {offsets = [3, 0], sizes = [3, 64], strides = [1, 1]} : vector<6x64xf32> to vector<3x64xf32>
    %618 = arith.truncf %617 : vector<3x64xf32> to vector<3x64xbf16>
    %c1_534 = arith.constant 1 : index
    %c1_535 = arith.constant 1 : index
    %c3_536 = arith.constant 3 : index
    %c0_537 = arith.constant 0 : index
    %619 = vector.load %arg19[%c1_534, %c1_535, %c3_536, %c0_537] : memref<2x2x12x64xbf16, #tpu.memory_space<vmem>>, vector<1x1x3x64xbf16>
    %620 = vector.shape_cast %619 : vector<1x1x3x64xbf16> to vector<3x64xbf16>
    %621 = vector.shape_cast %618 : vector<3x64xbf16> to vector<1x1x3x64xbf16>
    tpu.vector_store %arg19[%c1_534, %c1_535, %c3_536, %c0_537], %621 {strides = array<i32>} : memref<2x2x12x64xbf16, #tpu.memory_space<vmem>>, vector<1x1x3x64xbf16>,
    %c15_538 = arith.constant 15 : index
    %c0_539 = arith.constant 0 : index
    %622 = vector.load %arg18[%c15_538, %c0_539] : memref<20x64xbf16, #tpu.memory_space<vmem>>, vector<5x64xbf16>
    %cst_540 = arith.constant dense<0.000000e+00> : vector<6x64xf32>
    %623 = tpu.matmul %585, %622, %cst_540 {dimension_numbers = #tpu.dot_dimension_numbers<[1], [0], [0], [1], [0, 0, 1, 1], [], []>} : vector<6x5xbf16>, vector<5x64xbf16>, vector<6x64xf32> -> vector<6x64xf32>
    %624 = vector.extract_strided_slice %623 {offsets = [0, 0], sizes = [3, 64], strides = [1, 1]} : vector<6x64xf32> to vector<3x64xf32>
    %625 = arith.truncf %624 : vector<3x64xf32> to vector<3x64xbf16>
    %c0_541 = arith.constant 0 : index
    %c0_542 = arith.constant 0 : index
    %c6_543 = arith.constant 6 : index
    %c0_544 = arith.constant 0 : index
    %626 = vector.load %arg19[%c0_541, %c0_542, %c6_543, %c0_544] : memref<2x2x12x64xbf16, #tpu.memory_space<vmem>>, vector<1x1x3x64xbf16>
    %627 = vector.shape_cast %626 : vector<1x1x3x64xbf16> to vector<3x64xbf16>
    %628 = vector.shape_cast %625 : vector<3x64xbf16> to vector<1x1x3x64xbf16>
    tpu.vector_store %arg19[%c0_541, %c0_542, %c6_543, %c0_544], %628 {strides = array<i32>} : memref<2x2x12x64xbf16, #tpu.memory_space<vmem>>, vector<1x1x3x64xbf16>,
    %629 = vector.extract_strided_slice %623 {offsets = [3, 0], sizes = [3, 64], strides = [1, 1]} : vector<6x64xf32> to vector<3x64xf32>
    %630 = arith.truncf %629 : vector<3x64xf32> to vector<3x64xbf16>
    %c0_545 = arith.constant 0 : index
    %c1_546 = arith.constant 1 : index
    %c6_547 = arith.constant 6 : index
    %c0_548 = arith.constant 0 : index
    %631 = vector.load %arg19[%c0_545, %c1_546, %c6_547, %c0_548] : memref<2x2x12x64xbf16, #tpu.memory_space<vmem>>, vector<1x1x3x64xbf16>
    %632 = vector.shape_cast %631 : vector<1x1x3x64xbf16> to vector<3x64xbf16>
    %633 = vector.shape_cast %630 : vector<3x64xbf16> to vector<1x1x3x64xbf16>
    tpu.vector_store %arg19[%c0_545, %c1_546, %c6_547, %c0_548], %633 {strides = array<i32>} : memref<2x2x12x64xbf16, #tpu.memory_space<vmem>>, vector<1x1x3x64xbf16>,
    %c0_549 = arith.constant 0 : index
    %c0_550 = arith.constant 0 : index
    %c0_551 = arith.constant 0 : index
    %c0_552 = arith.constant 0 : index
    %634 = vector.load %arg19[%c0_549, %c0_550, %c0_551, %c0_552] : memref<2x2x12x64xbf16, #tpu.memory_space<vmem>>, vector<1x1x6x64xbf16>
    %635 = vector.shape_cast %634 : vector<1x1x6x64xbf16> to vector<6x64xbf16>
    %c0_553 = arith.constant 0 : index
    %c0_554 = arith.constant 0 : index
    %636 = vector.load %arg20[%c0_553, %c0_554] : memref<6x576xbf16, #tpu.memory_space<vmem>>, vector<6x64xbf16>
    tpu.vector_store %arg20[%c0_553, %c0_554], %635 {strides = array<i32>} : memref<6x576xbf16, #tpu.memory_space<vmem>>, vector<6x64xbf16>,
    %c0_555 = arith.constant 0 : index
    %c1_556 = arith.constant 1 : index
    %c0_557 = arith.constant 0 : index
    %c0_558 = arith.constant 0 : index
    %637 = vector.load %arg19[%c0_555, %c1_556, %c0_557, %c0_558] : memref<2x2x12x64xbf16, #tpu.memory_space<vmem>>, vector<1x1x6x64xbf16>
    %638 = vector.shape_cast %637 : vector<1x1x6x64xbf16> to vector<6x64xbf16>
    %c0_559 = arith.constant 0 : index
    %c64_560 = arith.constant 64 : index
    %639 = vector.load %arg20[%c0_559, %c64_560] : memref<6x576xbf16, #tpu.memory_space<vmem>>, vector<6x64xbf16>
    tpu.vector_store %arg20[%c0_559, %c64_560], %638 {strides = array<i32>} : memref<6x576xbf16, #tpu.memory_space<vmem>>, vector<6x64xbf16>,
    %c0_561 = arith.constant 0 : index
    %c0_562 = arith.constant 0 : index
    %c1_563 = arith.constant 1 : index
    %c0_564 = arith.constant 0 : index
    %640 = vector.load %arg19[%c0_561, %c0_562, %c1_563, %c0_564] : memref<2x2x12x64xbf16, #tpu.memory_space<vmem>>, vector<1x1x6x64xbf16>
    %641 = vector.shape_cast %640 : vector<1x1x6x64xbf16> to vector<6x64xbf16>
    %c0_565 = arith.constant 0 : index
    %c128_566 = arith.constant 128 : index
    %642 = vector.load %arg20[%c0_565, %c128_566] : memref<6x576xbf16, #tpu.memory_space<vmem>>, vector<6x64xbf16>
    tpu.vector_store %arg20[%c0_565, %c128_566], %641 {strides = array<i32>} : memref<6x576xbf16, #tpu.memory_space<vmem>>, vector<6x64xbf16>,
    %c1_567 = arith.constant 1 : index
    %c0_568 = arith.constant 0 : index
    %c0_569 = arith.constant 0 : index
    %c0_570 = arith.constant 0 : index
    %643 = vector.load %arg19[%c1_567, %c0_568, %c0_569, %c0_570] : memref<2x2x12x64xbf16, #tpu.memory_space<vmem>>, vector<1x1x6x64xbf16>
    %644 = vector.shape_cast %643 : vector<1x1x6x64xbf16> to vector<6x64xbf16>
    %c0_571 = arith.constant 0 : index
    %c192_572 = arith.constant 192 : index
    %645 = vector.load %arg20[%c0_571, %c192_572] : memref<6x576xbf16, #tpu.memory_space<vmem>>, vector<6x64xbf16>
    tpu.vector_store %arg20[%c0_571, %c192_572], %644 {strides = array<i32>} : memref<6x576xbf16, #tpu.memory_space<vmem>>, vector<6x64xbf16>,
    %c1_573 = arith.constant 1 : index
    %c1_574 = arith.constant 1 : index
    %c0_575 = arith.constant 0 : index
    %c0_576 = arith.constant 0 : index
    %646 = vector.load %arg19[%c1_573, %c1_574, %c0_575, %c0_576] : memref<2x2x12x64xbf16, #tpu.memory_space<vmem>>, vector<1x1x6x64xbf16>
    %647 = vector.shape_cast %646 : vector<1x1x6x64xbf16> to vector<6x64xbf16>
    %c0_577 = arith.constant 0 : index
    %c256_578 = arith.constant 256 : index
    %648 = vector.load %arg20[%c0_577, %c256_578] : memref<6x576xbf16, #tpu.memory_space<vmem>>, vector<6x64xbf16>
    tpu.vector_store %arg20[%c0_577, %c256_578], %647 {strides = array<i32>} : memref<6x576xbf16, #tpu.memory_space<vmem>>, vector<6x64xbf16>,
    %c1_579 = arith.constant 1 : index
    %c0_580 = arith.constant 0 : index
    %c1_581 = arith.constant 1 : index
    %c0_582 = arith.constant 0 : index
    %649 = vector.load %arg19[%c1_579, %c0_580, %c1_581, %c0_582] : memref<2x2x12x64xbf16, #tpu.memory_space<vmem>>, vector<1x1x6x64xbf16>
    %650 = vector.shape_cast %649 : vector<1x1x6x64xbf16> to vector<6x64xbf16>
    %c0_583 = arith.constant 0 : index
    %c320 = arith.constant 320 : index
    %651 = vector.load %arg20[%c0_583, %c320] : memref<6x576xbf16, #tpu.memory_space<vmem>>, vector<6x64xbf16>
    tpu.vector_store %arg20[%c0_583, %c320], %650 {strides = array<i32>} : memref<6x576xbf16, #tpu.memory_space<vmem>>, vector<6x64xbf16>,
    %c0_584 = arith.constant 0 : index
    %c0_585 = arith.constant 0 : index
    %c3_586 = arith.constant 3 : index
    %c0_587 = arith.constant 0 : index
    %652 = vector.load %arg19[%c0_584, %c0_585, %c3_586, %c0_587] : memref<2x2x12x64xbf16, #tpu.memory_space<vmem>>, vector<1x1x6x64xbf16>
    %653 = vector.shape_cast %652 : vector<1x1x6x64xbf16> to vector<6x64xbf16>
    %c0_588 = arith.constant 0 : index
    %c384 = arith.constant 384 : index
    %654 = vector.load %arg20[%c0_588, %c384] : memref<6x576xbf16, #tpu.memory_space<vmem>>, vector<6x64xbf16>
    tpu.vector_store %arg20[%c0_588, %c384], %653 {strides = array<i32>} : memref<6x576xbf16, #tpu.memory_space<vmem>>, vector<6x64xbf16>,
    %c0_589 = arith.constant 0 : index
    %c1_590 = arith.constant 1 : index
    %c3_591 = arith.constant 3 : index
    %c0_592 = arith.constant 0 : index
    %655 = vector.load %arg19[%c0_589, %c1_590, %c3_591, %c0_592] : memref<2x2x12x64xbf16, #tpu.memory_space<vmem>>, vector<1x1x6x64xbf16>
    %656 = vector.shape_cast %655 : vector<1x1x6x64xbf16> to vector<6x64xbf16>
    %c0_593 = arith.constant 0 : index
    %c448 = arith.constant 448 : index
    %657 = vector.load %arg20[%c0_593, %c448] : memref<6x576xbf16, #tpu.memory_space<vmem>>, vector<6x64xbf16>
    tpu.vector_store %arg20[%c0_593, %c448], %656 {strides = array<i32>} : memref<6x576xbf16, #tpu.memory_space<vmem>>, vector<6x64xbf16>,
    %c0_594 = arith.constant 0 : index
    %c0_595 = arith.constant 0 : index
    %c4_596 = arith.constant 4 : index
    %c0_597 = arith.constant 0 : index
    %658 = vector.load %arg19[%c0_594, %c0_595, %c4_596, %c0_597] : memref<2x2x12x64xbf16, #tpu.memory_space<vmem>>, vector<1x1x6x64xbf16>
    %659 = vector.shape_cast %658 : vector<1x1x6x64xbf16> to vector<6x64xbf16>
    %c0_598 = arith.constant 0 : index
    %c512 = arith.constant 512 : index
    %660 = vector.load %arg20[%c0_598, %c512] : memref<6x576xbf16, #tpu.memory_space<vmem>>, vector<6x64xbf16>
    tpu.vector_store %arg20[%c0_598, %c512], %659 {strides = array<i32>} : memref<6x576xbf16, #tpu.memory_space<vmem>>, vector<6x64xbf16>,
    %c0_599 = arith.constant 0 : index
    %c0_600 = arith.constant 0 : index
    %661 = vector.load %arg20[%c0_599, %c0_600] : memref<6x576xbf16, #tpu.memory_space<vmem>>, vector<6x576xbf16>
    %c0_601 = arith.constant 0 : index
    %c0_602 = arith.constant 0 : index
    %662 = vector.load %arg8[%c0_601, %c0_602] : memref<576x128xbf16, #tpu.memory_space<vmem>>, vector<576x128xbf16>
    %cst_603 = arith.constant dense<0.000000e+00> : vector<6x128xf32>
    %663 = tpu.matmul %661, %662, %cst_603 {dimension_numbers = #tpu.dot_dimension_numbers<[1], [0], [0], [1], [0, 0, 1, 1], [], []>} : vector<6x576xbf16>, vector<576x128xbf16>, vector<6x128xf32> -> vector<6x128xf32>
    %c0_604 = arith.constant 0 : index
    %c0_605 = arith.constant 0 : index
    %664 = vector.load %arg9[%c0_604, %c0_605] : memref<1x128xf32, #tpu.memory_space<vmem>>, vector<1x128xf32>
    %665 = vector.broadcast %664 : vector<1x128xf32> to vector<6x128xf32>
    %666 = arith.addf %663, %665 : vector<6x128xf32>
    %cst_606 = arith.constant 0.000000e+00 : f32
    %667 = vector.broadcast %cst_606 : f32 to vector<6x128xf32>
    %668 = arith.maximumf %666, %667 : vector<6x128xf32>
    %669 = arith.truncf %668 : vector<6x128xf32> to vector<6x128xbf16>
    %c0_607 = arith.constant 0 : index
    %c0_608 = arith.constant 0 : index
    %670 = vector.load %arg21[%c0_607, %c0_608] : memref<6x128xbf16, #tpu.memory_space<vmem>>, vector<6x128xbf16>
    tpu.vector_store %arg21[%c0_607, %c0_608], %669 {strides = array<i32>} : memref<6x128xbf16, #tpu.memory_space<vmem>>, vector<6x128xbf16>,
    %cst_609 = arith.constant 0.000000e+00 : bf16
    %671 = vector.broadcast %cst_609 : bf16 to vector<2x2x6x128xbf16>
    %c0_610 = arith.constant 0 : index
    %c0_611 = arith.constant 0 : index
    %c0_612 = arith.constant 0 : index
    %c0_613 = arith.constant 0 : index
    %672 = vector.load %arg22[%c0_610, %c0_611, %c0_612, %c0_613] : memref<2x2x6x128xbf16, #tpu.memory_space<vmem>>, vector<2x2x6x128xbf16>
    tpu.vector_store %arg22[%c0_610, %c0_611, %c0_612, %c0_613], %671 {strides = array<i32>} : memref<2x2x6x128xbf16, #tpu.memory_space<vmem>>, vector<2x2x6x128xbf16>,
    %673 = tpu.iota {dimensions = array<i32: 0>} : vector<4x3xi32>
    %674 = tpu.iota {dimensions = array<i32: 1>} : vector<4x3xi32>
    %c2_i32_614 = arith.constant 2 : i32
    %675 = vector.broadcast %c2_i32_614 : i32 to vector<4x3xi32>
    %676 = arith.cmpi sge, %673, %675 : vector<4x3xi32>
    %677 = arith.extui %676 : vector<4x3xi1> to vector<4x3xi32>
    %c2_i32_615 = arith.constant 2 : i32
    %678 = vector.broadcast %c2_i32_615 : i32 to vector<4x3xi32>
    %679 = arith.muli %677, %678 : vector<4x3xi32>
    %680 = arith.subi %673, %679 : vector<4x3xi32>
    %c2_i32_616 = arith.constant 2 : i32
    %681 = vector.broadcast %c2_i32_616 : i32 to vector<4x3xi32>
    %682 = arith.muli %681, %680 : vector<4x3xi32>
    %683 = arith.addi %682, %677 : vector<4x3xi32>
    %c1_i32_617 = arith.constant 1 : i32
    %684 = vector.broadcast %c1_i32_617 : i32 to vector<4x3xi32>
    %685 = arith.subi %683, %684 : vector<4x3xi32>
    %686 = arith.cmpi eq, %674, %685 : vector<4x3xi32>
    %c0_i32_618 = arith.constant 0 : i32
    %687 = vector.broadcast %c0_i32_618 : i32 to vector<4x3xi32>
    %688 = arith.cmpi sge, %685, %687 : vector<4x3xi32>
    %689 = arith.andi %686, %688 : vector<4x3xi1>
    %c2_i32_619 = arith.constant 2 : i32
    %690 = vector.broadcast %c2_i32_619 : i32 to vector<4x3xi32>
    %691 = arith.cmpi slt, %685, %690 : vector<4x3xi32>
    %692 = arith.andi %689, %691 : vector<4x3xi1>
    %cst_620 = arith.constant 1.000000e+00 : f32
    %cst_621 = arith.constant 0.000000e+00 : f32
    %693 = vector.broadcast %cst_620 : f32 to vector<4x3xf32>
    %694 = vector.broadcast %cst_621 : f32 to vector<4x3xf32>
    %695 = arith.select %692, %693, %694 : vector<4x3xi1>, vector<4x3xf32>
    %696 = arith.truncf %695 : vector<4x3xf32> to vector<4x3xbf16>
    %c0_622 = arith.constant 0 : index
    %c0_623 = arith.constant 0 : index
    %697 = vector.load %arg21[%c0_622, %c0_623] : memref<6x128xbf16, #tpu.memory_space<vmem>>, vector<3x128xbf16>
    %cst_624 = arith.constant dense<0.000000e+00> : vector<4x128xf32>
    %698 = tpu.matmul %696, %697, %cst_624 {dimension_numbers = #tpu.dot_dimension_numbers<[1], [0], [0], [1], [0, 0, 1, 1], [], []>} : vector<4x3xbf16>, vector<3x128xbf16>, vector<4x128xf32> -> vector<4x128xf32>
    %699 = vector.extract_strided_slice %698 {offsets = [0, 0], sizes = [2, 128], strides = [1, 1]} : vector<4x128xf32> to vector<2x128xf32>
    %700 = arith.truncf %699 : vector<2x128xf32> to vector<2x128xbf16>
    %c1_625 = arith.constant 1 : index
    %c0_626 = arith.constant 0 : index
    %c0_627 = arith.constant 0 : index
    %c0_628 = arith.constant 0 : index
    %701 = vector.load %arg22[%c1_625, %c0_626, %c0_627, %c0_628] : memref<2x2x6x128xbf16, #tpu.memory_space<vmem>>, vector<1x1x2x128xbf16>
    %702 = vector.shape_cast %701 : vector<1x1x2x128xbf16> to vector<2x128xbf16>
    %703 = vector.shape_cast %700 : vector<2x128xbf16> to vector<1x1x2x128xbf16>
    tpu.vector_store %arg22[%c1_625, %c0_626, %c0_627, %c0_628], %703 {strides = array<i32>} : memref<2x2x6x128xbf16, #tpu.memory_space<vmem>>, vector<1x1x2x128xbf16>,
    %704 = vector.extract_strided_slice %698 {offsets = [2, 0], sizes = [2, 128], strides = [1, 1]} : vector<4x128xf32> to vector<2x128xf32>
    %705 = arith.truncf %704 : vector<2x128xf32> to vector<2x128xbf16>
    %c1_629 = arith.constant 1 : index
    %c1_630 = arith.constant 1 : index
    %c0_631 = arith.constant 0 : index
    %c0_632 = arith.constant 0 : index
    %706 = vector.load %arg22[%c1_629, %c1_630, %c0_631, %c0_632] : memref<2x2x6x128xbf16, #tpu.memory_space<vmem>>, vector<1x1x2x128xbf16>
    %707 = vector.shape_cast %706 : vector<1x1x2x128xbf16> to vector<2x128xbf16>
    %708 = vector.shape_cast %705 : vector<2x128xbf16> to vector<1x1x2x128xbf16>
    tpu.vector_store %arg22[%c1_629, %c1_630, %c0_631, %c0_632], %708 {strides = array<i32>} : memref<2x2x6x128xbf16, #tpu.memory_space<vmem>>, vector<1x1x2x128xbf16>,
    %c3_633 = arith.constant 3 : index
    %c0_634 = arith.constant 0 : index
    %709 = vector.load %arg21[%c3_633, %c0_634] : memref<6x128xbf16, #tpu.memory_space<vmem>>, vector<3x128xbf16>
    %cst_635 = arith.constant dense<0.000000e+00> : vector<4x128xf32>
    %710 = tpu.matmul %696, %709, %cst_635 {dimension_numbers = #tpu.dot_dimension_numbers<[1], [0], [0], [1], [0, 0, 1, 1], [], []>} : vector<4x3xbf16>, vector<3x128xbf16>, vector<4x128xf32> -> vector<4x128xf32>
    %711 = vector.extract_strided_slice %710 {offsets = [0, 0], sizes = [2, 128], strides = [1, 1]} : vector<4x128xf32> to vector<2x128xf32>
    %712 = arith.truncf %711 : vector<2x128xf32> to vector<2x128xbf16>
    %c0_636 = arith.constant 0 : index
    %c0_637 = arith.constant 0 : index
    %c2_638 = arith.constant 2 : index
    %c0_639 = arith.constant 0 : index
    %713 = vector.load %arg22[%c0_636, %c0_637, %c2_638, %c0_639] : memref<2x2x6x128xbf16, #tpu.memory_space<vmem>>, vector<1x1x2x128xbf16>
    %714 = vector.shape_cast %713 : vector<1x1x2x128xbf16> to vector<2x128xbf16>
    %715 = vector.shape_cast %712 : vector<2x128xbf16> to vector<1x1x2x128xbf16>
    tpu.vector_store %arg22[%c0_636, %c0_637, %c2_638, %c0_639], %715 {strides = array<i32>} : memref<2x2x6x128xbf16, #tpu.memory_space<vmem>>, vector<1x1x2x128xbf16>,
    %716 = vector.extract_strided_slice %710 {offsets = [2, 0], sizes = [2, 128], strides = [1, 1]} : vector<4x128xf32> to vector<2x128xf32>
    %717 = arith.truncf %716 : vector<2x128xf32> to vector<2x128xbf16>
    %c0_640 = arith.constant 0 : index
    %c1_641 = arith.constant 1 : index
    %c2_642 = arith.constant 2 : index
    %c0_643 = arith.constant 0 : index
    %718 = vector.load %arg22[%c0_640, %c1_641, %c2_642, %c0_643] : memref<2x2x6x128xbf16, #tpu.memory_space<vmem>>, vector<1x1x2x128xbf16>
    %719 = vector.shape_cast %718 : vector<1x1x2x128xbf16> to vector<2x128xbf16>
    %720 = vector.shape_cast %717 : vector<2x128xbf16> to vector<1x1x2x128xbf16>
    tpu.vector_store %arg22[%c0_640, %c1_641, %c2_642, %c0_643], %720 {strides = array<i32>} : memref<2x2x6x128xbf16, #tpu.memory_space<vmem>>, vector<1x1x2x128xbf16>,
    %c0_644 = arith.constant 0 : index
    %c0_645 = arith.constant 0 : index
    %c0_646 = arith.constant 0 : index
    %c0_647 = arith.constant 0 : index
    %721 = vector.load %arg22[%c0_644, %c0_645, %c0_646, %c0_647] : memref<2x2x6x128xbf16, #tpu.memory_space<vmem>>, vector<1x1x2x128xbf16>
    %722 = vector.shape_cast %721 : vector<1x1x2x128xbf16> to vector<2x128xbf16>
    %c0_648 = arith.constant 0 : index
    %c0_649 = arith.constant 0 : index
    %723 = vector.load %arg23[%c0_648, %c0_649] : memref<2x1152xbf16, #tpu.memory_space<vmem>>, vector<2x128xbf16>
    tpu.vector_store %arg23[%c0_648, %c0_649], %722 {strides = array<i32>} : memref<2x1152xbf16, #tpu.memory_space<vmem>>, vector<2x128xbf16>,
    %c0_650 = arith.constant 0 : index
    %c1_651 = arith.constant 1 : index
    %c0_652 = arith.constant 0 : index
    %c0_653 = arith.constant 0 : index
    %724 = vector.load %arg22[%c0_650, %c1_651, %c0_652, %c0_653] : memref<2x2x6x128xbf16, #tpu.memory_space<vmem>>, vector<1x1x2x128xbf16>
    %725 = vector.shape_cast %724 : vector<1x1x2x128xbf16> to vector<2x128xbf16>
    %c0_654 = arith.constant 0 : index
    %c128_655 = arith.constant 128 : index
    %726 = vector.load %arg23[%c0_654, %c128_655] : memref<2x1152xbf16, #tpu.memory_space<vmem>>, vector<2x128xbf16>
    tpu.vector_store %arg23[%c0_654, %c128_655], %725 {strides = array<i32>} : memref<2x1152xbf16, #tpu.memory_space<vmem>>, vector<2x128xbf16>,
    %c0_656 = arith.constant 0 : index
    %c0_657 = arith.constant 0 : index
    %c1_658 = arith.constant 1 : index
    %c0_659 = arith.constant 0 : index
    %727 = vector.load %arg22[%c0_656, %c0_657, %c1_658, %c0_659] : memref<2x2x6x128xbf16, #tpu.memory_space<vmem>>, vector<1x1x2x128xbf16>
    %728 = vector.shape_cast %727 : vector<1x1x2x128xbf16> to vector<2x128xbf16>
    %c0_660 = arith.constant 0 : index
    %c256_661 = arith.constant 256 : index
    %729 = vector.load %arg23[%c0_660, %c256_661] : memref<2x1152xbf16, #tpu.memory_space<vmem>>, vector<2x128xbf16>
    tpu.vector_store %arg23[%c0_660, %c256_661], %728 {strides = array<i32>} : memref<2x1152xbf16, #tpu.memory_space<vmem>>, vector<2x128xbf16>,
    %c1_662 = arith.constant 1 : index
    %c0_663 = arith.constant 0 : index
    %c0_664 = arith.constant 0 : index
    %c0_665 = arith.constant 0 : index
    %730 = vector.load %arg22[%c1_662, %c0_663, %c0_664, %c0_665] : memref<2x2x6x128xbf16, #tpu.memory_space<vmem>>, vector<1x1x2x128xbf16>
    %731 = vector.shape_cast %730 : vector<1x1x2x128xbf16> to vector<2x128xbf16>
    %c0_666 = arith.constant 0 : index
    %c384_667 = arith.constant 384 : index
    %732 = vector.load %arg23[%c0_666, %c384_667] : memref<2x1152xbf16, #tpu.memory_space<vmem>>, vector<2x128xbf16>
    tpu.vector_store %arg23[%c0_666, %c384_667], %731 {strides = array<i32>} : memref<2x1152xbf16, #tpu.memory_space<vmem>>, vector<2x128xbf16>,
    %c1_668 = arith.constant 1 : index
    %c1_669 = arith.constant 1 : index
    %c0_670 = arith.constant 0 : index
    %c0_671 = arith.constant 0 : index
    %733 = vector.load %arg22[%c1_668, %c1_669, %c0_670, %c0_671] : memref<2x2x6x128xbf16, #tpu.memory_space<vmem>>, vector<1x1x2x128xbf16>
    %734 = vector.shape_cast %733 : vector<1x1x2x128xbf16> to vector<2x128xbf16>
    %c0_672 = arith.constant 0 : index
    %c512_673 = arith.constant 512 : index
    %735 = vector.load %arg23[%c0_672, %c512_673] : memref<2x1152xbf16, #tpu.memory_space<vmem>>, vector<2x128xbf16>
    tpu.vector_store %arg23[%c0_672, %c512_673], %734 {strides = array<i32>} : memref<2x1152xbf16, #tpu.memory_space<vmem>>, vector<2x128xbf16>,
    %c1_674 = arith.constant 1 : index
    %c0_675 = arith.constant 0 : index
    %c1_676 = arith.constant 1 : index
    %c0_677 = arith.constant 0 : index
    %736 = vector.load %arg22[%c1_674, %c0_675, %c1_676, %c0_677] : memref<2x2x6x128xbf16, #tpu.memory_space<vmem>>, vector<1x1x2x128xbf16>
    %737 = vector.shape_cast %736 : vector<1x1x2x128xbf16> to vector<2x128xbf16>
    %c0_678 = arith.constant 0 : index
    %c640 = arith.constant 640 : index
    %738 = vector.load %arg23[%c0_678, %c640] : memref<2x1152xbf16, #tpu.memory_space<vmem>>, vector<2x128xbf16>
    tpu.vector_store %arg23[%c0_678, %c640], %737 {strides = array<i32>} : memref<2x1152xbf16, #tpu.memory_space<vmem>>, vector<2x128xbf16>,
    %c0_679 = arith.constant 0 : index
    %c0_680 = arith.constant 0 : index
    %c2_681 = arith.constant 2 : index
    %c0_682 = arith.constant 0 : index
    %739 = vector.load %arg22[%c0_679, %c0_680, %c2_681, %c0_682] : memref<2x2x6x128xbf16, #tpu.memory_space<vmem>>, vector<1x1x2x128xbf16>
    %740 = vector.shape_cast %739 : vector<1x1x2x128xbf16> to vector<2x128xbf16>
    %c0_683 = arith.constant 0 : index
    %c768 = arith.constant 768 : index
    %741 = vector.load %arg23[%c0_683, %c768] : memref<2x1152xbf16, #tpu.memory_space<vmem>>, vector<2x128xbf16>
    tpu.vector_store %arg23[%c0_683, %c768], %740 {strides = array<i32>} : memref<2x1152xbf16, #tpu.memory_space<vmem>>, vector<2x128xbf16>,
    %c0_684 = arith.constant 0 : index
    %c1_685 = arith.constant 1 : index
    %c2_686 = arith.constant 2 : index
    %c0_687 = arith.constant 0 : index
    %742 = vector.load %arg22[%c0_684, %c1_685, %c2_686, %c0_687] : memref<2x2x6x128xbf16, #tpu.memory_space<vmem>>, vector<1x1x2x128xbf16>
    %743 = vector.shape_cast %742 : vector<1x1x2x128xbf16> to vector<2x128xbf16>
    %c0_688 = arith.constant 0 : index
    %c896 = arith.constant 896 : index
    %744 = vector.load %arg23[%c0_688, %c896] : memref<2x1152xbf16, #tpu.memory_space<vmem>>, vector<2x128xbf16>
    tpu.vector_store %arg23[%c0_688, %c896], %743 {strides = array<i32>} : memref<2x1152xbf16, #tpu.memory_space<vmem>>, vector<2x128xbf16>,
    %c0_689 = arith.constant 0 : index
    %c0_690 = arith.constant 0 : index
    %c3_691 = arith.constant 3 : index
    %c0_692 = arith.constant 0 : index
    %745 = vector.load %arg22[%c0_689, %c0_690, %c3_691, %c0_692] : memref<2x2x6x128xbf16, #tpu.memory_space<vmem>>, vector<1x1x2x128xbf16>
    %746 = vector.shape_cast %745 : vector<1x1x2x128xbf16> to vector<2x128xbf16>
    %c0_693 = arith.constant 0 : index
    %c1024 = arith.constant 1024 : index
    %747 = vector.load %arg23[%c0_693, %c1024] : memref<2x1152xbf16, #tpu.memory_space<vmem>>, vector<2x128xbf16>
    tpu.vector_store %arg23[%c0_693, %c1024], %746 {strides = array<i32>} : memref<2x1152xbf16, #tpu.memory_space<vmem>>, vector<2x128xbf16>,
    %c0_694 = arith.constant 0 : index
    %c0_695 = arith.constant 0 : index
    %748 = vector.load %arg23[%c0_694, %c0_695] : memref<2x1152xbf16, #tpu.memory_space<vmem>>, vector<2x1152xbf16>
    %c0_696 = arith.constant 0 : index
    %c0_697 = arith.constant 0 : index
    %749 = vector.load %arg10[%c0_696, %c0_697] : memref<1152x256xbf16, #tpu.memory_space<vmem>>, vector<1152x256xbf16>
    %cst_698 = arith.constant dense<0.000000e+00> : vector<2x256xf32>
    %750 = tpu.matmul %748, %749, %cst_698 {dimension_numbers = #tpu.dot_dimension_numbers<[1], [0], [0], [1], [0, 0, 1, 1], [], []>} : vector<2x1152xbf16>, vector<1152x256xbf16>, vector<2x256xf32> -> vector<2x256xf32>
    %c0_699 = arith.constant 0 : index
    %c0_700 = arith.constant 0 : index
    %751 = vector.load %arg11[%c0_699, %c0_700] : memref<1x256xf32, #tpu.memory_space<vmem>>, vector<1x256xf32>
    %752 = vector.broadcast %751 : vector<1x256xf32> to vector<2x256xf32>
    %753 = arith.addf %750, %752 : vector<2x256xf32>
    %cst_701 = arith.constant 0.000000e+00 : f32
    %754 = vector.broadcast %cst_701 : f32 to vector<2x256xf32>
    %755 = arith.maximumf %753, %754 : vector<2x256xf32>
    %cst_702 = arith.constant 0.000000e+00 : f32
    %756 = vector.broadcast %cst_702 : f32 to vector<1x256xf32>
    %757 = vector.extract_strided_slice %755 {offsets = [0, 0], sizes = [1, 256], strides = [1, 1]} : vector<2x256xf32> to vector<1x256xf32>
    %cst_703 = arith.constant dense<0.000000e+00> : vector<256xf32>
    %758 = vector.multi_reduction <add>, %757, %cst_703 [0] : vector<1x256xf32> to vector<256xf32>
    %759 = vector.shape_cast %758 : vector<256xf32> to vector<1x256xf32>
    %760 = arith.addf %756, %759 : vector<1x256xf32>
    %cst_704 = arith.constant 1.000000e+00 : f32
    %761 = vector.broadcast %cst_704 : f32 to vector<1x256xf32>
    %762 = arith.mulf %760, %761 : vector<1x256xf32>
    %c0_705 = arith.constant 0 : index
    %c0_706 = arith.constant 0 : index
    %c0_707 = arith.constant 0 : index
    %763 = vector.load %arg12[%c0_705, %c0_706, %c0_707] : memref<1x1x256xf32, #tpu.memory_space<vmem>>, vector<1x1x256xf32>
    %764 = vector.shape_cast %763 : vector<1x1x256xf32> to vector<1x256xf32>
    %765 = vector.shape_cast %762 : vector<1x256xf32> to vector<1x1x256xf32>
    tpu.vector_store %arg12[%c0_705, %c0_706, %c0_707], %765 {strides = array<i32>} : memref<1x1x256xf32, #tpu.memory_space<vmem>>, vector<1x1x256xf32>,
    return
  }
  func.func @transform_0(%arg0: i32) -> (i32, i32, i32, i32) {
    %c0_i32 = arith.constant 0 : i32
    %c0_i32_0 = arith.constant 0 : i32
    %c0_i32_1 = arith.constant 0 : i32
    %c0_i32_2 = arith.constant 0 : i32
    return %arg0, %c0_i32, %c0_i32_0, %c0_i32_1 : i32, i32, i32, i32
  }
  func.func @transform_1(%arg0: i32) -> (i32, i32) {
    %c0_i32 = arith.constant 0 : i32
    %c0_i32_0 = arith.constant 0 : i32
    %c0_i32_1 = arith.constant 0 : i32
    return %c0_i32, %c0_i32_0 : i32, i32
  }
  func.func @transform_2(%arg0: i32) -> (i32, i32) {
    %c0_i32 = arith.constant 0 : i32
    %c0_i32_0 = arith.constant 0 : i32
    %c0_i32_1 = arith.constant 0 : i32
    return %c0_i32, %c0_i32_0 : i32, i32
  }
  func.func @transform_3(%arg0: i32) -> (i32, i32) {
    %c0_i32 = arith.constant 0 : i32
    %c0_i32_0 = arith.constant 0 : i32
    %c0_i32_1 = arith.constant 0 : i32
    return %c0_i32, %c0_i32_0 : i32, i32
  }
  func.func @transform_4(%arg0: i32) -> (i32, i32) {
    %c0_i32 = arith.constant 0 : i32
    %c0_i32_0 = arith.constant 0 : i32
    %c0_i32_1 = arith.constant 0 : i32
    return %c0_i32, %c0_i32_0 : i32, i32
  }
  func.func @transform_5(%arg0: i32) -> (i32, i32) {
    %c0_i32 = arith.constant 0 : i32
    %c0_i32_0 = arith.constant 0 : i32
    %c0_i32_1 = arith.constant 0 : i32
    return %c0_i32, %c0_i32_0 : i32, i32
  }
  func.func @transform_6(%arg0: i32) -> (i32, i32) {
    %c0_i32 = arith.constant 0 : i32
    %c0_i32_0 = arith.constant 0 : i32
    %c0_i32_1 = arith.constant 0 : i32
    return %c0_i32, %c0_i32_0 : i32, i32
  }
  func.func @transform_7(%arg0: i32) -> (i32, i32) {
    %c0_i32 = arith.constant 0 : i32
    %c0_i32_0 = arith.constant 0 : i32
    %c0_i32_1 = arith.constant 0 : i32
    return %c0_i32, %c0_i32_0 : i32, i32
  }
  func.func @transform_8(%arg0: i32) -> (i32, i32) {
    %c0_i32 = arith.constant 0 : i32
    %c0_i32_0 = arith.constant 0 : i32
    %c0_i32_1 = arith.constant 0 : i32
    return %c0_i32, %c0_i32_0 : i32, i32
  }
  func.func @transform_9(%arg0: i32) -> (i32, i32) {
    %c0_i32 = arith.constant 0 : i32
    %c0_i32_0 = arith.constant 0 : i32
    %c0_i32_1 = arith.constant 0 : i32
    return %c0_i32, %c0_i32_0 : i32, i32
  }
  func.func @transform_10(%arg0: i32) -> (i32, i32) {
    %c0_i32 = arith.constant 0 : i32
    %c0_i32_0 = arith.constant 0 : i32
    %c0_i32_1 = arith.constant 0 : i32
    return %c0_i32, %c0_i32_0 : i32, i32
  }
  func.func @transform_11(%arg0: i32) -> (i32, i32, i32) {
    %c0_i32 = arith.constant 0 : i32
    %c0_i32_0 = arith.constant 0 : i32
    %c0_i32_1 = arith.constant 0 : i32
    return %arg0, %c0_i32, %c0_i32_0 : i32, i32, i32
  }
}

</mosaic_0001>

<llo_original>
// kernel: cnn_planner_forward.3
$region0: #{cnn_planner_forward.3}
  #allocation0 [shape = 'u32[]', space=smem, size = 0x4, offset = 0x4, fixed_abs, tag = 'smem constant byte address 0x4 - core index']
  #allocation1 [shape = 'u32[144,128]{1,0:T(1,128)}', space=vmem, size = 0x12000, scoped, tag = 'internal scratch']
  %s0 = inlined_call_operand.vmem [shape: f32[2,1,256], index: 0, kind: input, shape index: {}]
  %s1 = inlined_call_operand.vmem [shape: bf16[256,256], index: 1, kind: input, shape index: {}]
  %s2 = inlined_call_operand.vmem [shape: f32[1,256], index: 2, kind: input, shape index: {}]
  %s3 = inlined_call_operand.vmem [shape: bf16[256,128], index: 3, kind: input, shape index: {}]
  %s4 = inlined_call_operand.vmem [shape: f32[1,128], index: 4, kind: input, shape index: {}]
  %s5 = inlined_call_operand.vmem [shape: bf16[128,6], index: 5, kind: input, shape index: {}]
  %s6 = inlined_call_operand.vmem [shape: f32[1,6], index: 6, kind: input, shape index: {}]
  %s7 = inlined_call_operand.vmem [shape: f32[2,6], index: 7, kind: output, shape index: {}]
  %s8 = sld [smem:[#allocation0]]
  $region38: #{cnn_planner_forward.3} parent=0
    _
  %s10 = ssub.s32 1, %s8
  %s11 = scalar_select 0, %s10, %s8
  // Predicated region
  $region2: #{cnn_planner_forward.3} parent=0 // pred_check
    _
  $region3: #{cnn_planner_forward.3} parent=0 // pred_check_branch
    %13 = sbr.rel (0) target = $region5
  $region4: #{cnn_planner_forward.3} parent=0 // pred_region
    _
  $region5: #{cnn_planner_forward.3} parent=0 // pred_fallthru
    _
  // Predicated region
  $region6: #{cnn_planner_forward.3} parent=0 // pred_check
    _
  $region7: #{cnn_planner_forward.3} parent=0 // pred_check_branch
    %15 = sbr.rel (0) target = $region9
  $region8: #{cnn_planner_forward.3} parent=0 // pred_region
    _
  $region9: #{cnn_planner_forward.3} parent=0 // pred_fallthru
    _
  // Predicated region
  $region10: #{cnn_planner_forward.3} parent=0 // pred_check
    _
  $region11: #{cnn_planner_forward.3} parent=0 // pred_check_branch
    %17 = sbr.rel (0) target = $region13
  $region12: #{cnn_planner_forward.3} parent=0 // pred_region
    _
  $region13: #{cnn_planner_forward.3} parent=0 // pred_fallthru
    _
  // Predicated region
  $region14: #{cnn_planner_forward.3} parent=0 // pred_check
    _
  $region15: #{cnn_planner_forward.3} parent=0 // pred_check_branch
    %19 = sbr.rel (0) target = $region17
  $region16: #{cnn_planner_forward.3} parent=0 // pred_region
    _
  $region17: #{cnn_planner_forward.3} parent=0 // pred_fallthru
    _
  // Predicated region
  $region18: #{cnn_planner_forward.3} parent=0 // pred_check
    _
  $region19: #{cnn_planner_forward.3} parent=0 // pred_check_branch
    %21 = sbr.rel (0) target = $region21
  $region20: #{cnn_planner_forward.3} parent=0 // pred_region
    _
  $region21: #{cnn_planner_forward.3} parent=0 // pred_fallthru
    _
  // Predicated region
  $region22: #{cnn_planner_forward.3} parent=0 // pred_check
    _
  $region23: #{cnn_planner_forward.3} parent=0 // pred_check_branch
    %23 = sbr.rel (0) target = $region25
  $region24: #{cnn_planner_forward.3} parent=0 // pred_region
    _
  $region25: #{cnn_planner_forward.3} parent=0 // pred_fallthru
    _
  // Predicated region
  $region26: #{cnn_planner_forward.3} parent=0 // pred_check
    _
  $region27: #{cnn_planner_forward.3} parent=0 // pred_check_branch
    %25 = sbr.rel (0) target = $region29
  $region28: #{cnn_planner_forward.3} parent=0 // pred_region
    _
  $region29: #{cnn_planner_forward.3} parent=0 // pred_fallthru
    _
  %v27 = vld [vmem:[%s0] sm:$0x3]
  %v28 = vld [vmem:[%s0 + $0x2] sm:$0x3]
  %v31 = vlaneseq
  %v32 = vshrl.u32 %v31, 7
  %v33 = vsub.s32 0, %v32
  %v34 = vrot.slane %v27, %v33
  %v35 = vlaneseq
  %v36 = vshrl.u32 %v35, 7
  %v37 = vsub.s32 1, %v36
  %v38 = vrot.slane %v27, %v37
  %v39 = vlaneseq
  %v40 = vshrl.u32 %v39, 7
  %v41 = vsub.s32 0, %v40
  %v42 = vrot.slane %v28, %v41
  %v43 = vlaneseq
  %v44 = vshrl.u32 %v43, 7
  %v45 = vsub.s32 1, %v44
  %v46 = vrot.slane %v28, %v45
  %v51 = vpack.c.bf16 %v34, %v34
  %v52 = vpack.c.bf16 %v38, %v38
  %v53 = vpack.c.bf16 %v42, %v42
  %v54 = vpack.c.bf16 %v46, %v46
  %v55 = vld [vmem:[%s1] sm:$0xff]
  %v56 = vld [vmem:[%s1 + $0x8] sm:$0xff]
  %v57 = vld [vmem:[%s1 + $0x10] sm:$0xff]
  %v58 = vld [vmem:[%s1 + $0x18] sm:$0xff]
  %v59 = vld [vmem:[%s1 + $0x20] sm:$0xff]
  %v60 = vld [vmem:[%s1 + $0x28] sm:$0xff]
  %v61 = vld [vmem:[%s1 + $0x30] sm:$0xff]
  %v62 = vld [vmem:[%s1 + $0x38] sm:$0xff]
  %v63 = vld [vmem:[%s1 + $0x40] sm:$0xff]
  %v64 = vld [vmem:[%s1 + $0x48] sm:$0xff]
  %v65 = vld [vmem:[%s1 + $0x50] sm:$0xff]
  %v66 = vld [vmem:[%s1 + $0x58] sm:$0xff]
  %v67 = vld [vmem:[%s1 + $0x60] sm:$0xff]
  %v68 = vld [vmem:[%s1 + $0x68] sm:$0xff]
  %v69 = vld [vmem:[%s1 + $0x70] sm:$0xff]
  %v70 = vld [vmem:[%s1 + $0x78] sm:$0xff]
  %v71 = vld [vmem:[%s1 + $0x80] sm:$0xff]
  %v72 = vld [vmem:[%s1 + $0x88] sm:$0xff]
  %v73 = vld [vmem:[%s1 + $0x90] sm:$0xff]
  %v74 = vld [vmem:[%s1 + $0x98] sm:$0xff]
  %v75 = vld [vmem:[%s1 + $0xa0] sm:$0xff]
  %v76 = vld [vmem:[%s1 + $0xa8] sm:$0xff]
  %v77 = vld [vmem:[%s1 + $0xb0] sm:$0xff]
  %v78 = vld [vmem:[%s1 + $0xb8] sm:$0xff]
  %v79 = vld [vmem:[%s1 + $0xc0] sm:$0xff]
  %v80 = vld [vmem:[%s1 + $0xc8] sm:$0xff]
  %v81 = vld [vmem:[%s1 + $0xd0] sm:$0xff]
  %v82 = vld [vmem:[%s1 + $0xd8] sm:$0xff]
  %v83 = vld [vmem:[%s1 + $0xe0] sm:$0xff]
  %v84 = vld [vmem:[%s1 + $0xe8] sm:$0xff]
  %v85 = vld [vmem:[%s1 + $0xf0] sm:$0xff]
  %v86 = vld [vmem:[%s1 + $0xf8] sm:$0xff]
  %v87 = vld [vmem:[%s2] sm:$0x3]
  %v89 = vlaneseq
  %v90 = vshrl.u32 %v89, 7
  %v91 = vsub.s32 0, %v90
  %v92 = vrot.slane %v87, %v91
  %v93 = vlaneseq
  %v94 = vshrl.u32 %v93, 7
  %v95 = vsub.s32 1, %v94
  %v96 = vrot.slane %v87, %v95
  %v103 = vunpack.c.l.b16 %v51
  %v104 = vunpack.c.l.b16 %v52
  %v105 = vunpack.c.l.b16 %v53
  %v106 = vunpack.c.l.b16 %v54
  %v107 = vrot.slane %v105, 7
  %vm108 = vcmask 1041409
  %v109 = vsel %vm108, %v107, %v103
  %v110 = vrot.slane %v106, 7
  %v111 = vsel %vm108, %v110, %v104
  %v112 = vpack.c.b16 %v109, %v109
  %v113 = vpack.c.b16 %v111, %v111
  %v148 = vunpack.c.l.b16 %v55
  %v149 = vunpack.c.h.b16 %v55
  %v150 = vunpack.c.l.b16 %v56
  %v151 = vunpack.c.h.b16 %v56
  %v152 = vunpack.c.l.b16 %v57
  %v153 = vunpack.c.h.b16 %v57
  %v154 = vunpack.c.l.b16 %v58
  %v155 = vunpack.c.h.b16 %v58
  %v156 = vunpack.c.l.b16 %v59
  %v157 = vunpack.c.h.b16 %v59
  %v158 = vunpack.c.l.b16 %v60
  %v159 = vunpack.c.h.b16 %v60
  %v160 = vunpack.c.l.b16 %v61
  %v161 = vunpack.c.h.b16 %v61
  %v162 = vunpack.c.l.b16 %v62
  %v163 = vunpack.c.h.b16 %v62
  %v164 = vunpack.c.l.b16 %v63
  %v165 = vunpack.c.h.b16 %v63
  %v166 = vunpack.c.l.b16 %v64
  %v167 = vunpack.c.h.b16 %v64
  %v168 = vunpack.c.l.b16 %v65
  %v169 = vunpack.c.h.b16 %v65
  %v170 = vunpack.c.l.b16 %v66
  %v171 = vunpack.c.h.b16 %v66
  %v172 = vunpack.c.l.b16 %v67
  %v173 = vunpack.c.h.b16 %v67
  %v174 = vunpack.c.l.b16 %v68
  %v175 = vunpack.c.h.b16 %v68
  %v176 = vunpack.c.l.b16 %v69
  %v177 = vunpack.c.h.b16 %v69
  %v178 = vunpack.c.l.b16 %v70
  %v179 = vunpack.c.h.b16 %v70
  %v180 = vunpack.c.l.b16 %v71
  %v181 = vunpack.c.h.b16 %v71
  %v182 = vunpack.c.l.b16 %v72
  %v183 = vunpack.c.h.b16 %v72
  %v184 = vunpack.c.l.b16 %v73
  %v185 = vunpack.c.h.b16 %v73
  %v186 = vunpack.c.l.b16 %v74
  %v187 = vunpack.c.h.b16 %v74
  %v188 = vunpack.c.l.b16 %v75
  %v189 = vunpack.c.h.b16 %v75
  %v190 = vunpack.c.l.b16 %v76
  %v191 = vunpack.c.h.b16 %v76
  %v192 = vunpack.c.l.b16 %v77
  %v193 = vunpack.c.h.b16 %v77
  %v194 = vunpack.c.l.b16 %v78
  %v195 = vunpack.c.h.b16 %v78
  %v196 = vunpack.c.l.b16 %v79
  %v197 = vunpack.c.h.b16 %v79
  %v198 = vunpack.c.l.b16 %v80
  %v199 = vunpack.c.h.b16 %v80
  %v200 = vunpack.c.l.b16 %v81
  %v201 = vunpack.c.h.b16 %v81
  %v202 = vunpack.c.l.b16 %v82
  %v203 = vunpack.c.h.b16 %v82
  %v204 = vunpack.c.l.b16 %v83
  %v205 = vunpack.c.h.b16 %v83
  %v206 = vunpack.c.l.b16 %v84
  %v207 = vunpack.c.h.b16 %v84
  %v208 = vunpack.c.l.b16 %v85
  %v209 = vunpack.c.h.b16 %v85
  %v210 = vunpack.c.l.b16 %v86
  %v211 = vunpack.c.h.b16 %v86
  %v212 = vpack.c.b16 %v150, %v148
  %v213 = vpack.c.b16 %v151, %v149
  %v214 = vpack.c.b16 %v154, %v152
  %v215 = vpack.c.b16 %v155, %v153
  %v216 = vpack.c.b16 %v158, %v156
  %v217 = vpack.c.b16 %v159, %v157
  %v218 = vpack.c.b16 %v162, %v160
  %v219 = vpack.c.b16 %v163, %v161
  %v220 = vpack.c.b16 %v166, %v164
  %v221 = vpack.c.b16 %v167, %v165
  %v222 = vpack.c.b16 %v170, %v168
  %v223 = vpack.c.b16 %v171, %v169
  %v224 = vpack.c.b16 %v174, %v172
  %v225 = vpack.c.b16 %v175, %v173
  %v226 = vpack.c.b16 %v178, %v176
  %v227 = vpack.c.b16 %v179, %v177
  %v228 = vpack.c.b16 %v182, %v180
  %v229 = vpack.c.b16 %v183, %v181
  %v230 = vpack.c.b16 %v186, %v184
  %v231 = vpack.c.b16 %v187, %v185
  %v232 = vpack.c.b16 %v190, %v188
  %v233 = vpack.c.b16 %v191, %v189
  %v234 = vpack.c.b16 %v194, %v192
  %v235 = vpack.c.b16 %v195, %v193
  %v236 = vpack.c.b16 %v198, %v196
  %v237 = vpack.c.b16 %v199, %v197
  %v238 = vpack.c.b16 %v202, %v200
  %v239 = vpack.c.b16 %v203, %v201
  %v240 = vpack.c.b16 %v206, %v204
  %v241 = vpack.c.b16 %v207, %v205
  %v242 = vpack.c.b16 %v210, %v208
  %v243 = vpack.c.b16 %v211, %v209
  %276 = vmatprep.subr.bf16.mxu0 %v213
  %277 = vmatpush1.bf16.msra.mxu0 %v212
  %278 = vmatprep.subr.bf16.mxu0 %v215
  %279 = vmatpush1.bf16.msra.mxu0 %v214
  %280 = vmatprep.subr.bf16.mxu0 %v217
  %281 = vmatpush1.bf16.msra.mxu0 %v216
  %282 = vmatprep.subr.bf16.mxu0 %v219
  %283 = vmatpush1.bf16.msra.mxu0 %v218
  %284 = vmatprep.subr.bf16.mxu0 %v221
  %285 = vmatpush1.bf16.msra.mxu0 %v220
  %286 = vmatprep.subr.bf16.mxu0 %v223
  %287 = vmatpush1.bf16.msra.mxu0 %v222
  %288 = vmatprep.subr.bf16.mxu0 %v225
  %289 = vmatpush1.bf16.msra.mxu0 %v224
  %290 = vmatprep.subr.bf16.mxu0 %v227
  %291 = vmatpush1.bf16.msra.mxu0 %v226
  %292 = vmatprep.subr.bf16.mxu0 %v229
  %293 = vmatpush1.bf16.msra.mxu0 %v228
  %294 = vmatprep.subr.bf16.mxu0 %v231
  %295 = vmatpush1.bf16.msra.mxu0 %v230
  %296 = vmatprep.subr.bf16.mxu0 %v233
  %297 = vmatpush1.bf16.msra.mxu0 %v232
  %298 = vmatprep.subr.bf16.mxu0 %v235
  %299 = vmatpush1.bf16.msra.mxu0 %v234
  %300 = vmatprep.subr.bf16.mxu0 %v237
  %301 = vmatpush1.bf16.msra.mxu0 %v236
  %302 = vmatprep.subr.bf16.mxu0 %v239
  %303 = vmatpush1.bf16.msra.mxu0 %v238
  %304 = vmatprep.subr.bf16.mxu0 %v241
  %305 = vmatpush1.bf16.msra.mxu0 %v240
  %306 = vmatprep.subr.bf16.mxu0 %v243
  %307 = vmatpush1.bf16.msra.mxu0 %v242
  %308 = vmatprep.mubr.bf16.mxu0 %v113
  %309 = vmatmul.mubr.bf16.gmra.mrb[0].mxu0 %v112
  %v310 = vpop.f32.mrb[0].mxu0
  %v311 = vadd.f32 %v92, %v310
  %v312 = vpop.f32.mrb[0].mxu0
  %v313 = vadd.f32 %v96, %v312
  %v314 = vpop.f32.mrb[0].mxu0
  %v315 = vpop.f32.mrb[0].mxu0
  %316 = vdwg.mxu0
  %v317 = vmax.f32 %v311, 0.0
  %v318 = vmax.f32 %v313, 0.0
  %v319 = vpack.c.bf16 %v317, %v317
  %v320 = vpack.c.bf16 %v318, %v318
  %v321 = vld [vmem:[%s3] sm:$0xf]
  %v322 = vld [vmem:[%s3 + $0x4] sm:$0xf]
  %v323 = vld [vmem:[%s3 + $0x8] sm:$0xf]
  %v324 = vld [vmem:[%s3 + $0xc] sm:$0xf]
  %v325 = vld [vmem:[%s3 + $0x10] sm:$0xf]
  %v326 = vld [vmem:[%s3 + $0x14] sm:$0xf]
  %v327 = vld [vmem:[%s3 + $0x18] sm:$0xf]
  %v328 = vld [vmem:[%s3 + $0x1c] sm:$0xf]
  %v329 = vld [vmem:[%s3 + $0x20] sm:$0xf]
  %v330 = vld [vmem:[%s3 + $0x24] sm:$0xf]
  %v331 = vld [vmem:[%s3 + $0x28] sm:$0xf]
  %v332 = vld [vmem:[%s3 + $0x2c] sm:$0xf]
  %v333 = vld [vmem:[%s3 + $0x30] sm:$0xf]
  %v334 = vld [vmem:[%s3 + $0x34] sm:$0xf]
  %v335 = vld [vmem:[%s3 + $0x38] sm:$0xf]
  %v336 = vld [vmem:[%s3 + $0x3c] sm:$0xf]
  %v337 = vld [vmem:[%s3 + $0x40] sm:$0xf]
  %v338 = vld [vmem:[%s3 + $0x44] sm:$0xf]
  %v339 = vld [vmem:[%s3 + $0x48] sm:$0xf]
  %v340 = vld [vmem:[%s3 + $0x4c] sm:$0xf]
  %v341 = vld [vmem:[%s3 + $0x50] sm:$0xf]
  %v342 = vld [vmem:[%s3 + $0x54] sm:$0xf]
  %v343 = vld [vmem:[%s3 + $0x58] sm:$0xf]
  %v344 = vld [vmem:[%s3 + $0x5c] sm:$0xf]
  %v345 = vld [vmem:[%s3 + $0x60] sm:$0xf]
  %v346 = vld [vmem:[%s3 + $0x64] sm:$0xf]
  %v347 = vld [vmem:[%s3 + $0x68] sm:$0xf]
  %v348 = vld [vmem:[%s3 + $0x6c] sm:$0xf]
  %v349 = vld [vmem:[%s3 + $0x70] sm:$0xf]
  %v350 = vld [vmem:[%s3 + $0x74] sm:$0xf]
  %v351 = vld [vmem:[%s3 + $0x78] sm:$0xf]
  %v352 = vld [vmem:[%s3 + $0x7c] sm:$0xf]
  %v353 = vld [vmem:[%s4] sm:$0x1]
  %v355 = vlaneseq
  %v356 = vshrl.u32 %v355, 7
  %v357 = vsub.s32 0, %v356
  %v358 = vrot.slane %v353, %v357
  %v392 = vunpack.c.l.b16 %v321
  %v393 = vunpack.c.l.b16 %v322
  %v394 = vunpack.c.l.b16 %v323
  %v395 = vunpack.c.l.b16 %v324
  %v396 = vunpack.c.l.b16 %v325
  %v397 = vunpack.c.l.b16 %v326
  %v398 = vunpack.c.l.b16 %v327
  %v399 = vunpack.c.l.b16 %v328
  %v400 = vunpack.c.l.b16 %v329
  %v401 = vunpack.c.l.b16 %v330
  %v402 = vunpack.c.l.b16 %v331
  %v403 = vunpack.c.l.b16 %v332
  %v404 = vunpack.c.l.b16 %v333
  %v405 = vunpack.c.l.b16 %v334
  %v406 = vunpack.c.l.b16 %v335
  %v407 = vunpack.c.l.b16 %v336
  %v408 = vunpack.c.l.b16 %v337
  %v409 = vunpack.c.l.b16 %v338
  %v410 = vunpack.c.l.b16 %v339
  %v411 = vunpack.c.l.b16 %v340
  %v412 = vunpack.c.l.b16 %v341
  %v413 = vunpack.c.l.b16 %v342
  %v414 = vunpack.c.l.b16 %v343
  %v415 = vunpack.c.l.b16 %v344
  %v416 = vunpack.c.l.b16 %v345
  %v417 = vunpack.c.l.b16 %v346
  %v418 = vunpack.c.l.b16 %v347
  %v419 = vunpack.c.l.b16 %v348
  %v420 = vunpack.c.l.b16 %v349
  %v421 = vunpack.c.l.b16 %v350
  %v422 = vunpack.c.l.b16 %v351
  %v423 = vunpack.c.l.b16 %v352
  %v424 = vpack.c.b16 %v393, %v392
  %v425 = vpack.c.b16 %v395, %v394
  %v426 = vpack.c.b16 %v397, %v396
  %v427 = vpack.c.b16 %v399, %v398
  %v428 = vpack.c.b16 %v401, %v400
  %v429 = vpack.c.b16 %v403, %v402
  %v430 = vpack.c.b16 %v405, %v404
  %v431 = vpack.c.b16 %v407, %v406
  %v432 = vpack.c.b16 %v409, %v408
  %v433 = vpack.c.b16 %v411, %v410
  %v434 = vpack.c.b16 %v413, %v412
  %v435 = vpack.c.b16 %v415, %v414
  %v436 = vpack.c.b16 %v417, %v416
  %v437 = vpack.c.b16 %v419, %v418
  %v438 = vpack.c.b16 %v421, %v420
  %v439 = vpack.c.b16 %v423, %v422
  %456 = vmatprep.subr.bf16.mxu0 0
  %457 = vmatpush1.bf16.msra.mxu0 %v424
  %458 = vmatprep.subr.bf16.mxu0 0
  %459 = vmatpush1.bf16.msra.mxu0 %v425
  %460 = vmatprep.subr.bf16.mxu0 0
  %461 = vmatpush1.bf16.msra.mxu0 %v426
  %462 = vmatprep.subr.bf16.mxu0 0
  %463 = vmatpush1.bf16.msra.mxu0 %v427
  %464 = vmatprep.subr.bf16.mxu0 0
  %465 = vmatpush1.bf16.msra.mxu0 %v428
  %466 = vmatprep.subr.bf16.mxu0 0
  %467 = vmatpush1.bf16.msra.mxu0 %v429
  %468 = vmatprep.subr.bf16.mxu0 0
  %469 = vmatpush1.bf16.msra.mxu0 %v430
  %470 = vmatprep.subr.bf16.mxu0 0
  %471 = vmatpush1.bf16.msra.mxu0 %v431
  %472 = vmatprep.subr.bf16.mxu0 0
  %473 = vmatpush1.bf16.msra.mxu0 %v432
  %474 = vmatprep.subr.bf16.mxu0 0
  %475 = vmatpush1.bf16.msra.mxu0 %v433
  %476 = vmatprep.subr.bf16.mxu0 0
  %477 = vmatpush1.bf16.msra.mxu0 %v434
  %478 = vmatprep.subr.bf16.mxu0 0
  %479 = vmatpush1.bf16.msra.mxu0 %v435
  %480 = vmatprep.subr.bf16.mxu0 0
  %481 = vmatpush1.bf16.msra.mxu0 %v436
  %482 = vmatprep.subr.bf16.mxu0 0
  %483 = vmatpush1.bf16.msra.mxu0 %v437
  %484 = vmatprep.subr.bf16.mxu0 0
  %485 = vmatpush1.bf16.msra.mxu0 %v438
  %486 = vmatprep.subr.bf16.mxu0 0
  %487 = vmatpush1.bf16.msra.mxu0 %v439
  %488 = vmatprep.mubr.bf16.mxu0 %v320
  %489 = vmatmul.mubr.bf16.gmra.mrb[0].mxu0 %v319
  %v490 = vpop.f32.mrb[0].mxu0
  %v491 = vadd.f32 %v358, %v490
  %v492 = vpop.f32.mrb[0].mxu0
  %v493 = vpop.f32.mrb[0].mxu0
  %v494 = vpop.f32.mrb[0].mxu0
  %495 = vdwg.mxu0
  %v496 = vmax.f32 %v491, 0.0
  %v497 = vpack.c.bf16 %v496, %v496
  %v498 = vld [vmem:[%s5] sm:$0xf]
  %v499 = vld [vmem:[%s5 + $0x4] sm:$0xf]
  %v500 = vld [vmem:[%s5 + $0x8] sm:$0xf]
  %v501 = vld [vmem:[%s5 + $0xc] sm:$0xf]
  %v502 = vld [vmem:[%s5 + $0x10] sm:$0xf]
  %v503 = vld [vmem:[%s5 + $0x14] sm:$0xf]
  %v504 = vld [vmem:[%s5 + $0x18] sm:$0xf]
  %v505 = vld [vmem:[%s5 + $0x1c] sm:$0xf]
  %v506 = vld [vmem:[%s5 + $0x20] sm:$0xf]
  %v507 = vld [vmem:[%s5 + $0x24] sm:$0xf]
  %v508 = vld [vmem:[%s5 + $0x28] sm:$0xf]
  %v509 = vld [vmem:[%s5 + $0x2c] sm:$0xf]
  %v510 = vld [vmem:[%s5 + $0x30] sm:$0xf]
  %v511 = vld [vmem:[%s5 + $0x34] sm:$0xf]
  %v512 = vld [vmem:[%s5 + $0x38] sm:$0xf]
  %v513 = vld [vmem:[%s5 + $0x3c] sm:$0xf]
  %v514 = vld [vmem:[%s6] sm:$0x1]
  %v516 = vlaneseq
  %v517 = vshrl.u32 %v516, 7
  %v518 = vsub.s32 0, %v517
  %v519 = vrot.slane %v514, %v518
  %v537 = vunpack.c.l.b16 %v498
  %v538 = vunpack.c.l.b16 %v499
  %v539 = vunpack.c.l.b16 %v500
  %v540 = vunpack.c.l.b16 %v501
  %v541 = vunpack.c.l.b16 %v502
  %v542 = vunpack.c.l.b16 %v503
  %v543 = vunpack.c.l.b16 %v504
  %v544 = vunpack.c.l.b16 %v505
  %v545 = vunpack.c.l.b16 %v506
  %v546 = vunpack.c.l.b16 %v507
  %v547 = vunpack.c.l.b16 %v508
  %v548 = vunpack.c.l.b16 %v509
  %v549 = vunpack.c.l.b16 %v510
  %v550 = vunpack.c.l.b16 %v511
  %v551 = vunpack.c.l.b16 %v512
  %v552 = vunpack.c.l.b16 %v513
  %v553 = vpack.c.b16 %v538, %v537
  %v554 = vpack.c.b16 %v540, %v539
  %v555 = vpack.c.b16 %v542, %v541
  %v556 = vpack.c.b16 %v544, %v543
  %v557 = vpack.c.b16 %v546, %v545
  %v558 = vpack.c.b16 %v548, %v547
  %v559 = vpack.c.b16 %v550, %v549
  %v560 = vpack.c.b16 %v552, %v551
  %569 = vmatprep.subr.bf16.mxu0 0
  %570 = vmatpush1.bf16.msra.mxu0 %v553
  %571 = vmatprep.subr.bf16.mxu0 0
  %572 = vmatpush1.bf16.msra.mxu0 %v554
  %573 = vmatprep.subr.bf16.mxu0 0
  %574 = vmatpush1.bf16.msra.mxu0 %v555
  %575 = vmatprep.subr.bf16.mxu0 0
  %576 = vmatpush1.bf16.msra.mxu0 %v556
  %577 = vmatprep.subr.bf16.mxu0 0
  %578 = vmatpush1.bf16.msra.mxu0 %v557
  %579 = vmatprep.subr.bf16.mxu0 0
  %580 = vmatpush1.bf16.msra.mxu0 %v558
  %581 = vmatprep.subr.bf16.mxu0 0
  %582 = vmatpush1.bf16.msra.mxu0 %v559
  %583 = vmatprep.subr.bf16.mxu0 0
  %584 = vmatpush1.bf16.msra.mxu0 %v560
  %585 = vmatprep.subr.bf16.mxu0 0
  %586 = vmatpush1.bf16.msra.mxu0 0
  %587 = vmatprep.subr.bf16.mxu0 0
  %588 = vmatpush1.bf16.msra.mxu0 0
  %589 = vmatprep.subr.bf16.mxu0 0
  %590 = vmatpush1.bf16.msra.mxu0 0
  %591 = vmatprep.subr.bf16.mxu0 0
  %592 = vmatpush1.bf16.msra.mxu0 0
  %593 = vmatprep.subr.bf16.mxu0 0
  %594 = vmatpush1.bf16.msra.mxu0 0
  %595 = vmatprep.subr.bf16.mxu0 0
  %596 = vmatpush1.bf16.msra.mxu0 0
  %597 = vmatprep.subr.bf16.mxu0 0
  %598 = vmatpush1.bf16.msra.mxu0 0
  %599 = vmatprep.subr.bf16.mxu0 0
  %600 = vmatpush1.bf16.msra.mxu0 0
  %601 = vmatprep.mubr.bf16.mxu0 0
  %602 = vmatmul.mubr.bf16.gmra.mrb[0].mxu0 %v497
  %v603 = vpop.f32.mrb[0].mxu0
  %v604 = vadd.f32 %v519, %v603
  %v605 = vpop.f32.mrb[0].mxu0
  %v606 = vpop.f32.mrb[0].mxu0
  %v607 = vpop.f32.mrb[0].mxu0
  %608 = vdwg.mxu0
  %vm609 = vcmask 41984
  %610 = vst.msk [vmem:[%s7] sm:$0x3] %vm609, %v604
  // Predicated region
  $region30: #{cnn_planner_forward.3} parent=0 // pred_check
    _
  $region31: #{cnn_planner_forward.3} parent=0 // pred_check_branch
    %612 = sbr.rel (0) target = $region33
  $region32: #{cnn_planner_forward.3} parent=0 // pred_region
    _
  $region33: #{cnn_planner_forward.3} parent=0 // pred_fallthru
    _
  // Predicated region
  $region34: #{cnn_planner_forward.3} parent=0 // pred_check
    _
  $region35: #{cnn_planner_forward.3} parent=0 // pred_check_branch
    %614 = sbr.rel (0) target = $region37
  $region36: #{cnn_planner_forward.3} parent=0 // pred_region
    _
  $region37: #{cnn_planner_forward.3} parent=0 // pred_fallthru
    _

// kernel: cnn_planner_forward.2
$region0: #{cnn_planner_forward.2}
  #allocation0 [shape = 'u32[]', space=smem, size = 0x4, offset = 0x4, fixed_abs, tag = 'smem constant byte address 0x4 - core index']
  #allocation1 [shape = 'u32[144,128]{1,0:T(1,128)}', space=vmem, size = 0x12000, scoped, tag = 'internal scratch']
  #allocation2 [shape = 'bf16[2,2,110,8]{3,2,1,0:T(8,128)(2,1)}', space=vmem, size = 0x1c000, scoped, tag = 'scratch operand']
  #allocation3 [shape = 'bf16[80,200]{1,0:T(16,128)(2,1)}', space=vmem, size = 0xa000, scoped, tag = 'scratch operand']
  #allocation4 [shape = 'bf16[80,32]{1,0:T(16,128)(2,1)}', space=vmem, size = 0x5000, scoped, tag = 'scratch operand']
  #allocation5 [shape = 'bf16[2,2,30,32]{3,2,1,0:T(8,128)(2,1)}', space=vmem, size = 0x8000, scoped, tag = 'scratch operand']
  #allocation6 [shape = 'bf16[20,288]{1,0:T(8,128)(2,1)}', space=vmem, size = 0x4800, scoped, tag = 'scratch operand']
  #allocation7 [shape = 'bf16[20,64]{1,0:T(8,128)(2,1)}', space=vmem, size = 0x1800, scoped, tag = 'scratch operand']
  #allocation8 [shape = 'bf16[2,2,12,64]{3,2,1,0:T(8,128)(2,1)}', space=vmem, size = 0x4000, scoped, tag = 'scratch operand']
  #allocation9 [shape = 'bf16[6,576]{1,0:T(8,128)(2,1)}', space=vmem, size = 0x2800, scoped, tag = 'scratch operand']
  #allocation10 [shape = 'bf16[6,128]{1,0:T(8,128)(2,1)}', space=vmem, size = 0x800, scoped, tag = 'scratch operand']
  #allocation11 [shape = 'bf16[2,2,6,128]{3,2,1,0:T(8,128)(2,1)}', space=vmem, size = 0x2000, scoped, tag = 'scratch operand']
  #allocation12 [shape = 'bf16[2,1152]{1,0:T(2,128)(2,1)}', space=vmem, size = 0x1200, scoped, tag = 'scratch operand']
  %s0 = inlined_call_operand.vmem [shape: f32[2,16,16,8], index: 0, kind: input, shape index: {}]
  %s1 = inlined_call_operand.vmem [shape: f32[1,8], index: 1, kind: input, shape index: {}]
  %s2 = inlined_call_operand.vmem [shape: f32[1,8], index: 2, kind: input, shape index: {}]
  %s3 = inlined_call_operand.vmem [shape: bf16[200,32], index: 3, kind: input, shape index: {}]
  %s4 = inlined_call_operand.vmem [shape: f32[1,32], index: 4, kind: input, shape index: {}]
  %s5 = inlined_call_operand.vmem [shape: bf16[288,64], index: 5, kind: input, shape index: {}]
  %s6 = inlined_call_operand.vmem [shape: f32[1,64], index: 6, kind: input, shape index: {}]
  %s7 = inlined_call_operand.vmem [shape: bf16[576,128], index: 7, kind: input, shape index: {}]
  %s8 = inlined_call_operand.vmem [shape: f32[1,128], index: 8, kind: input, shape index: {}]
  %s9 = inlined_call_operand.vmem [shape: bf16[1152,256], index: 9, kind: input, shape index: {}]
  %s10 = inlined_call_operand.vmem [shape: f32[1,256], index: 10, kind: input, shape index: {}]
  %s11 = inlined_call_operand.vmem [shape: f32[2,1,256], index: 11, kind: output, shape index: {}]
  %s12 = sld [smem:[#allocation0]]
  $region77: #{cnn_planner_forward.2} parent=0
    _
  %s14 = ssub.s32 1, %s12
  %s15 = scalar_select 0, %s14, %s12
  loop: start=0, step=1, limit=4
  $region2: #{cnn_planner_forward.2} parent=0 // loop_pre_header
    _
  $region3: #{cnn_planner_forward.2} parent=0 // loop_header
    %s17 = sphi 0, %s21
    %p18 = scmp.ge.s32.totalorder %s17, 4
    %s27 = sphi 0, %s29
    %s30 = sphi 0, %s27
    %s31 = sphi 0, %s30
    %s47 = sphi 0, %s31
    %s51 = sphi 0, %s51
    %s53 = sphi 0, %s51
    %s54 = sphi 0, %s53
    %s68 = sphi 0, %s54
    %s72 = sphi 0, %s72
    %s74 = sphi 0, %s72
    %s75 = sphi 0, %s74
    %s89 = sphi 0, %s75
    %s93 = sphi 0, %s93
    %s95 = sphi 0, %s93
    %s96 = sphi 0, %s95
    %s110 = sphi 0, %s96
    %s114 = sphi 0, %s114
    %s116 = sphi 0, %s114
    %s117 = sphi 0, %s116
    %s131 = sphi 0, %s117
    %s135 = sphi 0, %s135
    %s137 = sphi 0, %s135
    %s138 = sphi 0, %s137
    %s152 = sphi 0, %s138
    %s156 = sphi 0, %s156
    %s158 = sphi 0, %s156
    %s159 = sphi 0, %s158
    %s173 = sphi 0, %s159
    %s177 = sphi 0, %s177
    %s179 = sphi 0, %s177
    %s180 = sphi 0, %s179
    %s194 = sphi 0, %s180
    %s198 = sphi 0, %s198
    %s200 = sphi 0, %s198
    %s201 = sphi 0, %s200
    %s215 = sphi 0, %s201
    %s219 = sphi 0, %s219
    %s221 = sphi 0, %s219
    %s222 = sphi 0, %s221
    %s236 = sphi 0, %s222
    %s240 = sphi 0, %s240
    %s242 = sphi 0, %s240
    %s243 = sphi 0, %s242
    %s257 = sphi 0, %s243
    %s263 = sphi 0, %s265
    %s266 = sphi 0, %s263
    %s267 = sphi 0, %s266
    %s283 = sphi 0, %s267
  $region4: #{cnn_planner_forward.2} parent=0 // loop_header_branch
    %20 = sbr.rel (%p18) target = $region8
  $region5: #{cnn_planner_forward.2} parent=0 // loop_body
    %s22 = ssub.s32 %s17, 1
    %s23 = ssub.s32 %s17, 2
    %s24 = sadd.s32 %s17, 1
    %s25 = ssub.s32 %s17, %s24
    %p26 = scmp.eq.s32.totalorder %s25, 0
    %s28 = sadd.s32 %s27, 1
    %s29 = scalar_select %p26, %s27, %s28
    %p32 = pneg %p26
    %p33 = scmp.eq.s32.totalorder %s17, 1
    %p34 = por %p32, %p33
    %p35 = scmp.ne.s32.totalorder %s27, %s30
    %p36 = scmp.eq.s32.totalorder %s17, 0
    %p37 = por %p35, %p36
    %p38 = scmp.ne.s32.totalorder %s27, %s30
    %p39 = scmp.eq.s32.totalorder %s22, 1
    %p40 = por %p38, %p39
    %p41 = scmp.ne.s32.totalorder %s30, %s31
    %p42 = scmp.eq.s32.totalorder %s22, 0
    %p43 = por %p41, %p42
    %p44 = scmp.ne.s32.totalorder %s30, %s31
    %p45 = scmp.eq.s32.totalorder %s23, 1
    %p46 = por %p44, %p45
    %p48 = scmp.ne.s32.totalorder %s31, %s47
    %p49 = scmp.eq.s32.totalorder %s23, 0
    %p50 = por %p48, %p49
    %s52 = sadd.s32 %s51, 1
    %p55 = scmp.eq.s32.totalorder %s17, 1
    %p56 = scmp.ne.s32.totalorder %s51, %s53
    %p57 = scmp.eq.s32.totalorder %s17, 0
    %p58 = por %p56, %p57
    %p59 = scmp.ne.s32.totalorder %s51, %s53
    %p60 = scmp.eq.s32.totalorder %s22, 1
    %p61 = por %p59, %p60
    %p62 = scmp.ne.s32.totalorder %s53, %s54
    %p63 = scmp.eq.s32.totalorder %s22, 0
    %p64 = por %p62, %p63
    %p65 = scmp.ne.s32.totalorder %s53, %s54
    %p66 = scmp.eq.s32.totalorder %s23, 1
    %p67 = por %p65, %p66
    %p69 = scmp.ne.s32.totalorder %s54, %s68
    %p70 = scmp.eq.s32.totalorder %s23, 0
    %p71 = por %p69, %p70
    %s73 = sadd.s32 %s72, 1
    %p76 = scmp.eq.s32.totalorder %s17, 1
    %p77 = scmp.ne.s32.totalorder %s72, %s74
    %p78 = scmp.eq.s32.totalorder %s17, 0
    %p79 = por %p77, %p78
    %p80 = scmp.ne.s32.totalorder %s72, %s74
    %p81 = scmp.eq.s32.totalorder %s22, 1
    %p82 = por %p80, %p81
    %p83 = scmp.ne.s32.totalorder %s74, %s75
    %p84 = scmp.eq.s32.totalorder %s22, 0
    %p85 = por %p83, %p84
    %p86 = scmp.ne.s32.totalorder %s74, %s75
    %p87 = scmp.eq.s32.totalorder %s23, 1
    %p88 = por %p86, %p87
    %p90 = scmp.ne.s32.totalorder %s75, %s89
    %p91 = scmp.eq.s32.totalorder %s23, 0
    %p92 = por %p90, %p91
    %s94 = sadd.s32 %s93, 1
    %p97 = scmp.eq.s32.totalorder %s17, 1
    %p98 = scmp.ne.s32.totalorder %s93, %s95
    %p99 = scmp.eq.s32.totalorder %s17, 0
    %p100 = por %p98, %p99
    %p101 = scmp.ne.s32.totalorder %s93, %s95
    %p102 = scmp.eq.s32.totalorder %s22, 1
    %p103 = por %p101, %p102
    %p104 = scmp.ne.s32.totalorder %s95, %s96
    %p105 = scmp.eq.s32.totalorder %s22, 0
    %p106 = por %p104, %p105
    %p107 = scmp.ne.s32.totalorder %s95, %s96
    %p108 = scmp.eq.s32.totalorder %s23, 1
    %p109 = por %p107, %p108
    %p111 = scmp.ne.s32.totalorder %s96, %s110
    %p112 = scmp.eq.s32.totalorder %s23, 0
    %p113 = por %p111, %p112
    %s115 = sadd.s32 %s114, 1
    %p118 = scmp.eq.s32.totalorder %s17, 1
    %p119 = scmp.ne.s32.totalorder %s114, %s116
    %p120 = scmp.eq.s32.totalorder %s17, 0
    %p121 = por %p119, %p120
    %p122 = scmp.ne.s32.totalorder %s114, %s116
    %p123 = scmp.eq.s32.totalorder %s22, 1
    %p124 = por %p122, %p123
    %p125 = scmp.ne.s32.totalorder %s116, %s117
    %p126 = scmp.eq.s32.totalorder %s22, 0
    %p127 = por %p125, %p126
    %p128 = scmp.ne.s32.totalorder %s116, %s117
    %p129 = scmp.eq.s32.totalorder %s23, 1
    %p130 = por %p128, %p129
    %p132 = scmp.ne.s32.totalorder %s117, %s131
    %p133 = scmp.eq.s32.totalorder %s23, 0
    %p134 = por %p132, %p133
    %s136 = sadd.s32 %s135, 1
    %p139 = scmp.eq.s32.totalorder %s17, 1
    %p140 = scmp.ne.s32.totalorder %s135, %s137
    %p141 = scmp.eq.s32.totalorder %s17, 0
    %p142 = por %p140, %p141
    %p143 = scmp.ne.s32.totalorder %s135, %s137
    %p144 = scmp.eq.s32.totalorder %s22, 1
    %p145 = por %p143, %p144
    %p146 = scmp.ne.s32.totalorder %s137, %s138
    %p147 = scmp.eq.s32.totalorder %s22, 0
    %p148 = por %p146, %p147
    %p149 = scmp.ne.s32.totalorder %s137, %s138
    %p150 = scmp.eq.s32.totalorder %s23, 1
    %p151 = por %p149, %p150
    %p153 = scmp.ne.s32.totalorder %s138, %s152
    %p154 = scmp.eq.s32.totalorder %s23, 0
    %p155 = por %p153, %p154
    %s157 = sadd.s32 %s156, 1
    %p160 = scmp.eq.s32.totalorder %s17, 1
    %p161 = scmp.ne.s32.totalorder %s156, %s158
    %p162 = scmp.eq.s32.totalorder %s17, 0
    %p163 = por %p161, %p162
    %p164 = scmp.ne.s32.totalorder %s156, %s158
    %p165 = scmp.eq.s32.totalorder %s22, 1
    %p166 = por %p164, %p165
    %p167 = scmp.ne.s32.totalorder %s158, %s159
    %p168 = scmp.eq.s32.totalorder %s22, 0
    %p169 = por %p167, %p168
    %p170 = scmp.ne.s32.totalorder %s158, %s159
    %p171 = scmp.eq.s32.totalorder %s23, 1
    %p172 = por %p170, %p171
    %p174 = scmp.ne.s32.totalorder %s159, %s173
    %p175 = scmp.eq.s32.totalorder %s23, 0
    %p176 = por %p174, %p175
    %s178 = sadd.s32 %s177, 1
    %p181 = scmp.eq.s32.totalorder %s17, 1
    %p182 = scmp.ne.s32.totalorder %s177, %s179
    %p183 = scmp.eq.s32.totalorder %s17, 0
    %p184 = por %p182, %p183
    %p185 = scmp.ne.s32.totalorder %s177, %s179
    %p186 = scmp.eq.s32.totalorder %s22, 1
    %p187 = por %p185, %p186
    %p188 = scmp.ne.s32.totalorder %s179, %s180
    %p189 = scmp.eq.s32.totalorder %s22, 0
    %p190 = por %p188, %p189
    %p191 = scmp.ne.s32.totalorder %s179, %s180
    %p192 = scmp.eq.s32.totalorder %s23, 1
    %p193 = por %p191, %p192
    %p195 = scmp.ne.s32.totalorder %s180, %s194
    %p196 = scmp.eq.s32.totalorder %s23, 0
    %p197 = por %p195, %p196
    %s199 = sadd.s32 %s198, 1
    %p202 = scmp.eq.s32.totalorder %s17, 1
    %p203 = scmp.ne.s32.totalorder %s198, %s200
    %p204 = scmp.eq.s32.totalorder %s17, 0
    %p205 = por %p203, %p204
    %p206 = scmp.ne.s32.totalorder %s198, %s200
    %p207 = scmp.eq.s32.totalorder %s22, 1
    %p208 = por %p206, %p207
    %p209 = scmp.ne.s32.totalorder %s200, %s201
    %p210 = scmp.eq.s32.totalorder %s22, 0
    %p211 = por %p209, %p210
    %p212 = scmp.ne.s32.totalorder %s200, %s201
    %p213 = scmp.eq.s32.totalorder %s23, 1
    %p214 = por %p212, %p213
    %p216 = scmp.ne.s32.totalorder %s201, %s215
    %p217 = scmp.eq.s32.totalorder %s23, 0
    %p218 = por %p216, %p217
    %s220 = sadd.s32 %s219, 1
    %p223 = scmp.eq.s32.totalorder %s17, 1
    %p224 = scmp.ne.s32.totalorder %s219, %s221
    %p225 = scmp.eq.s32.totalorder %s17, 0
    %p226 = por %p224, %p225
    %p227 = scmp.ne.s32.totalorder %s219, %s221
    %p228 = scmp.eq.s32.totalorder %s22, 1
    %p229 = por %p227, %p228
    %p230 = scmp.ne.s32.totalorder %s221, %s222
    %p231 = scmp.eq.s32.totalorder %s22, 0
    %p232 = por %p230, %p231
    %p233 = scmp.ne.s32.totalorder %s221, %s222
    %p234 = scmp.eq.s32.totalorder %s23, 1
    %p235 = por %p233, %p234
    %p237 = scmp.ne.s32.totalorder %s222, %s236
    %p238 = scmp.eq.s32.totalorder %s23, 0
    %p239 = por %p237, %p238
    %s241 = sadd.s32 %s240, 1
    %p244 = scmp.eq.s32.totalorder %s17, 1
    %p245 = scmp.ne.s32.totalorder %s240, %s242
    %p246 = scmp.eq.s32.totalorder %s17, 0
    %p247 = por %p245, %p246
    %p248 = scmp.ne.s32.totalorder %s240, %s242
    %p249 = scmp.eq.s32.totalorder %s22, 1
    %p250 = por %p248, %p249
    %p251 = scmp.ne.s32.totalorder %s242, %s243
    %p252 = scmp.eq.s32.totalorder %s22, 0
    %p253 = por %p251, %p252
    %p254 = scmp.ne.s32.totalorder %s242, %s243
    %p255 = scmp.eq.s32.totalorder %s23, 1
    %p256 = por %p254, %p255
    %p258 = scmp.ne.s32.totalorder %s243, %s257
    %p259 = scmp.eq.s32.totalorder %s23, 0
    %p260 = por %p258, %p259
    %s261 = ssub.s32 %s17, %s24
    %p262 = scmp.eq.s32.totalorder %s261, 0
    %s264 = sadd.s32 %s263, 1
    %s265 = scalar_select %p262, %s263, %s264
    %p268 = pneg %p262
    %p269 = scmp.eq.s32.totalorder %s17, 1
    %p270 = por %p268, %p269
    %p271 = scmp.ne.s32.totalorder %s263, %s266
    %p272 = scmp.eq.s32.totalorder %s17, 0
    %p273 = por %p271, %p272
    %p274 = scmp.ne.s32.totalorder %s263, %s266
    %p275 = scmp.eq.s32.totalorder %s22, 1
    %p276 = por %p274, %p275
    %p277 = scmp.ne.s32.totalorder %s266, %s267
    %p278 = scmp.eq.s32.totalorder %s22, 0
    %p279 = por %p277, %p278
    %p280 = scmp.ne.s32.totalorder %s266, %s267
    %p281 = scmp.eq.s32.totalorder %s23, 1
    %p282 = por %p280, %p281
    %p284 = scmp.ne.s32.totalorder %s267, %s283
    %p285 = scmp.eq.s32.totalorder %s23, 0
    %p286 = por %p284, %p285
    %p287 = scmp.le.s32.totalorder 1, %s17
    %p288 = scmp.lt.s32.totalorder %s17, 3
    %p289 = pnand %p287, %p288
    %p290 = pneg %p289
    // Predicated region
    $region9: #{cnn_planner_forward.2} parent=5 // pred_check
      _
    $region10: #{cnn_planner_forward.2} parent=5 // pred_check_branch
      %292 = sbr.rel (%p289) target = $region12
    $region11: #{cnn_planner_forward.2} parent=5 // pred_region
      %s293 = ssub.s32 %s17, 1
      // Predicated region
      $region13: #{cnn_planner_forward.2} parent=11 // pred_check
        %p294 = pneg %p64
      $region14: #{cnn_planner_forward.2} parent=11 // pred_check_branch
        %296 = sbr.rel (%p294) target = $region16
      $region15: #{cnn_planner_forward.2} parent=11 // pred_region
        _
      $region16: #{cnn_planner_forward.2} parent=11 // pred_fallthru
        _
      // Predicated region
      $region17: #{cnn_planner_forward.2} parent=11 // pred_check
        %p297 = pneg %p85
      $region18: #{cnn_planner_forward.2} parent=11 // pred_check_branch
        %299 = sbr.rel (%p297) target = $region20
      $region19: #{cnn_planner_forward.2} parent=11 // pred_region
        _
      $region20: #{cnn_planner_forward.2} parent=11 // pred_fallthru
        _
      // Predicated region
      $region21: #{cnn_planner_forward.2} parent=11 // pred_check
        %p300 = pneg %p106
      $region22: #{cnn_planner_forward.2} parent=11 // pred_check_branch
        %302 = sbr.rel (%p300) target = $region24
      $region23: #{cnn_planner_forward.2} parent=11 // pred_region
        _
      $region24: #{cnn_planner_forward.2} parent=11 // pred_fallthru
        _
      // Predicated region
      $region25: #{cnn_planner_forward.2} parent=11 // pred_check
        %p303 = pneg %p127
      $region26: #{cnn_planner_forward.2} parent=11 // pred_check_branch
        %305 = sbr.rel (%p303) target = $region28
      $region27: #{cnn_planner_forward.2} parent=11 // pred_region
        _
      $region28: #{cnn_planner_forward.2} parent=11 // pred_fallthru
        _
      // Predicated region
      $region29: #{cnn_planner_forward.2} parent=11 // pred_check
        %p306 = pneg %p148
      $region30: #{cnn_planner_forward.2} parent=11 // pred_check_branch
        %308 = sbr.rel (%p306) target = $region32
      $region31: #{cnn_planner_forward.2} parent=11 // pred_region
        _
      $region32: #{cnn_planner_forward.2} parent=11 // pred_fallthru
        _
      // Predicated region
      $region33: #{cnn_planner_forward.2} parent=11 // pred_check
        %p309 = pneg %p169
      $region34: #{cnn_planner_forward.2} parent=11 // pred_check_branch
        %311 = sbr.rel (%p309) target = $region36
      $region35: #{cnn_planner_forward.2} parent=11 // pred_region
        _
      $region36: #{cnn_planner_forward.2} parent=11 // pred_fallthru
        _
      // Predicated region
      $region37: #{cnn_planner_forward.2} parent=11 // pred_check
        %p312 = pneg %p190
      $region38: #{cnn_planner_forward.2} parent=11 // pred_check_branch
        %314 = sbr.rel (%p312) target = $region40
      $region39: #{cnn_planner_forward.2} parent=11 // pred_region
        _
      $region40: #{cnn_planner_forward.2} parent=11 // pred_fallthru
        _
      // Predicated region
      $region41: #{cnn_planner_forward.2} parent=11 // pred_check
        %p315 = pneg %p211
      $region42: #{cnn_planner_forward.2} parent=11 // pred_check_branch
        %317 = sbr.rel (%p315) target = $region44
      $region43: #{cnn_planner_forward.2} parent=11 // pred_region
        _
      $region44: #{cnn_planner_forward.2} parent=11 // pred_fallthru
        _
      // Predicated region
      $region45: #{cnn_planner_forward.2} parent=11 // pred_check
        %p318 = pneg %p232
      $region46: #{cnn_planner_forward.2} parent=11 // pred_check_branch
        %320 = sbr.rel (%p318) target = $region48
      $region47: #{cnn_planner_forward.2} parent=11 // pred_region
        _
      $region48: #{cnn_planner_forward.2} parent=11 // pred_fallthru
        _
      // Predicated region
      $region49: #{cnn_planner_forward.2} parent=11 // pred_check
        %p321 = pneg %p253
      $region50: #{cnn_planner_forward.2} parent=11 // pred_check_branch
        %323 = sbr.rel (%p321) target = $region52
      $region51: #{cnn_planner_forward.2} parent=11 // pred_region
        _
      $region52: #{cnn_planner_forward.2} parent=11 // pred_fallthru
        _
    $region12: #{cnn_planner_forward.2} parent=5 // pred_fallthru
      _
    %p324 = scmp.lt.s32.totalorder %s17, 2
    // Predicated region
    $region53: #{cnn_planner_forward.2} parent=5 // pred_check
      %p325 = pneg %p324
    $region54: #{cnn_planner_forward.2} parent=5 // pred_check_branch
      %327 = sbr.rel (%p325) target = $region56
    $region55: #{cnn_planner_forward.2} parent=5 // pred_region
      // Predicated region
      $region57: #{cnn_planner_forward.2} parent=55 // pred_check
        %p328 = pneg %p37
      $region58: #{cnn_planner_forward.2} parent=55 // pred_check_branch
        %330 = sbr.rel (%p328) target = $region60
      $region59: #{cnn_planner_forward.2} parent=55 // pred_region
        %p331 = scmp.lt.s32.totalorder %s17, 1
        %s332 = scalar_select %p331, %s17, 1
        %s333 = smul.addr %s332, 32
        %s334 = smul.addr %s333, 8
        %s335 = scalar_lea.vmem %s0, %s334
      $region60: #{cnn_planner_forward.2} parent=55 // pred_fallthru
        _
    $region56: #{cnn_planner_forward.2} parent=5 // pred_fallthru
      _
    %p336 = scmp.le.s32.totalorder 1, %s17
    %p337 = scmp.lt.s32.totalorder %s17, 3
    %p338 = pnand %p336, %p337
    %p339 = pneg %p338
    // Predicated region
    $region61: #{cnn_planner_forward.2} parent=5 // pred_check
      _
    $region62: #{cnn_planner_forward.2} parent=5 // pred_check_branch
      %341 = sbr.rel (%p338) target = $region64
    $region63: #{cnn_planner_forward.2} parent=5 // pred_region
      %s342 = ssub.s32 %s17, 1
      %p343 = scmp.lt.s32.totalorder %s22, 1
      %s344 = scalar_select %p343, %s22, 1
      %s345 = smul.addr %s344, 32
      %s346 = smul.addr %s345, 8
      %s347 = scalar_lea.vmem %s0, %s346
      %p348 = pneg %p43
      %p349 = pneg %p40
      %p350 = pneg %p64
      %p351 = pneg %p61
      %p352 = pneg %p85
      %p353 = pneg %p82
      %p354 = pneg %p106
      %p355 = pneg %p103
      %p356 = pneg %p127
      %p357 = pneg %p124
      %p358 = pneg %p148
      %p359 = pneg %p145
      %p360 = pneg %p169
      %p361 = pneg %p166
      %p362 = pneg %p190
      %p363 = pneg %p187
      %p364 = pneg %p211
      %p365 = pneg %p208
      %p366 = pneg %p232
      %p367 = pneg %p229
      %p368 = pneg %p253
      %p369 = pneg %p250
      %p370 = pneg %p279
      %p371 = pneg %p276
      %p372 = scmp.lt.s32.totalorder %s22, 1
      %s373 = scalar_select %p372, %s22, 1
      %s374 = smul.addr %s373, 2
      %s375 = scalar_lea.vmem %s11, %s374
      %p376 = scmp.lt.s32.totalorder %s22, 1
      %s377 = scalar_select %p376, %s22, 1
      %s378 = smul.addr %s377, 32
      %s379 = smul.addr %s378, 8
      %s380 = scalar_lea.vmem %s0, %s379
      %p381 = scmp.lt.s32.totalorder %s22, 1
      %s382 = scalar_select %p381, %s22, 1
      %s383 = smul.addr %s382, 2
      %s384 = scalar_lea.vmem %s11, %s383
      %vm386 = vcmask 60416
      %387 = vst.msk [vmem:[#allocation2] sm:$0xf] %vm386, 0
      %388 = vst.msk [vmem:[#allocation2 + $0x4] sm:$0xf] %vm386, 0
      %389 = vst.msk [vmem:[#allocation2 + $0x8] sm:$0xf] %vm386, 0
      %390 = vst.msk [vmem:[#allocation2 + $0xc] sm:$0xf] %vm386, 0
      %391 = vst.msk [vmem:[#allocation2 + $0x10] sm:$0xf] %vm386, 0
      %392 = vst.msk [vmem:[#allocation2 + $0x14] sm:$0xf] %vm386, 0
      %393 = vst.msk [vmem:[#allocation2 + $0x18] sm:$0xf] %vm386, 0
      %394 = vst.msk [vmem:[#allocation2 + $0x1c] sm:$0xf] %vm386, 0
      %395 = vst.msk [vmem:[#allocation2 + $0x20] sm:$0xf] %vm386, 0
      %396 = vst.msk [vmem:[#allocation2 + $0x24] sm:$0xf] %vm386, 0
      %397 = vst.msk [vmem:[#allocation2 + $0x28] sm:$0xf] %vm386, 0
      %398 = vst.msk [vmem:[#allocation2 + $0x2c] sm:$0xf] %vm386, 0
      %399 = vst.msk [vmem:[#allocation2 + $0x30] sm:$0xf] %vm386, 0
      %vm400 = vcmask 59392
      %401 = vst.msk [vmem:[#allocation2 + $0x34] sm:$0x7] %vm400, 0
      %402 = vst.msk [vmem:[#allocation2 + $0x38] sm:$0xf] %vm386, 0
      %403 = vst.msk [vmem:[#allocation2 + $0x3c] sm:$0xf] %vm386, 0
      %404 = vst.msk [vmem:[#allocation2 + $0x40] sm:$0xf] %vm386, 0
      %405 = vst.msk [vmem:[#allocation2 + $0x44] sm:$0xf] %vm386, 0
      %406 = vst.msk [vmem:[#allocation2 + $0x48] sm:$0xf] %vm386, 0
      %407 = vst.msk [vmem:[#allocation2 + $0x4c] sm:$0xf] %vm386, 0
      %408 = vst.msk [vmem:[#allocation2 + $0x50] sm:$0xf] %vm386, 0
      %409 = vst.msk [vmem:[#allocation2 + $0x54] sm:$0xf] %vm386, 0
      %410 = vst.msk [vmem:[#allocation2 + $0x58] sm:$0xf] %vm386, 0
      %411 = vst.msk [vmem:[#allocation2 + $0x5c] sm:$0xf] %vm386, 0
      %412 = vst.msk [vmem:[#allocation2 + $0x60] sm:$0xf] %vm386, 0
      %413 = vst.msk [vmem:[#allocation2 + $0x64] sm:$0xf] %vm386, 0
      %414 = vst.msk [vmem:[#allocation2 + $0x68] sm:$0xf] %vm386, 0
      %415 = vst.msk [vmem:[#allocation2 + $0x6c] sm:$0x7] %vm400, 0
      %416 = vst.msk [vmem:[#allocation2 + $0x70] sm:$0xf] %vm386, 0
      %417 = vst.msk [vmem:[#allocation2 + $0x74] sm:$0xf] %vm386, 0
      %418 = vst.msk [vmem:[#allocation2 + $0x78] sm:$0xf] %vm386, 0
      %419 = vst.msk [vmem:[#allocation2 + $0x7c] sm:$0xf] %vm386, 0
      %420 = vst.msk [vmem:[#allocation2 + $0x80] sm:$0xf] %vm386, 0
      %421 = vst.msk [vmem:[#allocation2 + $0x84] sm:$0xf] %vm386, 0
      %422 = vst.msk [vmem:[#allocation2 + $0x88] sm:$0xf] %vm386, 0
      %423 = vst.msk [vmem:[#allocation2 + $0x8c] sm:$0xf] %vm386, 0
      %424 = vst.msk [vmem:[#allocation2 + $0x90] sm:$0xf] %vm386, 0
      %425 = vst.msk [vmem:[#allocation2 + $0x94] sm:$0xf] %vm386, 0
      %426 = vst.msk [vmem:[#allocation2 + $0x98] sm:$0xf] %vm386, 0
      %427 = vst.msk [vmem:[#allocation2 + $0x9c] sm:$0xf] %vm386, 0
      %428 = vst.msk [vmem:[#allocation2 + $0xa0] sm:$0xf] %vm386, 0
      %429 = vst.msk [vmem:[#allocation2 + $0xa4] sm:$0x7] %vm400, 0
      %430 = vst.msk [vmem:[#allocation2 + $0xa8] sm:$0xf] %vm386, 0
      %431 = vst.msk [vmem:[#allocation2 + $0xac] sm:$0xf] %vm386, 0
      %432 = vst.msk [vmem:[#allocation2 + $0xb0] sm:$0xf] %vm386, 0
      %433 = vst.msk [vmem:[#allocation2 + $0xb4] sm:$0xf] %vm386, 0
      %434 = vst.msk [vmem:[#allocation2 + $0xb8] sm:$0xf] %vm386, 0
      %435 = vst.msk [vmem:[#allocation2 + $0xbc] sm:$0xf] %vm386, 0
      %436 = vst.msk [vmem:[#allocation2 + $0xc0] sm:$0xf] %vm386, 0
      %437 = vst.msk [vmem:[#allocation2 + $0xc4] sm:$0xf] %vm386, 0
      %438 = vst.msk [vmem:[#allocation2 + $0xc8] sm:$0xf] %vm386, 0
      %439 = vst.msk [vmem:[#allocation2 + $0xcc] sm:$0xf] %vm386, 0
      %440 = vst.msk [vmem:[#allocation2 + $0xd0] sm:$0xf] %vm386, 0
      %441 = vst.msk [vmem:[#allocation2 + $0xd4] sm:$0xf] %vm386, 0
      %442 = vst.msk [vmem:[#allocation2 + $0xd8] sm:$0xf] %vm386, 0
      %443 = vst.msk [vmem:[#allocation2 + $0xdc] sm:$0x7] %vm400, 0
      %v444 = vlaneseq
      %v445 = vshrl.u32 %v444, 7
      %v446 = vadd.s32 %v445, 8
      %v447 = vadd.s32 %v445, 16
      %v448 = vlaneseq
      %v449 = vand.u32 %v448, 127
      %vm450 = vcmp.ge.s32.totalorder %v445, 10
      %vm451 = vcmp.ge.s32.totalorder %v446, 10
      %vm452 = vcmp.ge.s32.totalorder %v447, 10
      %v453 = vsel %vm450, 1, 0
      %v454 = vsel %vm451, 1, 0
      %v455 = vsel %vm452, 1, 0
      %v456 = vmul.u32 %v453, 10
      %v457 = vmul.u32 %v454, 10
      %v458 = vmul.u32 %v455, 10
      %v459 = vsub.s32 %v445, %v456
      %v460 = vsub.s32 %v446, %v457
      %v461 = vsub.s32 %v447, %v458
      %v462 = vmul.u32 %v459, 2
      %v463 = vmul.u32 %v460, 2
      %v464 = vmul.u32 %v461, 2
      %v465 = vadd.s32 %v462, %v453
      %v466 = vadd.s32 %v463, %v454
      %v467 = vadd.s32 %v464, %v455
      %v468 = vsub.s32 %v465, 2
      %v469 = vsub.s32 %v466, 2
      %v470 = vsub.s32 %v467, 2
      %vm471 = vcmp.eq.s32.totalorder %v449, %v468
      %vm472 = vcmp.eq.s32.totalorder %v449, %v469
      %vm473 = vcmp.eq.s32.totalorder %v449, %v470
      %vm474 = vcmp.ge.s32.totalorder %v468, 0
      %vm475 = vcmp.ge.s32.totalorder %v469, 0
      %vm476 = vcmp.ge.s32.totalorder %v470, 0
      %vm477 = vmand %vm471, %vm474
      %vm478 = vmand %vm472, %vm475
      %vm479 = vmand %vm473, %vm476
      %vm480 = vcmp.lt.s32.totalorder %v468, 16
      %vm481 = vcmp.lt.s32.totalorder %v469, 16
      %vm482 = vcmp.lt.s32.totalorder %v470, 16
      %vm483 = vmand %vm477, %vm480
      %vm484 = vmand %vm478, %vm481
      %vm485 = vmand %vm479, %vm482
      %v486 = vsel %vm483, 1.0, 0.0
      %v487 = vsel %vm484, 1.0, 0.0
      %v488 = vsel %vm485, 1.0, 0.0
      %v489 = vpack.c.bf16 %v487, %v486
      %v490 = vpack.c.bf16 %v488, %v488
      %v491 = vld [vmem:[%s1] sm:$0x1]
      %v492 = vld [vmem:[%s2] sm:$0x1]
      %v493 = vld [vmem:[%s380] sm:$0xff]
      %v494 = vld [vmem:[%s380 + $0x8] sm:$0xff]
      %v496 = vlaneseq
      %v497 = vshrl.u32 %v496, 7
      %v498 = vsub.s32 0, %v497
      %v499 = vrot.slane %v491, %v498
      %v501 = vsub.f32 %v493, %v499
      %v502 = vsub.f32 %v494, %v499
      %v504 = vlaneseq
      %v505 = vshrl.u32 %v504, 7
      %v506 = vsub.s32 0, %v505
      %v507 = vrot.slane %v492, %v506
      %v509 = vmul.f32 %v501, %v507
      %v510 = vmul.f32 %v502, %v507
      %v511 = vpack.c.bf16 %v510, %v509
      %vm512 = vcmask 130048
      %v514 = vsel %vm512, %v489, 0
      %v517 = vsel %vm512, %v490, 0
      %519 = vmatprep.subr.bf16.mxu0 0
      %520 = vmatpush1.bf16.msra.mxu0 %v511
      %521 = vmatprep.subr.bf16.mxu0 0
      %522 = vmatpush1.bf16.msra.mxu0 0
      %523 = vmatprep.subr.bf16.mxu0 0
      %524 = vmatpush1.bf16.msra.mxu0 0
      %525 = vmatprep.subr.bf16.mxu0 0
      %526 = vmatpush1.bf16.msra.mxu0 0
      %527 = vmatprep.subr.bf16.mxu0 0
      %528 = vmatpush1.bf16.msra.mxu0 0
      %529 = vmatprep.subr.bf16.mxu0 0
      %530 = vmatpush1.bf16.msra.mxu0 0
      %531 = vmatprep.subr.bf16.mxu0 0
      %532 = vmatpush1.bf16.msra.mxu0 0
      %533 = vmatprep.subr.bf16.mxu0 0
      %534 = vmatpush1.bf16.msra.mxu0 0
      %535 = vmatprep.subr.bf16.mxu0 0
      %536 = vmatpush1.bf16.msra.mxu0 0
      %537 = vmatprep.subr.bf16.mxu0 0
      %538 = vmatpush1.bf16.msra.mxu0 0
      %539 = vmatprep.subr.bf16.mxu0 0
      %540 = vmatpush1.bf16.msra.mxu0 0
      %541 = vmatprep.subr.bf16.mxu0 0
      %542 = vmatpush1.bf16.msra.mxu0 0
      %543 = vmatprep.subr.bf16.mxu0 0
      %544 = vmatpush1.bf16.msra.mxu0 0
      %545 = vmatprep.subr.bf16.mxu0 0
      %546 = vmatpush1.bf16.msra.mxu0 0
      %547 = vmatprep.subr.bf16.mxu0 0
      %548 = vmatpush1.bf16.msra.mxu0 0
      %549 = vmatprep.subr.bf16.mxu0 0
      %550 = vmatpush1.bf16.msra.mxu0 0
      %551 = vmatprep.mubr.bf16.mxu0 0
      %552 = vmatmul.mubr.bf16.gmra.mrb[0].mxu0 %v514
      %v553 = vpop.f32.mrb[0].mxu0
      %v554 = vadd.f32 0.0, %v553
      %v555 = vpop.f32.mrb[0].mxu0
      %v556 = vpop.f32.mrb[0].mxu0
      %v557 = vadd.f32 0.0, %v556
      %v558 = vpop.f32.mrb[0].mxu0
      %559 = vmatprep.mubr.bf16.mxu0 0
      %560 = vmatmul.mubr.bf16.gmra.mrb[0].mxu0 %v517
      %v561 = vpop.f32.mrb[0].mxu0
      %v562 = vadd.f32 0.0, %v561
      %v563 = vpop.f32.mrb[0].mxu0
      %v564 = vpop.f32.mrb[0].mxu0
      %v565 = vpop.f32.mrb[0].mxu0
      %566 = vdwg.mxu0
      %v567 = vpack.c.bf16 %v557, %v554
      %v569 = vunpack.c.l.b16 %v567
      %v570 = vunpack.c.h.b16 %v567
      %v571 = vpack.c.b16 %v569, %v569
      %v572 = vpack.c.b16 %v570, %v570
      %vm573 = vcmask 1040384
      %vm574 = vcmask 1044484
      %vm575 = vmor %vm573, %vm574
      %v576 = vrot.slane %v571, 7
      %v577 = vrot.slane %v576, 4
      %v578 = vrot.slane %v572, 7
      %v579 = vsel %vm575, %v577, %v578
      %vm582 = vcmask 60417
      %583 = vst.msk [vmem:[#allocation2 + $0x4] sm:$0xe] %vm582, %v576
      %vm584 = vcmask 58368
      %585 = vst.msk [vmem:[#allocation2 + $0x8] sm:$0x3] %vm584, %v579
      %v586 = vpack.c.bf16 %v562, %v557
      %v588 = vunpack.c.l.b16 %v586
      %v589 = vunpack.c.h.b16 %v586
      %v590 = vpack.c.b16 %v588, %v588
      %v591 = vpack.c.b16 %v589, %v589
      %s594 = scalar_lea.vmem [#allocation2], 56
      %595 = vst.msk [vmem:[%s594 + $0x4] sm:$0xe] %vm582, %v590
      %596 = vst.msk [vmem:[%s594 + $0x8] sm:$0x3] %vm584, %v591
      %s597 = scalar_lea.vmem %s380, 16
      %v598 = vld [vmem:[%s597] sm:$0xff]
      %v599 = vld [vmem:[%s597 + $0x8] sm:$0xff]
      %v600 = vsub.f32 %v598, %v499
      %v601 = vsub.f32 %v599, %v499
      %v602 = vmul.f32 %v600, %v507
      %v603 = vmul.f32 %v601, %v507
      %v604 = vpack.c.bf16 %v603, %v602
      %605 = vmatprep.subr.bf16.mxu0 0
      %606 = vmatpush1.bf16.msra.mxu0 %v604
      %607 = vmatprep.subr.bf16.mxu0 0
      %608 = vmatpush1.bf16.msra.mxu0 0
      %609 = vmatprep.subr.bf16.mxu0 0
      %610 = vmatpush1.bf16.msra.mxu0 0
      %611 = vmatprep.subr.bf16.mxu0 0
      %612 = vmatpush1.bf16.msra.mxu0 0
      %613 = vmatprep.subr.bf16.mxu0 0
      %614 = vmatpush1.bf16.msra.mxu0 0
      %615 = vmatprep.subr.bf16.mxu0 0
      %616 = vmatpush1.bf16.msra.mxu0 0
      %617 = vmatprep.subr.bf16.mxu0 0
      %618 = vmatpush1.bf16.msra.mxu0 0
      %619 = vmatprep.subr.bf16.mxu0 0
      %620 = vmatpush1.bf16.msra.mxu0 0
      %621 = vmatprep.subr.bf16.mxu0 0
      %622 = vmatpush1.bf16.msra.mxu0 0
      %623 = vmatprep.subr.bf16.mxu0 0
      %624 = vmatpush1.bf16.msra.mxu0 0
      %625 = vmatprep.subr.bf16.mxu0 0
      %626 = vmatpush1.bf16.msra.mxu0 0
      %627 = vmatprep.subr.bf16.mxu0 0
      %628 = vmatpush1.bf16.msra.mxu0 0
      %629 = vmatprep.subr.bf16.mxu0 0
      %630 = vmatpush1.bf16.msra.mxu0 0
      %631 = vmatprep.subr.bf16.mxu0 0
      %632 = vmatpush1.bf16.msra.mxu0 0
      %633 = vmatprep.subr.bf16.mxu0 0
      %634 = vmatpush1.bf16.msra.mxu0 0
      %635 = vmatprep.subr.bf16.mxu0 0
      %636 = vmatpush1.bf16.msra.mxu0 0
      %637 = vmatprep.mubr.bf16.mxu0 0
      %638 = vmatmul.mubr.bf16.gmra.mrb[0].mxu0 %v514
      %v639 = vpop.f32.mrb[0].mxu0
      %v640 = vadd.f32 0.0, %v639
      %v641 = vpop.f32.mrb[0].mxu0
      %v642 = vpop.f32.mrb[0].mxu0
      %v643 = vadd.f32 0.0, %v642
      %v644 = vpop.f32.mrb[0].mxu0
      %645 = vmatprep.mubr.bf16.mxu0 0
      %646 = vmatmul.mubr.bf16.gmra.mrb[0].mxu0 %v517
      %v647 = vpop.f32.mrb[0].mxu0
      %v648 = vadd.f32 0.0, %v647
      %v649 = vpop.f32.mrb[0].mxu0
      %v650 = vpop.f32.mrb[0].mxu0
      %v651 = vpop.f32.mrb[0].mxu0
      %652 = vdwg.mxu0
      %v653 = vpack.c.bf16 %v643, %v640
      %v655 = vunpack.c.l.b16 %v653
      %v656 = vunpack.c.h.b16 %v653
      %v657 = vpack.c.b16 %v655, %v655
      %v658 = vpack.c.b16 %v656, %v656
      %v659 = vrot.slane %v657, 7
      %v660 = vrot.slane %v659, 4
      %v661 = vrot.slane %v658, 7
      %v662 = vsel %vm575, %v660, %v661
      %s665 = scalar_lea.vmem [#allocation2], 112
      %666 = vst.msk [vmem:[%s665 + $0x4] sm:$0xe] %vm582, %v659
      %667 = vst.msk [vmem:[%s665 + $0x8] sm:$0x3] %vm584, %v662
      %v668 = vpack.c.bf16 %v648, %v643
      %v670 = vunpack.c.l.b16 %v668
      %v671 = vunpack.c.h.b16 %v668
      %v672 = vpack.c.b16 %v670, %v670
      %v673 = vpack.c.b16 %v671, %v671
      %s676 = scalar_lea.vmem [#allocation2], 168
      %677 = vst.msk [vmem:[%s676 + $0x4] sm:$0xe] %vm582, %v672
      %678 = vst.msk [vmem:[%s676 + $0x8] sm:$0x3] %vm584, %v673
      %s679 = scalar_lea.vmem %s380, 32
      %v680 = vld [vmem:[%s679] sm:$0xff]
      %v681 = vld [vmem:[%s679 + $0x8] sm:$0xff]
      %v682 = vsub.f32 %v680, %v499
      %v683 = vsub.f32 %v681, %v499
      %v684 = vmul.f32 %v682, %v507
      %v685 = vmul.f32 %v683, %v507
      %v686 = vpack.c.bf16 %v685, %v684
      %687 = vmatprep.subr.bf16.mxu0 0
      %688 = vmatpush1.bf16.msra.mxu0 %v686
      %689 = vmatprep.subr.bf16.mxu0 0
      %690 = vmatpush1.bf16.msra.mxu0 0
      %691 = vmatprep.subr.bf16.mxu0 0
      %692 = vmatpush1.bf16.msra.mxu0 0
      %693 = vmatprep.subr.bf16.mxu0 0
      %694 = vmatpush1.bf16.msra.mxu0 0
      %695 = vmatprep.subr.bf16.mxu0 0
      %696 = vmatpush1.bf16.msra.mxu0 0
      %697 = vmatprep.subr.bf16.mxu0 0
      %698 = vmatpush1.bf16.msra.mxu0 0
      %699 = vmatprep.subr.bf16.mxu0 0
      %700 = vmatpush1.bf16.msra.mxu0 0
      %701 = vmatprep.subr.bf16.mxu0 0
      %702 = vmatpush1.bf16.msra.mxu0 0
      %703 = vmatprep.subr.bf16.mxu0 0
      %704 = vmatpush1.bf16.msra.mxu0 0
      %705 = vmatprep.subr.bf16.mxu0 0
      %706 = vmatpush1.bf16.msra.mxu0 0
      %707 = vmatprep.subr.bf16.mxu0 0
      %708 = vmatpush1.bf16.msra.mxu0 0
      %709 = vmatprep.subr.bf16.mxu0 0
      %710 = vmatpush1.bf16.msra.mxu0 0
      %711 = vmatprep.subr.bf16.mxu0 0
      %712 = vmatpush1.bf16.msra.mxu0 0
      %713 = vmatprep.subr.bf16.mxu0 0
      %714 = vmatpush1.bf16.msra.mxu0 0
      %715 = vmatprep.subr.bf16.mxu0 0
      %716 = vmatpush1.bf16.msra.mxu0 0
      %717 = vmatprep.subr.bf16.mxu0 0
      %718 = vmatpush1.bf16.msra.mxu0 0
      %719 = vmatprep.mubr.bf16.mxu0 0
      %720 = vmatmul.mubr.bf16.gmra.mrb[0].mxu0 %v514
      %v721 = vpop.f32.mrb[0].mxu0
      %v722 = vadd.f32 0.0, %v721
      %v723 = vpop.f32.mrb[0].mxu0
      %v724 = vpop.f32.mrb[0].mxu0
      %v725 = vadd.f32 0.0, %v724
      %v726 = vpop.f32.mrb[0].mxu0
      %727 = vmatprep.mubr.bf16.mxu0 0
      %728 = vmatmul.mubr.bf16.gmra.mrb[0].mxu0 %v517
      %v729 = vpop.f32.mrb[0].mxu0
      %v730 = vadd.f32 0.0, %v729
      %v731 = vpop.f32.mrb[0].mxu0
      %v732 = vpop.f32.mrb[0].mxu0
      %v733 = vpop.f32.mrb[0].mxu0
      %734 = vdwg.mxu0
      %v735 = vpack.c.bf16 %v725, %v722
      %v737 = vunpack.c.l.b16 %v735
      %v738 = vunpack.c.h.b16 %v735
      %v739 = vpack.c.b16 %v737, %v737
      %v740 = vpack.c.b16 %v738, %v738
      %vm741 = vcmask 1041408
      %vm742 = vcmask 1045508
      %vm743 = vmor %vm741, %vm742
      %v744 = vrot.slane %v739, 6
      %v745 = vrot.slane %v744, 4
      %v746 = vrot.slane %v740, 6
      %v747 = vsel %vm743, %v745, %v746
      %vm750 = vcmask 60418
      %751 = vst.msk [vmem:[#allocation2 + $0x8] sm:$0xc] %vm750, %v744
      %752 = vst.msk [vmem:[#allocation2 + $0xc] sm:$0x7] %vm400, %v747
      %v753 = vpack.c.bf16 %v730, %v725
      %v755 = vunpack.c.l.b16 %v753
      %v756 = vunpack.c.h.b16 %v753
      %v757 = vpack.c.b16 %v755, %v755
      %v758 = vpack.c.b16 %v756, %v756
      %v759 = vrot.slane %v757, 7
      %v760 = vrot.slane %v759, 4
      %v761 = vrot.slane %v758, 7
      %v762 = vsel %vm575, %v760, %v761
      %765 = vst.msk [vmem:[%s594 + $0x8] sm:$0xc] %vm750, %v759
      %766 = vst.msk [vmem:[%s594 + $0xc] sm:$0x7] %vm400, %v762
      %s767 = scalar_lea.vmem %s380, 48
      %v768 = vld [vmem:[%s767] sm:$0xff]
      %v769 = vld [vmem:[%s767 + $0x8] sm:$0xff]
      %v770 = vsub.f32 %v768, %v499
      %v771 = vsub.f32 %v769, %v499
      %v772 = vmul.f32 %v770, %v507
      %v773 = vmul.f32 %v771, %v507
      %v774 = vpack.c.bf16 %v773, %v772
      %775 = vmatprep.subr.bf16.mxu0 0
      %776 = vmatpush1.bf16.msra.mxu0 %v774
      %777 = vmatprep.subr.bf16.mxu0 0
      %778 = vmatpush1.bf16.msra.mxu0 0
      %779 = vmatprep.subr.bf16.mxu0 0
      %780 = vmatpush1.bf16.msra.mxu0 0
      %781 = vmatprep.subr.bf16.mxu0 0
      %782 = vmatpush1.bf16.msra.mxu0 0
      %783 = vmatprep.subr.bf16.mxu0 0
      %784 = vmatpush1.bf16.msra.mxu0 0
      %785 = vmatprep.subr.bf16.mxu0 0
      %786 = vmatpush1.bf16.msra.mxu0 0
      %787 = vmatprep.subr.bf16.mxu0 0
      %788 = vmatpush1.bf16.msra.mxu0 0
      %789 = vmatprep.subr.bf16.mxu0 0
      %790 = vmatpush1.bf16.msra.mxu0 0
      %791 = vmatprep.subr.bf16.mxu0 0
      %792 = vmatpush1.bf16.msra.mxu0 0
      %793 = vmatprep.subr.bf16.mxu0 0
      %794 = vmatpush1.bf16.msra.mxu0 0
      %795 = vmatprep.subr.bf16.mxu0 0
      %796 = vmatpush1.bf16.msra.mxu0 0
      %797 = vmatprep.subr.bf16.mxu0 0
      %798 = vmatpush1.bf16.msra.mxu0 0
      %799 = vmatprep.subr.bf16.mxu0 0
      %800 = vmatpush1.bf16.msra.mxu0 0
      %801 = vmatprep.subr.bf16.mxu0 0
      %802 = vmatpush1.bf16.msra.mxu0 0
      %803 = vmatprep.subr.bf16.mxu0 0
      %804 = vmatpush1.bf16.msra.mxu0 0
      %805 = vmatprep.subr.bf16.mxu0 0
      %806 = vmatpush1.bf16.msra.mxu0 0
      %807 = vmatprep.mubr.bf16.mxu0 0
      %808 = vmatmul.mubr.bf16.gmra.mrb[0].mxu0 %v514
      %v809 = vpop.f32.mrb[0].mxu0
      %v810 = vadd.f32 0.0, %v809
      %v811 = vpop.f32.mrb[0].mxu0
      %v812 = vpop.f32.mrb[0].mxu0
      %v813 = vadd.f32 0.0, %v812
      %v814 = vpop.f32.mrb[0].mxu0
      %815 = vmatprep.mubr.bf16.mxu0 0
      %816 = vmatmul.mubr.bf16.gmra.mrb[0].mxu0 %v517
      %v817 = vpop.f32.mrb[0].mxu0
      %v818 = vadd.f32 0.0, %v817
      %v819 = vpop.f32.mrb[0].mxu0
      %v820 = vpop.f32.mrb[0].mxu0
      %v821 = vpop.f32.mrb[0].mxu0
      %822 = vdwg.mxu0
      %v823 = vpack.c.bf16 %v813, %v810
      %v825 = vunpack.c.l.b16 %v823
      %v826 = vunpack.c.h.b16 %v823
      %v827 = vpack.c.b16 %v825, %v825
      %v828 = vpack.c.b16 %v826, %v826
      %v829 = vrot.slane %v827, 6
      %v830 = vrot.slane %v829, 4
      %v831 = vrot.slane %v828, 6
      %v832 = vsel %vm743, %v830, %v831
      %835 = vst.msk [vmem:[%s665 + $0x8] sm:$0xc] %vm750, %v829
      %836 = vst.msk [vmem:[%s665 + $0xc] sm:$0x7] %vm400, %v832
      %v837 = vpack.c.bf16 %v818, %v813
      %v839 = vunpack.c.l.b16 %v837
      %v840 = vunpack.c.h.b16 %v837
      %v841 = vpack.c.b16 %v839, %v839
      %v842 = vpack.c.b16 %v840, %v840
      %v843 = vrot.slane %v841, 7
      %v844 = vrot.slane %v843, 4
      %v845 = vrot.slane %v842, 7
      %v846 = vsel %vm575, %v844, %v845
      %849 = vst.msk [vmem:[%s676 + $0x8] sm:$0xc] %vm750, %v843
      %850 = vst.msk [vmem:[%s676 + $0xc] sm:$0x7] %vm400, %v846
      %s851 = scalar_lea.vmem %s380, 64
      %v852 = vld [vmem:[%s851] sm:$0xff]
      %v853 = vld [vmem:[%s851 + $0x8] sm:$0xff]
      %v854 = vsub.f32 %v852, %v499
      %v855 = vsub.f32 %v853, %v499
      %v856 = vmul.f32 %v854, %v507
      %v857 = vmul.f32 %v855, %v507
      %v858 = vpack.c.bf16 %v857, %v856
      %859 = vmatprep.subr.bf16.mxu0 0
      %860 = vmatpush1.bf16.msra.mxu0 %v858
      %861 = vmatprep.subr.bf16.mxu0 0
      %862 = vmatpush1.bf16.msra.mxu0 0
      %863 = vmatprep.subr.bf16.mxu0 0
      %864 = vmatpush1.bf16.msra.mxu0 0
      %865 = vmatprep.subr.bf16.mxu0 0
      %866 = vmatpush1.bf16.msra.mxu0 0
      %867 = vmatprep.subr.bf16.mxu0 0
      %868 = vmatpush1.bf16.msra.mxu0 0
      %869 = vmatprep.subr.bf16.mxu0 0
      %870 = vmatpush1.bf16.msra.mxu0 0
      %871 = vmatprep.subr.bf16.mxu0 0
      %872 = vmatpush1.bf16.msra.mxu0 0
      %873 = vmatprep.subr.bf16.mxu0 0
      %874 = vmatpush1.bf16.msra.mxu0 0
      %875 = vmatprep.subr.bf16.mxu0 0
      %876 = vmatpush1.bf16.msra.mxu0 0
      %877 = vmatprep.subr.bf16.mxu0 0
      %878 = vmatpush1.bf16.msra.mxu0 0
      %879 = vmatprep.subr.bf16.mxu0 0
      %880 = vmatpush1.bf16.msra.mxu0 0
      %881 = vmatprep.subr.bf16.mxu0 0
      %882 = vmatpush1.bf16.msra.mxu0 0
      %883 = vmatprep.subr.bf16.mxu0 0
      %884 = vmatpush1.bf16.msra.mxu0 0
      %885 = vmatprep.subr.bf16.mxu0 0
      %886 = vmatpush1.bf16.msra.mxu0 0
      %887 = vmatprep.subr.bf16.mxu0 0
      %888 = vmatpush1.bf16.msra.mxu0 0
      %889 = vmatprep.subr.bf16.mxu0 0
      %890 = vmatpush1.bf16.msra.mxu0 0
      %891 = vmatprep.mubr.bf16.mxu0 0
      %892 = vmatmul.mubr.bf16.gmra.mrb[0].mxu0 %v514
      %v893 = vpop.f32.mrb[0].mxu0
      %v894 = vadd.f32 0.0, %v893
      %v895 = vpop.f32.mrb[0].mxu0
      %v896 = vpop.f32.mrb[0].mxu0
      %v897 = vadd.f32 0.0, %v896
      %v898 = vpop.f32.mrb[0].mxu0
      %899 = vmatprep.mubr.bf16.mxu0 0
      %900 = vmatmul.mubr.bf16.gmra.mrb[0].mxu0 %v517
      %v901 = vpop.f32.mrb[0].mxu0
      %v902 = vadd.f32 0.0, %v901
      %v903 = vpop.f32.mrb[0].mxu0
      %v904 = vpop.f32.mrb[0].mxu0
      %v905 = vpop.f32.mrb[0].mxu0
      %906 = vdwg.mxu0
      %v907 = vpack.c.bf16 %v897, %v894
      %v909 = vunpack.c.l.b16 %v907
      %v910 = vunpack.c.h.b16 %v907
      %v911 = vpack.c.b16 %v909, %v909
      %v912 = vpack.c.b16 %v910, %v910
      %vm913 = vcmask 1042432
      %vm914 = vcmask 1046532
      %vm915 = vmor %vm913, %vm914
      %v916 = vrot.slane %v911, 5
      %v917 = vrot.slane %v916, 4
      %v918 = vrot.slane %v912, 5
      %v919 = vsel %vm915, %v917, %v918
      %vm922 = vcmask 60419
      %923 = vst.msk [vmem:[#allocation2 + $0xc] sm:$0x8] %vm922, %v916
      %924 = vst.msk [vmem:[#allocation2 + $0x10] sm:$0xf] %vm386, %v919
      %v925 = vpack.c.bf16 %v902, %v897
      %v927 = vunpack.c.l.b16 %v925
      %v928 = vunpack.c.h.b16 %v925
      %v929 = vpack.c.b16 %v927, %v927
      %v930 = vpack.c.b16 %v928, %v928
      %v931 = vrot.slane %v929, 6
      %v932 = vrot.slane %v931, 4
      %v933 = vrot.slane %v930, 6
      %v934 = vsel %vm743, %v932, %v933
      %937 = vst.msk [vmem:[%s594 + $0xc] sm:$0x8] %vm922, %v931
      %938 = vst.msk [vmem:[%s594 + $0x10] sm:$0xf] %vm386, %v934
      %s939 = scalar_lea.vmem %s380, 80
      %v940 = vld [vmem:[%s939] sm:$0xff]
      %v941 = vld [vmem:[%s939 + $0x8] sm:$0xff]
      %v942 = vsub.f32 %v940, %v499
      %v943 = vsub.f32 %v941, %v499
      %v944 = vmul.f32 %v942, %v507
      %v945 = vmul.f32 %v943, %v507
      %v946 = vpack.c.bf16 %v945, %v944
      %947 = vmatprep.subr.bf16.mxu0 0
      %948 = vmatpush1.bf16.msra.mxu0 %v946
      %949 = vmatprep.subr.bf16.mxu0 0
      %950 = vmatpush1.bf16.msra.mxu0 0
      %951 = vmatprep.subr.bf16.mxu0 0
      %952 = vmatpush1.bf16.msra.mxu0 0
      %953 = vmatprep.subr.bf16.mxu0 0
      %954 = vmatpush1.bf16.msra.mxu0 0
      %955 = vmatprep.subr.bf16.mxu0 0
      %956 = vmatpush1.bf16.msra.mxu0 0
      %957 = vmatprep.subr.bf16.mxu0 0
      %958 = vmatpush1.bf16.msra.mxu0 0
      %959 = vmatprep.subr.bf16.mxu0 0
      %960 = vmatpush1.bf16.msra.mxu0 0
      %961 = vmatprep.subr.bf16.mxu0 0
      %962 = vmatpush1.bf16.msra.mxu0 0
      %963 = vmatprep.subr.bf16.mxu0 0
      %964 = vmatpush1.bf16.msra.mxu0 0
      %965 = vmatprep.subr.bf16.mxu0 0
      %966 = vmatpush1.bf16.msra.mxu0 0
      %967 = vmatprep.subr.bf16.mxu0 0
      %968 = vmatpush1.bf16.msra.mxu0 0
      %969 = vmatprep.subr.bf16.mxu0 0
      %970 = vmatpush1.bf16.msra.mxu0 0
      %971 = vmatprep.subr.bf16.mxu0 0
      %972 = vmatpush1.bf16.msra.mxu0 0
      %973 = vmatprep.subr.bf16.mxu0 0
      %974 = vmatpush1.bf16.msra.mxu0 0
      %975 = vmatprep.subr.bf16.mxu0 0
      %976 = vmatpush1.bf16.msra.mxu0 0
      %977 = vmatprep.subr.bf16.mxu0 0
      %978 = vmatpush1.bf16.msra.mxu0 0
      %979 = vmatprep.mubr.bf16.mxu0 0
      %980 = vmatmul.mubr.bf16.gmra.mrb[0].mxu0 %v514
      %v981 = vpop.f32.mrb[0].mxu0
      %v982 = vadd.f32 0.0, %v981
      %v983 = vpop.f32.mrb[0].mxu0
      %v984 = vpop.f32.mrb[0].mxu0
      %v985 = vadd.f32 0.0, %v984
      %v986 = vpop.f32.mrb[0].mxu0
      %987 = vmatprep.mubr.bf16.mxu0 0
      %988 = vmatmul.mubr.bf16.gmra.mrb[0].mxu0 %v517
      %v989 = vpop.f32.mrb[0].mxu0
      %v990 = vadd.f32 0.0, %v989
      %v991 = vpop.f32.mrb[0].mxu0
      %v992 = vpop.f32.mrb[0].mxu0
      %v993 = vpop.f32.mrb[0].mxu0
      %994 = vdwg.mxu0
      %v995 = vpack.c.bf16 %v985, %v982
      %v997 = vunpack.c.l.b16 %v995
      %v998 = vunpack.c.h.b16 %v995
      %v999 = vpack.c.b16 %v997, %v997
      %v1000 = vpack.c.b16 %v998, %v998
      %v1001 = vrot.slane %v999, 5
      %v1002 = vrot.slane %v1001, 4
      %v1003 = vrot.slane %v1000, 5
      %v1004 = vsel %vm915, %v1002, %v1003
      %1007 = vst.msk [vmem:[%s665 + $0xc] sm:$0x8] %vm922, %v1001
      %1008 = vst.msk [vmem:[%s665 + $0x10] sm:$0xf] %vm386, %v1004
      %v1009 = vpack.c.bf16 %v990, %v985
      %v1011 = vunpack.c.l.b16 %v1009
      %v1012 = vunpack.c.h.b16 %v1009
      %v1013 = vpack.c.b16 %v1011, %v1011
      %v1014 = vpack.c.b16 %v1012, %v1012
      %v1015 = vrot.slane %v1013, 6
      %v1016 = vrot.slane %v1015, 4
      %v1017 = vrot.slane %v1014, 6
      %v1018 = vsel %vm743, %v1016, %v1017
      %1021 = vst.msk [vmem:[%s676 + $0xc] sm:$0x8] %vm922, %v1015
      %1022 = vst.msk [vmem:[%s676 + $0x10] sm:$0xf] %vm386, %v1018
      %s1023 = scalar_lea.vmem %s380, 96
      %v1024 = vld [vmem:[%s1023] sm:$0xff]
      %v1025 = vld [vmem:[%s1023 + $0x8] sm:$0xff]
      %v1026 = vsub.f32 %v1024, %v499
      %v1027 = vsub.f32 %v1025, %v499
      %v1028 = vmul.f32 %v1026, %v507
      %v1029 = vmul.f32 %v1027, %v507
      %v1030 = vpack.c.bf16 %v1029, %v1028
      %1031 = vmatprep.subr.bf16.mxu0 0
      %1032 = vmatpush1.bf16.msra.mxu0 %v1030
      %1033 = vmatprep.subr.bf16.mxu0 0
      %1034 = vmatpush1.bf16.msra.mxu0 0
      %1035 = vmatprep.subr.bf16.mxu0 0
      %1036 = vmatpush1.bf16.msra.mxu0 0
      %1037 = vmatprep.subr.bf16.mxu0 0
      %1038 = vmatpush1.bf16.msra.mxu0 0
      %1039 = vmatprep.subr.bf16.mxu0 0
      %1040 = vmatpush1.bf16.msra.mxu0 0
      %1041 = vmatprep.subr.bf16.mxu0 0
      %1042 = vmatpush1.bf16.msra.mxu0 0
      %1043 = vmatprep.subr.bf16.mxu0 0
      %1044 = vmatpush1.bf16.msra.mxu0 0
      %1045 = vmatprep.subr.bf16.mxu0 0
      %1046 = vmatpush1.bf16.msra.mxu0 0
      %1047 = vmatprep.subr.bf16.mxu0 0
      %1048 = vmatpush1.bf16.msra.mxu0 0
      %1049 = vmatprep.subr.bf16.mxu0 0
      %1050 = vmatpush1.bf16.msra.mxu0 0
      %1051 = vmatprep.subr.bf16.mxu0 0
      %1052 = vmatpush1.bf16.msra.mxu0 0
      %1053 = vmatprep.subr.bf16.mxu0 0
      %1054 = vmatpush1.bf16.msra.mxu0 0
      %1055 = vmatprep.subr.bf16.mxu0 0
      %1056 = vmatpush1.bf16.msra.mxu0 0
      %1057 = vmatprep.subr.bf16.mxu0 0
      %1058 = vmatpush1.bf16.msra.mxu0 0
      %1059 = vmatprep.subr.bf16.mxu0 0
      %1060 = vmatpush1.bf16.msra.mxu0 0
      %1061 = vmatprep.subr.bf16.mxu0 0
      %1062 = vmatpush1.bf16.msra.mxu0 0
      %1063 = vmatprep.mubr.bf16.mxu0 0
      %1064 = vmatmul.mubr.bf16.gmra.mrb[0].mxu0 %v514
      %v1065 = vpop.f32.mrb[0].mxu0
      %v1066 = vadd.f32 0.0, %v1065
      %v1067 = vpop.f32.mrb[0].mxu0
      %v1068 = vpop.f32.mrb[0].mxu0
      %v1069 = vadd.f32 0.0, %v1068
      %v1070 = vpop.f32.mrb[0].mxu0
      %1071 = vmatprep.mubr.bf16.mxu0 0
      %1072 = vmatmul.mubr.bf16.gmra.mrb[0].mxu0 %v517
      %v1073 = vpop.f32.mrb[0].mxu0
      %v1074 = vadd.f32 0.0, %v1073
      %v1075 = vpop.f32.mrb[0].mxu0
      %v1076 = vpop.f32.mrb[0].mxu0
      %v1077 = vpop.f32.mrb[0].mxu0
      %1078 = vdwg.mxu0
      %v1079 = vpack.c.bf16 %v1069, %v1066
      %v1081 = vunpack.c.l.b16 %v1079
      %v1082 = vunpack.c.h.b16 %v1079
      %v1083 = vpack.c.b16 %v1081, %v1081
      %v1084 = vpack.c.b16 %v1082, %v1082
      %1087 = vst.msk [vmem:[#allocation2 + $0x14] sm:$0xf] %vm386, %v1083
      %vm1088 = vcmask 57344
      %1089 = vst.msk [vmem:[#allocation2 + $0x18] sm:$0x1] %vm1088, %v1084
      %v1090 = vpack.c.bf16 %v1074, %v1069
      %v1092 = vunpack.c.l.b16 %v1090
      %v1093 = vunpack.c.h.b16 %v1090
      %v1094 = vpack.c.b16 %v1092, %v1092
      %v1095 = vpack.c.b16 %v1093, %v1093
      %v1096 = vrot.slane %v1094, 5
      %v1097 = vrot.slane %v1096, 4
      %v1098 = vrot.slane %v1095, 5
      %v1099 = vsel %vm915, %v1097, %v1098
      %v1100 = vrot.slane %v1098, 4
      %1103 = vst.msk [vmem:[%s594 + $0x14] sm:$0xf] %vm386, %v1099
      %1104 = vst.msk [vmem:[%s594 + $0x18] sm:$0x1] %vm1088, %v1100
      %s1105 = scalar_lea.vmem %s380, 112
      %v1106 = vld [vmem:[%s1105] sm:$0xff]
      %v1107 = vld [vmem:[%s1105 + $0x8] sm:$0xff]
      %v1108 = vsub.f32 %v1106, %v499
      %v1109 = vsub.f32 %v1107, %v499
      %v1110 = vmul.f32 %v1108, %v507
      %v1111 = vmul.f32 %v1109, %v507
      %v1112 = vpack.c.bf16 %v1111, %v1110
      %1113 = vmatprep.subr.bf16.mxu0 0
      %1114 = vmatpush1.bf16.msra.mxu0 %v1112
      %1115 = vmatprep.subr.bf16.mxu0 0
      %1116 = vmatpush1.bf16.msra.mxu0 0
      %1117 = vmatprep.subr.bf16.mxu0 0
      %1118 = vmatpush1.bf16.msra.mxu0 0
      %1119 = vmatprep.subr.bf16.mxu0 0
      %1120 = vmatpush1.bf16.msra.mxu0 0
      %1121 = vmatprep.subr.bf16.mxu0 0
      %1122 = vmatpush1.bf16.msra.mxu0 0
      %1123 = vmatprep.subr.bf16.mxu0 0
      %1124 = vmatpush1.bf16.msra.mxu0 0
      %1125 = vmatprep.subr.bf16.mxu0 0
      %1126 = vmatpush1.bf16.msra.mxu0 0
      %1127 = vmatprep.subr.bf16.mxu0 0
      %1128 = vmatpush1.bf16.msra.mxu0 0
      %1129 = vmatprep.subr.bf16.mxu0 0
      %1130 = vmatpush1.bf16.msra.mxu0 0
      %1131 = vmatprep.subr.bf16.mxu0 0
      %1132 = vmatpush1.bf16.msra.mxu0 0
      %1133 = vmatprep.subr.bf16.mxu0 0
      %1134 = vmatpush1.bf16.msra.mxu0 0
      %1135 = vmatprep.subr.bf16.mxu0 0
      %1136 = vmatpush1.bf16.msra.mxu0 0
      %1137 = vmatprep.subr.bf16.mxu0 0
      %1138 = vmatpush1.bf16.msra.mxu0 0
      %1139 = vmatprep.subr.bf16.mxu0 0
      %1140 = vmatpush1.bf16.msra.mxu0 0
      %1141 = vmatprep.subr.bf16.mxu0 0
      %1142 = vmatpush1.bf16.msra.mxu0 0
      %1143 = vmatprep.subr.bf16.mxu0 0
      %1144 = vmatpush1.bf16.msra.mxu0 0
      %1145 = vmatprep.mubr.bf16.mxu0 0
      %1146 = vmatmul.mubr.bf16.gmra.mrb[0].mxu0 %v514
      %v1147 = vpop.f32.mrb[0].mxu0
      %v1148 = vadd.f32 0.0, %v1147
      %v1149 = vpop.f32.mrb[0].mxu0
      %v1150 = vpop.f32.mrb[0].mxu0
      %v1151 = vadd.f32 0.0, %v1150
      %v1152 = vpop.f32.mrb[0].mxu0
      %1153 = vmatprep.mubr.bf16.mxu0 0
      %1154 = vmatmul.mubr.bf16.gmra.mrb[0].mxu0 %v517
      %v1155 = vpop.f32.mrb[0].mxu0
      %v1156 = vadd.f32 0.0, %v1155
      %v1157 = vpop.f32.mrb[0].mxu0
      %v1158 = vpop.f32.mrb[0].mxu0
      %v1159 = vpop.f32.mrb[0].mxu0
      %1160 = vdwg.mxu0
      %v1161 = vpack.c.bf16 %v1151, %v1148
      %v1163 = vunpack.c.l.b16 %v1161
      %v1164 = vunpack.c.h.b16 %v1161
      %v1165 = vpack.c.b16 %v1163, %v1163
      %v1166 = vpack.c.b16 %v1164, %v1164
      %1169 = vst.msk [vmem:[%s665 + $0x14] sm:$0xf] %vm386, %v1165
      %1170 = vst.msk [vmem:[%s665 + $0x18] sm:$0x1] %vm1088, %v1166
      %v1171 = vpack.c.bf16 %v1156, %v1151
      %v1173 = vunpack.c.l.b16 %v1171
      %v1174 = vunpack.c.h.b16 %v1171
      %v1175 = vpack.c.b16 %v1173, %v1173
      %v1176 = vpack.c.b16 %v1174, %v1174
      %v1177 = vrot.slane %v1175, 5
      %v1178 = vrot.slane %v1177, 4
      %v1179 = vrot.slane %v1176, 5
      %v1180 = vsel %vm915, %v1178, %v1179
      %v1181 = vrot.slane %v1179, 4
      %1184 = vst.msk [vmem:[%s676 + $0x14] sm:$0xf] %vm386, %v1180
      %1185 = vst.msk [vmem:[%s676 + $0x18] sm:$0x1] %vm1088, %v1181
      %s1186 = scalar_lea.vmem %s380, 128
      %v1187 = vld [vmem:[%s1186] sm:$0xff]
      %v1188 = vld [vmem:[%s1186 + $0x8] sm:$0xff]
      %v1189 = vsub.f32 %v1187, %v499
      %v1190 = vsub.f32 %v1188, %v499
      %v1191 = vmul.f32 %v1189, %v507
      %v1192 = vmul.f32 %v1190, %v507
      %v1193 = vpack.c.bf16 %v1192, %v1191
      %1194 = vmatprep.subr.bf16.mxu0 0
      %1195 = vmatpush1.bf16.msra.mxu0 %v1193
      %1196 = vmatprep.subr.bf16.mxu0 0
      %1197 = vmatpush1.bf16.msra.mxu0 0
      %1198 = vmatprep.subr.bf16.mxu0 0
      %1199 = vmatpush1.bf16.msra.mxu0 0
      %1200 = vmatprep.subr.bf16.mxu0 0
      %1201 = vmatpush1.bf16.msra.mxu0 0
      %1202 = vmatprep.subr.bf16.mxu0 0
      %1203 = vmatpush1.bf16.msra.mxu0 0
      %1204 = vmatprep.subr.bf16.mxu0 0
      %1205 = vmatpush1.bf16.msra.mxu0 0
      %1206 = vmatprep.subr.bf16.mxu0 0
      %1207 = vmatpush1.bf16.msra.mxu0 0
      %1208 = vmatprep.subr.bf16.mxu0 0
      %1209 = vmatpush1.bf16.msra.mxu0 0
      %1210 = vmatprep.subr.bf16.mxu0 0
      %1211 = vmatpush1.bf16.msra.mxu0 0
      %1212 = vmatprep.subr.bf16.mxu0 0
      %1213 = vmatpush1.bf16.msra.mxu0 0
      %1214 = vmatprep.subr.bf16.mxu0 0
      %1215 = vmatpush1.bf16.msra.mxu0 0
      %1216 = vmatprep.subr.bf16.mxu0 0
      %1217 = vmatpush1.bf16.msra.mxu0 0
      %1218 = vmatprep.subr.bf16.mxu0 0
      %1219 = vmatpush1.bf16.msra.mxu0 0
      %1220 = vmatprep.subr.bf16.mxu0 0
      %1221 = vmatpush1.bf16.msra.mxu0 0
      %1222 = vmatprep.subr.bf16.mxu0 0
      %1223 = vmatpush1.bf16.msra.mxu0 0
      %1224 = vmatprep.subr.bf16.mxu0 0
      %1225 = vmatpush1.bf16.msra.mxu0 0
      %1226 = vmatprep.mubr.bf16.mxu0 0
      %1227 = vmatmul.mubr.bf16.gmra.mrb[0].mxu0 %v514
      %v1228 = vpop.f32.mrb[0].mxu0
      %v1229 = vadd.f32 0.0, %v1228
      %v1230 = vpop.f32.mrb[0].mxu0
      %v1231 = vpop.f32.mrb[0].mxu0
      %v1232 = vadd.f32 0.0, %v1231
      %v1233 = vpop.f32.mrb[0].mxu0
      %1234 = vmatprep.mubr.bf16.mxu0 0
      %1235 = vmatmul.mubr.bf16.gmra.mrb[0].mxu0 %v517
      %v1236 = vpop.f32.mrb[0].mxu0
      %v1237 = vadd.f32 0.0, %v1236
      %v1238 = vpop.f32.mrb[0].mxu0
      %v1239 = vpop.f32.mrb[0].mxu0
      %v1240 = vpop.f32.mrb[0].mxu0
      %1241 = vdwg.mxu0
      %v1242 = vpack.c.bf16 %v1232, %v1229
      %v1244 = vunpack.c.l.b16 %v1242
      %v1245 = vunpack.c.h.b16 %v1242
      %v1246 = vpack.c.b16 %v1244, %v1244
      %v1247 = vpack.c.b16 %v1245, %v1245
      %v1248 = vrot.slane %v1246, 7
      %v1249 = vrot.slane %v1248, 4
      %v1250 = vrot.slane %v1247, 7
      %v1251 = vsel %vm575, %v1249, %v1250
      %1254 = vst.msk [vmem:[#allocation2 + $0x18] sm:$0xe] %vm582, %v1248
      %1255 = vst.msk [vmem:[#allocation2 + $0x1c] sm:$0x3] %vm584, %v1251
      %v1256 = vpack.c.bf16 %v1237, %v1232
      %v1258 = vunpack.c.l.b16 %v1256
      %v1259 = vunpack.c.h.b16 %v1256
      %v1260 = vpack.c.b16 %v1258, %v1258
      %v1261 = vpack.c.b16 %v1259, %v1259
      %1264 = vst.msk [vmem:[%s594 + $0x18] sm:$0xe] %vm582, %v1260
      %1265 = vst.msk [vmem:[%s594 + $0x1c] sm:$0x3] %vm584, %v1261
      %s1266 = scalar_lea.vmem %s380, 144
      %v1267 = vld [vmem:[%s1266] sm:$0xff]
      %v1268 = vld [vmem:[%s1266 + $0x8] sm:$0xff]
      %v1269 = vsub.f32 %v1267, %v499
      %v1270 = vsub.f32 %v1268, %v499
      %v1271 = vmul.f32 %v1269, %v507
      %v1272 = vmul.f32 %v1270, %v507
      %v1273 = vpack.c.bf16 %v1272, %v1271
      %1274 = vmatprep.subr.bf16.mxu0 0
      %1275 = vmatpush1.bf16.msra.mxu0 %v1273
      %1276 = vmatprep.subr.bf16.mxu0 0
      %1277 = vmatpush1.bf16.msra.mxu0 0
      %1278 = vmatprep.subr.bf16.mxu0 0
      %1279 = vmatpush1.bf16.msra.mxu0 0
      %1280 = vmatprep.subr.bf16.mxu0 0
      %1281 = vmatpush1.bf16.msra.mxu0 0
      %1282 = vmatprep.subr.bf16.mxu0 0
      %1283 = vmatpush1.bf16.msra.mxu0 0
      %1284 = vmatprep.subr.bf16.mxu0 0
      %1285 = vmatpush1.bf16.msra.mxu0 0
      %1286 = vmatprep.subr.bf16.mxu0 0
      %1287 = vmatpush1.bf16.msra.mxu0 0
      %1288 = vmatprep.subr.bf16.mxu0 0
      %1289 = vmatpush1.bf16.msra.mxu0 0
      %1290 = vmatprep.subr.bf16.mxu0 0
      %1291 = vmatpush1.bf16.msra.mxu0 0
      %1292 = vmatprep.subr.bf16.mxu0 0
      %1293 = vmatpush1.bf16.msra.mxu0 0
      %1294 = vmatprep.subr.bf16.mxu0 0
      %1295 = vmatpush1.bf16.msra.mxu0 0
      %1296 = vmatprep.subr.bf16.mxu0 0
      %1297 = vmatpush1.bf16.msra.mxu0 0
      %1298 = vmatprep.subr.bf16.mxu0 0
      %1299 = vmatpush1.bf16.msra.mxu0 0
      %1300 = vmatprep.subr.bf16.mxu0 0
      %1301 = vmatpush1.bf16.msra.mxu0 0
      %1302 = vmatprep.subr.bf16.mxu0 0
      %1303 = vmatpush1.bf16.msra.mxu0 0
      %1304 = vmatprep.subr.bf16.mxu0 0
      %1305 = vmatpush1.bf16.msra.mxu0 0
      %1306 = vmatprep.mubr.bf16.mxu0 0
      %1307 = vmatmul.mubr.bf16.gmra.mrb[0].mxu0 %v514
      %v1308 = vpop.f32.mrb[0].mxu0
      %v1309 = vadd.f32 0.0, %v1308
      %v1310 = vpop.f32.mrb[0].mxu0
      %v1311 = vpop.f32.mrb[0].mxu0
      %v1312 = vadd.f32 0.0, %v1311
      %v1313 = vpop.f32.mrb[0].mxu0
      %1314 = vmatprep.mubr.bf16.mxu0 0
      %1315 = vmatmul.mubr.bf16.gmra.mrb[0].mxu0 %v517
      %v1316 = vpop.f32.mrb[0].mxu0
      %v1317 = vadd.f32 0.0, %v1316
      %v1318 = vpop.f32.mrb[0].mxu0
      %v1319 = vpop.f32.mrb[0].mxu0
      %v1320 = vpop.f32.mrb[0].mxu0
      %1321 = vdwg.mxu0
      %v1322 = vpack.c.bf16 %v1312, %v1309
      %v1324 = vunpack.c.l.b16 %v1322
      %v1325 = vunpack.c.h.b16 %v1322
      %v1326 = vpack.c.b16 %v1324, %v1324
      %v1327 = vpack.c.b16 %v1325, %v1325
      %v1328 = vrot.slane %v1326, 7
      %v1329 = vrot.slane %v1328, 4
      %v1330 = vrot.slane %v1327, 7
      %v1331 = vsel %vm575, %v1329, %v1330
      %1334 = vst.msk [vmem:[%s665 + $0x18] sm:$0xe] %vm582, %v1328
      %1335 = vst.msk [vmem:[%s665 + $0x1c] sm:$0x3] %vm584, %v1331
      %v1336 = vpack.c.bf16 %v1317, %v1312
      %v1338 = vunpack.c.l.b16 %v1336
      %v1339 = vunpack.c.h.b16 %v1336
      %v1340 = vpack.c.b16 %v1338, %v1338
      %v1341 = vpack.c.b16 %v1339, %v1339
      %1344 = vst.msk [vmem:[%s676 + $0x18] sm:$0xe] %vm582, %v1340
      %1345 = vst.msk [vmem:[%s676 + $0x1c] sm:$0x3] %vm584, %v1341
      %s1346 = scalar_lea.vmem %s380, 160
      %v1347 = vld [vmem:[%s1346] sm:$0xff]
      %v1348 = vld [vmem:[%s1346 + $0x8] sm:$0xff]
      %v1349 = vsub.f32 %v1347, %v499
      %v1350 = vsub.f32 %v1348, %v499
      %v1351 = vmul.f32 %v1349, %v507
      %v1352 = vmul.f32 %v1350, %v507
      %v1353 = vpack.c.bf16 %v1352, %v1351
      %1354 = vmatprep.subr.bf16.mxu0 0
      %1355 = vmatpush1.bf16.msra.mxu0 %v1353
      %1356 = vmatprep.subr.bf16.mxu0 0
      %1357 = vmatpush1.bf16.msra.mxu0 0
      %1358 = vmatprep.subr.bf16.mxu0 0
      %1359 = vmatpush1.bf16.msra.mxu0 0
      %1360 = vmatprep.subr.bf16.mxu0 0
      %1361 = vmatpush1.bf16.msra.mxu0 0
      %1362 = vmatprep.subr.bf16.mxu0 0
      %1363 = vmatpush1.bf16.msra.mxu0 0
      %1364 = vmatprep.subr.bf16.mxu0 0
      %1365 = vmatpush1.bf16.msra.mxu0 0
      %1366 = vmatprep.subr.bf16.mxu0 0
      %1367 = vmatpush1.bf16.msra.mxu0 0
      %1368 = vmatprep.subr.bf16.mxu0 0
      %1369 = vmatpush1.bf16.msra.mxu0 0
      %1370 = vmatprep.subr.bf16.mxu0 0
      %1371 = vmatpush1.bf16.msra.mxu0 0
      %1372 = vmatprep.subr.bf16.mxu0 0
      %1373 = vmatpush1.bf16.msra.mxu0 0
      %1374 = vmatprep.subr.bf16.mxu0 0
      %1375 = vmatpush1.bf16.msra.mxu0 0
      %1376 = vmatprep.subr.bf16.mxu0 0
      %1377 = vmatpush1.bf16.msra.mxu0 0
      %1378 = vmatprep.subr.bf16.mxu0 0
      %1379 = vmatpush1.bf16.msra.mxu0 0
      %1380 = vmatprep.subr.bf16.mxu0 0
      %1381 = vmatpush1.bf16.msra.mxu0 0
      %1382 = vmatprep.subr.bf16.mxu0 0
      %1383 = vmatpush1.bf16.msra.mxu0 0
      %1384 = vmatprep.subr.bf16.mxu0 0
      %1385 = vmatpush1.bf16.msra.mxu0 0
      %1386 = vmatprep.mubr.bf16.mxu0 0
      %1387 = vmatmul.mubr.bf16.gmra.mrb[0].mxu0 %v514
      %v1388 = vpop.f32.mrb[0].mxu0
      %v1389 = vadd.f32 0.0, %v1388
      %v1390 = vpop.f32.mrb[0].mxu0
      %v1391 = vpop.f32.mrb[0].mxu0
      %v1392 = vadd.f32 0.0, %v1391
      %v1393 = vpop.f32.mrb[0].mxu0
      %1394 = vmatprep.mubr.bf16.mxu0 0
      %1395 = vmatmul.mubr.bf16.gmra.mrb[0].mxu0 %v517
      %v1396 = vpop.f32.mrb[0].mxu0
      %v1397 = vadd.f32 0.0, %v1396
      %v1398 = vpop.f32.mrb[0].mxu0
      %v1399 = vpop.f32.mrb[0].mxu0
      %v1400 = vpop.f32.mrb[0].mxu0
      %1401 = vdwg.mxu0
      %v1402 = vpack.c.bf16 %v1392, %v1389
      %v1404 = vunpack.c.l.b16 %v1402
      %v1405 = vunpack.c.h.b16 %v1402
      %v1406 = vpack.c.b16 %v1404, %v1404
      %v1407 = vpack.c.b16 %v1405, %v1405
      %v1408 = vrot.slane %v1406, 6
      %v1409 = vrot.slane %v1408, 4
      %v1410 = vrot.slane %v1407, 6
      %v1411 = vsel %vm743, %v1409, %v1410
      %1414 = vst.msk [vmem:[#allocation2 + $0x1c] sm:$0xc] %vm750, %v1408
      %1415 = vst.msk [vmem:[#allocation2 + $0x20] sm:$0x7] %vm400, %v1411
      %v1416 = vpack.c.bf16 %v1397, %v1392
      %v1418 = vunpack.c.l.b16 %v1416
      %v1419 = vunpack.c.h.b16 %v1416
      %v1420 = vpack.c.b16 %v1418, %v1418
      %v1421 = vpack.c.b16 %v1419, %v1419
      %v1422 = vrot.slane %v1420, 7
      %v1423 = vrot.slane %v1422, 4
      %v1424 = vrot.slane %v1421, 7
      %v1425 = vsel %vm575, %v1423, %v1424
      %1428 = vst.msk [vmem:[%s594 + $0x1c] sm:$0xc] %vm750, %v1422
      %1429 = vst.msk [vmem:[%s594 + $0x20] sm:$0x7] %vm400, %v1425
      %s1430 = scalar_lea.vmem %s380, 176
      %v1431 = vld [vmem:[%s1430] sm:$0xff]
      %v1432 = vld [vmem:[%s1430 + $0x8] sm:$0xff]
      %v1433 = vsub.f32 %v1431, %v499
      %v1434 = vsub.f32 %v1432, %v499
      %v1435 = vmul.f32 %v1433, %v507
      %v1436 = vmul.f32 %v1434, %v507
      %v1437 = vpack.c.bf16 %v1436, %v1435
      %1438 = vmatprep.subr.bf16.mxu0 0
      %1439 = vmatpush1.bf16.msra.mxu0 %v1437
      %1440 = vmatprep.subr.bf16.mxu0 0
      %1441 = vmatpush1.bf16.msra.mxu0 0
      %1442 = vmatprep.subr.bf16.mxu0 0
      %1443 = vmatpush1.bf16.msra.mxu0 0
      %1444 = vmatprep.subr.bf16.mxu0 0
      %1445 = vmatpush1.bf16.msra.mxu0 0
      %1446 = vmatprep.subr.bf16.mxu0 0
      %1447 = vmatpush1.bf16.msra.mxu0 0
      %1448 = vmatprep.subr.bf16.mxu0 0
      %1449 = vmatpush1.bf16.msra.mxu0 0
      %1450 = vmatprep.subr.bf16.mxu0 0
      %1451 = vmatpush1.bf16.msra.mxu0 0
      %1452 = vmatprep.subr.bf16.mxu0 0
      %1453 = vmatpush1.bf16.msra.mxu0 0
      %1454 = vmatprep.subr.bf16.mxu0 0
      %1455 = vmatpush1.bf16.msra.mxu0 0
      %1456 = vmatprep.subr.bf16.mxu0 0
      %1457 = vmatpush1.bf16.msra.mxu0 0
      %1458 = vmatprep.subr.bf16.mxu0 0
      %1459 = vmatpush1.bf16.msra.mxu0 0
      %1460 = vmatprep.subr.bf16.mxu0 0
      %1461 = vmatpush1.bf16.msra.mxu0 0
      %1462 = vmatprep.subr.bf16.mxu0 0
      %1463 = vmatpush1.bf16.msra.mxu0 0
      %1464 = vmatprep.subr.bf16.mxu0 0
      %1465 = vmatpush1.bf16.msra.mxu0 0
      %1466 = vmatprep.subr.bf16.mxu0 0
      %1467 = vmatpush1.bf16.msra.mxu0 0
      %1468 = vmatprep.subr.bf16.mxu0 0
      %1469 = vmatpush1.bf16.msra.mxu0 0
      %1470 = vmatprep.mubr.bf16.mxu0 0
      %1471 = vmatmul.mubr.bf16.gmra.mrb[0].mxu0 %v514
      %v1472 = vpop.f32.mrb[0].mxu0
      %v1473 = vadd.f32 0.0, %v1472
      %v1474 = vpop.f32.mrb[0].mxu0
      %v1475 = vpop.f32.mrb[0].mxu0
      %v1476 = vadd.f32 0.0, %v1475
      %v1477 = vpop.f32.mrb[0].mxu0
      %1478 = vmatprep.mubr.bf16.mxu0 0
      %1479 = vmatmul.mubr.bf16.gmra.mrb[0].mxu0 %v517
      %v1480 = vpop.f32.mrb[0].mxu0
      %v1481 = vadd.f32 0.0, %v1480
      %v1482 = vpop.f32.mrb[0].mxu0
      %v1483 = vpop.f32.mrb[0].mxu0
      %v1484 = vpop.f32.mrb[0].mxu0
      %1485 = vdwg.mxu0
      %v1486 = vpack.c.bf16 %v1476, %v1473
      %v1488 = vunpack.c.l.b16 %v1486
      %v1489 = vunpack.c.h.b16 %v1486
      %v1490 = vpack.c.b16 %v1488, %v1488
      %v1491 = vpack.c.b16 %v1489, %v1489
      %v1492 = vrot.slane %v1490, 6
      %v1493 = vrot.slane %v1492, 4
      %v1494 = vrot.slane %v1491, 6
      %v1495 = vsel %vm743, %v1493, %v1494
      %1498 = vst.msk [vmem:[%s665 + $0x1c] sm:$0xc] %vm750, %v1492
      %1499 = vst.msk [vmem:[%s665 + $0x20] sm:$0x7] %vm400, %v1495
      %v1500 = vpack.c.bf16 %v1481, %v1476
      %v1502 = vunpack.c.l.b16 %v1500
      %v1503 = vunpack.c.h.b16 %v1500
      %v1504 = vpack.c.b16 %v1502, %v1502
      %v1505 = vpack.c.b16 %v1503, %v1503
      %v1506 = vrot.slane %v1504, 7
      %v1507 = vrot.slane %v1506, 4
      %v1508 = vrot.slane %v1505, 7
      %v1509 = vsel %vm575, %v1507, %v1508
      %1512 = vst.msk [vmem:[%s676 + $0x1c] sm:$0xc] %vm750, %v1506
      %1513 = vst.msk [vmem:[%s676 + $0x20] sm:$0x7] %vm400, %v1509
      %s1514 = scalar_lea.vmem %s380, 192
      %v1515 = vld [vmem:[%s1514] sm:$0xff]
      %v1516 = vld [vmem:[%s1514 + $0x8] sm:$0xff]
      %v1517 = vsub.f32 %v1515, %v499
      %v1518 = vsub.f32 %v1516, %v499
      %v1519 = vmul.f32 %v1517, %v507
      %v1520 = vmul.f32 %v1518, %v507
      %v1521 = vpack.c.bf16 %v1520, %v1519
      %1522 = vmatprep.subr.bf16.mxu0 0
      %1523 = vmatpush1.bf16.msra.mxu0 %v1521
      %1524 = vmatprep.subr.bf16.mxu0 0
      %1525 = vmatpush1.bf16.msra.mxu0 0
      %1526 = vmatprep.subr.bf16.mxu0 0
      %1527 = vmatpush1.bf16.msra.mxu0 0
      %1528 = vmatprep.subr.bf16.mxu0 0
      %1529 = vmatpush1.bf16.msra.mxu0 0
      %1530 = vmatprep.subr.bf16.mxu0 0
      %1531 = vmatpush1.bf16.msra.mxu0 0
      %1532 = vmatprep.subr.bf16.mxu0 0
      %1533 = vmatpush1.bf16.msra.mxu0 0
      %1534 = vmatprep.subr.bf16.mxu0 0
      %1535 = vmatpush1.bf16.msra.mxu0 0
      %1536 = vmatprep.subr.bf16.mxu0 0
      %1537 = vmatpush1.bf16.msra.mxu0 0
      %1538 = vmatprep.subr.bf16.mxu0 0
      %1539 = vmatpush1.bf16.msra.mxu0 0
      %1540 = vmatprep.subr.bf16.mxu0 0
      %1541 = vmatpush1.bf16.msra.mxu0 0
      %1542 = vmatprep.subr.bf16.mxu0 0
      %1543 = vmatpush1.bf16.msra.mxu0 0
      %1544 = vmatprep.subr.bf16.mxu0 0
      %1545 = vmatpush1.bf16.msra.mxu0 0
      %1546 = vmatprep.subr.bf16.mxu0 0
      %1547 = vmatpush1.bf16.msra.mxu0 0
      %1548 = vmatprep.subr.bf16.mxu0 0
      %1549 = vmatpush1.bf16.msra.mxu0 0
      %1550 = vmatprep.subr.bf16.mxu0 0
      %1551 = vmatpush1.bf16.msra.mxu0 0
      %1552 = vmatprep.subr.bf16.mxu0 0
      %1553 = vmatpush1.bf16.msra.mxu0 0
      %1554 = vmatprep.mubr.bf16.mxu0 0
      %1555 = vmatmul.mubr.bf16.gmra.mrb[0].mxu0 %v514
      %v1556 = vpop.f32.mrb[0].mxu0
      %v1557 = vadd.f32 0.0, %v1556
      %v1558 = vpop.f32.mrb[0].mxu0
      %v1559 = vpop.f32.mrb[0].mxu0
      %v1560 = vadd.f32 0.0, %v1559
      %v1561 = vpop.f32.mrb[0].mxu0
      %1562 = vmatprep.mubr.bf16.mxu0 0
      %1563 = vmatmul.mubr.bf16.gmra.mrb[0].mxu0 %v517
      %v1564 = vpop.f32.mrb[0].mxu0
      %v1565 = vadd.f32 0.0, %v1564
      %v1566 = vpop.f32.mrb[0].mxu0
      %v1567 = vpop.f32.mrb[0].mxu0
      %v1568 = vpop.f32.mrb[0].mxu0
      %1569 = vdwg.mxu0
      %v1570 = vpack.c.bf16 %v1560, %v1557
      %v1572 = vunpack.c.l.b16 %v1570
      %v1573 = vunpack.c.h.b16 %v1570
      %v1574 = vpack.c.b16 %v1572, %v1572
      %v1575 = vpack.c.b16 %v1573, %v1573
      %v1576 = vrot.slane %v1574, 5
      %v1577 = vrot.slane %v1576, 4
      %v1578 = vrot.slane %v1575, 5
      %v1579 = vsel %vm915, %v1577, %v1578
      %1582 = vst.msk [vmem:[#allocation2 + $0x20] sm:$0x8] %vm922, %v1576
      %1583 = vst.msk [vmem:[#allocation2 + $0x24] sm:$0xf] %vm386, %v1579
      %v1584 = vpack.c.bf16 %v1565, %v1560
      %v1586 = vunpack.c.l.b16 %v1584
      %v1587 = vunpack.c.h.b16 %v1584
      %v1588 = vpack.c.b16 %v1586, %v1586
      %v1589 = vpack.c.b16 %v1587, %v1587
      %v1590 = vrot.slane %v1588, 6
      %v1591 = vrot.slane %v1590, 4
      %v1592 = vrot.slane %v1589, 6
      %v1593 = vsel %vm743, %v1591, %v1592
      %1596 = vst.msk [vmem:[%s594 + $0x20] sm:$0x8] %vm922, %v1590
      %1597 = vst.msk [vmem:[%s594 + $0x24] sm:$0xf] %vm386, %v1593
      %s1598 = scalar_lea.vmem %s380, 208
      %v1599 = vld [vmem:[%s1598] sm:$0xff]
      %v1600 = vld [vmem:[%s1598 + $0x8] sm:$0xff]
      %v1601 = vsub.f32 %v1599, %v499
      %v1602 = vsub.f32 %v1600, %v499
      %v1603 = vmul.f32 %v1601, %v507
      %v1604 = vmul.f32 %v1602, %v507
      %v1605 = vpack.c.bf16 %v1604, %v1603
      %1606 = vmatprep.subr.bf16.mxu0 0
      %1607 = vmatpush1.bf16.msra.mxu0 %v1605
      %1608 = vmatprep.subr.bf16.mxu0 0
      %1609 = vmatpush1.bf16.msra.mxu0 0
      %1610 = vmatprep.subr.bf16.mxu0 0
      %1611 = vmatpush1.bf16.msra.mxu0 0
      %1612 = vmatprep.subr.bf16.mxu0 0
      %1613 = vmatpush1.bf16.msra.mxu0 0
      %1614 = vmatprep.subr.bf16.mxu0 0
      %1615 = vmatpush1.bf16.msra.mxu0 0
      %1616 = vmatprep.subr.bf16.mxu0 0
      %1617 = vmatpush1.bf16.msra.mxu0 0
      %1618 = vmatprep.subr.bf16.mxu0 0
      %1619 = vmatpush1.bf16.msra.mxu0 0
      %1620 = vmatprep.subr.bf16.mxu0 0
      %1621 = vmatpush1.bf16.msra.mxu0 0
      %1622 = vmatprep.subr.bf16.mxu0 0
      %1623 = vmatpush1.bf16.msra.mxu0 0
      %1624 = vmatprep.subr.bf16.mxu0 0
      %1625 = vmatpush1.bf16.msra.mxu0 0
      %1626 = vmatprep.subr.bf16.mxu0 0
      %1627 = vmatpush1.bf16.msra.mxu0 0
      %1628 = vmatprep.subr.bf16.mxu0 0
      %1629 = vmatpush1.bf16.msra.mxu0 0
      %1630 = vmatprep.subr.bf16.mxu0 0
      %1631 = vmatpush1.bf16.msra.mxu0 0
      %1632 = vmatprep.subr.bf16.mxu0 0
      %1633 = vmatpush1.bf16.msra.mxu0 0
      %1634 = vmatprep.subr.bf16.mxu0 0
      %1635 = vmatpush1.bf16.msra.mxu0 0
      %1636 = vmatprep.subr.bf16.mxu0 0
      %1637 = vmatpush1.bf16.msra.mxu0 0
      %1638 = vmatprep.mubr.bf16.mxu0 0
      %1639 = vmatmul.mubr.bf16.gmra.mrb[0].mxu0 %v514
      %v1640 = vpop.f32.mrb[0].mxu0
      %v1641 = vadd.f32 0.0, %v1640
      %v1642 = vpop.f32.mrb[0].mxu0
      %v1643 = vpop.f32.mrb[0].mxu0
      %v1644 = vadd.f32 0.0, %v1643
      %v1645 = vpop.f32.mrb[0].mxu0
      %1646 = vmatprep.mubr.bf16.mxu0 0
      %1647 = vmatmul.mubr.bf16.gmra.mrb[0].mxu0 %v517
      %v1648 = vpop.f32.mrb[0].mxu0
      %v1649 = vadd.f32 0.0, %v1648
      %v1650 = vpop.f32.mrb[0].mxu0
      %v1651 = vpop.f32.mrb[0].mxu0
      %v1652 = vpop.f32.mrb[0].mxu0
      %1653 = vdwg.mxu0
      %v1654 = vpack.c.bf16 %v1644, %v1641
      %v1656 = vunpack.c.l.b16 %v1654
      %v1657 = vunpack.c.h.b16 %v1654
      %v1658 = vpack.c.b16 %v1656, %v1656
      %v1659 = vpack.c.b16 %v1657, %v1657
      %v1660 = vrot.slane %v1658, 5
      %v1661 = vrot.slane %v1660, 4
      %v1662 = vrot.slane %v1659, 5
      %v1663 = vsel %vm915, %v1661, %v1662
      %1666 = vst.msk [vmem:[%s665 + $0x20] sm:$0x8] %vm922, %v1660
      %1667 = vst.msk [vmem:[%s665 + $0x24] sm:$0xf] %vm386, %v1663
      %v1668 = vpack.c.bf16 %v1649, %v1644
      %v1670 = vunpack.c.l.b16 %v1668
      %v1671 = vunpack.c.h.b16 %v1668
      %v1672 = vpack.c.b16 %v1670, %v1670
      %v1673 = vpack.c.b16 %v1671, %v1671
      %v1674 = vrot.slane %v1672, 6
      %v1675 = vrot.slane %v1674, 4
      %v1676 = vrot.slane %v1673, 6
      %v1677 = vsel %vm743, %v1675, %v1676
      %1680 = vst.msk [vmem:[%s676 + $0x20] sm:$0x8] %vm922, %v1674
      %1681 = vst.msk [vmem:[%s676 + $0x24] sm:$0xf] %vm386, %v1677
      %s1682 = scalar_lea.vmem %s380, 224
      %v1683 = vld [vmem:[%s1682] sm:$0xff]
      %v1684 = vld [vmem:[%s1682 + $0x8] sm:$0xff]
      %v1685 = vsub.f32 %v1683, %v499
      %v1686 = vsub.f32 %v1684, %v499
      %v1687 = vmul.f32 %v1685, %v507
      %v1688 = vmul.f32 %v1686, %v507
      %v1689 = vpack.c.bf16 %v1688, %v1687
      %1690 = vmatprep.subr.bf16.mxu0 0
      %1691 = vmatpush1.bf16.msra.mxu0 %v1689
      %1692 = vmatprep.subr.bf16.mxu0 0
      %1693 = vmatpush1.bf16.msra.mxu0 0
      %1694 = vmatprep.subr.bf16.mxu0 0
      %1695 = vmatpush1.bf16.msra.mxu0 0
      %1696 = vmatprep.subr.bf16.mxu0 0
      %1697 = vmatpush1.bf16.msra.mxu0 0
      %1698 = vmatprep.subr.bf16.mxu0 0
      %1699 = vmatpush1.bf16.msra.mxu0 0
      %1700 = vmatprep.subr.bf16.mxu0 0
      %1701 = vmatpush1.bf16.msra.mxu0 0
      %1702 = vmatprep.subr.bf16.mxu0 0
      %1703 = vmatpush1.bf16.msra.mxu0 0
      %1704 = vmatprep.subr.bf16.mxu0 0
      %1705 = vmatpush1.bf16.msra.mxu0 0
      %1706 = vmatprep.subr.bf16.mxu0 0
      %1707 = vmatpush1.bf16.msra.mxu0 0
      %1708 = vmatprep.subr.bf16.mxu0 0
      %1709 = vmatpush1.bf16.msra.mxu0 0
      %1710 = vmatprep.subr.bf16.mxu0 0
      %1711 = vmatpush1.bf16.msra.mxu0 0
      %1712 = vmatprep.subr.bf16.mxu0 0
      %1713 = vmatpush1.bf16.msra.mxu0 0
      %1714 = vmatprep.subr.bf16.mxu0 0
      %1715 = vmatpush1.bf16.msra.mxu0 0
      %1716 = vmatprep.subr.bf16.mxu0 0
      %1717 = vmatpush1.bf16.msra.mxu0 0
      %1718 = vmatprep.subr.bf16.mxu0 0
      %1719 = vmatpush1.bf16.msra.mxu0 0
      %1720 = vmatprep.subr.bf16.mxu0 0
      %1721 = vmatpush1.bf16.msra.mxu0 0
      %1722 = vmatprep.mubr.bf16.mxu0 0
      %1723 = vmatmul.mubr.bf16.gmra.mrb[0].mxu0 %v514
      %v1724 = vpop.f32.mrb[0].mxu0
      %v1725 = vadd.f32 0.0, %v1724
      %v1726 = vpop.f32.mrb[0].mxu0
      %v1727 = vpop.f32.mrb[0].mxu0
      %v1728 = vadd.f32 0.0, %v1727
      %v1729 = vpop.f32.mrb[0].mxu0
      %1730 = vmatprep.mubr.bf16.mxu0 0
      %1731 = vmatmul.mubr.bf16.gmra.mrb[0].mxu0 %v517
      %v1732 = vpop.f32.mrb[0].mxu0
      %v1733 = vadd.f32 0.0, %v1732
      %v1734 = vpop.f32.mrb[0].mxu0
      %v1735 = vpop.f32.mrb[0].mxu0
      %v1736 = vpop.f32.mrb[0].mxu0
      %1737 = vdwg.mxu0
      %v1738 = vpack.c.bf16 %v1728, %v1725
      %v1740 = vunpack.c.l.b16 %v1738
      %v1741 = vunpack.c.h.b16 %v1738
      %v1742 = vpack.c.b16 %v1740, %v1740
      %v1743 = vpack.c.b16 %v1741, %v1741
      %1746 = vst.msk [vmem:[#allocation2 + $0x28] sm:$0xf] %vm386, %v1742
      %1747 = vst.msk [vmem:[#allocation2 + $0x2c] sm:$0x1] %vm1088, %v1743
      %v1748 = vpack.c.bf16 %v1733, %v1728
      %v1750 = vunpack.c.l.b16 %v1748
      %v1751 = vunpack.c.h.b16 %v1748
      %v1752 = vpack.c.b16 %v1750, %v1750
      %v1753 = vpack.c.b16 %v1751, %v1751
      %v1754 = vrot.slane %v1752, 5
      %v1755 = vrot.slane %v1754, 4
      %v1756 = vrot.slane %v1753, 5
      %v1757 = vsel %vm915, %v1755, %v1756
      %v1758 = vrot.slane %v1756, 4
      %1761 = vst.msk [vmem:[%s594 + $0x28] sm:$0xf] %vm386, %v1757
      %1762 = vst.msk [vmem:[%s594 + $0x2c] sm:$0x1] %vm1088, %v1758
      %s1763 = scalar_lea.vmem %s380, 240
      %v1764 = vld [vmem:[%s1763] sm:$0xff]
      %v1765 = vld [vmem:[%s1763 + $0x8] sm:$0xff]
      %v1766 = vsub.f32 %v1764, %v499
      %v1767 = vsub.f32 %v1765, %v499
      %v1768 = vmul.f32 %v1766, %v507
      %v1769 = vmul.f32 %v1767, %v507
      %v1770 = vpack.c.bf16 %v1769, %v1768
      %1771 = vmatprep.subr.bf16.mxu0 0
      %1772 = vmatpush1.bf16.msra.mxu0 %v1770
      %1773 = vmatprep.subr.bf16.mxu0 0
      %1774 = vmatpush1.bf16.msra.mxu0 0
      %1775 = vmatprep.subr.bf16.mxu0 0
      %1776 = vmatpush1.bf16.msra.mxu0 0
      %1777 = vmatprep.subr.bf16.mxu0 0
      %1778 = vmatpush1.bf16.msra.mxu0 0
      %1779 = vmatprep.subr.bf16.mxu0 0
      %1780 = vmatpush1.bf16.msra.mxu0 0
      %1781 = vmatprep.subr.bf16.mxu0 0
      %1782 = vmatpush1.bf16.msra.mxu0 0
      %1783 = vmatprep.subr.bf16.mxu0 0
      %1784 = vmatpush1.bf16.msra.mxu0 0
      %1785 = vmatprep.subr.bf16.mxu0 0
      %1786 = vmatpush1.bf16.msra.mxu0 0
      %1787 = vmatprep.subr.bf16.mxu0 0
      %1788 = vmatpush1.bf16.msra.mxu0 0
      %1789 = vmatprep.subr.bf16.mxu0 0
      %1790 = vmatpush1.bf16.msra.mxu0 0
      %1791 = vmatprep.subr.bf16.mxu0 0
      %1792 = vmatpush1.bf16.msra.mxu0 0
      %1793 = vmatprep.subr.bf16.mxu0 0
      %1794 = vmatpush1.bf16.msra.mxu0 0
      %1795 = vmatprep.subr.bf16.mxu0 0
      %1796 = vmatpush1.bf16.msra.mxu0 0
      %1797 = vmatprep.subr.bf16.mxu0 0
      %1798 = vmatpush1.bf16.msra.mxu0 0
      %1799 = vmatprep.subr.bf16.mxu0 0
      %1800 = vmatpush1.bf16.msra.mxu0 0
      %1801 = vmatprep.subr.bf16.mxu0 0
      %1802 = vmatpush1.bf16.msra.mxu0 0
      %1803 = vmatprep.mubr.bf16.mxu0 0
      %1804 = vmatmul.mubr.bf16.gmra.mrb[0].mxu0 %v514
      %v1805 = vpop.f32.mrb[0].mxu0
      %v1806 = vadd.f32 0.0, %v1805
      %v1807 = vpop.f32.mrb[0].mxu0
      %v1808 = vpop.f32.mrb[0].mxu0
      %v1809 = vadd.f32 0.0, %v1808
      %v1810 = vpop.f32.mrb[0].mxu0
      %1811 = vmatprep.mubr.bf16.mxu0 0
      %1812 = vmatmul.mubr.bf16.gmra.mrb[0].mxu0 %v517
      %v1813 = vpop.f32.mrb[0].mxu0
      %v1814 = vadd.f32 0.0, %v1813
      %v1815 = vpop.f32.mrb[0].mxu0
      %v1816 = vpop.f32.mrb[0].mxu0
      %v1817 = vpop.f32.mrb[0].mxu0
      %1818 = vdwg.mxu0
      %v1819 = vpack.c.bf16 %v1809, %v1806
      %v1821 = vunpack.c.l.b16 %v1819
      %v1822 = vunpack.c.h.b16 %v1819
      %v1823 = vpack.c.b16 %v1821, %v1821
      %v1824 = vpack.c.b16 %v1822, %v1822
      %1827 = vst.msk [vmem:[%s665 + $0x28] sm:$0xf] %vm386, %v1823
      %1828 = vst.msk [vmem:[%s665 + $0x2c] sm:$0x1] %vm1088, %v1824
      %v1829 = vpack.c.bf16 %v1814, %v1809
      %v1831 = vunpack.c.l.b16 %v1829
      %v1832 = vunpack.c.h.b16 %v1829
      %v1833 = vpack.c.b16 %v1831, %v1831
      %v1834 = vpack.c.b16 %v1832, %v1832
      %v1835 = vrot.slane %v1833, 5
      %v1836 = vrot.slane %v1835, 4
      %v1837 = vrot.slane %v1834, 5
      %v1838 = vsel %vm915, %v1836, %v1837
      %v1839 = vrot.slane %v1837, 4
      %1842 = vst.msk [vmem:[%s676 + $0x28] sm:$0xf] %vm386, %v1838
      %1843 = vst.msk [vmem:[%s676 + $0x2c] sm:$0x1] %vm1088, %v1839
      %v1844 = vld [vmem:[#allocation2] sm:$0xf]
      %v1845 = vld [vmem:[#allocation2 + $0x4] sm:$0xf]
      %v1846 = vld [vmem:[#allocation2 + $0x8] sm:$0xf]
      %v1847 = vld [vmem:[#allocation2 + $0xc] sm:$0xf]
      %v1848 = vld [vmem:[#allocation2 + $0x10] sm:$0xf]
      %v1849 = vld [vmem:[#allocation2 + $0x14] sm:$0xf]
      %v1850 = vld [vmem:[#allocation2 + $0x18] sm:$0xf]
      %v1851 = vld [vmem:[#allocation2 + $0x1c] sm:$0xf]
      %v1852 = vld [vmem:[#allocation2 + $0x20] sm:$0xf]
      %v1853 = vld [vmem:[#allocation2 + $0x24] sm:$0xf]
      %v1864 = vunpack.c.l.b16 %v1844
      %v1865 = vunpack.c.l.b16 %v1845
      %v1866 = vunpack.c.l.b16 %v1846
      %v1867 = vunpack.c.l.b16 %v1847
      %v1868 = vunpack.c.l.b16 %v1848
      %v1869 = vunpack.c.l.b16 %v1849
      %v1870 = vunpack.c.l.b16 %v1850
      %v1871 = vunpack.c.l.b16 %v1851
      %v1872 = vunpack.c.l.b16 %v1852
      %v1873 = vunpack.c.l.b16 %v1853
      %v1874 = vpack.c.b16 %v1865, %v1864
      %v1875 = vpack.c.b16 %v1867, %v1866
      %v1876 = vpack.c.b16 %v1869, %v1868
      %v1877 = vpack.c.b16 %v1871, %v1870
      %v1878 = vpack.c.b16 %v1873, %v1872
      %vm1884 = vcmask 64512
      %1885 = vst.msk [vmem:[#allocation3] sm:$0xff] %vm1884, %v1874
      %1886 = vst.msk [vmem:[#allocation3 + $0x10] sm:$0xff] %vm1884, %v1875
      %1887 = vst.msk [vmem:[#allocation3 + $0x20] sm:$0xff] %vm1884, %v1876
      %1888 = vst.msk [vmem:[#allocation3 + $0x30] sm:$0xff] %vm1884, %v1877
      %1889 = vst.msk [vmem:[#allocation3 + $0x40] sm:$0xff] %vm1884, %v1878
      %v1890 = vld [vmem:[%s594] sm:$0xf]
      %v1891 = vld [vmem:[%s594 + $0x4] sm:$0xf]
      %v1892 = vld [vmem:[%s594 + $0x8] sm:$0xf]
      %v1893 = vld [vmem:[%s594 + $0xc] sm:$0xf]
      %v1894 = vld [vmem:[%s594 + $0x10] sm:$0xf]
      %v1895 = vld [vmem:[%s594 + $0x14] sm:$0xf]
      %v1896 = vld [vmem:[%s594 + $0x18] sm:$0xf]
      %v1897 = vld [vmem:[%s594 + $0x1c] sm:$0xf]
      %v1898 = vld [vmem:[%s594 + $0x20] sm:$0xf]
      %v1899 = vld [vmem:[%s594 + $0x24] sm:$0xf]
      %v1910 = vunpack.c.l.b16 %v1890
      %v1911 = vunpack.c.l.b16 %v1891
      %v1912 = vunpack.c.l.b16 %v1892
      %v1913 = vunpack.c.l.b16 %v1893
      %v1914 = vunpack.c.l.b16 %v1894
      %v1915 = vunpack.c.l.b16 %v1895
      %v1916 = vunpack.c.l.b16 %v1896
      %v1917 = vunpack.c.l.b16 %v1897
      %v1918 = vunpack.c.l.b16 %v1898
      %v1919 = vunpack.c.l.b16 %v1899
      %v1920 = vpack.c.b16 %v1911, %v1910
      %v1921 = vpack.c.b16 %v1913, %v1912
      %v1922 = vpack.c.b16 %v1915, %v1914
      %v1923 = vpack.c.b16 %v1917, %v1916
      %v1924 = vpack.c.b16 %v1919, %v1918
      %1925 = vrot.lane.b32.xlu0 %v1920, 8
      %v1926 = vpop.permute.xlu0 %1925
      %1927 = vrot.lane.b32.xlu0 %v1921, 8
      %v1928 = vpop.permute.xlu0 %1927
      %1929 = vrot.lane.b32.xlu0 %v1922, 8
      %v1930 = vpop.permute.xlu0 %1929
      %1931 = vrot.lane.b32.xlu0 %v1923, 8
      %v1932 = vpop.permute.xlu0 %1931
      %1933 = vrot.lane.b32.xlu0 %v1924, 8
      %v1934 = vpop.permute.xlu0 %1933
      %vm1940 = vcmask 130112
      %1941 = vst.msk [vmem:[#allocation3] sm:$0xff] %vm1940, %v1926
      %1942 = vst.msk [vmem:[#allocation3 + $0x10] sm:$0xff] %vm1940, %v1928
      %1943 = vst.msk [vmem:[#allocation3 + $0x20] sm:$0xff] %vm1940, %v1930
      %1944 = vst.msk [vmem:[#allocation3 + $0x30] sm:$0xff] %vm1940, %v1932
      %1945 = vst.msk [vmem:[#allocation3 + $0x40] sm:$0xff] %vm1940, %v1934
      %v1946 = vld [vmem:[#allocation2] sm:$0xf]
      %v1947 = vld [vmem:[#allocation2 + $0x4] sm:$0xf]
      %v1948 = vld [vmem:[#allocation2 + $0x8] sm:$0xf]
      %v1949 = vld [vmem:[#allocation2 + $0xc] sm:$0xf]
      %v1950 = vld [vmem:[#allocation2 + $0x10] sm:$0xf]
      %v1951 = vld [vmem:[#allocation2 + $0x14] sm:$0xf]
      %v1952 = vld [vmem:[#allocation2 + $0x18] sm:$0xf]
      %v1953 = vld [vmem:[#allocation2 + $0x1c] sm:$0xf]
      %v1954 = vld [vmem:[#allocation2 + $0x20] sm:$0xf]
      %v1955 = vld [vmem:[#allocation2 + $0x24] sm:$0xf]
      %v1956 = vld [vmem:[#allocation2 + $0x28] sm:$0x1]
      %v1968 = vunpack.c.l.b16 %v1946
      %v1969 = vunpack.c.l.b16 %v1947
      %v1970 = vunpack.c.l.b16 %v1948
      %v1971 = vunpack.c.l.b16 %v1949
      %v1972 = vunpack.c.l.b16 %v1950
      %v1973 = vunpack.c.l.b16 %v1951
      %v1974 = vunpack.c.l.b16 %v1952
      %v1975 = vunpack.c.l.b16 %v1953
      %v1976 = vunpack.c.l.b16 %v1954
      %v1977 = vunpack.c.l.b16 %v1955
      %v1978 = vunpack.c.l.b16 %v1956
      %v1979 = vpack.c.b16 %v1969, %v1968
      %v1980 = vpack.c.b16 %v1971, %v1970
      %v1981 = vpack.c.b16 %v1973, %v1972
      %v1982 = vpack.c.b16 %v1975, %v1974
      %v1983 = vpack.c.b16 %v1977, %v1976
      %v1984 = vpack.c.b16 %v1978, %v1978
      %vm1985 = vsmask.f32 7424
      %v1987 = vshrl.u32 %v1979, 16
      %v1989 = vshll.u32 %v1979, 16
      %v1991 = vrot.slane %v1989, 1
      %v1992 = vor.u32 %v1987, %v1991
      %v1994 = vshll.u32 %v1980, 16
      %v1996 = vrot.slane %v1994, 1
      %v1997 = vsel %vm1985, %v1992, %v1996
      %v1998 = vshrl.u32 %v1980, 16
      %v2000 = vor.u32 %v1998, %v1996
      %v2002 = vshll.u32 %v1981, 16
      %v2004 = vrot.slane %v2002, 1
      %v2005 = vsel %vm1985, %v2000, %v2004
      %v2006 = vshrl.u32 %v1981, 16
      %v2008 = vor.u32 %v2006, %v2004
      %v2010 = vshll.u32 %v1982, 16
      %v2012 = vrot.slane %v2010, 1
      %v2013 = vsel %vm1985, %v2008, %v2012
      %v2014 = vshrl.u32 %v1982, 16
      %v2016 = vor.u32 %v2014, %v2012
      %v2018 = vshll.u32 %v1983, 16
      %v2020 = vrot.slane %v2018, 1
      %v2021 = vsel %vm1985, %v2016, %v2020
      %v2022 = vshrl.u32 %v1983, 16
      %v2024 = vor.u32 %v2022, %v2020
      %v2026 = vshll.u32 %v1984, 16
      %v2028 = vrot.slane %v2026, 1
      %v2029 = vsel %vm1985, %v2024, %v2028
      %2030 = vrot.lane.b32.xlu0 %v1997, 16
      %v2031 = vpop.permute.xlu0 %2030
      %2032 = vrot.lane.b32.xlu0 %v2005, 16
      %v2033 = vpop.permute.xlu0 %2032
      %2034 = vrot.lane.b32.xlu0 %v2013, 16
      %v2035 = vpop.permute.xlu0 %2034
      %2036 = vrot.lane.b32.xlu0 %v2021, 16
      %v2037 = vpop.permute.xlu0 %2036
      %2038 = vrot.lane.b32.xlu0 %v2029, 16
      %v2039 = vpop.permute.xlu0 %2038
      %vm2045 = vcmask 195712
      %2046 = vst.msk [vmem:[#allocation3] sm:$0xff] %vm2045, %v2031
      %2047 = vst.msk [vmem:[#allocation3 + $0x10] sm:$0xff] %vm2045, %v2033
      %2048 = vst.msk [vmem:[#allocation3 + $0x20] sm:$0xff] %vm2045, %v2035
      %2049 = vst.msk [vmem:[#allocation3 + $0x30] sm:$0xff] %vm2045, %v2037
      %2050 = vst.msk [vmem:[#allocation3 + $0x40] sm:$0xff] %vm2045, %v2039
      %v2051 = vld [vmem:[%s594] sm:$0xf]
      %v2052 = vld [vmem:[%s594 + $0x4] sm:$0xf]
      %v2053 = vld [vmem:[%s594 + $0x8] sm:$0xf]
      %v2054 = vld [vmem:[%s594 + $0xc] sm:$0xf]
      %v2055 = vld [vmem:[%s594 + $0x10] sm:$0xf]
      %v2056 = vld [vmem:[%s594 + $0x14] sm:$0xf]
      %v2057 = vld [vmem:[%s594 + $0x18] sm:$0xf]
      %v2058 = vld [vmem:[%s594 + $0x1c] sm:$0xf]
      %v2059 = vld [vmem:[%s594 + $0x20] sm:$0xf]
      %v2060 = vld [vmem:[%s594 + $0x24] sm:$0xf]
      %v2061 = vld [vmem:[%s594 + $0x28] sm:$0x1]
      %v2073 = vunpack.c.l.b16 %v2051
      %v2074 = vunpack.c.l.b16 %v2052
      %v2075 = vunpack.c.l.b16 %v2053
      %v2076 = vunpack.c.l.b16 %v2054
      %v2077 = vunpack.c.l.b16 %v2055
      %v2078 = vunpack.c.l.b16 %v2056
      %v2079 = vunpack.c.l.b16 %v2057
      %v2080 = vunpack.c.l.b16 %v2058
      %v2081 = vunpack.c.l.b16 %v2059
      %v2082 = vunpack.c.l.b16 %v2060
      %v2083 = vunpack.c.l.b16 %v2061
      %v2084 = vpack.c.b16 %v2074, %v2073
      %v2085 = vpack.c.b16 %v2076, %v2075
      %v2086 = vpack.c.b16 %v2078, %v2077
      %v2087 = vpack.c.b16 %v2080, %v2079
      %v2088 = vpack.c.b16 %v2082, %v2081
      %v2089 = vpack.c.b16 %v2083, %v2083
      %v2091 = vshrl.u32 %v2084, 16
      %v2093 = vshll.u32 %v2084, 16
      %v2095 = vrot.slane %v2093, 1
      %v2096 = vor.u32 %v2091, %v2095
      %v2098 = vshll.u32 %v2085, 16
      %v2100 = vrot.slane %v2098, 1
      %v2101 = vsel %vm1985, %v2096, %v2100
      %v2102 = vshrl.u32 %v2085, 16
      %v2104 = vor.u32 %v2102, %v2100
      %v2106 = vshll.u32 %v2086, 16
      %v2108 = vrot.slane %v2106, 1
      %v2109 = vsel %vm1985, %v2104, %v2108
      %v2110 = vshrl.u32 %v2086, 16
      %v2112 = vor.u32 %v2110, %v2108
      %v2114 = vshll.u32 %v2087, 16
      %v2116 = vrot.slane %v2114, 1
      %v2117 = vsel %vm1985, %v2112, %v2116
      %v2118 = vshrl.u32 %v2087, 16
      %v2120 = vor.u32 %v2118, %v2116
      %v2122 = vshll.u32 %v2088, 16
      %v2124 = vrot.slane %v2122, 1
      %v2125 = vsel %vm1985, %v2120, %v2124
      %v2126 = vshrl.u32 %v2088, 16
      %v2128 = vor.u32 %v2126, %v2124
      %v2130 = vshll.u32 %v2089, 16
      %v2132 = vrot.slane %v2130, 1
      %v2133 = vsel %vm1985, %v2128, %v2132
      %2134 = vrot.lane.b32.xlu0 %v2101, 24
      %v2135 = vpop.permute.xlu0 %2134
      %2136 = vrot.lane.b32.xlu0 %v2109, 24
      %v2137 = vpop.permute.xlu0 %2136
      %2138 = vrot.lane.b32.xlu0 %v2117, 24
      %v2139 = vpop.permute.xlu0 %2138
      %2140 = vrot.lane.b32.xlu0 %v2125, 24
      %v2141 = vpop.permute.xlu0 %2140
      %2142 = vrot.lane.b32.xlu0 %v2133, 24
      %v2143 = vpop.permute.xlu0 %2142
      %vm2149 = vcmask 261312
      %2150 = vst.msk [vmem:[#allocation3] sm:$0xff] %vm2149, %v2135
      %2151 = vst.msk [vmem:[#allocation3 + $0x10] sm:$0xff] %vm2149, %v2137
      %2152 = vst.msk [vmem:[#allocation3 + $0x20] sm:$0xff] %vm2149, %v2139
      %2153 = vst.msk [vmem:[#allocation3 + $0x30] sm:$0xff] %vm2149, %v2141
      %2154 = vst.msk [vmem:[#allocation3 + $0x40] sm:$0xff] %vm2149, %v2143
      %v2155 = vld [vmem:[#allocation2] sm:$0xe]
      %v2156 = vld [vmem:[#allocation2 + $0x4] sm:$0xf]
      %v2157 = vld [vmem:[#allocation2 + $0x8] sm:$0xf]
      %v2158 = vld [vmem:[#allocation2 + $0xc] sm:$0xf]
      %v2159 = vld [vmem:[#allocation2 + $0x10] sm:$0xf]
      %v2160 = vld [vmem:[#allocation2 + $0x14] sm:$0xf]
      %v2161 = vld [vmem:[#allocation2 + $0x18] sm:$0xf]
      %v2162 = vld [vmem:[#allocation2 + $0x1c] sm:$0xf]
      %v2163 = vld [vmem:[#allocation2 + $0x20] sm:$0xf]
      %v2164 = vld [vmem:[#allocation2 + $0x24] sm:$0xf]
      %v2165 = vld [vmem:[#allocation2 + $0x28] sm:$0x1]
      %v2177 = vunpack.c.l.b16 %v2155
      %v2178 = vunpack.c.l.b16 %v2156
      %v2179 = vunpack.c.l.b16 %v2157
      %v2180 = vunpack.c.l.b16 %v2158
      %v2181 = vunpack.c.l.b16 %v2159
      %v2182 = vunpack.c.l.b16 %v2160
      %v2183 = vunpack.c.l.b16 %v2161
      %v2184 = vunpack.c.l.b16 %v2162
      %v2185 = vunpack.c.l.b16 %v2163
      %v2186 = vunpack.c.l.b16 %v2164
      %v2187 = vunpack.c.l.b16 %v2165
      %v2188 = vpack.c.b16 %v2178, %v2177
      %v2189 = vpack.c.b16 %v2180, %v2179
      %v2190 = vpack.c.b16 %v2182, %v2181
      %v2191 = vpack.c.b16 %v2184, %v2183
      %v2192 = vpack.c.b16 %v2186, %v2185
      %v2193 = vpack.c.b16 %v2187, %v2187
      %vm2194 = vcmask 1046528
      %v2195 = vrot.slane %v2188, 1
      %v2196 = vrot.slane %v2189, 1
      %v2197 = vsel %vm2194, %v2195, %v2196
      %v2198 = vrot.slane %v2190, 1
      %v2199 = vsel %vm2194, %v2196, %v2198
      %v2200 = vrot.slane %v2191, 1
      %v2201 = vsel %vm2194, %v2198, %v2200
      %v2202 = vrot.slane %v2192, 1
      %v2203 = vsel %vm2194, %v2200, %v2202
      %v2204 = vrot.slane %v2193, 1
      %v2205 = vsel %vm2194, %v2202, %v2204
      %2206 = vrot.lane.b32.xlu0 %v2197, 32
      %v2207 = vpop.permute.xlu0 %2206
      %2208 = vrot.lane.b32.xlu0 %v2199, 32
      %v2209 = vpop.permute.xlu0 %2208
      %2210 = vrot.lane.b32.xlu0 %v2201, 32
      %v2211 = vpop.permute.xlu0 %2210
      %2212 = vrot.lane.b32.xlu0 %v2203, 32
      %v2213 = vpop.permute.xlu0 %2212
      %2214 = vrot.lane.b32.xlu0 %v2205, 32
      %v2215 = vpop.permute.xlu0 %2214
      %vm2221 = vcmask 326912
      %2222 = vst.msk [vmem:[#allocation3] sm:$0xff] %vm2221, %v2207
      %2223 = vst.msk [vmem:[#allocation3 + $0x10] sm:$0xff] %vm2221, %v2209
      %2224 = vst.msk [vmem:[#allocation3 + $0x20] sm:$0xff] %vm2221, %v2211
      %2225 = vst.msk [vmem:[#allocation3 + $0x30] sm:$0xff] %vm2221, %v2213
      %2226 = vst.msk [vmem:[#allocation3 + $0x40] sm:$0xff] %vm2221, %v2215
      %v2227 = vld [vmem:[%s665] sm:$0xf]
      %v2228 = vld [vmem:[%s665 + $0x4] sm:$0xf]
      %v2229 = vld [vmem:[%s665 + $0x8] sm:$0xf]
      %v2230 = vld [vmem:[%s665 + $0xc] sm:$0xf]
      %v2231 = vld [vmem:[%s665 + $0x10] sm:$0xf]
      %v2232 = vld [vmem:[%s665 + $0x14] sm:$0xf]
      %v2233 = vld [vmem:[%s665 + $0x18] sm:$0xf]
      %v2234 = vld [vmem:[%s665 + $0x1c] sm:$0xf]
      %v2235 = vld [vmem:[%s665 + $0x20] sm:$0xf]
      %v2236 = vld [vmem:[%s665 + $0x24] sm:$0xf]
      %v2247 = vunpack.c.l.b16 %v2227
      %v2248 = vunpack.c.l.b16 %v2228
      %v2249 = vunpack.c.l.b16 %v2229
      %v2250 = vunpack.c.l.b16 %v2230
      %v2251 = vunpack.c.l.b16 %v2231
      %v2252 = vunpack.c.l.b16 %v2232
      %v2253 = vunpack.c.l.b16 %v2233
      %v2254 = vunpack.c.l.b16 %v2234
      %v2255 = vunpack.c.l.b16 %v2235
      %v2256 = vunpack.c.l.b16 %v2236
      %v2257 = vpack.c.b16 %v2248, %v2247
      %v2258 = vpack.c.b16 %v2250, %v2249
      %v2259 = vpack.c.b16 %v2252, %v2251
      %v2260 = vpack.c.b16 %v2254, %v2253
      %v2261 = vpack.c.b16 %v2256, %v2255
      %2262 = vrot.lane.b32.xlu0 %v2257, 40
      %v2263 = vpop.permute.xlu0 %2262
      %2264 = vrot.lane.b32.xlu0 %v2258, 40
      %v2265 = vpop.permute.xlu0 %2264
      %2266 = vrot.lane.b32.xlu0 %v2259, 40
      %v2267 = vpop.permute.xlu0 %2266
      %2268 = vrot.lane.b32.xlu0 %v2260, 40
      %v2269 = vpop.permute.xlu0 %2268
      %2270 = vrot.lane.b32.xlu0 %v2261, 40
      %v2271 = vpop.permute.xlu0 %2270
      %vm2277 = vcmask 392512
      %2278 = vst.msk [vmem:[#allocation3] sm:$0xff] %vm2277, %v2263
      %2279 = vst.msk [vmem:[#allocation3 + $0x10] sm:$0xff] %vm2277, %v2265
      %2280 = vst.msk [vmem:[#allocation3 + $0x20] sm:$0xff] %vm2277, %v2267
      %2281 = vst.msk [vmem:[#allocation3 + $0x30] sm:$0xff] %vm2277, %v2269
      %2282 = vst.msk [vmem:[#allocation3 + $0x40] sm:$0xff] %vm2277, %v2271
      %v2283 = vld [vmem:[%s676] sm:$0xf]
      %v2284 = vld [vmem:[%s676 + $0x4] sm:$0xf]
      %v2285 = vld [vmem:[%s676 + $0x8] sm:$0xf]
      %v2286 = vld [vmem:[%s676 + $0xc] sm:$0xf]
      %v2287 = vld [vmem:[%s676 + $0x10] sm:$0xf]
      %v2288 = vld [vmem:[%s676 + $0x14] sm:$0xf]
      %v2289 = vld [vmem:[%s676 + $0x18] sm:$0xf]
      %v2290 = vld [vmem:[%s676 + $0x1c] sm:$0xf]
      %v2291 = vld [vmem:[%s676 + $0x20] sm:$0xf]
      %v2292 = vld [vmem:[%s676 + $0x24] sm:$0xf]
      %v2303 = vunpack.c.l.b16 %v2283
      %v2304 = vunpack.c.l.b16 %v2284
      %v2305 = vunpack.c.l.b16 %v2285
      %v2306 = vunpack.c.l.b16 %v2286
      %v2307 = vunpack.c.l.b16 %v2287
      %v2308 = vunpack.c.l.b16 %v2288
      %v2309 = vunpack.c.l.b16 %v2289
      %v2310 = vunpack.c.l.b16 %v2290
      %v2311 = vunpack.c.l.b16 %v2291
      %v2312 = vunpack.c.l.b16 %v2292
      %v2313 = vpack.c.b16 %v2304, %v2303
      %v2314 = vpack.c.b16 %v2306, %v2305
      %v2315 = vpack.c.b16 %v2308, %v2307
      %v2316 = vpack.c.b16 %v2310, %v2309
      %v2317 = vpack.c.b16 %v2312, %v2311
      %2318 = vrot.lane.b32.xlu0 %v2313, 48
      %v2319 = vpop.permute.xlu0 %2318
      %2320 = vrot.lane.b32.xlu0 %v2314, 48
      %v2321 = vpop.permute.xlu0 %2320
      %2322 = vrot.lane.b32.xlu0 %v2315, 48
      %v2323 = vpop.permute.xlu0 %2322
      %2324 = vrot.lane.b32.xlu0 %v2316, 48
      %v2325 = vpop.permute.xlu0 %2324
      %2326 = vrot.lane.b32.xlu0 %v2317, 48
      %v2327 = vpop.permute.xlu0 %2326
      %vm2333 = vcmask 458112
      %2334 = vst.msk [vmem:[#allocation3] sm:$0xff] %vm2333, %v2319
      %2335 = vst.msk [vmem:[#allocation3 + $0x10] sm:$0xff] %vm2333, %v2321
      %2336 = vst.msk [vmem:[#allocation3 + $0x20] sm:$0xff] %vm2333, %v2323
      %2337 = vst.msk [vmem:[#allocation3 + $0x30] sm:$0xff] %vm2333, %v2325
      %2338 = vst.msk [vmem:[#allocation3 + $0x40] sm:$0xff] %vm2333, %v2327
      %v2339 = vld [vmem:[%s665] sm:$0xf]
      %v2340 = vld [vmem:[%s665 + $0x4] sm:$0xf]
      %v2341 = vld [vmem:[%s665 + $0x8] sm:$0xf]
      %v2342 = vld [vmem:[%s665 + $0xc] sm:$0xf]
      %v2343 = vld [vmem:[%s665 + $0x10] sm:$0xf]
      %v2344 = vld [vmem:[%s665 + $0x14] sm:$0xf]
      %v2345 = vld [vmem:[%s665 + $0x18] sm:$0xf]
      %v2346 = vld [vmem:[%s665 + $0x1c] sm:$0xf]
      %v2347 = vld [vmem:[%s665 + $0x20] sm:$0xf]
      %v2348 = vld [vmem:[%s665 + $0x24] sm:$0xf]
      %v2349 = vld [vmem:[%s665 + $0x28] sm:$0x1]
      %v2361 = vunpack.c.l.b16 %v2339
      %v2362 = vunpack.c.l.b16 %v2340
      %v2363 = vunpack.c.l.b16 %v2341
      %v2364 = vunpack.c.l.b16 %v2342
      %v2365 = vunpack.c.l.b16 %v2343
      %v2366 = vunpack.c.l.b16 %v2344
      %v2367 = vunpack.c.l.b16 %v2345
      %v2368 = vunpack.c.l.b16 %v2346
      %v2369 = vunpack.c.l.b16 %v2347
      %v2370 = vunpack.c.l.b16 %v2348
      %v2371 = vunpack.c.l.b16 %v2349
      %v2372 = vpack.c.b16 %v2362, %v2361
      %v2373 = vpack.c.b16 %v2364, %v2363
      %v2374 = vpack.c.b16 %v2366, %v2365
      %v2375 = vpack.c.b16 %v2368, %v2367
      %v2376 = vpack.c.b16 %v2370, %v2369
      %v2377 = vpack.c.b16 %v2371, %v2371
      %v2379 = vshrl.u32 %v2372, 16
      %v2381 = vshll.u32 %v2372, 16
      %v2383 = vrot.slane %v2381, 1
      %v2384 = vor.u32 %v2379, %v2383
      %v2386 = vshll.u32 %v2373, 16
      %v2388 = vrot.slane %v2386, 1
      %v2389 = vsel %vm1985, %v2384, %v2388
      %v2390 = vshrl.u32 %v2373, 16
      %v2392 = vor.u32 %v2390, %v2388
      %v2394 = vshll.u32 %v2374, 16
      %v2396 = vrot.slane %v2394, 1
      %v2397 = vsel %vm1985, %v2392, %v2396
      %v2398 = vshrl.u32 %v2374, 16
      %v2400 = vor.u32 %v2398, %v2396
      %v2402 = vshll.u32 %v2375, 16
      %v2404 = vrot.slane %v2402, 1
      %v2405 = vsel %vm1985, %v2400, %v2404
      %v2406 = vshrl.u32 %v2375, 16
      %v2408 = vor.u32 %v2406, %v2404
      %v2410 = vshll.u32 %v2376, 16
      %v2412 = vrot.slane %v2410, 1
      %v2413 = vsel %vm1985, %v2408, %v2412
      %v2414 = vshrl.u32 %v2376, 16
      %v2416 = vor.u32 %v2414, %v2412
      %v2418 = vshll.u32 %v2377, 16
      %v2420 = vrot.slane %v2418, 1
      %v2421 = vsel %vm1985, %v2416, %v2420
      %2422 = vrot.lane.b32.xlu0 %v2389, 56
      %v2423 = vpop.permute.xlu0 %2422
      %2424 = vrot.lane.b32.xlu0 %v2397, 56
      %v2425 = vpop.permute.xlu0 %2424
      %2426 = vrot.lane.b32.xlu0 %v2405, 56
      %v2427 = vpop.permute.xlu0 %2426
      %2428 = vrot.lane.b32.xlu0 %v2413, 56
      %v2429 = vpop.permute.xlu0 %2428
      %2430 = vrot.lane.b32.xlu0 %v2421, 56
      %v2431 = vpop.permute.xlu0 %2430
      %vm2437 = vcmask 523712
      %2438 = vst.msk [vmem:[#allocation3] sm:$0xff] %vm2437, %v2423
      %2439 = vst.msk [vmem:[#allocation3 + $0x10] sm:$0xff] %vm2437, %v2425
      %2440 = vst.msk [vmem:[#allocation3 + $0x20] sm:$0xff] %vm2437, %v2427
      %2441 = vst.msk [vmem:[#allocation3 + $0x30] sm:$0xff] %vm2437, %v2429
      %2442 = vst.msk [vmem:[#allocation3 + $0x40] sm:$0xff] %vm2437, %v2431
      %v2443 = vld [vmem:[%s676] sm:$0xf]
      %v2444 = vld [vmem:[%s676 + $0x4] sm:$0xf]
      %v2445 = vld [vmem:[%s676 + $0x8] sm:$0xf]
      %v2446 = vld [vmem:[%s676 + $0xc] sm:$0xf]
      %v2447 = vld [vmem:[%s676 + $0x10] sm:$0xf]
      %v2448 = vld [vmem:[%s676 + $0x14] sm:$0xf]
      %v2449 = vld [vmem:[%s676 + $0x18] sm:$0xf]
      %v2450 = vld [vmem:[%s676 + $0x1c] sm:$0xf]
      %v2451 = vld [vmem:[%s676 + $0x20] sm:$0xf]
      %v2452 = vld [vmem:[%s676 + $0x24] sm:$0xf]
      %v2453 = vld [vmem:[%s676 + $0x28] sm:$0x1]
      %v2465 = vunpack.c.l.b16 %v2443
      %v2466 = vunpack.c.l.b16 %v2444
      %v2467 = vunpack.c.l.b16 %v2445
      %v2468 = vunpack.c.l.b16 %v2446
      %v2469 = vunpack.c.l.b16 %v2447
      %v2470 = vunpack.c.l.b16 %v2448
      %v2471 = vunpack.c.l.b16 %v2449
      %v2472 = vunpack.c.l.b16 %v2450
      %v2473 = vunpack.c.l.b16 %v2451
      %v2474 = vunpack.c.l.b16 %v2452
      %v2475 = vunpack.c.l.b16 %v2453
      %v2476 = vpack.c.b16 %v2466, %v2465
      %v2477 = vpack.c.b16 %v2468, %v2467
      %v2478 = vpack.c.b16 %v2470, %v2469
      %v2479 = vpack.c.b16 %v2472, %v2471
      %v2480 = vpack.c.b16 %v2474, %v2473
      %v2481 = vpack.c.b16 %v2475, %v2475
      %v2483 = vshrl.u32 %v2476, 16
      %v2485 = vshll.u32 %v2476, 16
      %v2487 = vrot.slane %v2485, 1
      %v2488 = vor.u32 %v2483, %v2487
      %v2490 = vshll.u32 %v2477, 16
      %v2492 = vrot.slane %v2490, 1
      %v2493 = vsel %vm1985, %v2488, %v2492
      %v2494 = vshrl.u32 %v2477, 16
      %v2496 = vor.u32 %v2494, %v2492
      %v2498 = vshll.u32 %v2478, 16
      %v2500 = vrot.slane %v2498, 1
      %v2501 = vsel %vm1985, %v2496, %v2500
      %v2502 = vshrl.u32 %v2478, 16
      %v2504 = vor.u32 %v2502, %v2500
      %v2506 = vshll.u32 %v2479, 16
      %v2508 = vrot.slane %v2506, 1
      %v2509 = vsel %vm1985, %v2504, %v2508
      %v2510 = vshrl.u32 %v2479, 16
      %v2512 = vor.u32 %v2510, %v2508
      %v2514 = vshll.u32 %v2480, 16
      %v2516 = vrot.slane %v2514, 1
      %v2517 = vsel %vm1985, %v2512, %v2516
      %v2518 = vshrl.u32 %v2480, 16
      %v2520 = vor.u32 %v2518, %v2516
      %v2522 = vshll.u32 %v2481, 16
      %v2524 = vrot.slane %v2522, 1
      %v2525 = vsel %vm1985, %v2520, %v2524
      %2526 = vrot.lane.b32.xlu0 %v2493, 64
      %v2527 = vpop.permute.xlu0 %2526
      %2528 = vrot.lane.b32.xlu0 %v2501, 64
      %v2529 = vpop.permute.xlu0 %2528
      %2530 = vrot.lane.b32.xlu0 %v2509, 64
      %v2531 = vpop.permute.xlu0 %2530
      %2532 = vrot.lane.b32.xlu0 %v2517, 64
      %v2533 = vpop.permute.xlu0 %2532
      %2534 = vrot.lane.b32.xlu0 %v2525, 64
      %v2535 = vpop.permute.xlu0 %2534
      %vm2541 = vcmask 589312
      %2542 = vst.msk [vmem:[#allocation3] sm:$0xff] %vm2541, %v2527
      %2543 = vst.msk [vmem:[#allocation3 + $0x10] sm:$0xff] %vm2541, %v2529
      %2544 = vst.msk [vmem:[#allocation3 + $0x20] sm:$0xff] %vm2541, %v2531
      %2545 = vst.msk [vmem:[#allocation3 + $0x30] sm:$0xff] %vm2541, %v2533
      %2546 = vst.msk [vmem:[#allocation3 + $0x40] sm:$0xff] %vm2541, %v2535
      %v2547 = vld [vmem:[%s665] sm:$0xe]
      %v2548 = vld [vmem:[%s665 + $0x4] sm:$0xf]
      %v2549 = vld [vmem:[%s665 + $0x8] sm:$0xf]
      %v2550 = vld [vmem:[%s665 + $0xc] sm:$0xf]
      %v2551 = vld [vmem:[%s665 + $0x10] sm:$0xf]
      %v2552 = vld [vmem:[%s665 + $0x14] sm:$0xf]
      %v2553 = vld [vmem:[%s665 + $0x18] sm:$0xf]
      %v2554 = vld [vmem:[%s665 + $0x1c] sm:$0xf]
      %v2555 = vld [vmem:[%s665 + $0x20] sm:$0xf]
      %v2556 = vld [vmem:[%s665 + $0x24] sm:$0xf]
      %v2557 = vld [vmem:[%s665 + $0x28] sm:$0x1]
      %v2569 = vunpack.c.l.b16 %v2547
      %v2570 = vunpack.c.l.b16 %v2548
      %v2571 = vunpack.c.l.b16 %v2549
      %v2572 = vunpack.c.l.b16 %v2550
      %v2573 = vunpack.c.l.b16 %v2551
      %v2574 = vunpack.c.l.b16 %v2552
      %v2575 = vunpack.c.l.b16 %v2553
      %v2576 = vunpack.c.l.b16 %v2554
      %v2577 = vunpack.c.l.b16 %v2555
      %v2578 = vunpack.c.l.b16 %v2556
      %v2579 = vunpack.c.l.b16 %v2557
      %v2580 = vpack.c.b16 %v2570, %v2569
      %v2581 = vpack.c.b16 %v2572, %v2571
      %v2582 = vpack.c.b16 %v2574, %v2573
      %v2583 = vpack.c.b16 %v2576, %v2575
      %v2584 = vpack.c.b16 %v2578, %v2577
      %v2585 = vpack.c.b16 %v2579, %v2579
      %v2586 = vrot.slane %v2580, 1
      %v2587 = vrot.slane %v2581, 1
      %v2588 = vsel %vm2194, %v2586, %v2587
      %v2589 = vrot.slane %v2582, 1
      %v2590 = vsel %vm2194, %v2587, %v2589
      %v2591 = vrot.slane %v2583, 1
      %v2592 = vsel %vm2194, %v2589, %v2591
      %v2593 = vrot.slane %v2584, 1
      %v2594 = vsel %vm2194, %v2591, %v2593
      %v2595 = vrot.slane %v2585, 1
      %v2596 = vsel %vm2194, %v2593, %v2595
      %2597 = vrot.lane.b32.xlu0 %v2588, 72
      %v2598 = vpop.permute.xlu0 %2597
      %2599 = vrot.lane.b32.xlu0 %v2590, 72
      %v2600 = vpop.permute.xlu0 %2599
      %2601 = vrot.lane.b32.xlu0 %v2592, 72
      %v2602 = vpop.permute.xlu0 %2601
      %2603 = vrot.lane.b32.xlu0 %v2594, 72
      %v2604 = vpop.permute.xlu0 %2603
      %2605 = vrot.lane.b32.xlu0 %v2596, 72
      %v2606 = vpop.permute.xlu0 %2605
      %vm2612 = vcmask 654912
      %2613 = vst.msk [vmem:[#allocation3] sm:$0xff] %vm2612, %v2598
      %2614 = vst.msk [vmem:[#allocation3 + $0x10] sm:$0xff] %vm2612, %v2600
      %2615 = vst.msk [vmem:[#allocation3 + $0x20] sm:$0xff] %vm2612, %v2602
      %2616 = vst.msk [vmem:[#allocation3 + $0x30] sm:$0xff] %vm2612, %v2604
      %2617 = vst.msk [vmem:[#allocation3 + $0x40] sm:$0xff] %vm2612, %v2606
      %v2618 = vld [vmem:[#allocation2 + $0x4] sm:$0xe]
      %v2619 = vld [vmem:[#allocation2 + $0x8] sm:$0xf]
      %v2620 = vld [vmem:[#allocation2 + $0xc] sm:$0xf]
      %v2621 = vld [vmem:[#allocation2 + $0x10] sm:$0xf]
      %v2622 = vld [vmem:[#allocation2 + $0x14] sm:$0xf]
      %v2623 = vld [vmem:[#allocation2 + $0x18] sm:$0xf]
      %v2624 = vld [vmem:[#allocation2 + $0x1c] sm:$0xf]
      %v2625 = vld [vmem:[#allocation2 + $0x20] sm:$0xf]
      %v2626 = vld [vmem:[#allocation2 + $0x24] sm:$0xf]
      %v2627 = vld [vmem:[#allocation2 + $0x28] sm:$0xf]
      %v2628 = vld [vmem:[#allocation2 + $0x2c] sm:$0x1]
      %v2640 = vunpack.c.l.b16 %v2618
      %v2641 = vunpack.c.l.b16 %v2619
      %v2642 = vunpack.c.l.b16 %v2620
      %v2643 = vunpack.c.l.b16 %v2621
      %v2644 = vunpack.c.l.b16 %v2622
      %v2645 = vunpack.c.l.b16 %v2623
      %v2646 = vunpack.c.l.b16 %v2624
      %v2647 = vunpack.c.l.b16 %v2625
      %v2648 = vunpack.c.l.b16 %v2626
      %v2649 = vunpack.c.l.b16 %v2627
      %v2650 = vunpack.c.l.b16 %v2628
      %v2651 = vpack.c.b16 %v2641, %v2640
      %v2652 = vpack.c.b16 %v2643, %v2642
      %v2653 = vpack.c.b16 %v2645, %v2644
      %v2654 = vpack.c.b16 %v2647, %v2646
      %v2655 = vpack.c.b16 %v2649, %v2648
      %v2656 = vpack.c.b16 %v2650, %v2650
      %v2657 = vrot.slane %v2651, 1
      %v2658 = vrot.slane %v2652, 1
      %v2659 = vsel %vm2194, %v2657, %v2658
      %v2660 = vrot.slane %v2653, 1
      %v2661 = vsel %vm2194, %v2658, %v2660
      %v2662 = vrot.slane %v2654, 1
      %v2663 = vsel %vm2194, %v2660, %v2662
      %v2664 = vrot.slane %v2655, 1
      %v2665 = vsel %vm2194, %v2662, %v2664
      %v2666 = vrot.slane %v2656, 1
      %v2667 = vsel %vm2194, %v2664, %v2666
      %2668 = vrot.lane.b32.xlu0 %v2659, 80
      %v2669 = vpop.permute.xlu0 %2668
      %2670 = vrot.lane.b32.xlu0 %v2661, 80
      %v2671 = vpop.permute.xlu0 %2670
      %2672 = vrot.lane.b32.xlu0 %v2663, 80
      %v2673 = vpop.permute.xlu0 %2672
      %2674 = vrot.lane.b32.xlu0 %v2665, 80
      %v2675 = vpop.permute.xlu0 %2674
      %2676 = vrot.lane.b32.xlu0 %v2667, 80
      %v2677 = vpop.permute.xlu0 %2676
      %vm2683 = vcmask 720512
      %2684 = vst.msk [vmem:[#allocation3] sm:$0xff] %vm2683, %v2669
      %2685 = vst.msk [vmem:[#allocation3 + $0x10] sm:$0xff] %vm2683, %v2671
      %2686 = vst.msk [vmem:[#allocation3 + $0x20] sm:$0xff] %vm2683, %v2673
      %2687 = vst.msk [vmem:[#allocation3 + $0x30] sm:$0xff] %vm2683, %v2675
      %2688 = vst.msk [vmem:[#allocation3 + $0x40] sm:$0xff] %vm2683, %v2677
      %v2689 = vld [vmem:[%s594 + $0x4] sm:$0xe]
      %v2690 = vld [vmem:[%s594 + $0x8] sm:$0xf]
      %v2691 = vld [vmem:[%s594 + $0xc] sm:$0xf]
      %v2692 = vld [vmem:[%s594 + $0x10] sm:$0xf]
      %v2693 = vld [vmem:[%s594 + $0x14] sm:$0xf]
      %v2694 = vld [vmem:[%s594 + $0x18] sm:$0xf]
      %v2695 = vld [vmem:[%s594 + $0x1c] sm:$0xf]
      %v2696 = vld [vmem:[%s594 + $0x20] sm:$0xf]
      %v2697 = vld [vmem:[%s594 + $0x24] sm:$0xf]
      %v2698 = vld [vmem:[%s594 + $0x28] sm:$0xf]
      %v2699 = vld [vmem:[%s594 + $0x2c] sm:$0x1]
      %v2711 = vunpack.c.l.b16 %v2689
      %v2712 = vunpack.c.l.b16 %v2690
      %v2713 = vunpack.c.l.b16 %v2691
      %v2714 = vunpack.c.l.b16 %v2692
      %v2715 = vunpack.c.l.b16 %v2693
      %v2716 = vunpack.c.l.b16 %v2694
      %v2717 = vunpack.c.l.b16 %v2695
      %v2718 = vunpack.c.l.b16 %v2696
      %v2719 = vunpack.c.l.b16 %v2697
      %v2720 = vunpack.c.l.b16 %v2698
      %v2721 = vunpack.c.l.b16 %v2699
      %v2722 = vpack.c.b16 %v2712, %v2711
      %v2723 = vpack.c.b16 %v2714, %v2713
      %v2724 = vpack.c.b16 %v2716, %v2715
      %v2725 = vpack.c.b16 %v2718, %v2717
      %v2726 = vpack.c.b16 %v2720, %v2719
      %v2727 = vpack.c.b16 %v2721, %v2721
      %v2728 = vrot.slane %v2722, 1
      %v2729 = vrot.slane %v2723, 1
      %v2730 = vsel %vm2194, %v2728, %v2729
      %v2731 = vrot.slane %v2724, 1
      %v2732 = vsel %vm2194, %v2729, %v2731
      %v2733 = vrot.slane %v2725, 1
      %v2734 = vsel %vm2194, %v2731, %v2733
      %v2735 = vrot.slane %v2726, 1
      %v2736 = vsel %vm2194, %v2733, %v2735
      %v2737 = vrot.slane %v2727, 1
      %v2738 = vsel %vm2194, %v2735, %v2737
      %2739 = vrot.lane.b32.xlu0 %v2730, 88
      %v2740 = vpop.permute.xlu0 %2739
      %2741 = vrot.lane.b32.xlu0 %v2732, 88
      %v2742 = vpop.permute.xlu0 %2741
      %2743 = vrot.lane.b32.xlu0 %v2734, 88
      %v2744 = vpop.permute.xlu0 %2743
      %2745 = vrot.lane.b32.xlu0 %v2736, 88
      %v2746 = vpop.permute.xlu0 %2745
      %2747 = vrot.lane.b32.xlu0 %v2738, 88
      %v2748 = vpop.permute.xlu0 %2747
      %vm2754 = vcmask 786112
      %2755 = vst.msk [vmem:[#allocation3] sm:$0xff] %vm2754, %v2740
      %2756 = vst.msk [vmem:[#allocation3 + $0x10] sm:$0xff] %vm2754, %v2742
      %2757 = vst.msk [vmem:[#allocation3 + $0x20] sm:$0xff] %vm2754, %v2744
      %2758 = vst.msk [vmem:[#allocation3 + $0x30] sm:$0xff] %vm2754, %v2746
      %2759 = vst.msk [vmem:[#allocation3 + $0x40] sm:$0xff] %vm2754, %v2748
      %v2760 = vld [vmem:[#allocation2 + $0x4] sm:$0xe]
      %v2761 = vld [vmem:[#allocation2 + $0x8] sm:$0xf]
      %v2762 = vld [vmem:[#allocation2 + $0xc] sm:$0xf]
      %v2763 = vld [vmem:[#allocation2 + $0x10] sm:$0xf]
      %v2764 = vld [vmem:[#allocation2 + $0x14] sm:$0xf]
      %v2765 = vld [vmem:[#allocation2 + $0x18] sm:$0xf]
      %v2766 = vld [vmem:[#allocation2 + $0x1c] sm:$0xf]
      %v2767 = vld [vmem:[#allocation2 + $0x20] sm:$0xf]
      %v2768 = vld [vmem:[#allocation2 + $0x24] sm:$0xf]
      %v2769 = vld [vmem:[#allocation2 + $0x28] sm:$0xf]
      %v2770 = vld [vmem:[#allocation2 + $0x2c] sm:$0x3]
      %v2782 = vunpack.c.l.b16 %v2760
      %v2783 = vunpack.c.l.b16 %v2761
      %v2784 = vunpack.c.l.b16 %v2762
      %v2785 = vunpack.c.l.b16 %v2763
      %v2786 = vunpack.c.l.b16 %v2764
      %v2787 = vunpack.c.l.b16 %v2765
      %v2788 = vunpack.c.l.b16 %v2766
      %v2789 = vunpack.c.l.b16 %v2767
      %v2790 = vunpack.c.l.b16 %v2768
      %v2791 = vunpack.c.l.b16 %v2769
      %v2792 = vunpack.c.l.b16 %v2770
      %v2793 = vpack.c.b16 %v2783, %v2782
      %v2794 = vpack.c.b16 %v2785, %v2784
      %v2795 = vpack.c.b16 %v2787, %v2786
      %v2796 = vpack.c.b16 %v2789, %v2788
      %v2797 = vpack.c.b16 %v2791, %v2790
      %v2798 = vpack.c.b16 %v2792, %v2792
      %vm2799 = vsmask.f32 6400
      %v2801 = vshrl.u32 %v2793, 16
      %v2803 = vrot.slane %v2801, 1
      %v2804 = vshll.u32 %v2793, 16
      %v2806 = vrot.slane %v2804, 2
      %v2807 = vor.u32 %v2803, %v2806
      %v2809 = vshrl.u32 %v2794, 16
      %v2811 = vrot.slane %v2809, 1
      %v2812 = vshll.u32 %v2794, 16
      %v2814 = vrot.slane %v2812, 2
      %v2815 = vor.u32 %v2811, %v2814
      %v2816 = vsel %vm2799, %v2807, %v2815
      %v2818 = vshrl.u32 %v2795, 16
      %v2820 = vrot.slane %v2818, 1
      %v2821 = vshll.u32 %v2795, 16
      %v2823 = vrot.slane %v2821, 2
      %v2824 = vor.u32 %v2820, %v2823
      %v2825 = vsel %vm2799, %v2815, %v2824
      %v2827 = vshrl.u32 %v2796, 16
      %v2829 = vrot.slane %v2827, 1
      %v2830 = vshll.u32 %v2796, 16
      %v2832 = vrot.slane %v2830, 2
      %v2833 = vor.u32 %v2829, %v2832
      %v2834 = vsel %vm2799, %v2824, %v2833
      %v2836 = vshrl.u32 %v2797, 16
      %v2838 = vrot.slane %v2836, 1
      %v2839 = vshll.u32 %v2797, 16
      %v2841 = vrot.slane %v2839, 2
      %v2842 = vor.u32 %v2838, %v2841
      %v2843 = vsel %vm2799, %v2833, %v2842
      %v2845 = vshrl.u32 %v2798, 16
      %v2847 = vrot.slane %v2845, 1
      %v2848 = vshll.u32 %v2798, 16
      %v2850 = vrot.slane %v2848, 2
      %v2851 = vor.u32 %v2847, %v2850
      %v2852 = vsel %vm2799, %v2842, %v2851
      %2853 = vrot.lane.b32.xlu0 %v2816, 96
      %v2854 = vpop.permute.xlu0 %2853
      %2855 = vrot.lane.b32.xlu0 %v2825, 96
      %v2856 = vpop.permute.xlu0 %2855
      %2857 = vrot.lane.b32.xlu0 %v2834, 96
      %v2858 = vpop.permute.xlu0 %2857
      %2859 = vrot.lane.b32.xlu0 %v2843, 96
      %v2860 = vpop.permute.xlu0 %2859
      %2861 = vrot.lane.b32.xlu0 %v2852, 96
      %v2862 = vpop.permute.xlu0 %2861
      %vm2868 = vcmask 851712
      %2869 = vst.msk [vmem:[#allocation3] sm:$0xff] %vm2868, %v2854
      %2870 = vst.msk [vmem:[#allocation3 + $0x10] sm:$0xff] %vm2868, %v2856
      %2871 = vst.msk [vmem:[#allocation3 + $0x20] sm:$0xff] %vm2868, %v2858
      %2872 = vst.msk [vmem:[#allocation3 + $0x30] sm:$0xff] %vm2868, %v2860
      %2873 = vst.msk [vmem:[#allocation3 + $0x40] sm:$0xff] %vm2868, %v2862
      %v2874 = vld [vmem:[%s594 + $0x4] sm:$0xe]
      %v2875 = vld [vmem:[%s594 + $0x8] sm:$0xf]
      %v2876 = vld [vmem:[%s594 + $0xc] sm:$0xf]
      %v2877 = vld [vmem:[%s594 + $0x10] sm:$0xf]
      %v2878 = vld [vmem:[%s594 + $0x14] sm:$0xf]
      %v2879 = vld [vmem:[%s594 + $0x18] sm:$0xf]
      %v2880 = vld [vmem:[%s594 + $0x1c] sm:$0xf]
      %v2881 = vld [vmem:[%s594 + $0x20] sm:$0xf]
      %v2882 = vld [vmem:[%s594 + $0x24] sm:$0xf]
      %v2883 = vld [vmem:[%s594 + $0x28] sm:$0xf]
      %v2884 = vld [vmem:[%s594 + $0x2c] sm:$0x3]
      %v2896 = vunpack.c.l.b16 %v2874
      %v2897 = vunpack.c.l.b16 %v2875
      %v2898 = vunpack.c.l.b16 %v2876
      %v2899 = vunpack.c.l.b16 %v2877
      %v2900 = vunpack.c.l.b16 %v2878
      %v2901 = vunpack.c.l.b16 %v2879
      %v2902 = vunpack.c.l.b16 %v2880
      %v2903 = vunpack.c.l.b16 %v2881
      %v2904 = vunpack.c.l.b16 %v2882
      %v2905 = vunpack.c.l.b16 %v2883
      %v2906 = vunpack.c.l.b16 %v2884
      %v2907 = vpack.c.b16 %v2897, %v2896
      %v2908 = vpack.c.b16 %v2899, %v2898
      %v2909 = vpack.c.b16 %v2901, %v2900
      %v2910 = vpack.c.b16 %v2903, %v2902
      %v2911 = vpack.c.b16 %v2905, %v2904
      %v2912 = vpack.c.b16 %v2906, %v2906
      %v2914 = vshrl.u32 %v2907, 16
      %v2916 = vrot.slane %v2914, 1
      %v2917 = vshll.u32 %v2907, 16
      %v2919 = vrot.slane %v2917, 2
      %v2920 = vor.u32 %v2916, %v2919
      %v2922 = vshrl.u32 %v2908, 16
      %v2924 = vrot.slane %v2922, 1
      %v2925 = vshll.u32 %v2908, 16
      %v2927 = vrot.slane %v2925, 2
      %v2928 = vor.u32 %v2924, %v2927
      %v2929 = vsel %vm2799, %v2920, %v2928
      %v2931 = vshrl.u32 %v2909, 16
      %v2933 = vrot.slane %v2931, 1
      %v2934 = vshll.u32 %v2909, 16
      %v2936 = vrot.slane %v2934, 2
      %v2937 = vor.u32 %v2933, %v2936
      %v2938 = vsel %vm2799, %v2928, %v2937
      %v2940 = vshrl.u32 %v2910, 16
      %v2942 = vrot.slane %v2940, 1
      %v2943 = vshll.u32 %v2910, 16
      %v2945 = vrot.slane %v2943, 2
      %v2946 = vor.u32 %v2942, %v2945
      %v2947 = vsel %vm2799, %v2937, %v2946
      %v2949 = vshrl.u32 %v2911, 16
      %v2951 = vrot.slane %v2949, 1
      %v2952 = vshll.u32 %v2911, 16
      %v2954 = vrot.slane %v2952, 2
      %v2955 = vor.u32 %v2951, %v2954
      %v2956 = vsel %vm2799, %v2946, %v2955
      %v2958 = vshrl.u32 %v2912, 16
      %v2960 = vrot.slane %v2958, 1
      %v2961 = vshll.u32 %v2912, 16
      %v2963 = vrot.slane %v2961, 2
      %v2964 = vor.u32 %v2960, %v2963
      %v2965 = vsel %vm2799, %v2955, %v2964
      %2966 = vrot.lane.b32.xlu0 %v2929, 104
      %v2967 = vpop.permute.xlu0 %2966
      %2968 = vrot.lane.b32.xlu0 %v2938, 104
      %v2969 = vpop.permute.xlu0 %2968
      %2970 = vrot.lane.b32.xlu0 %v2947, 104
      %v2971 = vpop.permute.xlu0 %2970
      %2972 = vrot.lane.b32.xlu0 %v2956, 104
      %v2973 = vpop.permute.xlu0 %2972
      %2974 = vrot.lane.b32.xlu0 %v2965, 104
      %v2975 = vpop.permute.xlu0 %2974
      %vm2981 = vcmask 917312
      %2982 = vst.msk [vmem:[#allocation3] sm:$0xff] %vm2981, %v2967
      %2983 = vst.msk [vmem:[#allocation3 + $0x10] sm:$0xff] %vm2981, %v2969
      %2984 = vst.msk [vmem:[#allocation3 + $0x20] sm:$0xff] %vm2981, %v2971
      %2985 = vst.msk [vmem:[#allocation3 + $0x30] sm:$0xff] %vm2981, %v2973
      %2986 = vst.msk [vmem:[#allocation3 + $0x40] sm:$0xff] %vm2981, %v2975
      %v2987 = vld [vmem:[#allocation2 + $0x4] sm:$0xc]
      %v2988 = vld [vmem:[#allocation2 + $0x8] sm:$0xf]
      %v2989 = vld [vmem:[#allocation2 + $0xc] sm:$0xf]
      %v2990 = vld [vmem:[#allocation2 + $0x10] sm:$0xf]
      %v2991 = vld [vmem:[#allocation2 + $0x14] sm:$0xf]
      %v2992 = vld [vmem:[#allocation2 + $0x18] sm:$0xf]
      %v2993 = vld [vmem:[#allocation2 + $0x1c] sm:$0xf]
      %v2994 = vld [vmem:[#allocation2 + $0x20] sm:$0xf]
      %v2995 = vld [vmem:[#allocation2 + $0x24] sm:$0xf]
      %v2996 = vld [vmem:[#allocation2 + $0x28] sm:$0xf]
      %v2997 = vld [vmem:[#allocation2 + $0x2c] sm:$0x3]
      %v3009 = vunpack.c.l.b16 %v2987
      %v3010 = vunpack.c.l.b16 %v2988
      %v3011 = vunpack.c.l.b16 %v2989
      %v3012 = vunpack.c.l.b16 %v2990
      %v3013 = vunpack.c.l.b16 %v2991
      %v3014 = vunpack.c.l.b16 %v2992
      %v3015 = vunpack.c.l.b16 %v2993
      %v3016 = vunpack.c.l.b16 %v2994
      %v3017 = vunpack.c.l.b16 %v2995
      %v3018 = vunpack.c.l.b16 %v2996
      %v3019 = vunpack.c.l.b16 %v2997
      %v3020 = vpack.c.b16 %v3010, %v3009
      %v3021 = vpack.c.b16 %v3012, %v3011
      %v3022 = vpack.c.b16 %v3014, %v3013
      %v3023 = vpack.c.b16 %v3016, %v3015
      %v3024 = vpack.c.b16 %v3018, %v3017
      %v3025 = vpack.c.b16 %v3019, %v3019
      %vm3026 = vcmask 1045504
      %v3027 = vrot.slane %v3020, 2
      %v3028 = vrot.slane %v3021, 2
      %v3029 = vsel %vm3026, %v3027, %v3028
      %v3030 = vrot.slane %v3022, 2
      %v3031 = vsel %vm3026, %v3028, %v3030
      %v3032 = vrot.slane %v3023, 2
      %v3033 = vsel %vm3026, %v3030, %v3032
      %v3034 = vrot.slane %v3024, 2
      %v3035 = vsel %vm3026, %v3032, %v3034
      %v3036 = vrot.slane %v3025, 2
      %v3037 = vsel %vm3026, %v3034, %v3036
      %3038 = vrot.lane.b32.xlu0 %v3029, 112
      %v3039 = vpop.permute.xlu0 %3038
      %3040 = vrot.lane.b32.xlu0 %v3031, 112
      %v3041 = vpop.permute.xlu0 %3040
      %3042 = vrot.lane.b32.xlu0 %v3033, 112
      %v3043 = vpop.permute.xlu0 %3042
      %3044 = vrot.lane.b32.xlu0 %v3035, 112
      %v3045 = vpop.permute.xlu0 %3044
      %3046 = vrot.lane.b32.xlu0 %v3037, 112
      %v3047 = vpop.permute.xlu0 %3046
      %vm3053 = vcmask 982912
      %3054 = vst.msk [vmem:[#allocation3] sm:$0xff] %vm3053, %v3039
      %3055 = vst.msk [vmem:[#allocation3 + $0x10] sm:$0xff] %vm3053, %v3041
      %3056 = vst.msk [vmem:[#allocation3 + $0x20] sm:$0xff] %vm3053, %v3043
      %3057 = vst.msk [vmem:[#allocation3 + $0x30] sm:$0xff] %vm3053, %v3045
      %3058 = vst.msk [vmem:[#allocation3 + $0x40] sm:$0xff] %vm3053, %v3047
      %v3059 = vld [vmem:[%s665 + $0x4] sm:$0xe]
      %v3060 = vld [vmem:[%s665 + $0x8] sm:$0xf]
      %v3061 = vld [vmem:[%s665 + $0xc] sm:$0xf]
      %v3062 = vld [vmem:[%s665 + $0x10] sm:$0xf]
      %v3063 = vld [vmem:[%s665 + $0x14] sm:$0xf]
      %v3064 = vld [vmem:[%s665 + $0x18] sm:$0xf]
      %v3065 = vld [vmem:[%s665 + $0x1c] sm:$0xf]
      %v3066 = vld [vmem:[%s665 + $0x20] sm:$0xf]
      %v3067 = vld [vmem:[%s665 + $0x24] sm:$0xf]
      %v3068 = vld [vmem:[%s665 + $0x28] sm:$0xf]
      %v3069 = vld [vmem:[%s665 + $0x2c] sm:$0x1]
      %v3081 = vunpack.c.l.b16 %v3059
      %v3082 = vunpack.c.l.b16 %v3060
      %v3083 = vunpack.c.l.b16 %v3061
      %v3084 = vunpack.c.l.b16 %v3062
      %v3085 = vunpack.c.l.b16 %v3063
      %v3086 = vunpack.c.l.b16 %v3064
      %v3087 = vunpack.c.l.b16 %v3065
      %v3088 = vunpack.c.l.b16 %v3066
      %v3089 = vunpack.c.l.b16 %v3067
      %v3090 = vunpack.c.l.b16 %v3068
      %v3091 = vunpack.c.l.b16 %v3069
      %v3092 = vpack.c.b16 %v3082, %v3081
      %v3093 = vpack.c.b16 %v3084, %v3083
      %v3094 = vpack.c.b16 %v3086, %v3085
      %v3095 = vpack.c.b16 %v3088, %v3087
      %v3096 = vpack.c.b16 %v3090, %v3089
      %v3097 = vpack.c.b16 %v3091, %v3091
      %v3098 = vrot.slane %v3092, 1
      %v3099 = vrot.slane %v3093, 1
      %v3100 = vsel %vm2194, %v3098, %v3099
      %v3101 = vrot.slane %v3094, 1
      %v3102 = vsel %vm2194, %v3099, %v3101
      %v3103 = vrot.slane %v3095, 1
      %v3104 = vsel %vm2194, %v3101, %v3103
      %v3105 = vrot.slane %v3096, 1
      %v3106 = vsel %vm2194, %v3103, %v3105
      %v3107 = vrot.slane %v3097, 1
      %v3108 = vsel %vm2194, %v3105, %v3107
      %3109 = vrot.lane.b32.xlu0 %v3100, 120
      %v3110 = vpop.permute.xlu0 %3109
      %3111 = vrot.lane.b32.xlu0 %v3102, 120
      %v3112 = vpop.permute.xlu0 %3111
      %3113 = vrot.lane.b32.xlu0 %v3104, 120
      %v3114 = vpop.permute.xlu0 %3113
      %3115 = vrot.lane.b32.xlu0 %v3106, 120
      %v3116 = vpop.permute.xlu0 %3115
      %3117 = vrot.lane.b32.xlu0 %v3108, 120
      %v3118 = vpop.permute.xlu0 %3117
      %vm3124 = vcmask 1048512
      %3125 = vst.msk [vmem:[#allocation3] sm:$0xff] %vm3124, %v3110
      %3126 = vst.msk [vmem:[#allocation3 + $0x10] sm:$0xff] %vm3124, %v3112
      %3127 = vst.msk [vmem:[#allocation3 + $0x20] sm:$0xff] %vm3124, %v3114
      %3128 = vst.msk [vmem:[#allocation3 + $0x30] sm:$0xff] %vm3124, %v3116
      %3129 = vst.msk [vmem:[#allocation3 + $0x40] sm:$0xff] %vm3124, %v3118
      %v3130 = vld [vmem:[%s676 + $0x4] sm:$0xe]
      %v3131 = vld [vmem:[%s676 + $0x8] sm:$0xf]
      %v3132 = vld [vmem:[%s676 + $0xc] sm:$0xf]
      %v3133 = vld [vmem:[%s676 + $0x10] sm:$0xf]
      %v3134 = vld [vmem:[%s676 + $0x14] sm:$0xf]
      %v3135 = vld [vmem:[%s676 + $0x18] sm:$0xf]
      %v3136 = vld [vmem:[%s676 + $0x1c] sm:$0xf]
      %v3137 = vld [vmem:[%s676 + $0x20] sm:$0xf]
      %v3138 = vld [vmem:[%s676 + $0x24] sm:$0xf]
      %v3139 = vld [vmem:[%s676 + $0x28] sm:$0xf]
      %v3140 = vld [vmem:[%s676 + $0x2c] sm:$0x1]
      %v3152 = vunpack.c.l.b16 %v3130
      %v3153 = vunpack.c.l.b16 %v3131
      %v3154 = vunpack.c.l.b16 %v3132
      %v3155 = vunpack.c.l.b16 %v3133
      %v3156 = vunpack.c.l.b16 %v3134
      %v3157 = vunpack.c.l.b16 %v3135
      %v3158 = vunpack.c.l.b16 %v3136
      %v3159 = vunpack.c.l.b16 %v3137
      %v3160 = vunpack.c.l.b16 %v3138
      %v3161 = vunpack.c.l.b16 %v3139
      %v3162 = vunpack.c.l.b16 %v3140
      %v3163 = vpack.c.b16 %v3153, %v3152
      %v3164 = vpack.c.b16 %v3155, %v3154
      %v3165 = vpack.c.b16 %v3157, %v3156
      %v3166 = vpack.c.b16 %v3159, %v3158
      %v3167 = vpack.c.b16 %v3161, %v3160
      %v3168 = vpack.c.b16 %v3162, %v3162
      %v3169 = vrot.slane %v3163, 1
      %v3170 = vrot.slane %v3164, 1
      %v3171 = vsel %vm2194, %v3169, %v3170
      %v3172 = vrot.slane %v3165, 1
      %v3173 = vsel %vm2194, %v3170, %v3172
      %v3174 = vrot.slane %v3166, 1
      %v3175 = vsel %vm2194, %v3172, %v3174
      %v3176 = vrot.slane %v3167, 1
      %v3177 = vsel %vm2194, %v3174, %v3176
      %v3178 = vrot.slane %v3168, 1
      %v3179 = vsel %vm2194, %v3176, %v3178
      %3185 = vst.msk [vmem:[#allocation3 + $0x8] sm:$0xff] %vm1884, %v3171
      %3186 = vst.msk [vmem:[#allocation3 + $0x18] sm:$0xff] %vm1884, %v3173
      %3187 = vst.msk [vmem:[#allocation3 + $0x28] sm:$0xff] %vm1884, %v3175
      %3188 = vst.msk [vmem:[#allocation3 + $0x38] sm:$0xff] %vm1884, %v3177
      %3189 = vst.msk [vmem:[#allocation3 + $0x48] sm:$0xff] %vm1884, %v3179
      %v3190 = vld [vmem:[%s665 + $0x4] sm:$0xe]
      %v3191 = vld [vmem:[%s665 + $0x8] sm:$0xf]
      %v3192 = vld [vmem:[%s665 + $0xc] sm:$0xf]
      %v3193 = vld [vmem:[%s665 + $0x10] sm:$0xf]
      %v3194 = vld [vmem:[%s665 + $0x14] sm:$0xf]
      %v3195 = vld [vmem:[%s665 + $0x18] sm:$0xf]
      %v3196 = vld [vmem:[%s665 + $0x1c] sm:$0xf]
      %v3197 = vld [vmem:[%s665 + $0x20] sm:$0xf]
      %v3198 = vld [vmem:[%s665 + $0x24] sm:$0xf]
      %v3199 = vld [vmem:[%s665 + $0x28] sm:$0xf]
      %v3200 = vld [vmem:[%s665 + $0x2c] sm:$0x3]
      %v3212 = vunpack.c.l.b16 %v3190
      %v3213 = vunpack.c.l.b16 %v3191
      %v3214 = vunpack.c.l.b16 %v3192
      %v3215 = vunpack.c.l.b16 %v3193
      %v3216 = vunpack.c.l.b16 %v3194
      %v3217 = vunpack.c.l.b16 %v3195
      %v3218 = vunpack.c.l.b16 %v3196
      %v3219 = vunpack.c.l.b16 %v3197
      %v3220 = vunpack.c.l.b16 %v3198
      %v3221 = vunpack.c.l.b16 %v3199
      %v3222 = vunpack.c.l.b16 %v3200
      %v3223 = vpack.c.b16 %v3213, %v3212
      %v3224 = vpack.c.b16 %v3215, %v3214
      %v3225 = vpack.c.b16 %v3217, %v3216
      %v3226 = vpack.c.b16 %v3219, %v3218
      %v3227 = vpack.c.b16 %v3221, %v3220
      %v3228 = vpack.c.b16 %v3222, %v3222
      %v3230 = vshrl.u32 %v3223, 16
      %v3232 = vrot.slane %v3230, 1
      %v3233 = vshll.u32 %v3223, 16
      %v3235 = vrot.slane %v3233, 2
      %v3236 = vor.u32 %v3232, %v3235
      %v3238 = vshrl.u32 %v3224, 16
      %v3240 = vrot.slane %v3238, 1
      %v3241 = vshll.u32 %v3224, 16
      %v3243 = vrot.slane %v3241, 2
      %v3244 = vor.u32 %v3240, %v3243
      %v3245 = vsel %vm2799, %v3236, %v3244
      %v3247 = vshrl.u32 %v3225, 16
      %v3249 = vrot.slane %v3247, 1
      %v3250 = vshll.u32 %v3225, 16
      %v3252 = vrot.slane %v3250, 2
      %v3253 = vor.u32 %v3249, %v3252
      %v3254 = vsel %vm2799, %v3244, %v3253
      %v3256 = vshrl.u32 %v3226, 16
      %v3258 = vrot.slane %v3256, 1
      %v3259 = vshll.u32 %v3226, 16
      %v3261 = vrot.slane %v3259, 2
      %v3262 = vor.u32 %v3258, %v3261
      %v3263 = vsel %vm2799, %v3253, %v3262
      %v3265 = vshrl.u32 %v3227, 16
      %v3267 = vrot.slane %v3265, 1
      %v3268 = vshll.u32 %v3227, 16
      %v3270 = vrot.slane %v3268, 2
      %v3271 = vor.u32 %v3267, %v3270
      %v3272 = vsel %vm2799, %v3262, %v3271
      %v3274 = vshrl.u32 %v3228, 16
      %v3276 = vrot.slane %v3274, 1
      %v3277 = vshll.u32 %v3228, 16
      %v3279 = vrot.slane %v3277, 2
      %v3280 = vor.u32 %v3276, %v3279
      %v3281 = vsel %vm2799, %v3271, %v3280
      %3282 = vrot.lane.b32.xlu0 %v3245, 8
      %v3283 = vpop.permute.xlu0 %3282
      %3284 = vrot.lane.b32.xlu0 %v3254, 8
      %v3285 = vpop.permute.xlu0 %3284
      %3286 = vrot.lane.b32.xlu0 %v3263, 8
      %v3287 = vpop.permute.xlu0 %3286
      %3288 = vrot.lane.b32.xlu0 %v3272, 8
      %v3289 = vpop.permute.xlu0 %3288
      %3290 = vrot.lane.b32.xlu0 %v3281, 8
      %v3291 = vpop.permute.xlu0 %3290
      %3297 = vst.msk [vmem:[#allocation3 + $0x8] sm:$0xff] %vm1940, %v3283
      %3298 = vst.msk [vmem:[#allocation3 + $0x18] sm:$0xff] %vm1940, %v3285
      %3299 = vst.msk [vmem:[#allocation3 + $0x28] sm:$0xff] %vm1940, %v3287
      %3300 = vst.msk [vmem:[#allocation3 + $0x38] sm:$0xff] %vm1940, %v3289
      %3301 = vst.msk [vmem:[#allocation3 + $0x48] sm:$0xff] %vm1940, %v3291
      %v3302 = vld [vmem:[%s676 + $0x4] sm:$0xe]
      %v3303 = vld [vmem:[%s676 + $0x8] sm:$0xf]
      %v3304 = vld [vmem:[%s676 + $0xc] sm:$0xf]
      %v3305 = vld [vmem:[%s676 + $0x10] sm:$0xf]
      %v3306 = vld [vmem:[%s676 + $0x14] sm:$0xf]
      %v3307 = vld [vmem:[%s676 + $0x18] sm:$0xf]
      %v3308 = vld [vmem:[%s676 + $0x1c] sm:$0xf]
      %v3309 = vld [vmem:[%s676 + $0x20] sm:$0xf]
      %v3310 = vld [vmem:[%s676 + $0x24] sm:$0xf]
      %v3311 = vld [vmem:[%s676 + $0x28] sm:$0xf]
      %v3312 = vld [vmem:[%s676 + $0x2c] sm:$0x3]
      %v3324 = vunpack.c.l.b16 %v3302
      %v3325 = vunpack.c.l.b16 %v3303
      %v3326 = vunpack.c.l.b16 %v3304
      %v3327 = vunpack.c.l.b16 %v3305
      %v3328 = vunpack.c.l.b16 %v3306
      %v3329 = vunpack.c.l.b16 %v3307
      %v3330 = vunpack.c.l.b16 %v3308
      %v3331 = vunpack.c.l.b16 %v3309
      %v3332 = vunpack.c.l.b16 %v3310
      %v3333 = vunpack.c.l.b16 %v3311
      %v3334 = vunpack.c.l.b16 %v3312
      %v3335 = vpack.c.b16 %v3325, %v3324
      %v3336 = vpack.c.b16 %v3327, %v3326
      %v3337 = vpack.c.b16 %v3329, %v3328
      %v3338 = vpack.c.b16 %v3331, %v3330
      %v3339 = vpack.c.b16 %v3333, %v3332
      %v3340 = vpack.c.b16 %v3334, %v3334
      %v3342 = vshrl.u32 %v3335, 16
      %v3344 = vrot.slane %v3342, 1
      %v3345 = vshll.u32 %v3335, 16
      %v3347 = vrot.slane %v3345, 2
      %v3348 = vor.u32 %v3344, %v3347
      %v3350 = vshrl.u32 %v3336, 16
      %v3352 = vrot.slane %v3350, 1
      %v3353 = vshll.u32 %v3336, 16
      %v3355 = vrot.slane %v3353, 2
      %v3356 = vor.u32 %v3352, %v3355
      %v3357 = vsel %vm2799, %v3348, %v3356
      %v3359 = vshrl.u32 %v3337, 16
      %v3361 = vrot.slane %v3359, 1
      %v3362 = vshll.u32 %v3337, 16
      %v3364 = vrot.slane %v3362, 2
      %v3365 = vor.u32 %v3361, %v3364
      %v3366 = vsel %vm2799, %v3356, %v3365
      %v3368 = vshrl.u32 %v3338, 16
      %v3370 = vrot.slane %v3368, 1
      %v3371 = vshll.u32 %v3338, 16
      %v3373 = vrot.slane %v3371, 2
      %v3374 = vor.u32 %v3370, %v3373
      %v3375 = vsel %vm2799, %v3365, %v3374
      %v3377 = vshrl.u32 %v3339, 16
      %v3379 = vrot.slane %v3377, 1
      %v3380 = vshll.u32 %v3339, 16
      %v3382 = vrot.slane %v3380, 2
      %v3383 = vor.u32 %v3379, %v3382
      %v3384 = vsel %vm2799, %v3374, %v3383
      %v3386 = vshrl.u32 %v3340, 16
      %v3388 = vrot.slane %v3386, 1
      %v3389 = vshll.u32 %v3340, 16
      %v3391 = vrot.slane %v3389, 2
      %v3392 = vor.u32 %v3388, %v3391
      %v3393 = vsel %vm2799, %v3383, %v3392
      %3394 = vrot.lane.b32.xlu0 %v3357, 16
      %v3395 = vpop.permute.xlu0 %3394
      %3396 = vrot.lane.b32.xlu0 %v3366, 16
      %v3397 = vpop.permute.xlu0 %3396
      %3398 = vrot.lane.b32.xlu0 %v3375, 16
      %v3399 = vpop.permute.xlu0 %3398
      %3400 = vrot.lane.b32.xlu0 %v3384, 16
      %v3401 = vpop.permute.xlu0 %3400
      %3402 = vrot.lane.b32.xlu0 %v3393, 16
      %v3403 = vpop.permute.xlu0 %3402
      %3409 = vst.msk [vmem:[#allocation3 + $0x8] sm:$0xff] %vm2045, %v3395
      %3410 = vst.msk [vmem:[#allocation3 + $0x18] sm:$0xff] %vm2045, %v3397
      %3411 = vst.msk [vmem:[#allocation3 + $0x28] sm:$0xff] %vm2045, %v3399
      %3412 = vst.msk [vmem:[#allocation3 + $0x38] sm:$0xff] %vm2045, %v3401
      %3413 = vst.msk [vmem:[#allocation3 + $0x48] sm:$0xff] %vm2045, %v3403
      %v3414 = vld [vmem:[%s665 + $0x4] sm:$0xc]
      %v3415 = vld [vmem:[%s665 + $0x8] sm:$0xf]
      %v3416 = vld [vmem:[%s665 + $0xc] sm:$0xf]
      %v3417 = vld [vmem:[%s665 + $0x10] sm:$0xf]
      %v3418 = vld [vmem:[%s665 + $0x14] sm:$0xf]
      %v3419 = vld [vmem:[%s665 + $0x18] sm:$0xf]
      %v3420 = vld [vmem:[%s665 + $0x1c] sm:$0xf]
      %v3421 = vld [vmem:[%s665 + $0x20] sm:$0xf]
      %v3422 = vld [vmem:[%s665 + $0x24] sm:$0xf]
      %v3423 = vld [vmem:[%s665 + $0x28] sm:$0xf]
      %v3424 = vld [vmem:[%s665 + $0x2c] sm:$0x3]
      %v3436 = vunpack.c.l.b16 %v3414
      %v3437 = vunpack.c.l.b16 %v3415
      %v3438 = vunpack.c.l.b16 %v3416
      %v3439 = vunpack.c.l.b16 %v3417
      %v3440 = vunpack.c.l.b16 %v3418
      %v3441 = vunpack.c.l.b16 %v3419
      %v3442 = vunpack.c.l.b16 %v3420
      %v3443 = vunpack.c.l.b16 %v3421
      %v3444 = vunpack.c.l.b16 %v3422
      %v3445 = vunpack.c.l.b16 %v3423
      %v3446 = vunpack.c.l.b16 %v3424
      %v3447 = vpack.c.b16 %v3437, %v3436
      %v3448 = vpack.c.b16 %v3439, %v3438
      %v3449 = vpack.c.b16 %v3441, %v3440
      %v3450 = vpack.c.b16 %v3443, %v3442
      %v3451 = vpack.c.b16 %v3445, %v3444
      %v3452 = vpack.c.b16 %v3446, %v3446
      %v3453 = vrot.slane %v3447, 2
      %v3454 = vrot.slane %v3448, 2
      %v3455 = vsel %vm3026, %v3453, %v3454
      %v3456 = vrot.slane %v3449, 2
      %v3457 = vsel %vm3026, %v3454, %v3456
      %v3458 = vrot.slane %v3450, 2
      %v3459 = vsel %vm3026, %v3456, %v3458
      %v3460 = vrot.slane %v3451, 2
      %v3461 = vsel %vm3026, %v3458, %v3460
      %v3462 = vrot.slane %v3452, 2
      %v3463 = vsel %vm3026, %v3460, %v3462
      %3464 = vrot.lane.b32.xlu0 %v3455, 24
      %v3465 = vpop.permute.xlu0 %3464
      %3466 = vrot.lane.b32.xlu0 %v3457, 24
      %v3467 = vpop.permute.xlu0 %3466
      %3468 = vrot.lane.b32.xlu0 %v3459, 24
      %v3469 = vpop.permute.xlu0 %3468
      %3470 = vrot.lane.b32.xlu0 %v3461, 24
      %v3471 = vpop.permute.xlu0 %3470
      %3472 = vrot.lane.b32.xlu0 %v3463, 24
      %v3473 = vpop.permute.xlu0 %3472
      %3479 = vst.msk [vmem:[#allocation3 + $0x8] sm:$0xff] %vm2149, %v3465
      %3480 = vst.msk [vmem:[#allocation3 + $0x18] sm:$0xff] %vm2149, %v3467
      %3481 = vst.msk [vmem:[#allocation3 + $0x28] sm:$0xff] %vm2149, %v3469
      %3482 = vst.msk [vmem:[#allocation3 + $0x38] sm:$0xff] %vm2149, %v3471
      %3483 = vst.msk [vmem:[#allocation3 + $0x48] sm:$0xff] %vm2149, %v3473
      %v3484 = vld [vmem:[#allocation2 + $0x8] sm:$0xc]
      %v3485 = vld [vmem:[#allocation2 + $0xc] sm:$0xf]
      %v3486 = vld [vmem:[#allocation2 + $0x10] sm:$0xf]
      %v3487 = vld [vmem:[#allocation2 + $0x14] sm:$0xf]
      %v3488 = vld [vmem:[#allocation2 + $0x18] sm:$0xf]
      %v3489 = vld [vmem:[#allocation2 + $0x1c] sm:$0xf]
      %v3490 = vld [vmem:[#allocation2 + $0x20] sm:$0xf]
      %v3491 = vld [vmem:[#allocation2 + $0x24] sm:$0xf]
      %v3492 = vld [vmem:[#allocation2 + $0x28] sm:$0xf]
      %v3493 = vld [vmem:[#allocation2 + $0x2c] sm:$0xf]
      %v3494 = vld [vmem:[#allocation2 + $0x30] sm:$0x3]
      %v3506 = vunpack.c.l.b16 %v3484
      %v3507 = vunpack.c.l.b16 %v3485
      %v3508 = vunpack.c.l.b16 %v3486
      %v3509 = vunpack.c.l.b16 %v3487
      %v3510 = vunpack.c.l.b16 %v3488
      %v3511 = vunpack.c.l.b16 %v3489
      %v3512 = vunpack.c.l.b16 %v3490
      %v3513 = vunpack.c.l.b16 %v3491
      %v3514 = vunpack.c.l.b16 %v3492
      %v3515 = vunpack.c.l.b16 %v3493
      %v3516 = vunpack.c.l.b16 %v3494
      %v3517 = vpack.c.b16 %v3507, %v3506
      %v3518 = vpack.c.b16 %v3509, %v3508
      %v3519 = vpack.c.b16 %v3511, %v3510
      %v3520 = vpack.c.b16 %v3513, %v3512
      %v3521 = vpack.c.b16 %v3515, %v3514
      %v3522 = vpack.c.b16 %v3516, %v3516
      %v3523 = vrot.slane %v3517, 2
      %v3524 = vrot.slane %v3518, 2
      %v3525 = vsel %vm3026, %v3523, %v3524
      %v3526 = vrot.slane %v3519, 2
      %v3527 = vsel %vm3026, %v3524, %v3526
      %v3528 = vrot.slane %v3520, 2
      %v3529 = vsel %vm3026, %v3526, %v3528
      %v3530 = vrot.slane %v3521, 2
      %v3531 = vsel %vm3026, %v3528, %v3530
      %v3532 = vrot.slane %v3522, 2
      %v3533 = vsel %vm3026, %v3530, %v3532
      %3534 = vrot.lane.b32.xlu0 %v3525, 32
      %v3535 = vpop.permute.xlu0 %3534
      %3536 = vrot.lane.b32.xlu0 %v3527, 32
      %v3537 = vpop.permute.xlu0 %3536
      %3538 = vrot.lane.b32.xlu0 %v3529, 32
      %v3539 = vpop.permute.xlu0 %3538
      %3540 = vrot.lane.b32.xlu0 %v3531, 32
      %v3541 = vpop.permute.xlu0 %3540
      %3542 = vrot.lane.b32.xlu0 %v3533, 32
      %v3543 = vpop.permute.xlu0 %3542
      %3549 = vst.msk [vmem:[#allocation3 + $0x8] sm:$0xff] %vm2221, %v3535
      %3550 = vst.msk [vmem:[#allocation3 + $0x18] sm:$0xff] %vm2221, %v3537
      %3551 = vst.msk [vmem:[#allocation3 + $0x28] sm:$0xff] %vm2221, %v3539
      %3552 = vst.msk [vmem:[#allocation3 + $0x38] sm:$0xff] %vm2221, %v3541
      %3553 = vst.msk [vmem:[#allocation3 + $0x48] sm:$0xff] %vm2221, %v3543
      %v3554 = vld [vmem:[%s594 + $0x8] sm:$0xc]
      %v3555 = vld [vmem:[%s594 + $0xc] sm:$0xf]
      %v3556 = vld [vmem:[%s594 + $0x10] sm:$0xf]
      %v3557 = vld [vmem:[%s594 + $0x14] sm:$0xf]
      %v3558 = vld [vmem:[%s594 + $0x18] sm:$0xf]
      %v3559 = vld [vmem:[%s594 + $0x1c] sm:$0xf]
      %v3560 = vld [vmem:[%s594 + $0x20] sm:$0xf]
      %v3561 = vld [vmem:[%s594 + $0x24] sm:$0xf]
      %v3562 = vld [vmem:[%s594 + $0x28] sm:$0xf]
      %v3563 = vld [vmem:[%s594 + $0x2c] sm:$0xf]
      %v3564 = vld [vmem:[%s594 + $0x30] sm:$0x3]
      %v3576 = vunpack.c.l.b16 %v3554
      %v3577 = vunpack.c.l.b16 %v3555
      %v3578 = vunpack.c.l.b16 %v3556
      %v3579 = vunpack.c.l.b16 %v3557
      %v3580 = vunpack.c.l.b16 %v3558
      %v3581 = vunpack.c.l.b16 %v3559
      %v3582 = vunpack.c.l.b16 %v3560
      %v3583 = vunpack.c.l.b16 %v3561
      %v3584 = vunpack.c.l.b16 %v3562
      %v3585 = vunpack.c.l.b16 %v3563
      %v3586 = vunpack.c.l.b16 %v3564
      %v3587 = vpack.c.b16 %v3577, %v3576
      %v3588 = vpack.c.b16 %v3579, %v3578
      %v3589 = vpack.c.b16 %v3581, %v3580
      %v3590 = vpack.c.b16 %v3583, %v3582
      %v3591 = vpack.c.b16 %v3585, %v3584
      %v3592 = vpack.c.b16 %v3586, %v3586
      %v3593 = vrot.slane %v3587, 2
      %v3594 = vrot.slane %v3588, 2
      %v3595 = vsel %vm3026, %v3593, %v3594
      %v3596 = vrot.slane %v3589, 2
      %v3597 = vsel %vm3026, %v3594, %v3596
      %v3598 = vrot.slane %v3590, 2
      %v3599 = vsel %vm3026, %v3596, %v3598
      %v3600 = vrot.slane %v3591, 2
      %v3601 = vsel %vm3026, %v3598, %v3600
      %v3602 = vrot.slane %v3592, 2
      %v3603 = vsel %vm3026, %v3600, %v3602
      %3604 = vrot.lane.b32.xlu0 %v3595, 40
      %v3605 = vpop.permute.xlu0 %3604
      %3606 = vrot.lane.b32.xlu0 %v3597, 40
      %v3607 = vpop.permute.xlu0 %3606
      %3608 = vrot.lane.b32.xlu0 %v3599, 40
      %v3609 = vpop.permute.xlu0 %3608
      %3610 = vrot.lane.b32.xlu0 %v3601, 40
      %v3611 = vpop.permute.xlu0 %3610
      %3612 = vrot.lane.b32.xlu0 %v3603, 40
      %v3613 = vpop.permute.xlu0 %3612
      %3619 = vst.msk [vmem:[#allocation3 + $0x8] sm:$0xff] %vm2277, %v3605
      %3620 = vst.msk [vmem:[#allocation3 + $0x18] sm:$0xff] %vm2277, %v3607
      %3621 = vst.msk [vmem:[#allocation3 + $0x28] sm:$0xff] %vm2277, %v3609
      %3622 = vst.msk [vmem:[#allocation3 + $0x38] sm:$0xff] %vm2277, %v3611
      %3623 = vst.msk [vmem:[#allocation3 + $0x48] sm:$0xff] %vm2277, %v3613
      %v3624 = vld [vmem:[#allocation2 + $0x8] sm:$0xc]
      %v3625 = vld [vmem:[#allocation2 + $0xc] sm:$0xf]
      %v3626 = vld [vmem:[#allocation2 + $0x10] sm:$0xf]
      %v3627 = vld [vmem:[#allocation2 + $0x14] sm:$0xf]
      %v3628 = vld [vmem:[#allocation2 + $0x18] sm:$0xf]
      %v3629 = vld [vmem:[#allocation2 + $0x1c] sm:$0xf]
      %v3630 = vld [vmem:[#allocation2 + $0x20] sm:$0xf]
      %v3631 = vld [vmem:[#allocation2 + $0x24] sm:$0xf]
      %v3632 = vld [vmem:[#allocation2 + $0x28] sm:$0xf]
      %v3633 = vld [vmem:[#allocation2 + $0x2c] sm:$0xf]
      %v3634 = vld [vmem:[#allocation2 + $0x30] sm:$0x7]
      %v3646 = vunpack.c.l.b16 %v3624
      %v3647 = vunpack.c.l.b16 %v3625
      %v3648 = vunpack.c.l.b16 %v3626
      %v3649 = vunpack.c.l.b16 %v3627
      %v3650 = vunpack.c.l.b16 %v3628
      %v3651 = vunpack.c.l.b16 %v3629
      %v3652 = vunpack.c.l.b16 %v3630
      %v3653 = vunpack.c.l.b16 %v3631
      %v3654 = vunpack.c.l.b16 %v3632
      %v3655 = vunpack.c.l.b16 %v3633
      %v3656 = vunpack.c.l.b16 %v3634
      %v3657 = vpack.c.b16 %v3647, %v3646
      %v3658 = vpack.c.b16 %v3649, %v3648
      %v3659 = vpack.c.b16 %v3651, %v3650
      %v3660 = vpack.c.b16 %v3653, %v3652
      %v3661 = vpack.c.b16 %v3655, %v3654
      %v3662 = vpack.c.b16 %v3656, %v3656
      %vm3663 = vsmask.f32 5376
      %v3665 = vshrl.u32 %v3657, 16
      %v3667 = vrot.slane %v3665, 2
      %v3668 = vshll.u32 %v3657, 16
      %v3670 = vrot.slane %v3668, 3
      %v3671 = vor.u32 %v3667, %v3670
      %v3673 = vshrl.u32 %v3658, 16
      %v3675 = vrot.slane %v3673, 2
      %v3676 = vshll.u32 %v3658, 16
      %v3678 = vrot.slane %v3676, 3
      %v3679 = vor.u32 %v3675, %v3678
      %v3680 = vsel %vm3663, %v3671, %v3679
      %v3682 = vshrl.u32 %v3659, 16
      %v3684 = vrot.slane %v3682, 2
      %v3685 = vshll.u32 %v3659, 16
      %v3687 = vrot.slane %v3685, 3
      %v3688 = vor.u32 %v3684, %v3687
      %v3689 = vsel %vm3663, %v3679, %v3688
      %v3691 = vshrl.u32 %v3660, 16
      %v3693 = vrot.slane %v3691, 2
      %v3694 = vshll.u32 %v3660, 16
      %v3696 = vrot.slane %v3694, 3
      %v3697 = vor.u32 %v3693, %v3696
      %v3698 = vsel %vm3663, %v3688, %v3697
      %v3700 = vshrl.u32 %v3661, 16
      %v3702 = vrot.slane %v3700, 2
      %v3703 = vshll.u32 %v3661, 16
      %v3705 = vrot.slane %v3703, 3
      %v3706 = vor.u32 %v3702, %v3705
      %v3707 = vsel %vm3663, %v3697, %v3706
      %v3709 = vshrl.u32 %v3662, 16
      %v3711 = vrot.slane %v3709, 2
      %v3712 = vshll.u32 %v3662, 16
      %v3714 = vrot.slane %v3712, 3
      %v3715 = vor.u32 %v3711, %v3714
      %v3716 = vsel %vm3663, %v3706, %v3715
      %3717 = vrot.lane.b32.xlu0 %v3680, 48
      %v3718 = vpop.permute.xlu0 %3717
      %3719 = vrot.lane.b32.xlu0 %v3689, 48
      %v3720 = vpop.permute.xlu0 %3719
      %3721 = vrot.lane.b32.xlu0 %v3698, 48
      %v3722 = vpop.permute.xlu0 %3721
      %3723 = vrot.lane.b32.xlu0 %v3707, 48
      %v3724 = vpop.permute.xlu0 %3723
      %3725 = vrot.lane.b32.xlu0 %v3716, 48
      %v3726 = vpop.permute.xlu0 %3725
      %3732 = vst.msk [vmem:[#allocation3 + $0x8] sm:$0xff] %vm2333, %v3718
      %3733 = vst.msk [vmem:[#allocation3 + $0x18] sm:$0xff] %vm2333, %v3720
      %3734 = vst.msk [vmem:[#allocation3 + $0x28] sm:$0xff] %vm2333, %v3722
      %3735 = vst.msk [vmem:[#allocation3 + $0x38] sm:$0xff] %vm2333, %v3724
      %3736 = vst.msk [vmem:[#allocation3 + $0x48] sm:$0xff] %vm2333, %v3726
      %v3737 = vld [vmem:[%s594 + $0x8] sm:$0xc]
      %v3738 = vld [vmem:[%s594 + $0xc] sm:$0xf]
      %v3739 = vld [vmem:[%s594 + $0x10] sm:$0xf]
      %v3740 = vld [vmem:[%s594 + $0x14] sm:$0xf]
      %v3741 = vld [vmem:[%s594 + $0x18] sm:$0xf]
      %v3742 = vld [vmem:[%s594 + $0x1c] sm:$0xf]
      %v3743 = vld [vmem:[%s594 + $0x20] sm:$0xf]
      %v3744 = vld [vmem:[%s594 + $0x24] sm:$0xf]
      %v3745 = vld [vmem:[%s594 + $0x28] sm:$0xf]
      %v3746 = vld [vmem:[%s594 + $0x2c] sm:$0xf]
      %v3747 = vld [vmem:[%s594 + $0x30] sm:$0x7]
      %v3759 = vunpack.c.l.b16 %v3737
      %v3760 = vunpack.c.l.b16 %v3738
      %v3761 = vunpack.c.l.b16 %v3739
      %v3762 = vunpack.c.l.b16 %v3740
      %v3763 = vunpack.c.l.b16 %v3741
      %v3764 = vunpack.c.l.b16 %v3742
      %v3765 = vunpack.c.l.b16 %v3743
      %v3766 = vunpack.c.l.b16 %v3744
      %v3767 = vunpack.c.l.b16 %v3745
      %v3768 = vunpack.c.l.b16 %v3746
      %v3769 = vunpack.c.l.b16 %v3747
      %v3770 = vpack.c.b16 %v3760, %v3759
      %v3771 = vpack.c.b16 %v3762, %v3761
      %v3772 = vpack.c.b16 %v3764, %v3763
      %v3773 = vpack.c.b16 %v3766, %v3765
      %v3774 = vpack.c.b16 %v3768, %v3767
      %v3775 = vpack.c.b16 %v3769, %v3769
      %v3777 = vshrl.u32 %v3770, 16
      %v3779 = vrot.slane %v3777, 2
      %v3780 = vshll.u32 %v3770, 16
      %v3782 = vrot.slane %v3780, 3
      %v3783 = vor.u32 %v3779, %v3782
      %v3785 = vshrl.u32 %v3771, 16
      %v3787 = vrot.slane %v3785, 2
      %v3788 = vshll.u32 %v3771, 16
      %v3790 = vrot.slane %v3788, 3
      %v3791 = vor.u32 %v3787, %v3790
      %v3792 = vsel %vm3663, %v3783, %v3791
      %v3794 = vshrl.u32 %v3772, 16
      %v3796 = vrot.slane %v3794, 2
      %v3797 = vshll.u32 %v3772, 16
      %v3799 = vrot.slane %v3797, 3
      %v3800 = vor.u32 %v3796, %v3799
      %v3801 = vsel %vm3663, %v3791, %v3800
      %v3803 = vshrl.u32 %v3773, 16
      %v3805 = vrot.slane %v3803, 2
      %v3806 = vshll.u32 %v3773, 16
      %v3808 = vrot.slane %v3806, 3
      %v3809 = vor.u32 %v3805, %v3808
      %v3810 = vsel %vm3663, %v3800, %v3809
      %v3812 = vshrl.u32 %v3774, 16
      %v3814 = vrot.slane %v3812, 2
      %v3815 = vshll.u32 %v3774, 16
      %v3817 = vrot.slane %v3815, 3
      %v3818 = vor.u32 %v3814, %v3817
      %v3819 = vsel %vm3663, %v3809, %v3818
      %v3821 = vshrl.u32 %v3775, 16
      %v3823 = vrot.slane %v3821, 2
      %v3824 = vshll.u32 %v3775, 16
      %v3826 = vrot.slane %v3824, 3
      %v3827 = vor.u32 %v3823, %v3826
      %v3828 = vsel %vm3663, %v3818, %v3827
      %3829 = vrot.lane.b32.xlu0 %v3792, 56
      %v3830 = vpop.permute.xlu0 %3829
      %3831 = vrot.lane.b32.xlu0 %v3801, 56
      %v3832 = vpop.permute.xlu0 %3831
      %3833 = vrot.lane.b32.xlu0 %v3810, 56
      %v3834 = vpop.permute.xlu0 %3833
      %3835 = vrot.lane.b32.xlu0 %v3819, 56
      %v3836 = vpop.permute.xlu0 %3835
      %3837 = vrot.lane.b32.xlu0 %v3828, 56
      %v3838 = vpop.permute.xlu0 %3837
      %3844 = vst.msk [vmem:[#allocation3 + $0x8] sm:$0xff] %vm2437, %v3830
      %3845 = vst.msk [vmem:[#allocation3 + $0x18] sm:$0xff] %vm2437, %v3832
      %3846 = vst.msk [vmem:[#allocation3 + $0x28] sm:$0xff] %vm2437, %v3834
      %3847 = vst.msk [vmem:[#allocation3 + $0x38] sm:$0xff] %vm2437, %v3836
      %3848 = vst.msk [vmem:[#allocation3 + $0x48] sm:$0xff] %vm2437, %v3838
      %v3849 = vld [vmem:[#allocation2 + $0x8] sm:$0x8]
      %v3850 = vld [vmem:[#allocation2 + $0xc] sm:$0xf]
      %v3851 = vld [vmem:[#allocation2 + $0x10] sm:$0xf]
      %v3852 = vld [vmem:[#allocation2 + $0x14] sm:$0xf]
      %v3853 = vld [vmem:[#allocation2 + $0x18] sm:$0xf]
      %v3854 = vld [vmem:[#allocation2 + $0x1c] sm:$0xf]
      %v3855 = vld [vmem:[#allocation2 + $0x20] sm:$0xf]
      %v3856 = vld [vmem:[#allocation2 + $0x24] sm:$0xf]
      %v3857 = vld [vmem:[#allocation2 + $0x28] sm:$0xf]
      %v3858 = vld [vmem:[#allocation2 + $0x2c] sm:$0xf]
      %v3859 = vld [vmem:[#allocation2 + $0x30] sm:$0x7]
      %v3871 = vunpack.c.l.b16 %v3849
      %v3872 = vunpack.c.l.b16 %v3850
      %v3873 = vunpack.c.l.b16 %v3851
      %v3874 = vunpack.c.l.b16 %v3852
      %v3875 = vunpack.c.l.b16 %v3853
      %v3876 = vunpack.c.l.b16 %v3854
      %v3877 = vunpack.c.l.b16 %v3855
      %v3878 = vunpack.c.l.b16 %v3856
      %v3879 = vunpack.c.l.b16 %v3857
      %v3880 = vunpack.c.l.b16 %v3858
      %v3881 = vunpack.c.l.b16 %v3859
      %v3882 = vpack.c.b16 %v3872, %v3871
      %v3883 = vpack.c.b16 %v3874, %v3873
      %v3884 = vpack.c.b16 %v3876, %v3875
      %v3885 = vpack.c.b16 %v3878, %v3877
      %v3886 = vpack.c.b16 %v3880, %v3879
      %v3887 = vpack.c.b16 %v3881, %v3881
      %vm3888 = vcmask 1044480
      %v3889 = vrot.slane %v3882, 3
      %v3890 = vrot.slane %v3883, 3
      %v3891 = vsel %vm3888, %v3889, %v3890
      %v3892 = vrot.slane %v3884, 3
      %v3893 = vsel %vm3888, %v3890, %v3892
      %v3894 = vrot.slane %v3885, 3
      %v3895 = vsel %vm3888, %v3892, %v3894
      %v3896 = vrot.slane %v3886, 3
      %v3897 = vsel %vm3888, %v3894, %v3896
      %v3898 = vrot.slane %v3887, 3
      %v3899 = vsel %vm3888, %v3896, %v3898
      %3900 = vrot.lane.b32.xlu0 %v3891, 64
      %v3901 = vpop.permute.xlu0 %3900
      %3902 = vrot.lane.b32.xlu0 %v3893, 64
      %v3903 = vpop.permute.xlu0 %3902
      %3904 = vrot.lane.b32.xlu0 %v3895, 64
      %v3905 = vpop.permute.xlu0 %3904
      %3906 = vrot.lane.b32.xlu0 %v3897, 64
      %v3907 = vpop.permute.xlu0 %3906
      %3908 = vrot.lane.b32.xlu0 %v3899, 64
      %v3909 = vpop.permute.xlu0 %3908
      %3915 = vst.msk [vmem:[#allocation3 + $0x8] sm:$0xff] %vm2541, %v3901
      %3916 = vst.msk [vmem:[#allocation3 + $0x18] sm:$0xff] %vm2541, %v3903
      %3917 = vst.msk [vmem:[#allocation3 + $0x28] sm:$0xff] %vm2541, %v3905
      %3918 = vst.msk [vmem:[#allocation3 + $0x38] sm:$0xff] %vm2541, %v3907
      %3919 = vst.msk [vmem:[#allocation3 + $0x48] sm:$0xff] %vm2541, %v3909
      %v3920 = vld [vmem:[#allocation3] sm:$0xff]
      %v3921 = vld [vmem:[#allocation3 + $0x8] sm:$0xff]
      %v3922 = vld [vmem:[#allocation3 + $0x10] sm:$0xff]
      %v3923 = vld [vmem:[#allocation3 + $0x18] sm:$0xff]
      %v3924 = vld [vmem:[#allocation3 + $0x20] sm:$0xff]
      %v3925 = vld [vmem:[#allocation3 + $0x28] sm:$0xff]
      %v3926 = vld [vmem:[#allocation3 + $0x30] sm:$0xff]
      %v3927 = vld [vmem:[#allocation3 + $0x38] sm:$0xff]
      %v3928 = vld [vmem:[#allocation3 + $0x40] sm:$0xff]
      %v3929 = vld [vmem:[#allocation3 + $0x48] sm:$0xff]
      %v3930 = vld [vmem:[%s3] sm:$0xf]
      %v3931 = vld [vmem:[%s3 + $0x4] sm:$0xf]
      %v3932 = vld [vmem:[%s3 + $0x8] sm:$0xf]
      %v3933 = vld [vmem:[%s3 + $0xc] sm:$0xf]
      %v3934 = vld [vmem:[%s3 + $0x10] sm:$0xf]
      %v3935 = vld [vmem:[%s3 + $0x14] sm:$0xf]
      %v3936 = vld [vmem:[%s3 + $0x18] sm:$0xf]
      %v3937 = vld [vmem:[%s3 + $0x1c] sm:$0xf]
      %v3938 = vld [vmem:[%s3 + $0x20] sm:$0xf]
      %v3939 = vld [vmem:[%s3 + $0x24] sm:$0xf]
      %v3940 = vld [vmem:[%s3 + $0x28] sm:$0xf]
      %v3941 = vld [vmem:[%s3 + $0x2c] sm:$0xf]
      %v3942 = vld [vmem:[%s3 + $0x30] sm:$0xf]
      %v3943 = vld [vmem:[%s3 + $0x34] sm:$0xf]
      %v3944 = vld [vmem:[%s3 + $0x38] sm:$0xf]
      %v3945 = vld [vmem:[%s3 + $0x3c] sm:$0xf]
      %v3946 = vld [vmem:[%s3 + $0x40] sm:$0xf]
      %v3947 = vld [vmem:[%s3 + $0x44] sm:$0xf]
      %v3948 = vld [vmem:[%s3 + $0x48] sm:$0xf]
      %v3949 = vld [vmem:[%s3 + $0x4c] sm:$0xf]
      %v3950 = vld [vmem:[%s3 + $0x50] sm:$0xf]
      %v3951 = vld [vmem:[%s3 + $0x54] sm:$0xf]
      %v3952 = vld [vmem:[%s3 + $0x58] sm:$0xf]
      %v3953 = vld [vmem:[%s3 + $0x5c] sm:$0xf]
      %v3954 = vld [vmem:[%s3 + $0x60] sm:$0xf]
      %v3955 = vld [vmem:[%s4] sm:$0x1]
      %v3957 = vlaneseq
      %v3958 = vshrl.u32 %v3957, 7
      %v3959 = vsub.s32 0, %v3958
      %v3960 = vrot.slane %v3955, %v3959
      %v3987 = vunpack.c.l.b16 %v3930
      %v3988 = vunpack.c.l.b16 %v3931
      %v3989 = vunpack.c.l.b16 %v3932
      %v3990 = vunpack.c.l.b16 %v3933
      %v3991 = vunpack.c.l.b16 %v3934
      %v3992 = vunpack.c.l.b16 %v3935
      %v3993 = vunpack.c.l.b16 %v3936
      %v3994 = vunpack.c.l.b16 %v3937
      %v3995 = vunpack.c.l.b16 %v3938
      %v3996 = vunpack.c.l.b16 %v3939
      %v3997 = vunpack.c.l.b16 %v3940
      %v3998 = vunpack.c.l.b16 %v3941
      %v3999 = vunpack.c.l.b16 %v3942
      %v4000 = vunpack.c.l.b16 %v3943
      %v4001 = vunpack.c.l.b16 %v3944
      %v4002 = vunpack.c.l.b16 %v3945
      %v4003 = vunpack.c.l.b16 %v3946
      %v4004 = vunpack.c.l.b16 %v3947
      %v4005 = vunpack.c.l.b16 %v3948
      %v4006 = vunpack.c.l.b16 %v3949
      %v4007 = vunpack.c.l.b16 %v3950
      %v4008 = vunpack.c.l.b16 %v3951
      %v4009 = vunpack.c.l.b16 %v3952
      %v4010 = vunpack.c.l.b16 %v3953
      %v4011 = vunpack.c.l.b16 %v3954
      %v4012 = vpack.c.b16 %v3988, %v3987
      %v4013 = vpack.c.b16 %v3990, %v3989
      %v4014 = vpack.c.b16 %v3992, %v3991
      %v4015 = vpack.c.b16 %v3994, %v3993
      %v4016 = vpack.c.b16 %v3996, %v3995
      %v4017 = vpack.c.b16 %v3998, %v3997
      %v4018 = vpack.c.b16 %v4000, %v3999
      %v4019 = vpack.c.b16 %v4002, %v4001
      %v4020 = vpack.c.b16 %v4004, %v4003
      %v4021 = vpack.c.b16 %v4006, %v4005
      %v4022 = vpack.c.b16 %v4008, %v4007
      %v4023 = vpack.c.b16 %v4010, %v4009
      %v4024 = vpack.c.b16 %v4011, %v4011
      %vm4037 = vcmask 588800
      %v4039 = vsel %vm4037, %v3921, 0
      %v4042 = vsel %vm4037, %v3923, 0
      %v4045 = vsel %vm4037, %v3925, 0
      %v4048 = vsel %vm4037, %v3927, 0
      %v4051 = vsel %vm4037, %v3929, 0
      %vm4053 = vcmask 1043456
      %v4055 = vsel %vm4053, %v4024, 0
      %4057 = vmatprep.subr.bf16.mxu0 0
      %4058 = vmatpush1.bf16.msra.mxu0 %v4012
      %4059 = vmatprep.subr.bf16.mxu0 0
      %4060 = vmatpush1.bf16.msra.mxu0 %v4013
      %4061 = vmatprep.subr.bf16.mxu0 0
      %4062 = vmatpush1.bf16.msra.mxu0 %v4014
      %4063 = vmatprep.subr.bf16.mxu0 0
      %4064 = vmatpush1.bf16.msra.mxu0 %v4015
      %4065 = vmatprep.subr.bf16.mxu0 0
      %4066 = vmatpush1.bf16.msra.mxu0 %v4016
      %4067 = vmatprep.subr.bf16.mxu0 0
      %4068 = vmatpush1.bf16.msra.mxu0 %v4017
      %4069 = vmatprep.subr.bf16.mxu0 0
      %4070 = vmatpush1.bf16.msra.mxu0 %v4018
      %4071 = vmatprep.subr.bf16.mxu0 0
      %4072 = vmatpush1.bf16.msra.mxu0 %v4019
      %4073 = vmatprep.subr.bf16.mxu0 0
      %4074 = vmatpush1.bf16.msra.mxu0 %v4020
      %4075 = vmatprep.subr.bf16.mxu0 0
      %4076 = vmatpush1.bf16.msra.mxu0 %v4021
      %4077 = vmatprep.subr.bf16.mxu0 0
      %4078 = vmatpush1.bf16.msra.mxu0 %v4022
      %4079 = vmatprep.subr.bf16.mxu0 0
      %4080 = vmatpush1.bf16.msra.mxu0 %v4023
      %4081 = vmatprep.subr.bf16.mxu0 0
      %4082 = vmatpush1.bf16.msra.mxu0 %v4055
      %4083 = vmatprep.subr.bf16.mxu0 0
      %4084 = vmatpush1.bf16.msra.mxu0 0
      %4085 = vmatprep.subr.bf16.mxu0 0
      %4086 = vmatpush1.bf16.msra.mxu0 0
      %4087 = vmatprep.subr.bf16.mxu0 0
      %4088 = vmatpush1.bf16.msra.mxu0 0
      %4089 = vmatprep.mubr.bf16.mxu0 %v4039
      %4090 = vmatmul.mubr.bf16.gmra.mrb[0].mxu0 %v3920
      %v4091 = vpop.f32.mrb[0].mxu0
      %v4092 = vadd.f32 %v3960, %v4091
      %v4093 = vpop.f32.mrb[0].mxu0
      %v4094 = vpop.f32.mrb[0].mxu0
      %v4095 = vadd.f32 %v3960, %v4094
      %v4096 = vpop.f32.mrb[0].mxu0
      %4097 = vmatprep.mubr.bf16.mxu0 %v4042
      %4098 = vmatmul.mubr.bf16.gmra.mrb[0].mxu0 %v3922
      %v4099 = vpop.f32.mrb[0].mxu0
      %v4100 = vadd.f32 %v3960, %v4099
      %v4101 = vpop.f32.mrb[0].mxu0
      %v4102 = vpop.f32.mrb[0].mxu0
      %v4103 = vadd.f32 %v3960, %v4102
      %v4104 = vpop.f32.mrb[0].mxu0
      %4105 = vmatprep.mubr.bf16.mxu0 %v4045
      %4106 = vmatmul.mubr.bf16.gmra.mrb[0].mxu0 %v3924
      %v4107 = vpop.f32.mrb[0].mxu0
      %v4108 = vadd.f32 %v3960, %v4107
      %v4109 = vpop.f32.mrb[0].mxu0
      %v4110 = vpop.f32.mrb[0].mxu0
      %v4111 = vadd.f32 %v3960, %v4110
      %v4112 = vpop.f32.mrb[0].mxu0
      %4113 = vmatprep.mubr.bf16.mxu0 %v4048
      %4114 = vmatmul.mubr.bf16.gmra.mrb[0].mxu0 %v3926
      %v4115 = vpop.f32.mrb[0].mxu0
      %v4116 = vadd.f32 %v3960, %v4115
      %v4117 = vpop.f32.mrb[0].mxu0
      %v4118 = vpop.f32.mrb[0].mxu0
      %v4119 = vadd.f32 %v3960, %v4118
      %v4120 = vpop.f32.mrb[0].mxu0
      %4121 = vmatprep.mubr.bf16.mxu0 %v4051
      %4122 = vmatmul.mubr.bf16.gmra.mrb[0].mxu0 %v3928
      %v4123 = vpop.f32.mrb[0].mxu0
      %v4124 = vadd.f32 %v3960, %v4123
      %v4125 = vpop.f32.mrb[0].mxu0
      %v4126 = vpop.f32.mrb[0].mxu0
      %v4127 = vadd.f32 %v3960, %v4126
      %v4128 = vpop.f32.mrb[0].mxu0
      %4129 = vdwg.mxu0
      %v4130 = vmax.f32 %v4092, 0.0
      %v4131 = vmax.f32 %v4095, 0.0
      %v4132 = vmax.f32 %v4100, 0.0
      %v4133 = vmax.f32 %v4103, 0.0
      %v4134 = vmax.f32 %v4108, 0.0
      %v4135 = vmax.f32 %v4111, 0.0
      %v4136 = vmax.f32 %v4116, 0.0
      %v4137 = vmax.f32 %v4119, 0.0
      %v4138 = vmax.f32 %v4124, 0.0
      %v4139 = vmax.f32 %v4127, 0.0
      %v4140 = vpack.c.bf16 %v4131, %v4130
      %v4141 = vpack.c.bf16 %v4133, %v4132
      %v4142 = vpack.c.bf16 %v4135, %v4134
      %v4143 = vpack.c.bf16 %v4137, %v4136
      %v4144 = vpack.c.bf16 %v4139, %v4138
      %vm4145 = vcmask 261120
      %4146 = vst.msk [vmem:[#allocation4] sm:$0xff] %vm4145, %v4140
      %4147 = vst.msk [vmem:[#allocation4 + $0x8] sm:$0xff] %vm4145, %v4141
      %4148 = vst.msk [vmem:[#allocation4 + $0x10] sm:$0xff] %vm4145, %v4142
      %4149 = vst.msk [vmem:[#allocation4 + $0x18] sm:$0xff] %vm4145, %v4143
      %4150 = vst.msk [vmem:[#allocation4 + $0x20] sm:$0xff] %vm4145, %v4144
      %vm4151 = vcmask 257024
      %4152 = vst.msk [vmem:[#allocation5] sm:$0xf] %vm4151, 0
      %4153 = vst.msk [vmem:[#allocation5 + $0x4] sm:$0xf] %vm4151, 0
      %4154 = vst.msk [vmem:[#allocation5 + $0x8] sm:$0xf] %vm4151, 0
      %vm4155 = vcmask 256000
      %4156 = vst.msk [vmem:[#allocation5 + $0xc] sm:$0x7] %vm4155, 0
      %4157 = vst.msk [vmem:[#allocation5 + $0x10] sm:$0xf] %vm4151, 0
      %4158 = vst.msk [vmem:[#allocation5 + $0x14] sm:$0xf] %vm4151, 0
      %4159 = vst.msk [vmem:[#allocation5 + $0x18] sm:$0xf] %vm4151, 0
      %4160 = vst.msk [vmem:[#allocation5 + $0x1c] sm:$0x7] %vm4155, 0
      %4161 = vst.msk [vmem:[#allocation5 + $0x20] sm:$0xf] %vm4151, 0
      %4162 = vst.msk [vmem:[#allocation5 + $0x24] sm:$0xf] %vm4151, 0
      %4163 = vst.msk [vmem:[#allocation5 + $0x28] sm:$0xf] %vm4151, 0
      %4164 = vst.msk [vmem:[#allocation5 + $0x2c] sm:$0x7] %vm4155, 0
      %4165 = vst.msk [vmem:[#allocation5 + $0x30] sm:$0xf] %vm4151, 0
      %4166 = vst.msk [vmem:[#allocation5 + $0x34] sm:$0xf] %vm4151, 0
      %4167 = vst.msk [vmem:[#allocation5 + $0x38] sm:$0xf] %vm4151, 0
      %4168 = vst.msk [vmem:[#allocation5 + $0x3c] sm:$0x7] %vm4155, 0
      %vm4169 = vcmp.ge.s32.totalorder %v445, 5
      %vm4170 = vcmp.ge.s32.totalorder %v446, 5
      %v4171 = vsel %vm4169, 1, 0
      %v4172 = vsel %vm4170, 1, 0
      %v4173 = vmul.u32 %v4171, 5
      %v4174 = vmul.u32 %v4172, 5
      %v4175 = vsub.s32 %v445, %v4173
      %v4176 = vsub.s32 %v446, %v4174
      %v4177 = vmul.u32 %v4175, 2
      %v4178 = vmul.u32 %v4176, 2
      %v4179 = vadd.s32 %v4177, %v4171
      %v4180 = vadd.s32 %v4178, %v4172
      %v4181 = vsub.s32 %v4179, 1
      %v4182 = vsub.s32 %v4180, 1
      %vm4183 = vcmp.eq.s32.totalorder %v449, %v4181
      %vm4184 = vcmp.eq.s32.totalorder %v449, %v4182
      %vm4185 = vcmp.ge.s32.totalorder %v4181, 0
      %vm4186 = vcmp.ge.s32.totalorder %v4182, 0
      %vm4187 = vmand %vm4183, %vm4185
      %vm4188 = vmand %vm4184, %vm4186
      %vm4189 = vcmp.lt.s32.totalorder %v4181, 8
      %vm4190 = vcmp.lt.s32.totalorder %v4182, 8
      %vm4191 = vmand %vm4187, %vm4189
      %vm4192 = vmand %vm4188, %vm4190
      %v4193 = vsel %vm4191, 1.0, 0.0
      %v4194 = vsel %vm4192, 1.0, 0.0
      %v4195 = vpack.c.bf16 %v4194, %v4193
      %v4196 = vld [vmem:[#allocation4] sm:$0x1f]
      %vm4197 = vcmask 80896
      %v4199 = vsel %vm4197, %v4195, 0
      %vm4201 = vcmask 1044480
      %v4203 = vsel %vm4201, %v4196, 0
      %4205 = vmatprep.subr.bf16.mxu0 0
      %4206 = vmatpush1.bf16.msra.mxu0 %v4203
      %4207 = vmatprep.subr.bf16.mxu0 0
      %4208 = vmatpush1.bf16.msra.mxu0 0
      %4209 = vmatprep.subr.bf16.mxu0 0
      %4210 = vmatpush1.bf16.msra.mxu0 0
      %4211 = vmatprep.subr.bf16.mxu0 0
      %4212 = vmatpush1.bf16.msra.mxu0 0
      %4213 = vmatprep.subr.bf16.mxu0 0
      %4214 = vmatpush1.bf16.msra.mxu0 0
      %4215 = vmatprep.subr.bf16.mxu0 0
      %4216 = vmatpush1.bf16.msra.mxu0 0
      %4217 = vmatprep.subr.bf16.mxu0 0
      %4218 = vmatpush1.bf16.msra.mxu0 0
      %4219 = vmatprep.subr.bf16.mxu0 0
      %4220 = vmatpush1.bf16.msra.mxu0 0
      %4221 = vmatprep.subr.bf16.mxu0 0
      %4222 = vmatpush1.bf16.msra.mxu0 0
      %4223 = vmatprep.subr.bf16.mxu0 0
      %4224 = vmatpush1.bf16.msra.mxu0 0
      %4225 = vmatprep.subr.bf16.mxu0 0
      %4226 = vmatpush1.bf16.msra.mxu0 0
      %4227 = vmatprep.subr.bf16.mxu0 0
      %4228 = vmatpush1.bf16.msra.mxu0 0
      %4229 = vmatprep.subr.bf16.mxu0 0
      %4230 = vmatpush1.bf16.msra.mxu0 0
      %4231 = vmatprep.subr.bf16.mxu0 0
      %4232 = vmatpush1.bf16.msra.mxu0 0
      %4233 = vmatprep.subr.bf16.mxu0 0
      %4234 = vmatpush1.bf16.msra.mxu0 0
      %4235 = vmatprep.subr.bf16.mxu0 0
      %4236 = vmatpush1.bf16.msra.mxu0 0
      %4237 = vmatprep.mubr.bf16.mxu0 0
      %4238 = vmatmul.mubr.bf16.gmra.mrb[0].mxu0 %v4199
      %v4239 = vpop.f32.mrb[0].mxu0
      %v4240 = vadd.f32 0.0, %v4239
      %v4241 = vpop.f32.mrb[0].mxu0
      %v4242 = vpop.f32.mrb[0].mxu0
      %v4243 = vadd.f32 0.0, %v4242
      %v4244 = vpop.f32.mrb[0].mxu0
      %4245 = vdwg.mxu0
      %v4246 = vpack.c.bf16 %v4240, %v4240
      %s4247 = scalar_lea.vmem [#allocation5], 32
      %vm4248 = vcmask 256000
      %vm4249 = vsmask.f32 2304
      %vm4250 = vmand %vm4248, %vm4249
      %v4251 = vld [vmem:[%s4247] sm:$0x7]
      %v4252 = vsel %vm4250, %v4246, %v4251
      %4253 = vst [vmem:[%s4247] sm:$0x7] %v4252
      %v4254 = vpack.c.bf16 %v4243, %v4240
      %v4256 = vunpack.c.l.b16 %v4254
      %v4257 = vunpack.c.h.b16 %v4254
      %v4258 = vpack.c.b16 %v4256, %v4256
      %v4259 = vpack.c.b16 %v4257, %v4257
      %vm4260 = vsmask.f32 1280
      %vm4261 = vsmask.f32 5392
      %vm4262 = vmor %vm4260, %vm4261
      %v4264 = vshrl.u32 %v4258, 16
      %v4266 = vrot.slane %v4264, 6
      %v4267 = vshll.u32 %v4258, 16
      %v4269 = vrot.slane %v4267, 7
      %v4270 = vor.u32 %v4266, %v4269
      %v4271 = vrot.slane %v4270, 4
      %v4273 = vshrl.u32 %v4259, 16
      %v4275 = vrot.slane %v4273, 6
      %v4276 = vshll.u32 %v4259, 16
      %v4278 = vrot.slane %v4276, 7
      %v4279 = vor.u32 %v4275, %v4278
      %v4280 = vsel %vm4262, %v4271, %v4279
      %s4282 = scalar_lea.vmem [#allocation5], 48
      %v4283 = vld [vmem:[%s4282] sm:$0x7]
      %v4284 = vsel %vm4250, %v4280, %v4283
      %4285 = vst [vmem:[%s4282] sm:$0x7] %v4284
      %v4286 = vld [vmem:[#allocation4] sm:$0xe0]
      %v4287 = vld [vmem:[#allocation4 + $0x8] sm:$0x3]
      %v4290 = vrot.slane %v4286, 5
      %v4291 = vrot.slane %v4287, 5
      %v4292 = vsel %vm913, %v4290, %v4291
      %v4294 = vsel %vm4201, %v4292, 0
      %4296 = vmatprep.subr.bf16.mxu0 0
      %4297 = vmatpush1.bf16.msra.mxu0 %v4294
      %4298 = vmatprep.subr.bf16.mxu0 0
      %4299 = vmatpush1.bf16.msra.mxu0 0
      %4300 = vmatprep.subr.bf16.mxu0 0
      %4301 = vmatpush1.bf16.msra.mxu0 0
      %4302 = vmatprep.subr.bf16.mxu0 0
      %4303 = vmatpush1.bf16.msra.mxu0 0
      %4304 = vmatprep.subr.bf16.mxu0 0
      %4305 = vmatpush1.bf16.msra.mxu0 0
      %4306 = vmatprep.subr.bf16.mxu0 0
      %4307 = vmatpush1.bf16.msra.mxu0 0
      %4308 = vmatprep.subr.bf16.mxu0 0
      %4309 = vmatpush1.bf16.msra.mxu0 0
      %4310 = vmatprep.subr.bf16.mxu0 0
      %4311 = vmatpush1.bf16.msra.mxu0 0
      %4312 = vmatprep.subr.bf16.mxu0 0
      %4313 = vmatpush1.bf16.msra.mxu0 0
      %4314 = vmatprep.subr.bf16.mxu0 0
      %4315 = vmatpush1.bf16.msra.mxu0 0
      %4316 = vmatprep.subr.bf16.mxu0 0
      %4317 = vmatpush1.bf16.msra.mxu0 0
      %4318 = vmatprep.subr.bf16.mxu0 0
      %4319 = vmatpush1.bf16.msra.mxu0 0
      %4320 = vmatprep.subr.bf16.mxu0 0
      %4321 = vmatpush1.bf16.msra.mxu0 0
      %4322 = vmatprep.subr.bf16.mxu0 0
      %4323 = vmatpush1.bf16.msra.mxu0 0
      %4324 = vmatprep.subr.bf16.mxu0 0
      %4325 = vmatpush1.bf16.msra.mxu0 0
      %4326 = vmatprep.subr.bf16.mxu0 0
      %4327 = vmatpush1.bf16.msra.mxu0 0
      %4328 = vmatprep.mubr.bf16.mxu0 0
      %4329 = vmatmul.mubr.bf16.gmra.mrb[0].mxu0 %v4199
      %v4330 = vpop.f32.mrb[0].mxu0
      %v4331 = vadd.f32 0.0, %v4330
      %v4332 = vpop.f32.mrb[0].mxu0
      %v4333 = vpop.f32.mrb[0].mxu0
      %v4334 = vadd.f32 0.0, %v4333
      %v4335 = vpop.f32.mrb[0].mxu0
      %4336 = vdwg.mxu0
      %v4337 = vpack.c.bf16 %v4331, %v4331
      %v4339 = vunpack.c.l.b16 %v4337
      %v4340 = vpack.c.b16 %v4339, %v4339
      %v4342 = vshrl.u32 %v4340, 16
      %v4344 = vrot.slane %v4342, 5
      %v4345 = vshll.u32 %v4340, 16
      %v4347 = vrot.slane %v4345, 6
      %v4348 = vor.u32 %v4344, %v4347
      %v4349 = vrot.slane %v4348, 4
      %vm4352 = vcmask 257026
      %vm4353 = vsmask.f32 7946
      %vm4354 = vmand %vm4352, %vm4353
      %v4355 = vld [vmem:[#allocation5] sm:$0xc]
      %v4356 = vsel %vm4354, %v4348, %v4355
      %4357 = vst [vmem:[#allocation5] sm:$0xc] %v4356
      %vm4358 = vcmask 253952
      %4359 = vst.msk [vmem:[#allocation5 + $0x4] sm:$0x1] %vm4358, %v4349
      %v4360 = vpack.c.bf16 %v4334, %v4331
      %v4362 = vunpack.c.l.b16 %v4360
      %v4363 = vunpack.c.h.b16 %v4360
      %v4364 = vpack.c.b16 %v4362, %v4362
      %v4365 = vpack.c.b16 %v4363, %v4363
      %s4368 = scalar_lea.vmem [#allocation5], 16
      %v4369 = vld [vmem:[%s4368] sm:$0xc]
      %v4370 = vsel %vm4354, %v4364, %v4369
      %4371 = vst [vmem:[%s4368] sm:$0xc] %v4370
      %4372 = vst.msk [vmem:[%s4368 + $0x4] sm:$0x1] %vm4358, %v4365
      %v4373 = vld [vmem:[#allocation4 + $0x8] sm:$0x7c]
      %v4375 = vrot.slane %v4373, 2
      %v4377 = vsel %vm4201, %v4375, 0
      %4379 = vmatprep.subr.bf16.mxu0 0
      %4380 = vmatpush1.bf16.msra.mxu0 %v4377
      %4381 = vmatprep.subr.bf16.mxu0 0
      %4382 = vmatpush1.bf16.msra.mxu0 0
      %4383 = vmatprep.subr.bf16.mxu0 0
      %4384 = vmatpush1.bf16.msra.mxu0 0
      %4385 = vmatprep.subr.bf16.mxu0 0
      %4386 = vmatpush1.bf16.msra.mxu0 0
      %4387 = vmatprep.subr.bf16.mxu0 0
      %4388 = vmatpush1.bf16.msra.mxu0 0
      %4389 = vmatprep.subr.bf16.mxu0 0
      %4390 = vmatpush1.bf16.msra.mxu0 0
      %4391 = vmatprep.subr.bf16.mxu0 0
      %4392 = vmatpush1.bf16.msra.mxu0 0
      %4393 = vmatprep.subr.bf16.mxu0 0
      %4394 = vmatpush1.bf16.msra.mxu0 0
      %4395 = vmatprep.subr.bf16.mxu0 0
      %4396 = vmatpush1.bf16.msra.mxu0 0
      %4397 = vmatprep.subr.bf16.mxu0 0
      %4398 = vmatpush1.bf16.msra.mxu0 0
      %4399 = vmatprep.subr.bf16.mxu0 0
      %4400 = vmatpush1.bf16.msra.mxu0 0
      %4401 = vmatprep.subr.bf16.mxu0 0
      %4402 = vmatpush1.bf16.msra.mxu0 0
      %4403 = vmatprep.subr.bf16.mxu0 0
      %4404 = vmatpush1.bf16.msra.mxu0 0
      %4405 = vmatprep.subr.bf16.mxu0 0
      %4406 = vmatpush1.bf16.msra.mxu0 0
      %4407 = vmatprep.subr.bf16.mxu0 0
      %4408 = vmatpush1.bf16.msra.mxu0 0
      %4409 = vmatprep.subr.bf16.mxu0 0
      %4410 = vmatpush1.bf16.msra.mxu0 0
      %4411 = vmatprep.mubr.bf16.mxu0 0
      %4412 = vmatmul.mubr.bf16.gmra.mrb[0].mxu0 %v4199
      %v4413 = vpop.f32.mrb[0].mxu0
      %v4414 = vadd.f32 0.0, %v4413
      %v4415 = vpop.f32.mrb[0].mxu0
      %v4416 = vpop.f32.mrb[0].mxu0
      %v4417 = vadd.f32 0.0, %v4416
      %v4418 = vpop.f32.mrb[0].mxu0
      %4419 = vdwg.mxu0
      %v4420 = vpack.c.bf16 %v4414, %v4414
      %v4422 = vunpack.c.l.b16 %v4420
      %v4423 = vpack.c.b16 %v4422, %v4422
      %v4425 = vshrl.u32 %v4423, 16
      %v4427 = vrot.slane %v4425, 5
      %v4428 = vshll.u32 %v4423, 16
      %v4430 = vrot.slane %v4428, 6
      %v4431 = vor.u32 %v4427, %v4430
      %v4432 = vrot.slane %v4431, 4
      %v4435 = vld [vmem:[%s4247] sm:$0xc]
      %v4436 = vsel %vm4354, %v4431, %v4435
      %4437 = vst [vmem:[%s4247] sm:$0xc] %v4436
      %4438 = vst.msk [vmem:[%s4247 + $0x4] sm:$0x1] %vm4358, %v4432
      %v4439 = vpack.c.bf16 %v4417, %v4414
      %v4441 = vunpack.c.l.b16 %v4439
      %v4442 = vunpack.c.h.b16 %v4439
      %v4443 = vpack.c.b16 %v4441, %v4441
      %v4444 = vpack.c.b16 %v4442, %v4442
      %v4447 = vld [vmem:[%s4282] sm:$0xc]
      %v4448 = vsel %vm4354, %v4443, %v4447
      %4449 = vst [vmem:[%s4282] sm:$0xc] %v4448
      %4450 = vst.msk [vmem:[%s4282 + $0x4] sm:$0x1] %vm4358, %v4444
      %v4451 = vld [vmem:[#allocation4 + $0x8] sm:$0x80]
      %v4452 = vld [vmem:[#allocation4 + $0x10] sm:$0xf]
      %v4455 = vrot.slane %v4451, 7
      %v4456 = vrot.slane %v4452, 7
      %v4457 = vsel %vm573, %v4455, %v4456
      %v4459 = vsel %vm4201, %v4457, 0
      %4461 = vmatprep.subr.bf16.mxu0 0
      %4462 = vmatpush1.bf16.msra.mxu0 %v4459
      %4463 = vmatprep.subr.bf16.mxu0 0
      %4464 = vmatpush1.bf16.msra.mxu0 0
      %4465 = vmatprep.subr.bf16.mxu0 0
      %4466 = vmatpush1.bf16.msra.mxu0 0
      %4467 = vmatprep.subr.bf16.mxu0 0
      %4468 = vmatpush1.bf16.msra.mxu0 0
      %4469 = vmatprep.subr.bf16.mxu0 0
      %4470 = vmatpush1.bf16.msra.mxu0 0
      %4471 = vmatprep.subr.bf16.mxu0 0
      %4472 = vmatpush1.bf16.msra.mxu0 0
      %4473 = vmatprep.subr.bf16.mxu0 0
      %4474 = vmatpush1.bf16.msra.mxu0 0
      %4475 = vmatprep.subr.bf16.mxu0 0
      %4476 = vmatpush1.bf16.msra.mxu0 0
      %4477 = vmatprep.subr.bf16.mxu0 0
      %4478 = vmatpush1.bf16.msra.mxu0 0
      %4479 = vmatprep.subr.bf16.mxu0 0
      %4480 = vmatpush1.bf16.msra.mxu0 0
      %4481 = vmatprep.subr.bf16.mxu0 0
      %4482 = vmatpush1.bf16.msra.mxu0 0
      %4483 = vmatprep.subr.bf16.mxu0 0
      %4484 = vmatpush1.bf16.msra.mxu0 0
      %4485 = vmatprep.subr.bf16.mxu0 0
      %4486 = vmatpush1.bf16.msra.mxu0 0
      %4487 = vmatprep.subr.bf16.mxu0 0
      %4488 = vmatpush1.bf16.msra.mxu0 0
      %4489 = vmatprep.subr.bf16.mxu0 0
      %4490 = vmatpush1.bf16.msra.mxu0 0
      %4491 = vmatprep.subr.bf16.mxu0 0
      %4492 = vmatpush1.bf16.msra.mxu0 0
      %4493 = vmatprep.mubr.bf16.mxu0 0
      %4494 = vmatmul.mubr.bf16.gmra.mrb[0].mxu0 %v4199
      %v4495 = vpop.f32.mrb[0].mxu0
      %v4496 = vadd.f32 0.0, %v4495
      %v4497 = vpop.f32.mrb[0].mxu0
      %v4498 = vpop.f32.mrb[0].mxu0
      %v4499 = vadd.f32 0.0, %v4498
      %v4500 = vpop.f32.mrb[0].mxu0
      %4501 = vdwg.mxu0
      %v4502 = vpack.c.bf16 %v4496, %v4496
      %v4504 = vunpack.c.l.b16 %v4502
      %v4505 = vpack.c.b16 %v4504, %v4504
      %v4506 = vrot.slane %v4505, 7
      %vm4508 = vcmask 257025
      %vm4509 = vsmask.f32 3328
      %vm4510 = vmand %vm4508, %vm4509
      %v4511 = vld [vmem:[#allocation5 + $0x4] sm:$0xe]
      %v4512 = vsel %vm4510, %v4506, %v4511
      %4513 = vst [vmem:[#allocation5 + $0x4] sm:$0xe] %v4512
      %v4514 = vpack.c.bf16 %v4499, %v4496
      %v4516 = vunpack.c.l.b16 %v4514
      %v4517 = vunpack.c.h.b16 %v4514
      %v4518 = vpack.c.b16 %v4516, %v4516
      %v4519 = vpack.c.b16 %v4517, %v4517
      %vm4520 = vsmask.f32 6416
      %vm4521 = vmor %vm4249, %vm4520
      %v4523 = vshrl.u32 %v4518, 16
      %v4525 = vrot.slane %v4523, 5
      %v4526 = vshll.u32 %v4518, 16
      %v4528 = vrot.slane %v4526, 6
      %v4529 = vor.u32 %v4525, %v4528
      %v4530 = vrot.slane %v4529, 4
      %v4532 = vshrl.u32 %v4519, 16
      %v4534 = vrot.slane %v4532, 5
      %v4535 = vshll.u32 %v4519, 16
      %v4537 = vrot.slane %v4535, 6
      %v4538 = vor.u32 %v4534, %v4537
      %v4539 = vsel %vm4521, %v4530, %v4538
      %v4541 = vld [vmem:[%s4368 + $0x4] sm:$0xe]
      %v4542 = vsel %vm4510, %v4539, %v4541
      %4543 = vst [vmem:[%s4368 + $0x4] sm:$0xe] %v4542
      %v4544 = vld [vmem:[#allocation4 + $0x10] sm:$0xf0]
      %v4545 = vld [vmem:[#allocation4 + $0x18] sm:$0x1]
      %vm4548 = vcmask 1043456
      %v4549 = vrot.slane %v4544, 4
      %v4550 = vrot.slane %v4545, 4
      %v4551 = vsel %vm4548, %v4549, %v4550
      %v4553 = vsel %vm4201, %v4551, 0
      %4555 = vmatprep.subr.bf16.mxu0 0
      %4556 = vmatpush1.bf16.msra.mxu0 %v4553
      %4557 = vmatprep.subr.bf16.mxu0 0
      %4558 = vmatpush1.bf16.msra.mxu0 0
      %4559 = vmatprep.subr.bf16.mxu0 0
      %4560 = vmatpush1.bf16.msra.mxu0 0
      %4561 = vmatprep.subr.bf16.mxu0 0
      %4562 = vmatpush1.bf16.msra.mxu0 0
      %4563 = vmatprep.subr.bf16.mxu0 0
      %4564 = vmatpush1.bf16.msra.mxu0 0
      %4565 = vmatprep.subr.bf16.mxu0 0
      %4566 = vmatpush1.bf16.msra.mxu0 0
      %4567 = vmatprep.subr.bf16.mxu0 0
      %4568 = vmatpush1.bf16.msra.mxu0 0
      %4569 = vmatprep.subr.bf16.mxu0 0
      %4570 = vmatpush1.bf16.msra.mxu0 0
      %4571 = vmatprep.subr.bf16.mxu0 0
      %4572 = vmatpush1.bf16.msra.mxu0 0
      %4573 = vmatprep.subr.bf16.mxu0 0
      %4574 = vmatpush1.bf16.msra.mxu0 0
      %4575 = vmatprep.subr.bf16.mxu0 0
      %4576 = vmatpush1.bf16.msra.mxu0 0
      %4577 = vmatprep.subr.bf16.mxu0 0
      %4578 = vmatpush1.bf16.msra.mxu0 0
      %4579 = vmatprep.subr.bf16.mxu0 0
      %4580 = vmatpush1.bf16.msra.mxu0 0
      %4581 = vmatprep.subr.bf16.mxu0 0
      %4582 = vmatpush1.bf16.msra.mxu0 0
      %4583 = vmatprep.subr.bf16.mxu0 0
      %4584 = vmatpush1.bf16.msra.mxu0 0
      %4585 = vmatprep.subr.bf16.mxu0 0
      %4586 = vmatpush1.bf16.msra.mxu0 0
      %4587 = vmatprep.mubr.bf16.mxu0 0
      %4588 = vmatmul.mubr.bf16.gmra.mrb[0].mxu0 %v4199
      %v4589 = vpop.f32.mrb[0].mxu0
      %v4590 = vadd.f32 0.0, %v4589
      %v4591 = vpop.f32.mrb[0].mxu0
      %v4592 = vpop.f32.mrb[0].mxu0
      %v4593 = vadd.f32 0.0, %v4592
      %v4594 = vpop.f32.mrb[0].mxu0
      %4595 = vdwg.mxu0
      %v4596 = vpack.c.bf16 %v4590, %v4590
      %v4598 = vunpack.c.l.b16 %v4596
      %v4599 = vpack.c.b16 %v4598, %v4598
      %v4600 = vrot.slane %v4599, 7
      %v4602 = vld [vmem:[%s4247 + $0x4] sm:$0xe]
      %v4603 = vsel %vm4510, %v4600, %v4602
      %4604 = vst [vmem:[%s4247 + $0x4] sm:$0xe] %v4603
      %v4605 = vpack.c.bf16 %v4593, %v4590
      %v4607 = vunpack.c.l.b16 %v4605
      %v4608 = vunpack.c.h.b16 %v4605
      %v4609 = vpack.c.b16 %v4607, %v4607
      %v4610 = vpack.c.b16 %v4608, %v4608
      %v4612 = vshrl.u32 %v4609, 16
      %v4614 = vrot.slane %v4612, 5
      %v4615 = vshll.u32 %v4609, 16
      %v4617 = vrot.slane %v4615, 6
      %v4618 = vor.u32 %v4614, %v4617
      %v4619 = vrot.slane %v4618, 4
      %v4621 = vshrl.u32 %v4610, 16
      %v4623 = vrot.slane %v4621, 5
      %v4624 = vshll.u32 %v4610, 16
      %v4626 = vrot.slane %v4624, 6
      %v4627 = vor.u32 %v4623, %v4626
      %v4628 = vsel %vm4521, %v4619, %v4627
      %v4630 = vld [vmem:[%s4282 + $0x4] sm:$0xe]
      %v4631 = vsel %vm4510, %v4628, %v4630
      %4632 = vst [vmem:[%s4282 + $0x4] sm:$0xe] %v4631
      %v4633 = vld [vmem:[#allocation4 + $0x18] sm:$0x3e]
      %v4635 = vrot.slane %v4633, 1
      %v4637 = vsel %vm4201, %v4635, 0
      %4639 = vmatprep.subr.bf16.mxu0 0
      %4640 = vmatpush1.bf16.msra.mxu0 %v4637
      %4641 = vmatprep.subr.bf16.mxu0 0
      %4642 = vmatpush1.bf16.msra.mxu0 0
      %4643 = vmatprep.subr.bf16.mxu0 0
      %4644 = vmatpush1.bf16.msra.mxu0 0
      %4645 = vmatprep.subr.bf16.mxu0 0
      %4646 = vmatpush1.bf16.msra.mxu0 0
      %4647 = vmatprep.subr.bf16.mxu0 0
      %4648 = vmatpush1.bf16.msra.mxu0 0
      %4649 = vmatprep.subr.bf16.mxu0 0
      %4650 = vmatpush1.bf16.msra.mxu0 0
      %4651 = vmatprep.subr.bf16.mxu0 0
      %4652 = vmatpush1.bf16.msra.mxu0 0
      %4653 = vmatprep.subr.bf16.mxu0 0
      %4654 = vmatpush1.bf16.msra.mxu0 0
      %4655 = vmatprep.subr.bf16.mxu0 0
      %4656 = vmatpush1.bf16.msra.mxu0 0
      %4657 = vmatprep.subr.bf16.mxu0 0
      %4658 = vmatpush1.bf16.msra.mxu0 0
      %4659 = vmatprep.subr.bf16.mxu0 0
      %4660 = vmatpush1.bf16.msra.mxu0 0
      %4661 = vmatprep.subr.bf16.mxu0 0
      %4662 = vmatpush1.bf16.msra.mxu0 0
      %4663 = vmatprep.subr.bf16.mxu0 0
      %4664 = vmatpush1.bf16.msra.mxu0 0
      %4665 = vmatprep.subr.bf16.mxu0 0
      %4666 = vmatpush1.bf16.msra.mxu0 0
      %4667 = vmatprep.subr.bf16.mxu0 0
      %4668 = vmatpush1.bf16.msra.mxu0 0
      %4669 = vmatprep.subr.bf16.mxu0 0
      %4670 = vmatpush1.bf16.msra.mxu0 0
      %4671 = vmatprep.mubr.bf16.mxu0 0
      %4672 = vmatmul.mubr.bf16.gmra.mrb[0].mxu0 %v4199
      %v4673 = vpop.f32.mrb[0].mxu0
      %v4674 = vadd.f32 0.0, %v4673
      %v4675 = vpop.f32.mrb[0].mxu0
      %v4676 = vpop.f32.mrb[0].mxu0
      %v4677 = vadd.f32 0.0, %v4676
      %v4678 = vpop.f32.mrb[0].mxu0
      %4679 = vdwg.mxu0
      %v4680 = vpack.c.bf16 %v4674, %v4674
      %v4682 = vunpack.c.l.b16 %v4680
      %v4683 = vpack.c.b16 %v4682, %v4682
      %v4685 = vshll.u32 %v4683, 16
      %v4687 = vrot.slane %v4685, 5
      %v4688 = vshrl.u32 %v4683, 16
      %v4690 = vrot.slane %v4688, 4
      %v4691 = vor.u32 %v4690, %v4687
      %v4692 = vrot.slane %v4691, 4
      %vm4695 = vcmask 257027
      %vm4696 = vsmask.f32 7950
      %vm4697 = vmand %vm4695, %vm4696
      %v4698 = vld [vmem:[#allocation5 + $0x4] sm:$0x8]
      %v4699 = vsel %vm4697, %v4687, %v4698
      %4700 = vst [vmem:[#allocation5 + $0x4] sm:$0x8] %v4699
      %vm4701 = vcmask 254976
      %4702 = vst.msk [vmem:[#allocation5 + $0x8] sm:$0x3] %vm4701, %v4692
      %v4703 = vpack.c.bf16 %v4677, %v4674
      %v4705 = vunpack.c.l.b16 %v4703
      %v4706 = vunpack.c.h.b16 %v4703
      %v4707 = vpack.c.b16 %v4705, %v4705
      %v4708 = vpack.c.b16 %v4706, %v4706
      %v4709 = vrot.slane %v4707, 7
      %v4710 = vrot.slane %v4709, 4
      %v4711 = vrot.slane %v4708, 7
      %v4712 = vsel %vm575, %v4710, %v4711
      %v4715 = vld [vmem:[%s4368 + $0x4] sm:$0x8]
      %v4716 = vsel %vm4697, %v4709, %v4715
      %4717 = vst [vmem:[%s4368 + $0x4] sm:$0x8] %v4716
      %4718 = vst.msk [vmem:[%s4368 + $0x8] sm:$0x3] %vm4701, %v4712
      %v4719 = vld [vmem:[#allocation4 + $0x18] sm:$0xc0]
      %v4720 = vld [vmem:[#allocation4 + $0x20] sm:$0x7]
      %v4723 = vrot.slane %v4719, 6
      %v4724 = vrot.slane %v4720, 6
      %v4725 = vsel %vm741, %v4723, %v4724
      %v4727 = vsel %vm4201, %v4725, 0
      %4729 = vmatprep.subr.bf16.mxu0 0
      %4730 = vmatpush1.bf16.msra.mxu0 %v4727
      %4731 = vmatprep.subr.bf16.mxu0 0
      %4732 = vmatpush1.bf16.msra.mxu0 0
      %4733 = vmatprep.subr.bf16.mxu0 0
      %4734 = vmatpush1.bf16.msra.mxu0 0
      %4735 = vmatprep.subr.bf16.mxu0 0
      %4736 = vmatpush1.bf16.msra.mxu0 0
      %4737 = vmatprep.subr.bf16.mxu0 0
      %4738 = vmatpush1.bf16.msra.mxu0 0
      %4739 = vmatprep.subr.bf16.mxu0 0
      %4740 = vmatpush1.bf16.msra.mxu0 0
      %4741 = vmatprep.subr.bf16.mxu0 0
      %4742 = vmatpush1.bf16.msra.mxu0 0
      %4743 = vmatprep.subr.bf16.mxu0 0
      %4744 = vmatpush1.bf16.msra.mxu0 0
      %4745 = vmatprep.subr.bf16.mxu0 0
      %4746 = vmatpush1.bf16.msra.mxu0 0
      %4747 = vmatprep.subr.bf16.mxu0 0
      %4748 = vmatpush1.bf16.msra.mxu0 0
      %4749 = vmatprep.subr.bf16.mxu0 0
      %4750 = vmatpush1.bf16.msra.mxu0 0
      %4751 = vmatprep.subr.bf16.mxu0 0
      %4752 = vmatpush1.bf16.msra.mxu0 0
      %4753 = vmatprep.subr.bf16.mxu0 0
      %4754 = vmatpush1.bf16.msra.mxu0 0
      %4755 = vmatprep.subr.bf16.mxu0 0
      %4756 = vmatpush1.bf16.msra.mxu0 0
      %4757 = vmatprep.subr.bf16.mxu0 0
      %4758 = vmatpush1.bf16.msra.mxu0 0
      %4759 = vmatprep.subr.bf16.mxu0 0
      %4760 = vmatpush1.bf16.msra.mxu0 0
      %4761 = vmatprep.mubr.bf16.mxu0 0
      %4762 = vmatmul.mubr.bf16.gmra.mrb[0].mxu0 %v4199
      %v4763 = vpop.f32.mrb[0].mxu0
      %v4764 = vadd.f32 0.0, %v4763
      %v4765 = vpop.f32.mrb[0].mxu0
      %v4766 = vpop.f32.mrb[0].mxu0
      %v4767 = vadd.f32 0.0, %v4766
      %v4768 = vpop.f32.mrb[0].mxu0
      %4769 = vdwg.mxu0
      %v4770 = vpack.c.bf16 %v4764, %v4764
      %v4772 = vunpack.c.l.b16 %v4770
      %v4773 = vpack.c.b16 %v4772, %v4772
      %v4775 = vshll.u32 %v4773, 16
      %v4777 = vrot.slane %v4775, 5
      %v4778 = vshrl.u32 %v4773, 16
      %v4780 = vrot.slane %v4778, 4
      %v4781 = vor.u32 %v4780, %v4777
      %v4782 = vrot.slane %v4781, 4
      %v4785 = vld [vmem:[%s4247 + $0x4] sm:$0x8]
      %v4786 = vsel %vm4697, %v4777, %v4785
      %4787 = vst [vmem:[%s4247 + $0x4] sm:$0x8] %v4786
      %4788 = vst.msk [vmem:[%s4247 + $0x8] sm:$0x3] %vm4701, %v4782
      %v4789 = vpack.c.bf16 %v4767, %v4764
      %v4791 = vunpack.c.l.b16 %v4789
      %v4792 = vunpack.c.h.b16 %v4789
      %v4793 = vpack.c.b16 %v4791, %v4791
      %v4794 = vpack.c.b16 %v4792, %v4792
      %v4795 = vrot.slane %v4793, 7
      %v4796 = vrot.slane %v4795, 4
      %v4797 = vrot.slane %v4794, 7
      %v4798 = vsel %vm575, %v4796, %v4797
      %v4801 = vld [vmem:[%s4282 + $0x4] sm:$0x8]
      %v4802 = vsel %vm4697, %v4795, %v4801
      %4803 = vst [vmem:[%s4282 + $0x4] sm:$0x8] %v4802
      %4804 = vst.msk [vmem:[%s4282 + $0x8] sm:$0x3] %vm4701, %v4798
      %v4805 = vld [vmem:[#allocation4 + $0x20] sm:$0xf8]
      %v4807 = vrot.slane %v4805, 3
      %v4809 = vsel %vm4201, %v4807, 0
      %4811 = vmatprep.subr.bf16.mxu0 0
      %4812 = vmatpush1.bf16.msra.mxu0 %v4809
      %4813 = vmatprep.subr.bf16.mxu0 0
      %4814 = vmatpush1.bf16.msra.mxu0 0
      %4815 = vmatprep.subr.bf16.mxu0 0
      %4816 = vmatpush1.bf16.msra.mxu0 0
      %4817 = vmatprep.subr.bf16.mxu0 0
      %4818 = vmatpush1.bf16.msra.mxu0 0
      %4819 = vmatprep.subr.bf16.mxu0 0
      %4820 = vmatpush1.bf16.msra.mxu0 0
      %4821 = vmatprep.subr.bf16.mxu0 0
      %4822 = vmatpush1.bf16.msra.mxu0 0
      %4823 = vmatprep.subr.bf16.mxu0 0
      %4824 = vmatpush1.bf16.msra.mxu0 0
      %4825 = vmatprep.subr.bf16.mxu0 0
      %4826 = vmatpush1.bf16.msra.mxu0 0
      %4827 = vmatprep.subr.bf16.mxu0 0
      %4828 = vmatpush1.bf16.msra.mxu0 0
      %4829 = vmatprep.subr.bf16.mxu0 0
      %4830 = vmatpush1.bf16.msra.mxu0 0
      %4831 = vmatprep.subr.bf16.mxu0 0
      %4832 = vmatpush1.bf16.msra.mxu0 0
      %4833 = vmatprep.subr.bf16.mxu0 0
      %4834 = vmatpush1.bf16.msra.mxu0 0
      %4835 = vmatprep.subr.bf16.mxu0 0
      %4836 = vmatpush1.bf16.msra.mxu0 0
      %4837 = vmatprep.subr.bf16.mxu0 0
      %4838 = vmatpush1.bf16.msra.mxu0 0
      %4839 = vmatprep.subr.bf16.mxu0 0
      %4840 = vmatpush1.bf16.msra.mxu0 0
      %4841 = vmatprep.subr.bf16.mxu0 0
      %4842 = vmatpush1.bf16.msra.mxu0 0
      %4843 = vmatprep.mubr.bf16.mxu0 0
      %4844 = vmatmul.mubr.bf16.gmra.mrb[0].mxu0 %v4199
      %v4845 = vpop.f32.mrb[0].mxu0
      %v4846 = vadd.f32 0.0, %v4845
      %v4847 = vpop.f32.mrb[0].mxu0
      %v4848 = vpop.f32.mrb[0].mxu0
      %v4849 = vadd.f32 0.0, %v4848
      %v4850 = vpop.f32.mrb[0].mxu0
      %4851 = vdwg.mxu0
      %v4852 = vpack.c.bf16 %v4846, %v4846
      %v4854 = vunpack.c.l.b16 %v4852
      %v4855 = vpack.c.b16 %v4854, %v4854
      %v4856 = vrot.slane %v4855, 6
      %v4857 = vrot.slane %v4856, 4
      %vm4860 = vcmask 257026
      %4861 = vst.msk [vmem:[#allocation5 + $0x8] sm:$0xc] %vm4860, %v4856
      %vm4862 = vcmask 253952
      %vm4863 = vsmask.f32 256
      %vm4864 = vmand %vm4862, %vm4863
      %v4865 = vld [vmem:[#allocation5 + $0xc] sm:$0x1]
      %v4866 = vsel %vm4864, %v4857, %v4865
      %4867 = vst [vmem:[#allocation5 + $0xc] sm:$0x1] %v4866
      %v4868 = vpack.c.bf16 %v4849, %v4846
      %v4870 = vunpack.c.l.b16 %v4868
      %v4871 = vunpack.c.h.b16 %v4868
      %v4872 = vpack.c.b16 %v4870, %v4870
      %v4873 = vpack.c.b16 %v4871, %v4871
      %vm4874 = vsmask.f32 7440
      %vm4875 = vmor %vm4509, %vm4874
      %v4877 = vshrl.u32 %v4872, 16
      %v4879 = vrot.slane %v4877, 4
      %v4880 = vshll.u32 %v4872, 16
      %v4882 = vrot.slane %v4880, 5
      %v4883 = vor.u32 %v4879, %v4882
      %v4884 = vrot.slane %v4883, 4
      %v4886 = vshll.u32 %v4873, 16
      %v4888 = vrot.slane %v4886, 5
      %v4889 = vsel %vm4875, %v4884, %v4888
      %v4890 = vshrl.u32 %v4873, 16
      %v4892 = vrot.slane %v4890, 4
      %v4893 = vrot.slane %v4892, 4
      %4896 = vst.msk [vmem:[%s4368 + $0x8] sm:$0xc] %vm4860, %v4889
      %v4897 = vld [vmem:[%s4368 + $0xc] sm:$0x1]
      %v4898 = vsel %vm4864, %v4893, %v4897
      %4899 = vst [vmem:[%s4368 + $0xc] sm:$0x1] %v4898
      %v4900 = vld [vmem:[#allocation5] sm:$0xf]
      %v4901 = vld [vmem:[#allocation5 + $0x4] sm:$0xf]
      %v4902 = vld [vmem:[#allocation5 + $0x8] sm:$0x3]
      %4903 = vst.msk [vmem:[#allocation6] sm:$0xf] %vm4151, %v4900
      %4904 = vst.msk [vmem:[#allocation6 + $0xc] sm:$0xf] %vm4151, %v4901
      %4905 = vst.msk [vmem:[#allocation6 + $0x18] sm:$0x3] %vm4701, %v4902
      %v4906 = vld [vmem:[%s4368] sm:$0xf]
      %v4907 = vld [vmem:[%s4368 + $0x4] sm:$0xf]
      %v4908 = vld [vmem:[%s4368 + $0x8] sm:$0x3]
      %4912 = vrot.lane.b32.xlu0 %v4906, 32
      %v4913 = vpop.permute.xlu0 %4912
      %4914 = vrot.lane.b32.xlu0 %v4907, 32
      %v4915 = vpop.permute.xlu0 %4914
      %4916 = vrot.lane.b32.xlu0 %v4908, 32
      %v4917 = vpop.permute.xlu0 %4916
      %vm4921 = vcmask 519424
      %4922 = vst.msk [vmem:[#allocation6] sm:$0xf] %vm4921, %v4913
      %4923 = vst.msk [vmem:[#allocation6 + $0xc] sm:$0xf] %vm4921, %v4915
      %vm4924 = vcmask 517376
      %4925 = vst.msk [vmem:[#allocation6 + $0x18] sm:$0x3] %vm4924, %v4917
      %v4926 = vld [vmem:[#allocation5] sm:$0xf]
      %v4927 = vld [vmem:[#allocation5 + $0x4] sm:$0xf]
      %v4928 = vld [vmem:[#allocation5 + $0x8] sm:$0x7]
      %v4930 = vshrl.u32 %v4926, 16
      %v4932 = vrot.slane %v4930, 4
      %v4933 = vshll.u32 %v4926, 16
      %v4935 = vrot.slane %v4933, 5
      %v4936 = vor.u32 %v4932, %v4935
      %v4937 = vrot.slane %v4936, 4
      %v4939 = vshll.u32 %v4927, 16
      %v4941 = vrot.slane %v4939, 5
      %v4942 = vsel %vm4875, %v4937, %v4941
      %v4943 = vshrl.u32 %v4927, 16
      %v4945 = vrot.slane %v4943, 4
      %v4946 = vor.u32 %v4945, %v4941
      %v4947 = vrot.slane %v4946, 4
      %v4949 = vshll.u32 %v4928, 16
      %v4951 = vrot.slane %v4949, 5
      %v4952 = vsel %vm4875, %v4947, %v4951
      %v4953 = vshrl.u32 %v4928, 16
      %v4955 = vrot.slane %v4953, 4
      %v4956 = vor.u32 %v4955, %v4951
      %v4957 = vrot.slane %v4956, 4
      %4958 = vrot.lane.b32.xlu0 %v4942, 64
      %v4959 = vpop.permute.xlu0 %4958
      %4960 = vrot.lane.b32.xlu0 %v4952, 64
      %v4961 = vpop.permute.xlu0 %4960
      %4962 = vrot.lane.b32.xlu0 %v4957, 64
      %v4963 = vpop.permute.xlu0 %4962
      %vm4967 = vcmask 781824
      %4968 = vst.msk [vmem:[#allocation6] sm:$0xf] %vm4967, %v4959
      %4969 = vst.msk [vmem:[#allocation6 + $0xc] sm:$0xf] %vm4967, %v4961
      %vm4970 = vcmask 779776
      %4971 = vst.msk [vmem:[#allocation6 + $0x18] sm:$0x3] %vm4970, %v4963
      %v4972 = vld [vmem:[%s4247] sm:$0xf]
      %v4973 = vld [vmem:[%s4247 + $0x4] sm:$0xf]
      %v4974 = vld [vmem:[%s4247 + $0x8] sm:$0x3]
      %4978 = vrot.lane.b32.xlu0 %v4972, 96
      %v4979 = vpop.permute.xlu0 %4978
      %4980 = vrot.lane.b32.xlu0 %v4973, 96
      %v4981 = vpop.permute.xlu0 %4980
      %4982 = vrot.lane.b32.xlu0 %v4974, 96
      %v4983 = vpop.permute.xlu0 %4982
      %vm4987 = vcmask 1044224
      %4988 = vst.msk [vmem:[#allocation6] sm:$0xf] %vm4987, %v4979
      %4989 = vst.msk [vmem:[#allocation6 + $0xc] sm:$0xf] %vm4987, %v4981
      %vm4990 = vcmask 1042176
      %4991 = vst.msk [vmem:[#allocation6 + $0x18] sm:$0x3] %vm4990, %v4983
      %v4992 = vld [vmem:[%s4282] sm:$0xf]
      %v4993 = vld [vmem:[%s4282 + $0x4] sm:$0xf]
      %v4994 = vld [vmem:[%s4282 + $0x8] sm:$0x3]
      %4995 = vst.msk [vmem:[#allocation6 + $0x4] sm:$0xf] %vm4151, %v4992
      %4996 = vst.msk [vmem:[#allocation6 + $0x10] sm:$0xf] %vm4151, %v4993
      %4997 = vst.msk [vmem:[#allocation6 + $0x1c] sm:$0x3] %vm4701, %v4994
      %v4998 = vld [vmem:[%s4247] sm:$0xf]
      %v4999 = vld [vmem:[%s4247 + $0x4] sm:$0xf]
      %v5000 = vld [vmem:[%s4247 + $0x8] sm:$0x7]
      %v5002 = vshrl.u32 %v4998, 16
      %v5004 = vrot.slane %v5002, 4
      %v5005 = vshll.u32 %v4998, 16
      %v5007 = vrot.slane %v5005, 5
      %v5008 = vor.u32 %v5004, %v5007
      %v5009 = vrot.slane %v5008, 4
      %v5011 = vshll.u32 %v4999, 16
      %v5013 = vrot.slane %v5011, 5
      %v5014 = vsel %vm4875, %v5009, %v5013
      %v5015 = vshrl.u32 %v4999, 16
      %v5017 = vrot.slane %v5015, 4
      %v5018 = vor.u32 %v5017, %v5013
      %v5019 = vrot.slane %v5018, 4
      %v5021 = vshll.u32 %v5000, 16
      %v5023 = vrot.slane %v5021, 5
      %v5024 = vsel %vm4875, %v5019, %v5023
      %v5025 = vshrl.u32 %v5000, 16
      %v5027 = vrot.slane %v5025, 4
      %v5028 = vor.u32 %v5027, %v5023
      %v5029 = vrot.slane %v5028, 4
      %5030 = vrot.lane.b32.xlu0 %v5014, 32
      %v5031 = vpop.permute.xlu0 %5030
      %5032 = vrot.lane.b32.xlu0 %v5024, 32
      %v5033 = vpop.permute.xlu0 %5032
      %5034 = vrot.lane.b32.xlu0 %v5029, 32
      %v5035 = vpop.permute.xlu0 %5034
      %5039 = vst.msk [vmem:[#allocation6 + $0x4] sm:$0xf] %vm4921, %v5031
      %5040 = vst.msk [vmem:[#allocation6 + $0x10] sm:$0xf] %vm4921, %v5033
      %5041 = vst.msk [vmem:[#allocation6 + $0x1c] sm:$0x3] %vm4924, %v5035
      %v5042 = vld [vmem:[#allocation5] sm:$0xc]
      %v5043 = vld [vmem:[#allocation5 + $0x4] sm:$0xf]
      %v5044 = vld [vmem:[#allocation5 + $0x8] sm:$0xf]
      %v5045 = vld [vmem:[#allocation5 + $0xc] sm:$0x1]
      %v5047 = vshrl.u32 %v5042, 16
      %v5049 = vrot.slane %v5047, 6
      %v5050 = vshll.u32 %v5042, 16
      %v5052 = vrot.slane %v5050, 7
      %v5053 = vor.u32 %v5049, %v5052
      %v5054 = vrot.slane %v5053, 4
      %v5056 = vshrl.u32 %v5043, 16
      %v5058 = vrot.slane %v5056, 6
      %v5059 = vshll.u32 %v5043, 16
      %v5061 = vrot.slane %v5059, 7
      %v5062 = vor.u32 %v5058, %v5061
      %v5063 = vsel %vm4262, %v5054, %v5062
      %v5064 = vrot.slane %v5062, 4
      %v5066 = vshrl.u32 %v5044, 16
      %v5068 = vrot.slane %v5066, 6
      %v5069 = vshll.u32 %v5044, 16
      %v5071 = vrot.slane %v5069, 7
      %v5072 = vor.u32 %v5068, %v5071
      %v5073 = vsel %vm4262, %v5064, %v5072
      %v5074 = vrot.slane %v5072, 4
      %v5076 = vshll.u32 %v5045, 16
      %v5078 = vrot.slane %v5076, 7
      %v5079 = vsel %vm4262, %v5074, %v5078
      %5080 = vrot.lane.b32.xlu0 %v5063, 64
      %v5081 = vpop.permute.xlu0 %5080
      %5082 = vrot.lane.b32.xlu0 %v5073, 64
      %v5083 = vpop.permute.xlu0 %5082
      %5084 = vrot.lane.b32.xlu0 %v5079, 64
      %v5085 = vpop.permute.xlu0 %5084
      %5089 = vst.msk [vmem:[#allocation6 + $0x4] sm:$0xf] %vm4967, %v5081
      %5090 = vst.msk [vmem:[#allocation6 + $0x10] sm:$0xf] %vm4967, %v5083
      %5091 = vst.msk [vmem:[#allocation6 + $0x1c] sm:$0x3] %vm4970, %v5085
      %v5092 = vld [vmem:[%s4368] sm:$0xc]
      %v5093 = vld [vmem:[%s4368 + $0x4] sm:$0xf]
      %v5094 = vld [vmem:[%s4368 + $0x8] sm:$0xf]
      %v5095 = vld [vmem:[%s4368 + $0xc] sm:$0x1]
      %v5097 = vshrl.u32 %v5092, 16
      %v5099 = vrot.slane %v5097, 6
      %v5100 = vshll.u32 %v5092, 16
      %v5102 = vrot.slane %v5100, 7
      %v5103 = vor.u32 %v5099, %v5102
      %v5104 = vrot.slane %v5103, 4
      %v5106 = vshrl.u32 %v5093, 16
      %v5108 = vrot.slane %v5106, 6
      %v5109 = vshll.u32 %v5093, 16
      %v5111 = vrot.slane %v5109, 7
      %v5112 = vor.u32 %v5108, %v5111
      %v5113 = vsel %vm4262, %v5104, %v5112
      %v5114 = vrot.slane %v5112, 4
      %v5116 = vshrl.u32 %v5094, 16
      %v5118 = vrot.slane %v5116, 6
      %v5119 = vshll.u32 %v5094, 16
      %v5121 = vrot.slane %v5119, 7
      %v5122 = vor.u32 %v5118, %v5121
      %v5123 = vsel %vm4262, %v5114, %v5122
      %v5124 = vrot.slane %v5122, 4
      %v5126 = vshll.u32 %v5095, 16
      %v5128 = vrot.slane %v5126, 7
      %v5129 = vsel %vm4262, %v5124, %v5128
      %5130 = vrot.lane.b32.xlu0 %v5113, 96
      %v5131 = vpop.permute.xlu0 %5130
      %5132 = vrot.lane.b32.xlu0 %v5123, 96
      %v5133 = vpop.permute.xlu0 %5132
      %5134 = vrot.lane.b32.xlu0 %v5129, 96
      %v5135 = vpop.permute.xlu0 %5134
      %5139 = vst.msk [vmem:[#allocation6 + $0x4] sm:$0xf] %vm4987, %v5131
      %5140 = vst.msk [vmem:[#allocation6 + $0x10] sm:$0xf] %vm4987, %v5133
      %5141 = vst.msk [vmem:[#allocation6 + $0x1c] sm:$0x3] %vm4990, %v5135
      %v5142 = vld [vmem:[#allocation5] sm:$0x8]
      %v5143 = vld [vmem:[#allocation5 + $0x4] sm:$0xf]
      %v5144 = vld [vmem:[#allocation5 + $0x8] sm:$0xf]
      %v5145 = vld [vmem:[#allocation5 + $0xc] sm:$0x1]
      %v5150 = vrot.slane %v5142, 7
      %v5151 = vrot.slane %v5150, 4
      %v5152 = vrot.slane %v5143, 7
      %v5153 = vsel %vm575, %v5151, %v5152
      %v5154 = vrot.slane %v5152, 4
      %v5155 = vrot.slane %v5144, 7
      %v5156 = vsel %vm575, %v5154, %v5155
      %v5157 = vrot.slane %v5155, 4
      %v5158 = vrot.slane %v5145, 7
      %v5159 = vsel %vm575, %v5157, %v5158
      %5163 = vst.msk [vmem:[#allocation6 + $0x8] sm:$0xf] %vm4151, %v5153
      %5164 = vst.msk [vmem:[#allocation6 + $0x14] sm:$0xf] %vm4151, %v5156
      %5165 = vst.msk [vmem:[#allocation6 + $0x20] sm:$0x3] %vm4701, %v5159
      %v5166 = vld [vmem:[#allocation6] sm:$0xff]
      %v5167 = vld [vmem:[#allocation6 + $0x8] sm:$0xf]
      %v5168 = vld [vmem:[#allocation6 + $0xc] sm:$0xff]
      %v5169 = vld [vmem:[#allocation6 + $0x14] sm:$0xf]
      %v5170 = vld [vmem:[#allocation6 + $0x18] sm:$0x33]
      %v5171 = vld [vmem:[#allocation6 + $0x20] sm:$0x3]
      %v5172 = vld [vmem:[%s5] sm:$0xf]
      %v5173 = vld [vmem:[%s5 + $0x4] sm:$0xf]
      %v5174 = vld [vmem:[%s5 + $0x8] sm:$0xf]
      %v5175 = vld [vmem:[%s5 + $0xc] sm:$0xf]
      %v5176 = vld [vmem:[%s5 + $0x10] sm:$0xf]
      %v5177 = vld [vmem:[%s5 + $0x14] sm:$0xf]
      %v5178 = vld [vmem:[%s5 + $0x18] sm:$0xf]
      %v5179 = vld [vmem:[%s5 + $0x1c] sm:$0xf]
      %v5180 = vld [vmem:[%s5 + $0x20] sm:$0xf]
      %v5181 = vld [vmem:[%s5 + $0x24] sm:$0xf]
      %v5182 = vld [vmem:[%s5 + $0x28] sm:$0xf]
      %v5183 = vld [vmem:[%s5 + $0x2c] sm:$0xf]
      %v5184 = vld [vmem:[%s5 + $0x30] sm:$0xf]
      %v5185 = vld [vmem:[%s5 + $0x34] sm:$0xf]
      %v5186 = vld [vmem:[%s5 + $0x38] sm:$0xf]
      %v5187 = vld [vmem:[%s5 + $0x3c] sm:$0xf]
      %v5188 = vld [vmem:[%s5 + $0x40] sm:$0xf]
      %v5189 = vld [vmem:[%s5 + $0x44] sm:$0xf]
      %v5190 = vld [vmem:[%s5 + $0x48] sm:$0xf]
      %v5191 = vld [vmem:[%s5 + $0x4c] sm:$0xf]
      %v5192 = vld [vmem:[%s5 + $0x50] sm:$0xf]
      %v5193 = vld [vmem:[%s5 + $0x54] sm:$0xf]
      %v5194 = vld [vmem:[%s5 + $0x58] sm:$0xf]
      %v5195 = vld [vmem:[%s5 + $0x5c] sm:$0xf]
      %v5196 = vld [vmem:[%s5 + $0x60] sm:$0xf]
      %v5197 = vld [vmem:[%s5 + $0x64] sm:$0xf]
      %v5198 = vld [vmem:[%s5 + $0x68] sm:$0xf]
      %v5199 = vld [vmem:[%s5 + $0x6c] sm:$0xf]
      %v5200 = vld [vmem:[%s5 + $0x70] sm:$0xf]
      %v5201 = vld [vmem:[%s5 + $0x74] sm:$0xf]
      %v5202 = vld [vmem:[%s5 + $0x78] sm:$0xf]
      %v5203 = vld [vmem:[%s5 + $0x7c] sm:$0xf]
      %v5204 = vld [vmem:[%s5 + $0x80] sm:$0xf]
      %v5205 = vld [vmem:[%s5 + $0x84] sm:$0xf]
      %v5206 = vld [vmem:[%s5 + $0x88] sm:$0xf]
      %v5207 = vld [vmem:[%s5 + $0x8c] sm:$0xf]
      %v5208 = vld [vmem:[%s6] sm:$0x1]
      %v5210 = vlaneseq
      %v5211 = vshrl.u32 %v5210, 7
      %v5212 = vsub.s32 0, %v5211
      %v5213 = vrot.slane %v5208, %v5212
      %v5221 = vunpack.c.l.b16 %v5166
      %v5222 = vunpack.c.h.b16 %v5166
      %v5223 = vunpack.c.l.b16 %v5167
      %v5224 = vunpack.c.l.b16 %v5168
      %v5225 = vunpack.c.h.b16 %v5168
      %v5226 = vunpack.c.l.b16 %v5169
      %v5227 = vunpack.c.l.b16 %v5170
      %v5228 = vunpack.c.h.b16 %v5170
      %v5229 = vunpack.c.l.b16 %v5171
      %v5230 = vpack.c.b16 %v5224, %v5221
      %v5231 = vpack.c.b16 %v5225, %v5222
      %v5232 = vpack.c.b16 %v5226, %v5223
      %v5233 = vpack.c.b16 %v5227, %v5227
      %v5234 = vpack.c.b16 %v5228, %v5228
      %v5235 = vpack.c.b16 %v5229, %v5229
      %v5276 = vunpack.c.l.b16 %v5172
      %v5277 = vunpack.c.l.b16 %v5173
      %v5278 = vunpack.c.l.b16 %v5174
      %v5279 = vunpack.c.l.b16 %v5175
      %v5280 = vunpack.c.l.b16 %v5176
      %v5281 = vunpack.c.l.b16 %v5177
      %v5282 = vunpack.c.l.b16 %v5178
      %v5283 = vunpack.c.l.b16 %v5179
      %v5284 = vunpack.c.l.b16 %v5180
      %v5285 = vunpack.c.l.b16 %v5181
      %v5286 = vunpack.c.l.b16 %v5182
      %v5287 = vunpack.c.l.b16 %v5183
      %v5288 = vunpack.c.l.b16 %v5184
      %v5289 = vunpack.c.l.b16 %v5185
      %v5290 = vunpack.c.l.b16 %v5186
      %v5291 = vunpack.c.l.b16 %v5187
      %v5292 = vunpack.c.l.b16 %v5188
      %v5293 = vunpack.c.l.b16 %v5189
      %v5294 = vunpack.c.l.b16 %v5190
      %v5295 = vunpack.c.l.b16 %v5191
      %v5296 = vunpack.c.l.b16 %v5192
      %v5297 = vunpack.c.l.b16 %v5193
      %v5298 = vunpack.c.l.b16 %v5194
      %v5299 = vunpack.c.l.b16 %v5195
      %v5300 = vunpack.c.l.b16 %v5196
      %v5301 = vunpack.c.l.b16 %v5197
      %v5302 = vunpack.c.l.b16 %v5198
      %v5303 = vunpack.c.l.b16 %v5199
      %v5304 = vunpack.c.l.b16 %v5200
      %v5305 = vunpack.c.l.b16 %v5201
      %v5306 = vunpack.c.l.b16 %v5202
      %v5307 = vunpack.c.l.b16 %v5203
      %v5308 = vunpack.c.l.b16 %v5204
      %v5309 = vunpack.c.l.b16 %v5205
      %v5310 = vunpack.c.l.b16 %v5206
      %v5311 = vunpack.c.l.b16 %v5207
      %v5312 = vpack.c.b16 %v5277, %v5276
      %v5313 = vpack.c.b16 %v5279, %v5278
      %v5314 = vpack.c.b16 %v5281, %v5280
      %v5315 = vpack.c.b16 %v5283, %v5282
      %v5316 = vpack.c.b16 %v5285, %v5284
      %v5317 = vpack.c.b16 %v5287, %v5286
      %v5318 = vpack.c.b16 %v5289, %v5288
      %v5319 = vpack.c.b16 %v5291, %v5290
      %v5320 = vpack.c.b16 %v5293, %v5292
      %v5321 = vpack.c.b16 %v5295, %v5294
      %v5322 = vpack.c.b16 %v5297, %v5296
      %v5323 = vpack.c.b16 %v5299, %v5298
      %v5324 = vpack.c.b16 %v5301, %v5300
      %v5325 = vpack.c.b16 %v5303, %v5302
      %v5326 = vpack.c.b16 %v5305, %v5304
      %v5327 = vpack.c.b16 %v5307, %v5306
      %v5328 = vpack.c.b16 %v5309, %v5308
      %v5329 = vpack.c.b16 %v5311, %v5310
      %v5349 = vsel %vm4145, %v5232, 0
      %v5352 = vsel %vm4145, %v5235, 0
      %5354 = vmatprep.subr.bf16.mxu0 0
      %5355 = vmatpush1.bf16.msra.mxu0 %v5312
      %5356 = vmatprep.subr.bf16.mxu0 0
      %5357 = vmatpush1.bf16.msra.mxu0 %v5313
      %5358 = vmatprep.subr.bf16.mxu0 0
      %5359 = vmatpush1.bf16.msra.mxu0 %v5314
      %5360 = vmatprep.subr.bf16.mxu0 0
      %5361 = vmatpush1.bf16.msra.mxu0 %v5315
      %5362 = vmatprep.subr.bf16.mxu0 0
      %5363 = vmatpush1.bf16.msra.mxu0 %v5316
      %5364 = vmatprep.subr.bf16.mxu0 0
      %5365 = vmatpush1.bf16.msra.mxu0 %v5317
      %5366 = vmatprep.subr.bf16.mxu0 0
      %5367 = vmatpush1.bf16.msra.mxu0 %v5318
      %5368 = vmatprep.subr.bf16.mxu0 0
      %5369 = vmatpush1.bf16.msra.mxu0 %v5319
      %5370 = vmatprep.subr.bf16.mxu0 0
      %5371 = vmatpush1.bf16.msra.mxu0 %v5320
      %5372 = vmatprep.subr.bf16.mxu0 0
      %5373 = vmatpush1.bf16.msra.mxu0 %v5321
      %5374 = vmatprep.subr.bf16.mxu0 0
      %5375 = vmatpush1.bf16.msra.mxu0 %v5322
      %5376 = vmatprep.subr.bf16.mxu0 0
      %5377 = vmatpush1.bf16.msra.mxu0 %v5323
      %5378 = vmatprep.subr.bf16.mxu0 0
      %5379 = vmatpush1.bf16.msra.mxu0 %v5324
      %5380 = vmatprep.subr.bf16.mxu0 0
      %5381 = vmatpush1.bf16.msra.mxu0 %v5325
      %5382 = vmatprep.subr.bf16.mxu0 0
      %5383 = vmatpush1.bf16.msra.mxu0 %v5326
      %5384 = vmatprep.subr.bf16.mxu0 0
      %5385 = vmatpush1.bf16.msra.mxu0 %v5327
      %5386 = vmatprep.mubr.bf16.mxu0 %v5231
      %5387 = vmatmul.mubr.bf16.gmra.mrb[0].mxu0 %v5230
      %v5388 = vpop.f32.mrb[0].mxu0
      %v5389 = vadd.f32 %v5213, %v5388
      %v5390 = vpop.f32.mrb[0].mxu0
      %v5391 = vpop.f32.mrb[0].mxu0
      %v5392 = vadd.f32 %v5213, %v5391
      %v5393 = vpop.f32.mrb[0].mxu0
      %5394 = vmatprep.mubr.bf16.mxu0 %v5234
      %5395 = vmatmul.mubr.bf16.gmra.mrb[0].mxu0 %v5233
      %v5396 = vpop.f32.mrb[0].mxu0
      %v5397 = vadd.f32 %v5213, %v5396
      %v5398 = vpop.f32.mrb[0].mxu0
      %v5399 = vpop.f32.mrb[0].mxu0
      %v5400 = vpop.f32.mrb[0].mxu0
      %5401 = vdwg.mxu0
      %5402 = vmatprep.subr.bf16.mxu0 0
      %5403 = vmatpush1.bf16.msra.mxu0 %v5328
      %5404 = vmatprep.subr.bf16.mxu0 0
      %5405 = vmatpush1.bf16.msra.mxu0 %v5329
      %5406 = vmatprep.subr.bf16.mxu0 0
      %5407 = vmatpush1.bf16.msra.mxu0 0
      %5408 = vmatprep.subr.bf16.mxu0 0
      %5409 = vmatpush1.bf16.msra.mxu0 0
      %5410 = vmatprep.subr.bf16.mxu0 0
      %5411 = vmatpush1.bf16.msra.mxu0 0
      %5412 = vmatprep.subr.bf16.mxu0 0
      %5413 = vmatpush1.bf16.msra.mxu0 0
      %5414 = vmatprep.subr.bf16.mxu0 0
      %5415 = vmatpush1.bf16.msra.mxu0 0
      %5416 = vmatprep.subr.bf16.mxu0 0
      %5417 = vmatpush1.bf16.msra.mxu0 0
      %5418 = vmatprep.subr.bf16.mxu0 0
      %5419 = vmatpush1.bf16.msra.mxu0 0
      %5420 = vmatprep.subr.bf16.mxu0 0
      %5421 = vmatpush1.bf16.msra.mxu0 0
      %5422 = vmatprep.subr.bf16.mxu0 0
      %5423 = vmatpush1.bf16.msra.mxu0 0
      %5424 = vmatprep.subr.bf16.mxu0 0
      %5425 = vmatpush1.bf16.msra.mxu0 0
      %5426 = vmatprep.subr.bf16.mxu0 0
      %5427 = vmatpush1.bf16.msra.mxu0 0
      %5428 = vmatprep.subr.bf16.mxu0 0
      %5429 = vmatpush1.bf16.msra.mxu0 0
      %5430 = vmatprep.subr.bf16.mxu0 0
      %5431 = vmatpush1.bf16.msra.mxu0 0
      %5432 = vmatprep.subr.bf16.mxu0 0
      %5433 = vmatpush1.bf16.msra.mxu0 0
      %5434 = vmatprep.mubr.bf16.mxu0 0
      %5435 = vmatmul.mubr.bf16.gmra.mrb[0].mxu0 %v5349
      %v5436 = vpop.f32.mrb[0].mxu0
      %v5437 = vadd.f32 %v5389, %v5436
      %v5438 = vpop.f32.mrb[0].mxu0
      %v5439 = vpop.f32.mrb[0].mxu0
      %v5440 = vadd.f32 %v5392, %v5439
      %v5441 = vpop.f32.mrb[0].mxu0
      %5442 = vmatprep.mubr.bf16.mxu0 0
      %5443 = vmatmul.mubr.bf16.gmra.mrb[0].mxu0 %v5352
      %v5444 = vpop.f32.mrb[0].mxu0
      %v5445 = vadd.f32 %v5397, %v5444
      %v5446 = vpop.f32.mrb[0].mxu0
      %v5447 = vpop.f32.mrb[0].mxu0
      %v5448 = vpop.f32.mrb[0].mxu0
      %5449 = vdwg.mxu0
      %v5450 = vmax.f32 %v5437, 0.0
      %v5451 = vmax.f32 %v5440, 0.0
      %v5452 = vmax.f32 %v5445, 0.0
      %v5453 = vpack.c.bf16 %v5451, %v5450
      %v5454 = vpack.c.bf16 %v5452, %v5452
      %v5457 = vunpack.c.l.b16 %v5453
      %v5458 = vunpack.c.h.b16 %v5453
      %v5459 = vunpack.c.l.b16 %v5454
      %v5460 = vpack.c.b16 %v5457, %v5457
      %v5461 = vpack.c.b16 %v5458, %v5458
      %v5462 = vpack.c.b16 %v5459, %v5459
      %vm5466 = vcmask 519168
      %5467 = vst.msk [vmem:[#allocation7] sm:$0xf] %vm5466, %v5460
      %5468 = vst.msk [vmem:[#allocation7 + $0x4] sm:$0xf] %vm5466, %v5461
      %vm5469 = vcmask 517120
      %5470 = vst.msk [vmem:[#allocation7 + $0x8] sm:$0x3] %vm5469, %v5462
      %5471 = vst.msk [vmem:[#allocation8] sm:$0xf] %vm5466, 0
      %5472 = vst.msk [vmem:[#allocation8 + $0x4] sm:$0x3] %vm5469, 0
      %5473 = vst.msk [vmem:[#allocation8 + $0x8] sm:$0xf] %vm5466, 0
      %5474 = vst.msk [vmem:[#allocation8 + $0xc] sm:$0x3] %vm5469, 0
      %5475 = vst.msk [vmem:[#allocation8 + $0x10] sm:$0xf] %vm5466, 0
      %5476 = vst.msk [vmem:[#allocation8 + $0x14] sm:$0x3] %vm5469, 0
      %5477 = vst.msk [vmem:[#allocation8 + $0x18] sm:$0xf] %vm5466, 0
      %5478 = vst.msk [vmem:[#allocation8 + $0x1c] sm:$0x3] %vm5469, 0
      %vm5479 = vcmp.ge.s32.totalorder %v445, 3
      %v5480 = vsel %vm5479, 1, 0
      %v5481 = vmul.u32 %v5480, 3
      %v5482 = vsub.s32 %v445, %v5481
      %v5483 = vmul.u32 %v5482, 2
      %v5484 = vadd.s32 %v5483, %v5480
      %v5485 = vsub.s32 %v5484, 1
      %vm5486 = vcmp.eq.s32.totalorder %v449, %v5485
      %vm5487 = vcmp.ge.s32.totalorder %v5485, 0
      %vm5488 = vmand %vm5486, %vm5487
      %vm5489 = vcmp.lt.s32.totalorder %v5485, 4
      %vm5490 = vmand %vm5488, %vm5489
      %v5491 = vsel %vm5490, 1.0, 0.0
      %v5492 = vpack.c.bf16 %v5491, %v5491
      %v5493 = vld [vmem:[#allocation7] sm:$0x7]
      %vm5494 = vcmask 39936
      %v5496 = vsel %vm5494, %v5492, 0
      %vm5498 = vcmask 1041408
      %vm5499 = vcmask 1042432
      %v5500 = vsel %vm5498, 4294967295, 65535
      %v5501 = vsel %vm5499, %v5500, 0
      %v5503 = vand.u32 %v5493, %v5501
      %5505 = vmatprep.subr.bf16.mxu0 0
      %5506 = vmatpush1.bf16.msra.mxu0 %v5503
      %5507 = vmatprep.subr.bf16.mxu0 0
      %5508 = vmatpush1.bf16.msra.mxu0 0
      %5509 = vmatprep.subr.bf16.mxu0 0
      %5510 = vmatpush1.bf16.msra.mxu0 0
      %5511 = vmatprep.subr.bf16.mxu0 0
      %5512 = vmatpush1.bf16.msra.mxu0 0
      %5513 = vmatprep.subr.bf16.mxu0 0
      %5514 = vmatpush1.bf16.msra.mxu0 0
      %5515 = vmatprep.subr.bf16.mxu0 0
      %5516 = vmatpush1.bf16.msra.mxu0 0
      %5517 = vmatprep.subr.bf16.mxu0 0
      %5518 = vmatpush1.bf16.msra.mxu0 0
      %5519 = vmatprep.subr.bf16.mxu0 0
      %5520 = vmatpush1.bf16.msra.mxu0 0
      %5521 = vmatprep.subr.bf16.mxu0 0
      %5522 = vmatpush1.bf16.msra.mxu0 0
      %5523 = vmatprep.subr.bf16.mxu0 0
      %5524 = vmatpush1.bf16.msra.mxu0 0
      %5525 = vmatprep.subr.bf16.mxu0 0
      %5526 = vmatpush1.bf16.msra.mxu0 0
      %5527 = vmatprep.subr.bf16.mxu0 0
      %5528 = vmatpush1.bf16.msra.mxu0 0
      %5529 = vmatprep.subr.bf16.mxu0 0
      %5530 = vmatpush1.bf16.msra.mxu0 0
      %5531 = vmatprep.subr.bf16.mxu0 0
      %5532 = vmatpush1.bf16.msra.mxu0 0
      %5533 = vmatprep.subr.bf16.mxu0 0
      %5534 = vmatpush1.bf16.msra.mxu0 0
      %5535 = vmatprep.subr.bf16.mxu0 0
      %5536 = vmatpush1.bf16.msra.mxu0 0
      %5537 = vmatprep.mubr.bf16.mxu0 0
      %5538 = vmatmul.mubr.bf16.gmra.mrb[0].mxu0 %v5496
      %v5539 = vpop.f32.mrb[0].mxu0
      %v5540 = vadd.f32 0.0, %v5539
      %v5541 = vpop.f32.mrb[0].mxu0
      %v5542 = vpop.f32.mrb[0].mxu0
      %v5543 = vpop.f32.mrb[0].mxu0
      %5544 = vdwg.mxu0
      %v5545 = vpack.c.bf16 %v5540, %v5540
      %s5546 = scalar_lea.vmem [#allocation8], 16
      %vm5547 = vcmask 517120
      %vm5548 = vmand %vm5547, %vm4260
      %v5549 = vld [vmem:[%s5546] sm:$0x3]
      %v5550 = vsel %vm5548, %v5545, %v5549
      %5551 = vst [vmem:[%s5546] sm:$0x3] %v5550
      %v5553 = vunpack.c.l.b16 %v5545
      %v5554 = vpack.c.b16 %v5553, %v5553
      %v5556 = vshrl.u32 %v5554, 16
      %v5558 = vrot.slane %v5556, 5
      %v5559 = vshll.u32 %v5554, 16
      %v5561 = vrot.slane %v5559, 6
      %v5562 = vor.u32 %v5558, %v5561
      %v5563 = vrot.slane %v5562, 4
      %s5565 = scalar_lea.vmem [#allocation8], 24
      %v5566 = vld [vmem:[%s5565] sm:$0x3]
      %v5567 = vsel %vm5548, %v5563, %v5566
      %5568 = vst [vmem:[%s5565] sm:$0x3] %v5567
      %v5569 = vld [vmem:[#allocation7] sm:$0xc]
      %v5570 = vld [vmem:[#allocation7 + $0x4] sm:$0x1]
      %v5573 = vunpack.c.l.b16 %v5569
      %v5574 = vunpack.c.l.b16 %v5570
      %v5575 = vpack.c.b16 %v5574, %v5573
      %v5577 = vshrl.u32 %v5575, 16
      %v5579 = vrot.slane %v5577, 2
      %v5580 = vshll.u32 %v5575, 16
      %v5582 = vrot.slane %v5580, 3
      %v5583 = vor.u32 %v5579, %v5582
      %v5585 = vand.u32 %v5583, %v5501
      %5587 = vmatprep.subr.bf16.mxu0 0
      %5588 = vmatpush1.bf16.msra.mxu0 %v5585
      %5589 = vmatprep.subr.bf16.mxu0 0
      %5590 = vmatpush1.bf16.msra.mxu0 0
      %5591 = vmatprep.subr.bf16.mxu0 0
      %5592 = vmatpush1.bf16.msra.mxu0 0
      %5593 = vmatprep.subr.bf16.mxu0 0
      %5594 = vmatpush1.bf16.msra.mxu0 0
      %5595 = vmatprep.subr.bf16.mxu0 0
      %5596 = vmatpush1.bf16.msra.mxu0 0
      %5597 = vmatprep.subr.bf16.mxu0 0
      %5598 = vmatpush1.bf16.msra.mxu0 0
      %5599 = vmatprep.subr.bf16.mxu0 0
      %5600 = vmatpush1.bf16.msra.mxu0 0
      %5601 = vmatprep.subr.bf16.mxu0 0
      %5602 = vmatpush1.bf16.msra.mxu0 0
      %5603 = vmatprep.subr.bf16.mxu0 0
      %5604 = vmatpush1.bf16.msra.mxu0 0
      %5605 = vmatprep.subr.bf16.mxu0 0
      %5606 = vmatpush1.bf16.msra.mxu0 0
      %5607 = vmatprep.subr.bf16.mxu0 0
      %5608 = vmatpush1.bf16.msra.mxu0 0
      %5609 = vmatprep.subr.bf16.mxu0 0
      %5610 = vmatpush1.bf16.msra.mxu0 0
      %5611 = vmatprep.subr.bf16.mxu0 0
      %5612 = vmatpush1.bf16.msra.mxu0 0
      %5613 = vmatprep.subr.bf16.mxu0 0
      %5614 = vmatpush1.bf16.msra.mxu0 0
      %5615 = vmatprep.subr.bf16.mxu0 0
      %5616 = vmatpush1.bf16.msra.mxu0 0
      %5617 = vmatprep.subr.bf16.mxu0 0
      %5618 = vmatpush1.bf16.msra.mxu0 0
      %5619 = vmatprep.mubr.bf16.mxu0 0
      %5620 = vmatmul.mubr.bf16.gmra.mrb[0].mxu0 %v5496
      %v5621 = vpop.f32.mrb[0].mxu0
      %v5622 = vadd.f32 0.0, %v5621
      %v5623 = vpop.f32.mrb[0].mxu0
      %v5624 = vpop.f32.mrb[0].mxu0
      %v5625 = vpop.f32.mrb[0].mxu0
      %5626 = vdwg.mxu0
      %v5627 = vpack.c.bf16 %v5622, %v5622
      %v5629 = vunpack.c.l.b16 %v5627
      %v5630 = vpack.c.b16 %v5629, %v5629
      %v5632 = vshrl.u32 %v5630, 16
      %v5634 = vrot.slane %v5632, 6
      %v5635 = vshll.u32 %v5630, 16
      %v5637 = vrot.slane %v5635, 7
      %v5638 = vor.u32 %v5634, %v5637
      %vm5640 = vcmask 518145
      %vm5641 = vsmask.f32 7942
      %vm5642 = vmand %vm5640, %vm5641
      %v5643 = vld [vmem:[#allocation8] sm:$0x6]
      %v5644 = vsel %vm5642, %v5638, %v5643
      %5645 = vst [vmem:[#allocation8] sm:$0x6] %v5644
      %s5646 = scalar_lea.vmem [#allocation8], 8
      %v5647 = vld [vmem:[%s5646] sm:$0x6]
      %v5648 = vsel %vm5642, %v5627, %v5647
      %5649 = vst [vmem:[%s5646] sm:$0x6] %v5648
      %v5650 = vld [vmem:[#allocation7 + $0x4] sm:$0xe]
      %v5652 = vunpack.c.l.b16 %v5650
      %v5653 = vpack.c.b16 %v5652, %v5652
      %v5654 = vrot.slane %v5653, 1
      %v5656 = vand.u32 %v5654, %v5501
      %5658 = vmatprep.subr.bf16.mxu0 0
      %5659 = vmatpush1.bf16.msra.mxu0 %v5656
      %5660 = vmatprep.subr.bf16.mxu0 0
      %5661 = vmatpush1.bf16.msra.mxu0 0
      %5662 = vmatprep.subr.bf16.mxu0 0
      %5663 = vmatpush1.bf16.msra.mxu0 0
      %5664 = vmatprep.subr.bf16.mxu0 0
      %5665 = vmatpush1.bf16.msra.mxu0 0
      %5666 = vmatprep.subr.bf16.mxu0 0
      %5667 = vmatpush1.bf16.msra.mxu0 0
      %5668 = vmatprep.subr.bf16.mxu0 0
      %5669 = vmatpush1.bf16.msra.mxu0 0
      %5670 = vmatprep.subr.bf16.mxu0 0
      %5671 = vmatpush1.bf16.msra.mxu0 0
      %5672 = vmatprep.subr.bf16.mxu0 0
      %5673 = vmatpush1.bf16.msra.mxu0 0
      %5674 = vmatprep.subr.bf16.mxu0 0
      %5675 = vmatpush1.bf16.msra.mxu0 0
      %5676 = vmatprep.subr.bf16.mxu0 0
      %5677 = vmatpush1.bf16.msra.mxu0 0
      %5678 = vmatprep.subr.bf16.mxu0 0
      %5679 = vmatpush1.bf16.msra.mxu0 0
      %5680 = vmatprep.subr.bf16.mxu0 0
      %5681 = vmatpush1.bf16.msra.mxu0 0
      %5682 = vmatprep.subr.bf16.mxu0 0
      %5683 = vmatpush1.bf16.msra.mxu0 0
      %5684 = vmatprep.subr.bf16.mxu0 0
      %5685 = vmatpush1.bf16.msra.mxu0 0
      %5686 = vmatprep.subr.bf16.mxu0 0
      %5687 = vmatpush1.bf16.msra.mxu0 0
      %5688 = vmatprep.subr.bf16.mxu0 0
      %5689 = vmatpush1.bf16.msra.mxu0 0
      %5690 = vmatprep.mubr.bf16.mxu0 0
      %5691 = vmatmul.mubr.bf16.gmra.mrb[0].mxu0 %v5496
      %v5692 = vpop.f32.mrb[0].mxu0
      %v5693 = vadd.f32 0.0, %v5692
      %v5694 = vpop.f32.mrb[0].mxu0
      %v5695 = vpop.f32.mrb[0].mxu0
      %v5696 = vpop.f32.mrb[0].mxu0
      %5697 = vdwg.mxu0
      %v5698 = vpack.c.bf16 %v5693, %v5693
      %v5700 = vunpack.c.l.b16 %v5698
      %v5701 = vpack.c.b16 %v5700, %v5700
      %v5703 = vshrl.u32 %v5701, 16
      %v5705 = vrot.slane %v5703, 6
      %v5706 = vshll.u32 %v5701, 16
      %v5708 = vrot.slane %v5706, 7
      %v5709 = vor.u32 %v5705, %v5708
      %v5711 = vld [vmem:[%s5546] sm:$0x6]
      %v5712 = vsel %vm5642, %v5709, %v5711
      %5713 = vst [vmem:[%s5546] sm:$0x6] %v5712
      %v5714 = vld [vmem:[%s5565] sm:$0x6]
      %v5715 = vsel %vm5642, %v5698, %v5714
      %5716 = vst [vmem:[%s5565] sm:$0x6] %v5715
      %v5717 = vld [vmem:[#allocation7 + $0x4] sm:$0x8]
      %v5718 = vld [vmem:[#allocation7 + $0x8] sm:$0x3]
      %v5721 = vunpack.c.l.b16 %v5717
      %v5722 = vunpack.c.l.b16 %v5718
      %v5723 = vpack.c.b16 %v5722, %v5721
      %v5725 = vshrl.u32 %v5723, 16
      %v5727 = vrot.slane %v5725, 3
      %v5728 = vshll.u32 %v5723, 16
      %v5730 = vrot.slane %v5728, 4
      %v5731 = vor.u32 %v5727, %v5730
      %v5733 = vand.u32 %v5731, %v5501
      %5735 = vmatprep.subr.bf16.mxu0 0
      %5736 = vmatpush1.bf16.msra.mxu0 %v5733
      %5737 = vmatprep.subr.bf16.mxu0 0
      %5738 = vmatpush1.bf16.msra.mxu0 0
      %5739 = vmatprep.subr.bf16.mxu0 0
      %5740 = vmatpush1.bf16.msra.mxu0 0
      %5741 = vmatprep.subr.bf16.mxu0 0
      %5742 = vmatpush1.bf16.msra.mxu0 0
      %5743 = vmatprep.subr.bf16.mxu0 0
      %5744 = vmatpush1.bf16.msra.mxu0 0
      %5745 = vmatprep.subr.bf16.mxu0 0
      %5746 = vmatpush1.bf16.msra.mxu0 0
      %5747 = vmatprep.subr.bf16.mxu0 0
      %5748 = vmatpush1.bf16.msra.mxu0 0
      %5749 = vmatprep.subr.bf16.mxu0 0
      %5750 = vmatpush1.bf16.msra.mxu0 0
      %5751 = vmatprep.subr.bf16.mxu0 0
      %5752 = vmatpush1.bf16.msra.mxu0 0
      %5753 = vmatprep.subr.bf16.mxu0 0
      %5754 = vmatpush1.bf16.msra.mxu0 0
      %5755 = vmatprep.subr.bf16.mxu0 0
      %5756 = vmatpush1.bf16.msra.mxu0 0
      %5757 = vmatprep.subr.bf16.mxu0 0
      %5758 = vmatpush1.bf16.msra.mxu0 0
      %5759 = vmatprep.subr.bf16.mxu0 0
      %5760 = vmatpush1.bf16.msra.mxu0 0
      %5761 = vmatprep.subr.bf16.mxu0 0
      %5762 = vmatpush1.bf16.msra.mxu0 0
      %5763 = vmatprep.subr.bf16.mxu0 0
      %5764 = vmatpush1.bf16.msra.mxu0 0
      %5765 = vmatprep.subr.bf16.mxu0 0
      %5766 = vmatpush1.bf16.msra.mxu0 0
      %5767 = vmatprep.mubr.bf16.mxu0 0
      %5768 = vmatmul.mubr.bf16.gmra.mrb[0].mxu0 %v5496
      %v5769 = vpop.f32.mrb[0].mxu0
      %v5770 = vadd.f32 0.0, %v5769
      %v5771 = vpop.f32.mrb[0].mxu0
      %v5772 = vpop.f32.mrb[0].mxu0
      %v5773 = vpop.f32.mrb[0].mxu0
      %5774 = vdwg.mxu0
      %v5775 = vpack.c.bf16 %v5770, %v5770
      %v5777 = vunpack.c.l.b16 %v5775
      %v5778 = vpack.c.b16 %v5777, %v5777
      %v5779 = vrot.slane %v5778, 5
      %v5780 = vrot.slane %v5779, 4
      %vm5783 = vcmask 519171
      %5784 = vst.msk [vmem:[#allocation8] sm:$0x8] %vm5783, %v5779
      %vm5785 = vcmask 516096
      %vm5786 = vmand %vm5785, %vm4863
      %v5787 = vld [vmem:[#allocation8 + $0x4] sm:$0x1]
      %v5788 = vsel %vm5786, %v5780, %v5787
      %5789 = vst [vmem:[#allocation8 + $0x4] sm:$0x1] %v5788
      %v5791 = vshrl.u32 %v5778, 16
      %v5793 = vrot.slane %v5791, 6
      %v5794 = vshll.u32 %v5778, 16
      %v5796 = vrot.slane %v5794, 7
      %v5797 = vor.u32 %v5793, %v5796
      %v5798 = vrot.slane %v5793, 4
      %5801 = vst.msk [vmem:[%s5646] sm:$0x8] %vm5783, %v5797
      %v5802 = vld [vmem:[%s5646 + $0x4] sm:$0x1]
      %v5803 = vsel %vm5786, %v5798, %v5802
      %5804 = vst [vmem:[%s5646 + $0x4] sm:$0x1] %v5803
      %v5805 = vld [vmem:[#allocation8] sm:$0x7]
      %vm5806 = vcmask 518144
      %5807 = vst.msk [vmem:[#allocation9] sm:$0x7] %vm5806, %v5805
      %v5808 = vld [vmem:[%s5646] sm:$0x7]
      %5810 = vrot.lane.b32.xlu0 %v5808, 64
      %v5811 = vpop.permute.xlu0 %5810
      %vm5813 = vcmask 1042944
      %5814 = vst.msk [vmem:[#allocation9] sm:$0x7] %vm5813, %v5811
      %v5815 = vld [vmem:[#allocation8] sm:$0xf]
      %v5817 = vshrl.u32 %v5815, 16
      %v5819 = vrot.slane %v5817, 4
      %v5820 = vshll.u32 %v5815, 16
      %v5822 = vrot.slane %v5820, 5
      %v5823 = vor.u32 %v5819, %v5822
      %v5824 = vrot.slane %v5823, 4
      %5826 = vst.msk [vmem:[#allocation9 + $0x4] sm:$0x7] %vm5806, %v5824
      %v5827 = vld [vmem:[%s5546] sm:$0x7]
      %5829 = vrot.lane.b32.xlu0 %v5827, 64
      %v5830 = vpop.permute.xlu0 %5829
      %5832 = vst.msk [vmem:[#allocation9 + $0x4] sm:$0x7] %vm5813, %v5830
      %v5833 = vld [vmem:[%s5565] sm:$0x7]
      %5834 = vst.msk [vmem:[#allocation9 + $0x8] sm:$0x7] %vm5806, %v5833
      %v5835 = vld [vmem:[%s5546] sm:$0xf]
      %v5837 = vshrl.u32 %v5835, 16
      %v5839 = vrot.slane %v5837, 4
      %v5840 = vshll.u32 %v5835, 16
      %v5842 = vrot.slane %v5840, 5
      %v5843 = vor.u32 %v5839, %v5842
      %v5844 = vrot.slane %v5843, 4
      %5845 = vrot.lane.b32.xlu0 %v5844, 64
      %v5846 = vpop.permute.xlu0 %5845
      %5848 = vst.msk [vmem:[#allocation9 + $0x8] sm:$0x7] %vm5813, %v5846
      %v5849 = vld [vmem:[#allocation8] sm:$0xe]
      %v5850 = vld [vmem:[#allocation8 + $0x4] sm:$0x1]
      %v5852 = vshrl.u32 %v5849, 16
      %v5854 = vrot.slane %v5852, 5
      %v5855 = vshll.u32 %v5849, 16
      %v5857 = vrot.slane %v5855, 6
      %v5858 = vor.u32 %v5854, %v5857
      %v5859 = vrot.slane %v5858, 4
      %v5861 = vshll.u32 %v5850, 16
      %v5863 = vrot.slane %v5861, 6
      %v5864 = vsel %vm4521, %v5859, %v5863
      %5866 = vst.msk [vmem:[#allocation9 + $0xc] sm:$0x7] %vm5806, %v5864
      %v5867 = vld [vmem:[%s5646] sm:$0xe]
      %v5868 = vld [vmem:[%s5646 + $0x4] sm:$0x1]
      %v5870 = vshrl.u32 %v5867, 16
      %v5872 = vrot.slane %v5870, 5
      %v5873 = vshll.u32 %v5867, 16
      %v5875 = vrot.slane %v5873, 6
      %v5876 = vor.u32 %v5872, %v5875
      %v5877 = vrot.slane %v5876, 4
      %v5879 = vshll.u32 %v5868, 16
      %v5881 = vrot.slane %v5879, 6
      %v5882 = vsel %vm4521, %v5877, %v5881
      %5883 = vrot.lane.b32.xlu0 %v5882, 64
      %v5884 = vpop.permute.xlu0 %5883
      %5886 = vst.msk [vmem:[#allocation9 + $0xc] sm:$0x7] %vm5813, %v5884
      %v5887 = vld [vmem:[#allocation8] sm:$0xc]
      %v5888 = vld [vmem:[#allocation8 + $0x4] sm:$0x1]
      %v5891 = vrot.slane %v5887, 6
      %v5892 = vrot.slane %v5891, 4
      %v5893 = vrot.slane %v5888, 6
      %v5894 = vsel %vm743, %v5892, %v5893
      %5896 = vst.msk [vmem:[#allocation9 + $0x10] sm:$0x7] %vm5806, %v5894
      %v5897 = vld [vmem:[#allocation9] sm:$0x77]
      %v5898 = vld [vmem:[#allocation9 + $0x8] sm:$0x77]
      %v5899 = vld [vmem:[#allocation9 + $0x10] sm:$0x7]
      %v5900 = vld [vmem:[%s7] sm:$0xf]
      %v5901 = vld [vmem:[%s7 + $0x4] sm:$0xf]
      %v5902 = vld [vmem:[%s7 + $0x8] sm:$0xf]
      %v5903 = vld [vmem:[%s7 + $0xc] sm:$0xf]
      %v5904 = vld [vmem:[%s7 + $0x10] sm:$0xf]
      %v5905 = vld [vmem:[%s7 + $0x14] sm:$0xf]
      %v5906 = vld [vmem:[%s7 + $0x18] sm:$0xf]
      %v5907 = vld [vmem:[%s7 + $0x1c] sm:$0xf]
      %v5908 = vld [vmem:[%s7 + $0x20] sm:$0xf]
      %v5909 = vld [vmem:[%s7 + $0x24] sm:$0xf]
      %v5910 = vld [vmem:[%s7 + $0x28] sm:$0xf]
      %v5911 = vld [vmem:[%s7 + $0x2c] sm:$0xf]
      %v5912 = vld [vmem:[%s7 + $0x30] sm:$0xf]
      %v5913 = vld [vmem:[%s7 + $0x34] sm:$0xf]
      %v5914 = vld [vmem:[%s7 + $0x38] sm:$0xf]
      %v5915 = vld [vmem:[%s7 + $0x3c] sm:$0xf]
      %v5916 = vld [vmem:[%s7 + $0x40] sm:$0xf]
      %v5917 = vld [vmem:[%s7 + $0x44] sm:$0xf]
      %v5918 = vld [vmem:[%s7 + $0x48] sm:$0xf]
      %v5919 = vld [vmem:[%s7 + $0x4c] sm:$0xf]
      %v5920 = vld [vmem:[%s7 + $0x50] sm:$0xf]
      %v5921 = vld [vmem:[%s7 + $0x54] sm:$0xf]
      %v5922 = vld [vmem:[%s7 + $0x58] sm:$0xf]
      %v5923 = vld [vmem:[%s7 + $0x5c] sm:$0xf]
      %v5924 = vld [vmem:[%s7 + $0x60] sm:$0xf]
      %v5925 = vld [vmem:[%s7 + $0x64] sm:$0xf]
      %v5926 = vld [vmem:[%s7 + $0x68] sm:$0xf]
      %v5927 = vld [vmem:[%s7 + $0x6c] sm:$0xf]
      %v5928 = vld [vmem:[%s7 + $0x70] sm:$0xf]
      %v5929 = vld [vmem:[%s7 + $0x74] sm:$0xf]
      %v5930 = vld [vmem:[%s7 + $0x78] sm:$0xf]
      %v5931 = vld [vmem:[%s7 + $0x7c] sm:$0xf]
      %v5932 = vld [vmem:[%s7 + $0x80] sm:$0xf]
      %v5933 = vld [vmem:[%s7 + $0x84] sm:$0xf]
      %v5934 = vld [vmem:[%s7 + $0x88] sm:$0xf]
      %v5935 = vld [vmem:[%s7 + $0x8c] sm:$0xf]
      %v5936 = vld [vmem:[%s7 + $0x90] sm:$0xf]
      %v5937 = vld [vmem:[%s7 + $0x94] sm:$0xf]
      %v5938 = vld [vmem:[%s7 + $0x98] sm:$0xf]
      %v5939 = vld [vmem:[%s7 + $0x9c] sm:$0xf]
      %v5940 = vld [vmem:[%s7 + $0xa0] sm:$0xf]
      %v5941 = vld [vmem:[%s7 + $0xa4] sm:$0xf]
      %v5942 = vld [vmem:[%s7 + $0xa8] sm:$0xf]
      %v5943 = vld [vmem:[%s7 + $0xac] sm:$0xf]
      %v5944 = vld [vmem:[%s7 + $0xb0] sm:$0xf]
      %v5945 = vld [vmem:[%s7 + $0xb4] sm:$0xf]
      %v5946 = vld [vmem:[%s7 + $0xb8] sm:$0xf]
      %v5947 = vld [vmem:[%s7 + $0xbc] sm:$0xf]
      %v5948 = vld [vmem:[%s7 + $0xc0] sm:$0xf]
      %v5949 = vld [vmem:[%s7 + $0xc4] sm:$0xf]
      %v5950 = vld [vmem:[%s7 + $0xc8] sm:$0xf]
      %v5951 = vld [vmem:[%s7 + $0xcc] sm:$0xf]
      %v5952 = vld [vmem:[%s7 + $0xd0] sm:$0xf]
      %v5953 = vld [vmem:[%s7 + $0xd4] sm:$0xf]
      %v5954 = vld [vmem:[%s7 + $0xd8] sm:$0xf]
      %v5955 = vld [vmem:[%s7 + $0xdc] sm:$0xf]
      %v5956 = vld [vmem:[%s7 + $0xe0] sm:$0xf]
      %v5957 = vld [vmem:[%s7 + $0xe4] sm:$0xf]
      %v5958 = vld [vmem:[%s7 + $0xe8] sm:$0xf]
      %v5959 = vld [vmem:[%s7 + $0xec] sm:$0xf]
      %v5960 = vld [vmem:[%s7 + $0xf0] sm:$0xf]
      %v5961 = vld [vmem:[%s7 + $0xf4] sm:$0xf]
      %v5962 = vld [vmem:[%s7 + $0xf8] sm:$0xf]
      %v5963 = vld [vmem:[%s7 + $0xfc] sm:$0xf]
      %v5964 = vld [vmem:[%s7 + $0x100] sm:$0xf]
      %v5965 = vld [vmem:[%s7 + $0x104] sm:$0xf]
      %v5966 = vld [vmem:[%s7 + $0x108] sm:$0xf]
      %v5967 = vld [vmem:[%s7 + $0x10c] sm:$0xf]
      %v5968 = vld [vmem:[%s7 + $0x110] sm:$0xf]
      %v5969 = vld [vmem:[%s7 + $0x114] sm:$0xf]
      %v5970 = vld [vmem:[%s7 + $0x118] sm:$0xf]
      %v5971 = vld [vmem:[%s7 + $0x11c] sm:$0xf]
      %v5972 = vld [vmem:[%s8] sm:$0x1]
      %v5974 = vlaneseq
      %v5975 = vshrl.u32 %v5974, 7
      %v5976 = vsub.s32 0, %v5975
      %v5977 = vrot.slane %v5972, %v5976
      %v5982 = vunpack.c.l.b16 %v5897
      %v5983 = vunpack.c.h.b16 %v5897
      %v5984 = vunpack.c.l.b16 %v5898
      %v5985 = vunpack.c.h.b16 %v5898
      %v5986 = vunpack.c.l.b16 %v5899
      %v5987 = vpack.c.b16 %v5982, %v5982
      %v5988 = vpack.c.b16 %v5983, %v5983
      %v5989 = vpack.c.b16 %v5984, %v5984
      %v5990 = vpack.c.b16 %v5985, %v5985
      %v5991 = vpack.c.b16 %v5986, %v5986
      %v6068 = vunpack.c.l.b16 %v5900
      %v6069 = vunpack.c.l.b16 %v5901
      %v6070 = vunpack.c.l.b16 %v5902
      %v6071 = vunpack.c.l.b16 %v5903
      %v6072 = vunpack.c.l.b16 %v5904
      %v6073 = vunpack.c.l.b16 %v5905
      %v6074 = vunpack.c.l.b16 %v5906
      %v6075 = vunpack.c.l.b16 %v5907
      %v6076 = vunpack.c.l.b16 %v5908
      %v6077 = vunpack.c.l.b16 %v5909
      %v6078 = vunpack.c.l.b16 %v5910
      %v6079 = vunpack.c.l.b16 %v5911
      %v6080 = vunpack.c.l.b16 %v5912
      %v6081 = vunpack.c.l.b16 %v5913
      %v6082 = vunpack.c.l.b16 %v5914
      %v6083 = vunpack.c.l.b16 %v5915
      %v6084 = vunpack.c.l.b16 %v5916
      %v6085 = vunpack.c.l.b16 %v5917
      %v6086 = vunpack.c.l.b16 %v5918
      %v6087 = vunpack.c.l.b16 %v5919
      %v6088 = vunpack.c.l.b16 %v5920
      %v6089 = vunpack.c.l.b16 %v5921
      %v6090 = vunpack.c.l.b16 %v5922
      %v6091 = vunpack.c.l.b16 %v5923
      %v6092 = vunpack.c.l.b16 %v5924
      %v6093 = vunpack.c.l.b16 %v5925
      %v6094 = vunpack.c.l.b16 %v5926
      %v6095 = vunpack.c.l.b16 %v5927
      %v6096 = vunpack.c.l.b16 %v5928
      %v6097 = vunpack.c.l.b16 %v5929
      %v6098 = vunpack.c.l.b16 %v5930
      %v6099 = vunpack.c.l.b16 %v5931
      %v6100 = vunpack.c.l.b16 %v5932
      %v6101 = vunpack.c.l.b16 %v5933
      %v6102 = vunpack.c.l.b16 %v5934
      %v6103 = vunpack.c.l.b16 %v5935
      %v6104 = vunpack.c.l.b16 %v5936
      %v6105 = vunpack.c.l.b16 %v5937
      %v6106 = vunpack.c.l.b16 %v5938
      %v6107 = vunpack.c.l.b16 %v5939
      %v6108 = vunpack.c.l.b16 %v5940
      %v6109 = vunpack.c.l.b16 %v5941
      %v6110 = vunpack.c.l.b16 %v5942
      %v6111 = vunpack.c.l.b16 %v5943
      %v6112 = vunpack.c.l.b16 %v5944
      %v6113 = vunpack.c.l.b16 %v5945
      %v6114 = vunpack.c.l.b16 %v5946
      %v6115 = vunpack.c.l.b16 %v5947
      %v6116 = vunpack.c.l.b16 %v5948
      %v6117 = vunpack.c.l.b16 %v5949
      %v6118 = vunpack.c.l.b16 %v5950
      %v6119 = vunpack.c.l.b16 %v5951
      %v6120 = vunpack.c.l.b16 %v5952
      %v6121 = vunpack.c.l.b16 %v5953
      %v6122 = vunpack.c.l.b16 %v5954
      %v6123 = vunpack.c.l.b16 %v5955
      %v6124 = vunpack.c.l.b16 %v5956
      %v6125 = vunpack.c.l.b16 %v5957
      %v6126 = vunpack.c.l.b16 %v5958
      %v6127 = vunpack.c.l.b16 %v5959
      %v6128 = vunpack.c.l.b16 %v5960
      %v6129 = vunpack.c.l.b16 %v5961
      %v6130 = vunpack.c.l.b16 %v5962
      %v6131 = vunpack.c.l.b16 %v5963
      %v6132 = vunpack.c.l.b16 %v5964
      %v6133 = vunpack.c.l.b16 %v5965
      %v6134 = vunpack.c.l.b16 %v5966
      %v6135 = vunpack.c.l.b16 %v5967
      %v6136 = vunpack.c.l.b16 %v5968
      %v6137 = vunpack.c.l.b16 %v5969
      %v6138 = vunpack.c.l.b16 %v5970
      %v6139 = vunpack.c.l.b16 %v5971
      %v6140 = vpack.c.b16 %v6069, %v6068
      %v6141 = vpack.c.b16 %v6071, %v6070
      %v6142 = vpack.c.b16 %v6073, %v6072
      %v6143 = vpack.c.b16 %v6075, %v6074
      %v6144 = vpack.c.b16 %v6077, %v6076
      %v6145 = vpack.c.b16 %v6079, %v6078
      %v6146 = vpack.c.b16 %v6081, %v6080
      %v6147 = vpack.c.b16 %v6083, %v6082
      %v6148 = vpack.c.b16 %v6085, %v6084
      %v6149 = vpack.c.b16 %v6087, %v6086
      %v6150 = vpack.c.b16 %v6089, %v6088
      %v6151 = vpack.c.b16 %v6091, %v6090
      %v6152 = vpack.c.b16 %v6093, %v6092
      %v6153 = vpack.c.b16 %v6095, %v6094
      %v6154 = vpack.c.b16 %v6097, %v6096
      %v6155 = vpack.c.b16 %v6099, %v6098
      %v6156 = vpack.c.b16 %v6101, %v6100
      %v6157 = vpack.c.b16 %v6103, %v6102
      %v6158 = vpack.c.b16 %v6105, %v6104
      %v6159 = vpack.c.b16 %v6107, %v6106
      %v6160 = vpack.c.b16 %v6109, %v6108
      %v6161 = vpack.c.b16 %v6111, %v6110
      %v6162 = vpack.c.b16 %v6113, %v6112
      %v6163 = vpack.c.b16 %v6115, %v6114
      %v6164 = vpack.c.b16 %v6117, %v6116
      %v6165 = vpack.c.b16 %v6119, %v6118
      %v6166 = vpack.c.b16 %v6121, %v6120
      %v6167 = vpack.c.b16 %v6123, %v6122
      %v6168 = vpack.c.b16 %v6125, %v6124
      %v6169 = vpack.c.b16 %v6127, %v6126
      %v6170 = vpack.c.b16 %v6129, %v6128
      %v6171 = vpack.c.b16 %v6131, %v6130
      %v6172 = vpack.c.b16 %v6133, %v6132
      %v6173 = vpack.c.b16 %v6135, %v6134
      %v6174 = vpack.c.b16 %v6137, %v6136
      %v6175 = vpack.c.b16 %v6139, %v6138
      %vm6212 = vcmask 523264
      %v6214 = vsel %vm6212, %v5991, 0
      %6216 = vmatprep.subr.bf16.mxu0 0
      %6217 = vmatpush1.bf16.msra.mxu0 %v6140
      %6218 = vmatprep.subr.bf16.mxu0 0
      %6219 = vmatpush1.bf16.msra.mxu0 %v6141
      %6220 = vmatprep.subr.bf16.mxu0 0
      %6221 = vmatpush1.bf16.msra.mxu0 %v6142
      %6222 = vmatprep.subr.bf16.mxu0 0
      %6223 = vmatpush1.bf16.msra.mxu0 %v6143
      %6224 = vmatprep.subr.bf16.mxu0 0
      %6225 = vmatpush1.bf16.msra.mxu0 %v6144
      %6226 = vmatprep.subr.bf16.mxu0 0
      %6227 = vmatpush1.bf16.msra.mxu0 %v6145
      %6228 = vmatprep.subr.bf16.mxu0 0
      %6229 = vmatpush1.bf16.msra.mxu0 %v6146
      %6230 = vmatprep.subr.bf16.mxu0 0
      %6231 = vmatpush1.bf16.msra.mxu0 %v6147
      %6232 = vmatprep.subr.bf16.mxu0 0
      %6233 = vmatpush1.bf16.msra.mxu0 %v6148
      %6234 = vmatprep.subr.bf16.mxu0 0
      %6235 = vmatpush1.bf16.msra.mxu0 %v6149
      %6236 = vmatprep.subr.bf16.mxu0 0
      %6237 = vmatpush1.bf16.msra.mxu0 %v6150
      %6238 = vmatprep.subr.bf16.mxu0 0
      %6239 = vmatpush1.bf16.msra.mxu0 %v6151
      %6240 = vmatprep.subr.bf16.mxu0 0
      %6241 = vmatpush1.bf16.msra.mxu0 %v6152
      %6242 = vmatprep.subr.bf16.mxu0 0
      %6243 = vmatpush1.bf16.msra.mxu0 %v6153
      %6244 = vmatprep.subr.bf16.mxu0 0
      %6245 = vmatpush1.bf16.msra.mxu0 %v6154
      %6246 = vmatprep.subr.bf16.mxu0 0
      %6247 = vmatpush1.bf16.msra.mxu0 %v6155
      %6248 = vmatprep.mubr.bf16.mxu0 %v5988
      %6249 = vmatmul.mubr.bf16.gmra.mrb[0].mxu0 %v5987
      %v6250 = vpop.f32.mrb[0].mxu0
      %v6251 = vadd.f32 %v5977, %v6250
      %v6252 = vpop.f32.mrb[0].mxu0
      %v6253 = vpop.f32.mrb[0].mxu0
      %v6254 = vpop.f32.mrb[0].mxu0
      %6255 = vdwg.mxu0
      %6256 = vmatprep.subr.bf16.mxu0 0
      %6257 = vmatpush1.bf16.msra.mxu0 %v6156
      %6258 = vmatprep.subr.bf16.mxu0 0
      %6259 = vmatpush1.bf16.msra.mxu0 %v6157
      %6260 = vmatprep.subr.bf16.mxu0 0
      %6261 = vmatpush1.bf16.msra.mxu0 %v6158
      %6262 = vmatprep.subr.bf16.mxu0 0
      %6263 = vmatpush1.bf16.msra.mxu0 %v6159
      %6264 = vmatprep.subr.bf16.mxu0 0
      %6265 = vmatpush1.bf16.msra.mxu0 %v6160
      %6266 = vmatprep.subr.bf16.mxu0 0
      %6267 = vmatpush1.bf16.msra.mxu0 %v6161
      %6268 = vmatprep.subr.bf16.mxu0 0
      %6269 = vmatpush1.bf16.msra.mxu0 %v6162
      %6270 = vmatprep.subr.bf16.mxu0 0
      %6271 = vmatpush1.bf16.msra.mxu0 %v6163
      %6272 = vmatprep.subr.bf16.mxu0 0
      %6273 = vmatpush1.bf16.msra.mxu0 %v6164
      %6274 = vmatprep.subr.bf16.mxu0 0
      %6275 = vmatpush1.bf16.msra.mxu0 %v6165
      %6276 = vmatprep.subr.bf16.mxu0 0
      %6277 = vmatpush1.bf16.msra.mxu0 %v6166
      %6278 = vmatprep.subr.bf16.mxu0 0
      %6279 = vmatpush1.bf16.msra.mxu0 %v6167
      %6280 = vmatprep.subr.bf16.mxu0 0
      %6281 = vmatpush1.bf16.msra.mxu0 %v6168
      %6282 = vmatprep.subr.bf16.mxu0 0
      %6283 = vmatpush1.bf16.msra.mxu0 %v6169
      %6284 = vmatprep.subr.bf16.mxu0 0
      %6285 = vmatpush1.bf16.msra.mxu0 %v6170
      %6286 = vmatprep.subr.bf16.mxu0 0
      %6287 = vmatpush1.bf16.msra.mxu0 %v6171
      %6288 = vmatprep.mubr.bf16.mxu0 %v5990
      %6289 = vmatmul.mubr.bf16.gmra.mrb[0].mxu0 %v5989
      %v6290 = vpop.f32.mrb[0].mxu0
      %v6291 = vadd.f32 %v6251, %v6290
      %v6292 = vpop.f32.mrb[0].mxu0
      %v6293 = vpop.f32.mrb[0].mxu0
      %v6294 = vpop.f32.mrb[0].mxu0
      %6295 = vdwg.mxu0
      %6296 = vmatprep.subr.bf16.mxu0 0
      %6297 = vmatpush1.bf16.msra.mxu0 %v6172
      %6298 = vmatprep.subr.bf16.mxu0 0
      %6299 = vmatpush1.bf16.msra.mxu0 %v6173
      %6300 = vmatprep.subr.bf16.mxu0 0
      %6301 = vmatpush1.bf16.msra.mxu0 %v6174
      %6302 = vmatprep.subr.bf16.mxu0 0
      %6303 = vmatpush1.bf16.msra.mxu0 %v6175
      %6304 = vmatprep.subr.bf16.mxu0 0
      %6305 = vmatpush1.bf16.msra.mxu0 0
      %6306 = vmatprep.subr.bf16.mxu0 0
      %6307 = vmatpush1.bf16.msra.mxu0 0
      %6308 = vmatprep.subr.bf16.mxu0 0
      %6309 = vmatpush1.bf16.msra.mxu0 0
      %6310 = vmatprep.subr.bf16.mxu0 0
      %6311 = vmatpush1.bf16.msra.mxu0 0
      %6312 = vmatprep.subr.bf16.mxu0 0
      %6313 = vmatpush1.bf16.msra.mxu0 0
      %6314 = vmatprep.subr.bf16.mxu0 0
      %6315 = vmatpush1.bf16.msra.mxu0 0
      %6316 = vmatprep.subr.bf16.mxu0 0
      %6317 = vmatpush1.bf16.msra.mxu0 0
      %6318 = vmatprep.subr.bf16.mxu0 0
      %6319 = vmatpush1.bf16.msra.mxu0 0
      %6320 = vmatprep.subr.bf16.mxu0 0
      %6321 = vmatpush1.bf16.msra.mxu0 0
      %6322 = vmatprep.subr.bf16.mxu0 0
      %6323 = vmatpush1.bf16.msra.mxu0 0
      %6324 = vmatprep.subr.bf16.mxu0 0
      %6325 = vmatpush1.bf16.msra.mxu0 0
      %6326 = vmatprep.subr.bf16.mxu0 0
      %6327 = vmatpush1.bf16.msra.mxu0 0
      %6328 = vmatprep.mubr.bf16.mxu0 0
      %6329 = vmatmul.mubr.bf16.gmra.mrb[0].mxu0 %v6214
      %v6330 = vpop.f32.mrb[0].mxu0
      %v6331 = vadd.f32 %v6291, %v6330
      %v6332 = vpop.f32.mrb[0].mxu0
      %v6333 = vpop.f32.mrb[0].mxu0
      %v6334 = vpop.f32.mrb[0].mxu0
      %6335 = vdwg.mxu0
      %v6336 = vmax.f32 %v6331, 0.0
      %v6337 = vpack.c.bf16 %v6336, %v6336
      %6338 = vst [vmem:[#allocation10] sm:$0x7] %v6337
      %6339 = vst [vmem:[#allocation11] sm:$0x7] 0
      %6340 = vst [vmem:[#allocation11 + $0x4] sm:$0x7] 0
      %6341 = vst [vmem:[#allocation11 + $0x8] sm:$0x7] 0
      %6342 = vst [vmem:[#allocation11 + $0xc] sm:$0x7] 0
      %vm6343 = vcmp.ge.s32.totalorder %v445, 2
      %v6344 = vsel %vm6343, 1, 0
      %v6345 = vmul.u32 %v6344, 2
      %v6346 = vsub.s32 %v445, %v6345
      %v6347 = vmul.u32 %v6346, 2
      %v6348 = vadd.s32 %v6347, %v6344
      %v6349 = vsub.s32 %v6348, 1
      %vm6350 = vcmp.eq.s32.totalorder %v449, %v6349
      %vm6351 = vcmp.ge.s32.totalorder %v6349, 0
      %vm6352 = vmand %vm6350, %vm6351
      %vm6353 = vcmp.lt.s32.totalorder %v6349, 2
      %vm6354 = vmand %vm6352, %vm6353
      %v6355 = vsel %vm6354, 1.0, 0.0
      %v6356 = vpack.c.bf16 %v6355, %v6355
      %v6357 = vld [vmem:[#allocation10] sm:$0x3]
      %vm6358 = vcmask 23552
      %v6360 = vsel %vm6358, %v6356, 0
      %vm6362 = vcmask 1040384
      %v6363 = vsel %vm6362, 4294967295, 65535
      %v6364 = vsel %vm5498, %v6363, 0
      %v6366 = vand.u32 %v6357, %v6364
      %6368 = vmatprep.subr.bf16.mxu0 0
      %6369 = vmatpush1.bf16.msra.mxu0 %v6366
      %6370 = vmatprep.subr.bf16.mxu0 0
      %6371 = vmatpush1.bf16.msra.mxu0 0
      %6372 = vmatprep.subr.bf16.mxu0 0
      %6373 = vmatpush1.bf16.msra.mxu0 0
      %6374 = vmatprep.subr.bf16.mxu0 0
      %6375 = vmatpush1.bf16.msra.mxu0 0
      %6376 = vmatprep.subr.bf16.mxu0 0
      %6377 = vmatpush1.bf16.msra.mxu0 0
      %6378 = vmatprep.subr.bf16.mxu0 0
      %6379 = vmatpush1.bf16.msra.mxu0 0
      %6380 = vmatprep.subr.bf16.mxu0 0
      %6381 = vmatpush1.bf16.msra.mxu0 0
      %6382 = vmatprep.subr.bf16.mxu0 0
      %6383 = vmatpush1.bf16.msra.mxu0 0
      %6384 = vmatprep.subr.bf16.mxu0 0
      %6385 = vmatpush1.bf16.msra.mxu0 0
      %6386 = vmatprep.subr.bf16.mxu0 0
      %6387 = vmatpush1.bf16.msra.mxu0 0
      %6388 = vmatprep.subr.bf16.mxu0 0
      %6389 = vmatpush1.bf16.msra.mxu0 0
      %6390 = vmatprep.subr.bf16.mxu0 0
      %6391 = vmatpush1.bf16.msra.mxu0 0
      %6392 = vmatprep.subr.bf16.mxu0 0
      %6393 = vmatpush1.bf16.msra.mxu0 0
      %6394 = vmatprep.subr.bf16.mxu0 0
      %6395 = vmatpush1.bf16.msra.mxu0 0
      %6396 = vmatprep.subr.bf16.mxu0 0
      %6397 = vmatpush1.bf16.msra.mxu0 0
      %6398 = vmatprep.subr.bf16.mxu0 0
      %6399 = vmatpush1.bf16.msra.mxu0 0
      %6400 = vmatprep.mubr.bf16.mxu0 0
      %6401 = vmatmul.mubr.bf16.gmra.mrb[0].mxu0 %v6360
      %v6402 = vpop.f32.mrb[0].mxu0
      %v6403 = vadd.f32 0.0, %v6402
      %v6404 = vpop.f32.mrb[0].mxu0
      %v6405 = vpop.f32.mrb[0].mxu0
      %v6406 = vpop.f32.mrb[0].mxu0
      %6407 = vdwg.mxu0
      %v6408 = vpack.c.bf16 %v6403, %v6403
      %s6409 = scalar_lea.vmem [#allocation11], 8
      %6410 = vst [vmem:[%s6409] sm:$0x1] %v6408
      %v6412 = vunpack.c.l.b16 %v6408
      %v6413 = vpack.c.b16 %v6412, %v6412
      %v6414 = vrot.slane %v6413, 5
      %v6415 = vrot.slane %v6414, 4
      %s6417 = scalar_lea.vmem [#allocation11], 12
      %6418 = vst [vmem:[%s6417] sm:$0x1] %v6415
      %v6419 = vld [vmem:[#allocation10] sm:$0x6]
      %v6421 = vunpack.c.l.b16 %v6419
      %v6422 = vpack.c.b16 %v6421, %v6421
      %v6424 = vshrl.u32 %v6422, 16
      %v6426 = vrot.slane %v6424, 1
      %v6427 = vshll.u32 %v6422, 16
      %v6429 = vrot.slane %v6427, 2
      %v6430 = vor.u32 %v6426, %v6429
      %v6432 = vand.u32 %v6430, %v6364
      %6434 = vmatprep.subr.bf16.mxu0 0
      %6435 = vmatpush1.bf16.msra.mxu0 %v6432
      %6436 = vmatprep.subr.bf16.mxu0 0
      %6437 = vmatpush1.bf16.msra.mxu0 0
      %6438 = vmatprep.subr.bf16.mxu0 0
      %6439 = vmatpush1.bf16.msra.mxu0 0
      %6440 = vmatprep.subr.bf16.mxu0 0
      %6441 = vmatpush1.bf16.msra.mxu0 0
      %6442 = vmatprep.subr.bf16.mxu0 0
      %6443 = vmatpush1.bf16.msra.mxu0 0
      %6444 = vmatprep.subr.bf16.mxu0 0
      %6445 = vmatpush1.bf16.msra.mxu0 0
      %6446 = vmatprep.subr.bf16.mxu0 0
      %6447 = vmatpush1.bf16.msra.mxu0 0
      %6448 = vmatprep.subr.bf16.mxu0 0
      %6449 = vmatpush1.bf16.msra.mxu0 0
      %6450 = vmatprep.subr.bf16.mxu0 0
      %6451 = vmatpush1.bf16.msra.mxu0 0
      %6452 = vmatprep.subr.bf16.mxu0 0
      %6453 = vmatpush1.bf16.msra.mxu0 0
      %6454 = vmatprep.subr.bf16.mxu0 0
      %6455 = vmatpush1.bf16.msra.mxu0 0
      %6456 = vmatprep.subr.bf16.mxu0 0
      %6457 = vmatpush1.bf16.msra.mxu0 0
      %6458 = vmatprep.subr.bf16.mxu0 0
      %6459 = vmatpush1.bf16.msra.mxu0 0
      %6460 = vmatprep.subr.bf16.mxu0 0
      %6461 = vmatpush1.bf16.msra.mxu0 0
      %6462 = vmatprep.subr.bf16.mxu0 0
      %6463 = vmatpush1.bf16.msra.mxu0 0
      %6464 = vmatprep.subr.bf16.mxu0 0
      %6465 = vmatpush1.bf16.msra.mxu0 0
      %6466 = vmatprep.mubr.bf16.mxu0 0
      %6467 = vmatmul.mubr.bf16.gmra.mrb[0].mxu0 %v6360
      %v6468 = vpop.f32.mrb[0].mxu0
      %v6469 = vadd.f32 0.0, %v6468
      %v6470 = vpop.f32.mrb[0].mxu0
      %v6471 = vpop.f32.mrb[0].mxu0
      %v6472 = vpop.f32.mrb[0].mxu0
      %6473 = vdwg.mxu0
      %v6474 = vpack.c.bf16 %v6469, %v6469
      %v6476 = vunpack.c.l.b16 %v6474
      %v6477 = vpack.c.b16 %v6476, %v6476
      %v6478 = vrot.slane %v6477, 7
      %6480 = vst [vmem:[#allocation11] sm:$0x2] %v6478
      %s6481 = scalar_lea.vmem [#allocation11], 4
      %6482 = vst [vmem:[%s6481] sm:$0x2] %v6474
      %v6483 = vld [vmem:[#allocation11] sm:$0x1]
      %6484 = vst [vmem:[#allocation12] sm:$0x1] %v6483
      %v6485 = vld [vmem:[%s6481] sm:$0x1]
      %6486 = vst [vmem:[#allocation12 + $0x1] sm:$0x1] %v6485
      %v6487 = vld [vmem:[#allocation11] sm:$0x3]
      %v6490 = vunpack.c.l.s4 1966171168
      %v6491 = vunpack.c.0.s8 %v6490
      %v6492 = vlaneseq
      %v6493 = vshrl.u32 %v6492, 7
      %v6494 = vsub.s32 %v6491, %v6493
      %v6495 = vrot.slane %v6487, %v6494
      %v6496 = vcombine.high %v6495, %v6495
      %v6498 = vunpack.c.l.s4 1966171168
      %v6499 = vunpack.c.0.s8 %v6498
      %v6500 = vlaneseq
      %v6501 = vshrl.u32 %v6500, 7
      %v6502 = vsub.s32 %v6499, %v6501
      %v6503 = vrot.slane %v6495, %v6502
      %v6505 = vunpack.c.l.s4 1966171168
      %v6506 = vunpack.c.0.s8 %v6505
      %v6507 = vlaneseq
      %v6508 = vshrl.u32 %v6507, 7
      %v6509 = vsub.s32 %v6506, %v6508
      %v6510 = vrot.slane %v6496, %v6509
      %vm6511 = vsmask.f32 1284
      %vm6512 = vmor %vm4863, %vm6511
      %vm6513 = vsmask.f32 2312
      %vm6514 = vmor %vm6512, %vm6513
      %vm6515 = vsmask.f32 3340
      %vm6516 = vmor %vm6514, %vm6515
      %vm6517 = vsmask.f32 4368
      %vm6518 = vmor %vm6516, %vm6517
      %vm6519 = vsmask.f32 5396
      %vm6520 = vmor %vm6518, %vm6519
      %vm6521 = vsmask.f32 6424
      %vm6522 = vmor %vm6520, %vm6521
      %vm6523 = vsmask.f32 7452
      %vm6524 = vmor %vm6522, %vm6523
      %v6526 = vshrl.u32 %v6503, 16
      %v6528 = vrot.slane %v6526, 7
      %v6529 = vrot.slane %v6528, 1
      %v6531 = vshll.u32 %v6510, 16
      %v6533 = vsel %vm6524, %v6529, %v6531
      %6535 = vst [vmem:[#allocation12 + $0x2] sm:$0x1] %v6533
      %v6536 = vld [vmem:[%s6409] sm:$0x1]
      %6537 = vst [vmem:[#allocation12 + $0x3] sm:$0x1] %v6536
      %v6538 = vld [vmem:[%s6417] sm:$0x1]
      %6539 = vst [vmem:[#allocation12 + $0x4] sm:$0x1] %v6538
      %v6540 = vld [vmem:[%s6409] sm:$0x3]
      %v6543 = vunpack.c.l.s4 1966171168
      %v6544 = vunpack.c.0.s8 %v6543
      %v6545 = vlaneseq
      %v6546 = vshrl.u32 %v6545, 7
      %v6547 = vsub.s32 %v6544, %v6546
      %v6548 = vrot.slane %v6540, %v6547
      %v6549 = vcombine.high %v6548, %v6548
      %v6551 = vunpack.c.l.s4 1966171168
      %v6552 = vunpack.c.0.s8 %v6551
      %v6553 = vlaneseq
      %v6554 = vshrl.u32 %v6553, 7
      %v6555 = vsub.s32 %v6552, %v6554
      %v6556 = vrot.slane %v6548, %v6555
      %v6558 = vunpack.c.l.s4 1966171168
      %v6559 = vunpack.c.0.s8 %v6558
      %v6560 = vlaneseq
      %v6561 = vshrl.u32 %v6560, 7
      %v6562 = vsub.s32 %v6559, %v6561
      %v6563 = vrot.slane %v6549, %v6562
      %v6565 = vshrl.u32 %v6556, 16
      %v6567 = vrot.slane %v6565, 7
      %v6568 = vrot.slane %v6567, 1
      %v6570 = vshll.u32 %v6563, 16
      %v6572 = vsel %vm6524, %v6568, %v6570
      %6574 = vst [vmem:[#allocation12 + $0x5] sm:$0x1] %v6572
      %v6575 = vld [vmem:[#allocation11] sm:$0x2]
      %v6578 = vunpack.c.l.s4 1966171168
      %v6579 = vunpack.c.0.s8 %v6578
      %v6580 = vlaneseq
      %v6581 = vshrl.u32 %v6580, 7
      %v6582 = vsub.s32 %v6579, %v6581
      %v6583 = vrot.slane %v6575, %v6582
      %v6584 = vcombine.high %v6583, %v6583
      %v6586 = vunpack.c.l.s4 1966171168
      %v6587 = vunpack.c.0.s8 %v6586
      %v6588 = vlaneseq
      %v6589 = vshrl.u32 %v6588, 7
      %v6590 = vsub.s32 %v6587, %v6589
      %v6591 = vrot.slane %v6584, %v6590
      %6593 = vst [vmem:[#allocation12 + $0x6] sm:$0x1] %v6591
      %v6594 = vld [vmem:[%s6481] sm:$0x2]
      %v6597 = vunpack.c.l.s4 1966171168
      %v6598 = vunpack.c.0.s8 %v6597
      %v6599 = vlaneseq
      %v6600 = vshrl.u32 %v6599, 7
      %v6601 = vsub.s32 %v6598, %v6600
      %v6602 = vrot.slane %v6594, %v6601
      %v6603 = vcombine.high %v6602, %v6602
      %v6605 = vunpack.c.l.s4 1966171168
      %v6606 = vunpack.c.0.s8 %v6605
      %v6607 = vlaneseq
      %v6608 = vshrl.u32 %v6607, 7
      %v6609 = vsub.s32 %v6606, %v6608
      %v6610 = vrot.slane %v6603, %v6609
      %6612 = vst [vmem:[#allocation12 + $0x7] sm:$0x1] %v6610
      %v6613 = vld [vmem:[#allocation11] sm:$0x6]
      %v6616 = vunpack.c.l.s4 1966171168
      %v6617 = vunpack.c.0.s8 %v6616
      %v6618 = vlaneseq
      %v6619 = vshrl.u32 %v6618, 7
      %v6620 = vsub.s32 %v6617, %v6619
      %v6621 = vrot.slane %v6613, %v6620
      %v6622 = vcombine.high %v6621, %v6621
      %v6624 = vunpack.c.l.s4 1966171168
      %v6625 = vunpack.c.0.s8 %v6624
      %v6626 = vlaneseq
      %v6627 = vshrl.u32 %v6626, 7
      %v6628 = vsub.s32 %v6625, %v6627
      %v6629 = vrot.slane %v6621, %v6628
      %v6631 = vunpack.c.l.s4 1966171168
      %v6632 = vunpack.c.0.s8 %v6631
      %v6633 = vlaneseq
      %v6634 = vshrl.u32 %v6633, 7
      %v6635 = vsub.s32 %v6632, %v6634
      %v6636 = vrot.slane %v6622, %v6635
      %v6637 = vcombine.high %v6629, %v6629
      %v6639 = vshrl.u32 %v6636, 16
      %v6641 = vrot.slane %v6639, 7
      %v6642 = vrot.slane %v6641, 1
      %v6644 = vshll.u32 %v6637, 16
      %v6646 = vsel %vm6524, %v6642, %v6644
      %6648 = vst [vmem:[#allocation12 + $0x8] sm:$0x1] %v6646
      %v6649 = vld [vmem:[#allocation12] sm:$0xff]
      %v6650 = vld [vmem:[#allocation12 + $0x8] sm:$0x1]
      %v6651 = vld [vmem:[%s9] sm:$0xff]
      %v6652 = vld [vmem:[%s9 + $0x8] sm:$0xff]
      %v6653 = vld [vmem:[%s9 + $0x10] sm:$0xff]
      %v6654 = vld [vmem:[%s9 + $0x18] sm:$0xff]
      %v6655 = vld [vmem:[%s9 + $0x20] sm:$0xff]
      %v6656 = vld [vmem:[%s9 + $0x28] sm:$0xff]
      %v6657 = vld [vmem:[%s9 + $0x30] sm:$0xff]
      %v6658 = vld [vmem:[%s9 + $0x38] sm:$0xff]
      %v6659 = vld [vmem:[%s9 + $0x40] sm:$0xff]
      %v6660 = vld [vmem:[%s9 + $0x48] sm:$0xff]
      %v6661 = vld [vmem:[%s9 + $0x50] sm:$0xff]
      %v6662 = vld [vmem:[%s9 + $0x58] sm:$0xff]
      %v6663 = vld [vmem:[%s9 + $0x60] sm:$0xff]
      %v6664 = vld [vmem:[%s9 + $0x68] sm:$0xff]
      %v6665 = vld [vmem:[%s9 + $0x70] sm:$0xff]
      %v6666 = vld [vmem:[%s9 + $0x78] sm:$0xff]
      %v6667 = vld [vmem:[%s9 + $0x80] sm:$0xff]
      %v6668 = vld [vmem:[%s9 + $0x88] sm:$0xff]
      %v6669 = vld [vmem:[%s9 + $0x90] sm:$0xff]
      %v6670 = vld [vmem:[%s9 + $0x98] sm:$0xff]
      %v6671 = vld [vmem:[%s9 + $0xa0] sm:$0xff]
      %v6672 = vld [vmem:[%s9 + $0xa8] sm:$0xff]
      %v6673 = vld [vmem:[%s9 + $0xb0] sm:$0xff]
      %v6674 = vld [vmem:[%s9 + $0xb8] sm:$0xff]
      %v6675 = vld [vmem:[%s9 + $0xc0] sm:$0xff]
      %v6676 = vld [vmem:[%s9 + $0xc8] sm:$0xff]
      %v6677 = vld [vmem:[%s9 + $0xd0] sm:$0xff]
      %v6678 = vld [vmem:[%s9 + $0xd8] sm:$0xff]
      %v6679 = vld [vmem:[%s9 + $0xe0] sm:$0xff]
      %v6680 = vld [vmem:[%s9 + $0xe8] sm:$0xff]
      %v6681 = vld [vmem:[%s9 + $0xf0] sm:$0xff]
      %v6682 = vld [vmem:[%s9 + $0xf8] sm:$0xff]
      %v6683 = vld [vmem:[%s9 + $0x100] sm:$0xff]
      %v6684 = vld [vmem:[%s9 + $0x108] sm:$0xff]
      %v6685 = vld [vmem:[%s9 + $0x110] sm:$0xff]
      %v6686 = vld [vmem:[%s9 + $0x118] sm:$0xff]
      %v6687 = vld [vmem:[%s9 + $0x120] sm:$0xff]
      %v6688 = vld [vmem:[%s9 + $0x128] sm:$0xff]
      %v6689 = vld [vmem:[%s9 + $0x130] sm:$0xff]
      %v6690 = vld [vmem:[%s9 + $0x138] sm:$0xff]
      %v6691 = vld [vmem:[%s9 + $0x140] sm:$0xff]
      %v6692 = vld [vmem:[%s9 + $0x148] sm:$0xff]
      %v6693 = vld [vmem:[%s9 + $0x150] sm:$0xff]
      %v6694 = vld [vmem:[%s9 + $0x158] sm:$0xff]
      %v6695 = vld [vmem:[%s9 + $0x160] sm:$0xff]
      %v6696 = vld [vmem:[%s9 + $0x168] sm:$0xff]
      %v6697 = vld [vmem:[%s9 + $0x170] sm:$0xff]
      %v6698 = vld [vmem:[%s9 + $0x178] sm:$0xff]
      %v6699 = vld [vmem:[%s9 + $0x180] sm:$0xff]
      %v6700 = vld [vmem:[%s9 + $0x188] sm:$0xff]
      %v6701 = vld [vmem:[%s9 + $0x190] sm:$0xff]
      %v6702 = vld [vmem:[%s9 + $0x198] sm:$0xff]
      %v6703 = vld [vmem:[%s9 + $0x1a0] sm:$0xff]
      %v6704 = vld [vmem:[%s9 + $0x1a8] sm:$0xff]
      %v6705 = vld [vmem:[%s9 + $0x1b0] sm:$0xff]
      %v6706 = vld [vmem:[%s9 + $0x1b8] sm:$0xff]
      %v6707 = vld [vmem:[%s9 + $0x1c0] sm:$0xff]
      %v6708 = vld [vmem:[%s9 + $0x1c8] sm:$0xff]
      %v6709 = vld [vmem:[%s9 + $0x1d0] sm:$0xff]
      %v6710 = vld [vmem:[%s9 + $0x1d8] sm:$0xff]
      %v6711 = vld [vmem:[%s9 + $0x1e0] sm:$0xff]
      %v6712 = vld [vmem:[%s9 + $0x1e8] sm:$0xff]
      %v6713 = vld [vmem:[%s9 + $0x1f0] sm:$0xff]
      %v6714 = vld [vmem:[%s9 + $0x1f8] sm:$0xff]
      %v6715 = vld [vmem:[%s9 + $0x200] sm:$0xff]
      %v6716 = vld [vmem:[%s9 + $0x208] sm:$0xff]
      %v6717 = vld [vmem:[%s9 + $0x210] sm:$0xff]
      %v6718 = vld [vmem:[%s9 + $0x218] sm:$0xff]
      %v6719 = vld [vmem:[%s9 + $0x220] sm:$0xff]
      %v6720 = vld [vmem:[%s9 + $0x228] sm:$0xff]
      %v6721 = vld [vmem:[%s9 + $0x230] sm:$0xff]
      %v6722 = vld [vmem:[%s9 + $0x238] sm:$0xff]
      %v6723 = vld [vmem:[%s9 + $0x240] sm:$0xff]
      %v6724 = vld [vmem:[%s9 + $0x248] sm:$0xff]
      %v6725 = vld [vmem:[%s9 + $0x250] sm:$0xff]
      %v6726 = vld [vmem:[%s9 + $0x258] sm:$0xff]
      %v6727 = vld [vmem:[%s9 + $0x260] sm:$0xff]
      %v6728 = vld [vmem:[%s9 + $0x268] sm:$0xff]
      %v6729 = vld [vmem:[%s9 + $0x270] sm:$0xff]
      %v6730 = vld [vmem:[%s9 + $0x278] sm:$0xff]
      %v6731 = vld [vmem:[%s9 + $0x280] sm:$0xff]
      %v6732 = vld [vmem:[%s9 + $0x288] sm:$0xff]
      %v6733 = vld [vmem:[%s9 + $0x290] sm:$0xff]
      %v6734 = vld [vmem:[%s9 + $0x298] sm:$0xff]
      %v6735 = vld [vmem:[%s9 + $0x2a0] sm:$0xff]
      %v6736 = vld [vmem:[%s9 + $0x2a8] sm:$0xff]
      %v6737 = vld [vmem:[%s9 + $0x2b0] sm:$0xff]
      %v6738 = vld [vmem:[%s9 + $0x2b8] sm:$0xff]
      %v6739 = vld [vmem:[%s9 + $0x2c0] sm:$0xff]
      %v6740 = vld [vmem:[%s9 + $0x2c8] sm:$0xff]
      %v6741 = vld [vmem:[%s9 + $0x2d0] sm:$0xff]
      %v6742 = vld [vmem:[%s9 + $0x2d8] sm:$0xff]
      %v6743 = vld [vmem:[%s9 + $0x2e0] sm:$0xff]
      %v6744 = vld [vmem:[%s9 + $0x2e8] sm:$0xff]
      %v6745 = vld [vmem:[%s9 + $0x2f0] sm:$0xff]
      %v6746 = vld [vmem:[%s9 + $0x2f8] sm:$0xff]
      %v6747 = vld [vmem:[%s9 + $0x300] sm:$0xff]
      %v6748 = vld [vmem:[%s9 + $0x308] sm:$0xff]
      %v6749 = vld [vmem:[%s9 + $0x310] sm:$0xff]
      %v6750 = vld [vmem:[%s9 + $0x318] sm:$0xff]
      %v6751 = vld [vmem:[%s9 + $0x320] sm:$0xff]
      %v6752 = vld [vmem:[%s9 + $0x328] sm:$0xff]
      %v6753 = vld [vmem:[%s9 + $0x330] sm:$0xff]
      %v6754 = vld [vmem:[%s9 + $0x338] sm:$0xff]
      %v6755 = vld [vmem:[%s9 + $0x340] sm:$0xff]
      %v6756 = vld [vmem:[%s9 + $0x348] sm:$0xff]
      %v6757 = vld [vmem:[%s9 + $0x350] sm:$0xff]
      %v6758 = vld [vmem:[%s9 + $0x358] sm:$0xff]
      %v6759 = vld [vmem:[%s9 + $0x360] sm:$0xff]
      %v6760 = vld [vmem:[%s9 + $0x368] sm:$0xff]
      %v6761 = vld [vmem:[%s9 + $0x370] sm:$0xff]
      %v6762 = vld [vmem:[%s9 + $0x378] sm:$0xff]
      %v6763 = vld [vmem:[%s9 + $0x380] sm:$0xff]
      %v6764 = vld [vmem:[%s9 + $0x388] sm:$0xff]
      %v6765 = vld [vmem:[%s9 + $0x390] sm:$0xff]
      %v6766 = vld [vmem:[%s9 + $0x398] sm:$0xff]
      %v6767 = vld [vmem:[%s9 + $0x3a0] sm:$0xff]
      %v6768 = vld [vmem:[%s9 + $0x3a8] sm:$0xff]
      %v6769 = vld [vmem:[%s9 + $0x3b0] sm:$0xff]
      %v6770 = vld [vmem:[%s9 + $0x3b8] sm:$0xff]
      %v6771 = vld [vmem:[%s9 + $0x3c0] sm:$0xff]
      %v6772 = vld [vmem:[%s9 + $0x3c8] sm:$0xff]
      %v6773 = vld [vmem:[%s9 + $0x3d0] sm:$0xff]
      %v6774 = vld [vmem:[%s9 + $0x3d8] sm:$0xff]
      %v6775 = vld [vmem:[%s9 + $0x3e0] sm:$0xff]
      %v6776 = vld [vmem:[%s9 + $0x3e8] sm:$0xff]
      %v6777 = vld [vmem:[%s9 + $0x3f0] sm:$0xff]
      %v6778 = vld [vmem:[%s9 + $0x3f8] sm:$0xff]
      %v6779 = vld [vmem:[%s9 + $0x400] sm:$0xff]
      %v6780 = vld [vmem:[%s9 + $0x408] sm:$0xff]
      %v6781 = vld [vmem:[%s9 + $0x410] sm:$0xff]
      %v6782 = vld [vmem:[%s9 + $0x418] sm:$0xff]
      %v6783 = vld [vmem:[%s9 + $0x420] sm:$0xff]
      %v6784 = vld [vmem:[%s9 + $0x428] sm:$0xff]
      %v6785 = vld [vmem:[%s9 + $0x430] sm:$0xff]
      %v6786 = vld [vmem:[%s9 + $0x438] sm:$0xff]
      %v6787 = vld [vmem:[%s9 + $0x440] sm:$0xff]
      %v6788 = vld [vmem:[%s9 + $0x448] sm:$0xff]
      %v6789 = vld [vmem:[%s9 + $0x450] sm:$0xff]
      %v6790 = vld [vmem:[%s9 + $0x458] sm:$0xff]
      %v6791 = vld [vmem:[%s9 + $0x460] sm:$0xff]
      %v6792 = vld [vmem:[%s9 + $0x468] sm:$0xff]
      %v6793 = vld [vmem:[%s9 + $0x470] sm:$0xff]
      %v6794 = vld [vmem:[%s9 + $0x478] sm:$0xff]
      %v6795 = vld [vmem:[%s10] sm:$0x3]
      %v6797 = vlaneseq
      %v6798 = vshrl.u32 %v6797, 7
      %v6799 = vsub.s32 0, %v6798
      %v6800 = vrot.slane %v6795, %v6799
      %v6801 = vlaneseq
      %v6802 = vshrl.u32 %v6801, 7
      %v6803 = vsub.s32 1, %v6802
      %v6804 = vrot.slane %v6795, %v6803
      %v6809 = vcombine.high %v6649, %v6649
      %v6811 = vunpack.c.l.s4 1966171168
      %v6812 = vunpack.c.0.s8 %v6811
      %v6813 = vlaneseq
      %v6814 = vshrl.u32 %v6813, 7
      %v6815 = vsub.s32 %v6812, %v6814
      %v6816 = vrot.slane %v6649, %v6815
      %v6818 = vunpack.c.l.s4 1966171168
      %v6819 = vunpack.c.0.s8 %v6818
      %v6820 = vlaneseq
      %v6821 = vshrl.u32 %v6820, 7
      %v6822 = vsub.s32 %v6819, %v6821
      %v6823 = vrot.slane %v6809, %v6822
      %v6824 = vcombine.high %v6816, %v6816
      %v6825 = vcombine.high %v6823, %v6823
      %v6827 = vunpack.c.l.s4 1966171168
      %v6828 = vunpack.c.0.s8 %v6827
      %v6829 = vlaneseq
      %v6830 = vshrl.u32 %v6829, 7
      %v6831 = vsub.s32 %v6828, %v6830
      %v6832 = vrot.slane %v6816, %v6831
      %v6834 = vunpack.c.l.s4 1966171168
      %v6835 = vunpack.c.0.s8 %v6834
      %v6836 = vlaneseq
      %v6837 = vshrl.u32 %v6836, 7
      %v6838 = vsub.s32 %v6835, %v6837
      %v6839 = vrot.slane %v6823, %v6838
      %v6841 = vunpack.c.l.s4 1966171168
      %v6842 = vunpack.c.0.s8 %v6841
      %v6843 = vlaneseq
      %v6844 = vshrl.u32 %v6843, 7
      %v6845 = vsub.s32 %v6842, %v6844
      %v6846 = vrot.slane %v6824, %v6845
      %v6848 = vunpack.c.l.s4 1966171168
      %v6849 = vunpack.c.0.s8 %v6848
      %v6850 = vlaneseq
      %v6851 = vshrl.u32 %v6850, 7
      %v6852 = vsub.s32 %v6849, %v6851
      %v6853 = vrot.slane %v6825, %v6852
      %v6854 = vcombine.high %v6832, %v6832
      %v6855 = vcombine.high %v6839, %v6839
      %v6856 = vcombine.high %v6846, %v6846
      %v6857 = vcombine.high %v6853, %v6853
      %v6859 = vunpack.c.l.s4 1966171168
      %v6860 = vunpack.c.0.s8 %v6859
      %v6861 = vlaneseq
      %v6862 = vshrl.u32 %v6861, 7
      %v6863 = vsub.s32 %v6860, %v6862
      %v6864 = vrot.slane %v6650, %v6863
      %v6866 = vunpack.c.l.s4 1966171168
      %v6867 = vunpack.c.0.s8 %v6866
      %v6868 = vlaneseq
      %v6869 = vshrl.u32 %v6868, 7
      %v6870 = vsub.s32 %v6867, %v6869
      %v6871 = vrot.slane %v6864, %v6870
      %v7025 = vunpack.c.l.b16 %v6651
      %v7026 = vunpack.c.h.b16 %v6651
      %v7027 = vunpack.c.l.b16 %v6652
      %v7028 = vunpack.c.h.b16 %v6652
      %v7029 = vunpack.c.l.b16 %v6653
      %v7030 = vunpack.c.h.b16 %v6653
      %v7031 = vunpack.c.l.b16 %v6654
      %v7032 = vunpack.c.h.b16 %v6654
      %v7033 = vunpack.c.l.b16 %v6655
      %v7034 = vunpack.c.h.b16 %v6655
      %v7035 = vunpack.c.l.b16 %v6656
      %v7036 = vunpack.c.h.b16 %v6656
      %v7037 = vunpack.c.l.b16 %v6657
      %v7038 = vunpack.c.h.b16 %v6657
      %v7039 = vunpack.c.l.b16 %v6658
      %v7040 = vunpack.c.h.b16 %v6658
      %v7041 = vunpack.c.l.b16 %v6659
      %v7042 = vunpack.c.h.b16 %v6659
      %v7043 = vunpack.c.l.b16 %v6660
      %v7044 = vunpack.c.h.b16 %v6660
      %v7045 = vunpack.c.l.b16 %v6661
      %v7046 = vunpack.c.h.b16 %v6661
      %v7047 = vunpack.c.l.b16 %v6662
      %v7048 = vunpack.c.h.b16 %v6662
      %v7049 = vunpack.c.l.b16 %v6663
      %v7050 = vunpack.c.h.b16 %v6663
      %v7051 = vunpack.c.l.b16 %v6664
      %v7052 = vunpack.c.h.b16 %v6664
      %v7053 = vunpack.c.l.b16 %v6665
      %v7054 = vunpack.c.h.b16 %v6665
      %v7055 = vunpack.c.l.b16 %v6666
      %v7056 = vunpack.c.h.b16 %v6666
      %v7057 = vunpack.c.l.b16 %v6667
      %v7058 = vunpack.c.h.b16 %v6667
      %v7059 = vunpack.c.l.b16 %v6668
      %v7060 = vunpack.c.h.b16 %v6668
      %v7061 = vunpack.c.l.b16 %v6669
      %v7062 = vunpack.c.h.b16 %v6669
      %v7063 = vunpack.c.l.b16 %v6670
      %v7064 = vunpack.c.h.b16 %v6670
      %v7065 = vunpack.c.l.b16 %v6671
      %v7066 = vunpack.c.h.b16 %v6671
      %v7067 = vunpack.c.l.b16 %v6672
      %v7068 = vunpack.c.h.b16 %v6672
      %v7069 = vunpack.c.l.b16 %v6673
      %v7070 = vunpack.c.h.b16 %v6673
      %v7071 = vunpack.c.l.b16 %v6674
      %v7072 = vunpack.c.h.b16 %v6674
      %v7073 = vunpack.c.l.b16 %v6675
      %v7074 = vunpack.c.h.b16 %v6675
      %v7075 = vunpack.c.l.b16 %v6676
      %v7076 = vunpack.c.h.b16 %v6676
      %v7077 = vunpack.c.l.b16 %v6677
      %v7078 = vunpack.c.h.b16 %v6677
      %v7079 = vunpack.c.l.b16 %v6678
      %v7080 = vunpack.c.h.b16 %v6678
      %v7081 = vunpack.c.l.b16 %v6679
      %v7082 = vunpack.c.h.b16 %v6679
      %v7083 = vunpack.c.l.b16 %v6680
      %v7084 = vunpack.c.h.b16 %v6680
      %v7085 = vunpack.c.l.b16 %v6681
      %v7086 = vunpack.c.h.b16 %v6681
      %v7087 = vunpack.c.l.b16 %v6682
      %v7088 = vunpack.c.h.b16 %v6682
      %v7089 = vunpack.c.l.b16 %v6683
      %v7090 = vunpack.c.h.b16 %v6683
      %v7091 = vunpack.c.l.b16 %v6684
      %v7092 = vunpack.c.h.b16 %v6684
      %v7093 = vunpack.c.l.b16 %v6685
      %v7094 = vunpack.c.h.b16 %v6685
      %v7095 = vunpack.c.l.b16 %v6686
      %v7096 = vunpack.c.h.b16 %v6686
      %v7097 = vunpack.c.l.b16 %v6687
      %v7098 = vunpack.c.h.b16 %v6687
      %v7099 = vunpack.c.l.b16 %v6688
      %v7100 = vunpack.c.h.b16 %v6688
      %v7101 = vunpack.c.l.b16 %v6689
      %v7102 = vunpack.c.h.b16 %v6689
      %v7103 = vunpack.c.l.b16 %v6690
      %v7104 = vunpack.c.h.b16 %v6690
      %v7105 = vunpack.c.l.b16 %v6691
      %v7106 = vunpack.c.h.b16 %v6691
      %v7107 = vunpack.c.l.b16 %v6692
      %v7108 = vunpack.c.h.b16 %v6692
      %v7109 = vunpack.c.l.b16 %v6693
      %v7110 = vunpack.c.h.b16 %v6693
      %v7111 = vunpack.c.l.b16 %v6694
      %v7112 = vunpack.c.h.b16 %v6694
      %v7113 = vunpack.c.l.b16 %v6695
      %v7114 = vunpack.c.h.b16 %v6695
      %v7115 = vunpack.c.l.b16 %v6696
      %v7116 = vunpack.c.h.b16 %v6696
      %v7117 = vunpack.c.l.b16 %v6697
      %v7118 = vunpack.c.h.b16 %v6697
      %v7119 = vunpack.c.l.b16 %v6698
      %v7120 = vunpack.c.h.b16 %v6698
      %v7121 = vunpack.c.l.b16 %v6699
      %v7122 = vunpack.c.h.b16 %v6699
      %v7123 = vunpack.c.l.b16 %v6700
      %v7124 = vunpack.c.h.b16 %v6700
      %v7125 = vunpack.c.l.b16 %v6701
      %v7126 = vunpack.c.h.b16 %v6701
      %v7127 = vunpack.c.l.b16 %v6702
      %v7128 = vunpack.c.h.b16 %v6702
      %v7129 = vunpack.c.l.b16 %v6703
      %v7130 = vunpack.c.h.b16 %v6703
      %v7131 = vunpack.c.l.b16 %v6704
      %v7132 = vunpack.c.h.b16 %v6704
      %v7133 = vunpack.c.l.b16 %v6705
      %v7134 = vunpack.c.h.b16 %v6705
      %v7135 = vunpack.c.l.b16 %v6706
      %v7136 = vunpack.c.h.b16 %v6706
      %v7137 = vunpack.c.l.b16 %v6707
      %v7138 = vunpack.c.h.b16 %v6707
      %v7139 = vunpack.c.l.b16 %v6708
      %v7140 = vunpack.c.h.b16 %v6708
      %v7141 = vunpack.c.l.b16 %v6709
      %v7142 = vunpack.c.h.b16 %v6709
      %v7143 = vunpack.c.l.b16 %v6710
      %v7144 = vunpack.c.h.b16 %v6710
      %v7145 = vunpack.c.l.b16 %v6711
      %v7146 = vunpack.c.h.b16 %v6711
      %v7147 = vunpack.c.l.b16 %v6712
      %v7148 = vunpack.c.h.b16 %v6712
      %v7149 = vunpack.c.l.b16 %v6713
      %v7150 = vunpack.c.h.b16 %v6713
      %v7151 = vunpack.c.l.b16 %v6714
      %v7152 = vunpack.c.h.b16 %v6714
      %v7153 = vunpack.c.l.b16 %v6715
      %v7154 = vunpack.c.h.b16 %v6715
      %v7155 = vunpack.c.l.b16 %v6716
      %v7156 = vunpack.c.h.b16 %v6716
      %v7157 = vunpack.c.l.b16 %v6717
      %v7158 = vunpack.c.h.b16 %v6717
      %v7159 = vunpack.c.l.b16 %v6718
      %v7160 = vunpack.c.h.b16 %v6718
      %v7161 = vunpack.c.l.b16 %v6719
      %v7162 = vunpack.c.h.b16 %v6719
      %v7163 = vunpack.c.l.b16 %v6720
      %v7164 = vunpack.c.h.b16 %v6720
      %v7165 = vunpack.c.l.b16 %v6721
      %v7166 = vunpack.c.h.b16 %v6721
      %v7167 = vunpack.c.l.b16 %v6722
      %v7168 = vunpack.c.h.b16 %v6722
      %v7169 = vunpack.c.l.b16 %v6723
      %v7170 = vunpack.c.h.b16 %v6723
      %v7171 = vunpack.c.l.b16 %v6724
      %v7172 = vunpack.c.h.b16 %v6724
      %v7173 = vunpack.c.l.b16 %v6725
      %v7174 = vunpack.c.h.b16 %v6725
      %v7175 = vunpack.c.l.b16 %v6726
      %v7176 = vunpack.c.h.b16 %v6726
      %v7177 = vunpack.c.l.b16 %v6727
      %v7178 = vunpack.c.h.b16 %v6727
      %v7179 = vunpack.c.l.b16 %v6728
      %v7180 = vunpack.c.h.b16 %v6728
      %v7181 = vunpack.c.l.b16 %v6729
      %v7182 = vunpack.c.h.b16 %v6729
      %v7183 = vunpack.c.l.b16 %v6730
      %v7184 = vunpack.c.h.b16 %v6730
      %v7185 = vunpack.c.l.b16 %v6731
      %v7186 = vunpack.c.h.b16 %v6731
      %v7187 = vunpack.c.l.b16 %v6732
      %v7188 = vunpack.c.h.b16 %v6732
      %v7189 = vunpack.c.l.b16 %v6733
      %v7190 = vunpack.c.h.b16 %v6733
      %v7191 = vunpack.c.l.b16 %v6734
      %v7192 = vunpack.c.h.b16 %v6734
      %v7193 = vunpack.c.l.b16 %v6735
      %v7194 = vunpack.c.h.b16 %v6735
      %v7195 = vunpack.c.l.b16 %v6736
      %v7196 = vunpack.c.h.b16 %v6736
      %v7197 = vunpack.c.l.b16 %v6737
      %v7198 = vunpack.c.h.b16 %v6737
      %v7199 = vunpack.c.l.b16 %v6738
      %v7200 = vunpack.c.h.b16 %v6738
      %v7201 = vunpack.c.l.b16 %v6739
      %v7202 = vunpack.c.h.b16 %v6739
      %v7203 = vunpack.c.l.b16 %v6740
      %v7204 = vunpack.c.h.b16 %v6740
      %v7205 = vunpack.c.l.b16 %v6741
      %v7206 = vunpack.c.h.b16 %v6741
      %v7207 = vunpack.c.l.b16 %v6742
      %v7208 = vunpack.c.h.b16 %v6742
      %v7209 = vunpack.c.l.b16 %v6743
      %v7210 = vunpack.c.h.b16 %v6743
      %v7211 = vunpack.c.l.b16 %v6744
      %v7212 = vunpack.c.h.b16 %v6744
      %v7213 = vunpack.c.l.b16 %v6745
      %v7214 = vunpack.c.h.b16 %v6745
      %v7215 = vunpack.c.l.b16 %v6746
      %v7216 = vunpack.c.h.b16 %v6746
      %v7217 = vunpack.c.l.b16 %v6747
      %v7218 = vunpack.c.h.b16 %v6747
      %v7219 = vunpack.c.l.b16 %v6748
      %v7220 = vunpack.c.h.b16 %v6748
      %v7221 = vunpack.c.l.b16 %v6749
      %v7222 = vunpack.c.h.b16 %v6749
      %v7223 = vunpack.c.l.b16 %v6750
      %v7224 = vunpack.c.h.b16 %v6750
      %v7225 = vunpack.c.l.b16 %v6751
      %v7226 = vunpack.c.h.b16 %v6751
      %v7227 = vunpack.c.l.b16 %v6752
      %v7228 = vunpack.c.h.b16 %v6752
      %v7229 = vunpack.c.l.b16 %v6753
      %v7230 = vunpack.c.h.b16 %v6753
      %v7231 = vunpack.c.l.b16 %v6754
      %v7232 = vunpack.c.h.b16 %v6754
      %v7233 = vunpack.c.l.b16 %v6755
      %v7234 = vunpack.c.h.b16 %v6755
      %v7235 = vunpack.c.l.b16 %v6756
      %v7236 = vunpack.c.h.b16 %v6756
      %v7237 = vunpack.c.l.b16 %v6757
      %v7238 = vunpack.c.h.b16 %v6757
      %v7239 = vunpack.c.l.b16 %v6758
      %v7240 = vunpack.c.h.b16 %v6758
      %v7241 = vunpack.c.l.b16 %v6759
      %v7242 = vunpack.c.h.b16 %v6759
      %v7243 = vunpack.c.l.b16 %v6760
      %v7244 = vunpack.c.h.b16 %v6760
      %v7245 = vunpack.c.l.b16 %v6761
      %v7246 = vunpack.c.h.b16 %v6761
      %v7247 = vunpack.c.l.b16 %v6762
      %v7248 = vunpack.c.h.b16 %v6762
      %v7249 = vunpack.c.l.b16 %v6763
      %v7250 = vunpack.c.h.b16 %v6763
      %v7251 = vunpack.c.l.b16 %v6764
      %v7252 = vunpack.c.h.b16 %v6764
      %v7253 = vunpack.c.l.b16 %v6765
      %v7254 = vunpack.c.h.b16 %v6765
      %v7255 = vunpack.c.l.b16 %v6766
      %v7256 = vunpack.c.h.b16 %v6766
      %v7257 = vunpack.c.l.b16 %v6767
      %v7258 = vunpack.c.h.b16 %v6767
      %v7259 = vunpack.c.l.b16 %v6768
      %v7260 = vunpack.c.h.b16 %v6768
      %v7261 = vunpack.c.l.b16 %v6769
      %v7262 = vunpack.c.h.b16 %v6769
      %v7263 = vunpack.c.l.b16 %v6770
      %v7264 = vunpack.c.h.b16 %v6770
      %v7265 = vunpack.c.l.b16 %v6771
      %v7266 = vunpack.c.h.b16 %v6771
      %v7267 = vunpack.c.l.b16 %v6772
      %v7268 = vunpack.c.h.b16 %v6772
      %v7269 = vunpack.c.l.b16 %v6773
      %v7270 = vunpack.c.h.b16 %v6773
      %v7271 = vunpack.c.l.b16 %v6774
      %v7272 = vunpack.c.h.b16 %v6774
      %v7273 = vunpack.c.l.b16 %v6775
      %v7274 = vunpack.c.h.b16 %v6775
      %v7275 = vunpack.c.l.b16 %v6776
      %v7276 = vunpack.c.h.b16 %v6776
      %v7277 = vunpack.c.l.b16 %v6777
      %v7278 = vunpack.c.h.b16 %v6777
      %v7279 = vunpack.c.l.b16 %v6778
      %v7280 = vunpack.c.h.b16 %v6778
      %v7281 = vunpack.c.l.b16 %v6779
      %v7282 = vunpack.c.h.b16 %v6779
      %v7283 = vunpack.c.l.b16 %v6780
      %v7284 = vunpack.c.h.b16 %v6780
      %v7285 = vunpack.c.l.b16 %v6781
      %v7286 = vunpack.c.h.b16 %v6781
      %v7287 = vunpack.c.l.b16 %v6782
      %v7288 = vunpack.c.h.b16 %v6782
      %v7289 = vunpack.c.l.b16 %v6783
      %v7290 = vunpack.c.h.b16 %v6783
      %v7291 = vunpack.c.l.b16 %v6784
      %v7292 = vunpack.c.h.b16 %v6784
      %v7293 = vunpack.c.l.b16 %v6785
      %v7294 = vunpack.c.h.b16 %v6785
      %v7295 = vunpack.c.l.b16 %v6786
      %v7296 = vunpack.c.h.b16 %v6786
      %v7297 = vunpack.c.l.b16 %v6787
      %v7298 = vunpack.c.h.b16 %v6787
      %v7299 = vunpack.c.l.b16 %v6788
      %v7300 = vunpack.c.h.b16 %v6788
      %v7301 = vunpack.c.l.b16 %v6789
      %v7302 = vunpack.c.h.b16 %v6789
      %v7303 = vunpack.c.l.b16 %v6790
      %v7304 = vunpack.c.h.b16 %v6790
      %v7305 = vunpack.c.l.b16 %v6791
      %v7306 = vunpack.c.h.b16 %v6791
      %v7307 = vunpack.c.l.b16 %v6792
      %v7308 = vunpack.c.h.b16 %v6792
      %v7309 = vunpack.c.l.b16 %v6793
      %v7310 = vunpack.c.h.b16 %v6793
      %v7311 = vunpack.c.l.b16 %v6794
      %v7312 = vunpack.c.h.b16 %v6794
      %v7313 = vpack.c.b16 %v7027, %v7025
      %v7314 = vpack.c.b16 %v7028, %v7026
      %v7315 = vpack.c.b16 %v7031, %v7029
      %v7316 = vpack.c.b16 %v7032, %v7030
      %v7317 = vpack.c.b16 %v7035, %v7033
      %v7318 = vpack.c.b16 %v7036, %v7034
      %v7319 = vpack.c.b16 %v7039, %v7037
      %v7320 = vpack.c.b16 %v7040, %v7038
      %v7321 = vpack.c.b16 %v7043, %v7041
      %v7322 = vpack.c.b16 %v7044, %v7042
      %v7323 = vpack.c.b16 %v7047, %v7045
      %v7324 = vpack.c.b16 %v7048, %v7046
      %v7325 = vpack.c.b16 %v7051, %v7049
      %v7326 = vpack.c.b16 %v7052, %v7050
      %v7327 = vpack.c.b16 %v7055, %v7053
      %v7328 = vpack.c.b16 %v7056, %v7054
      %v7329 = vpack.c.b16 %v7059, %v7057
      %v7330 = vpack.c.b16 %v7060, %v7058
      %v7331 = vpack.c.b16 %v7063, %v7061
      %v7332 = vpack.c.b16 %v7064, %v7062
      %v7333 = vpack.c.b16 %v7067, %v7065
      %v7334 = vpack.c.b16 %v7068, %v7066
      %v7335 = vpack.c.b16 %v7071, %v7069
      %v7336 = vpack.c.b16 %v7072, %v7070
      %v7337 = vpack.c.b16 %v7075, %v7073
      %v7338 = vpack.c.b16 %v7076, %v7074
      %v7339 = vpack.c.b16 %v7079, %v7077
      %v7340 = vpack.c.b16 %v7080, %v7078
      %v7341 = vpack.c.b16 %v7083, %v7081
      %v7342 = vpack.c.b16 %v7084, %v7082
      %v7343 = vpack.c.b16 %v7087, %v7085
      %v7344 = vpack.c.b16 %v7088, %v7086
      %v7345 = vpack.c.b16 %v7091, %v7089
      %v7346 = vpack.c.b16 %v7092, %v7090
      %v7347 = vpack.c.b16 %v7095, %v7093
      %v7348 = vpack.c.b16 %v7096, %v7094
      %v7349 = vpack.c.b16 %v7099, %v7097
      %v7350 = vpack.c.b16 %v7100, %v7098
      %v7351 = vpack.c.b16 %v7103, %v7101
      %v7352 = vpack.c.b16 %v7104, %v7102
      %v7353 = vpack.c.b16 %v7107, %v7105
      %v7354 = vpack.c.b16 %v7108, %v7106
      %v7355 = vpack.c.b16 %v7111, %v7109
      %v7356 = vpack.c.b16 %v7112, %v7110
      %v7357 = vpack.c.b16 %v7115, %v7113
      %v7358 = vpack.c.b16 %v7116, %v7114
      %v7359 = vpack.c.b16 %v7119, %v7117
      %v7360 = vpack.c.b16 %v7120, %v7118
      %v7361 = vpack.c.b16 %v7123, %v7121
      %v7362 = vpack.c.b16 %v7124, %v7122
      %v7363 = vpack.c.b16 %v7127, %v7125
      %v7364 = vpack.c.b16 %v7128, %v7126
      %v7365 = vpack.c.b16 %v7131, %v7129
      %v7366 = vpack.c.b16 %v7132, %v7130
      %v7367 = vpack.c.b16 %v7135, %v7133
      %v7368 = vpack.c.b16 %v7136, %v7134
      %v7369 = vpack.c.b16 %v7139, %v7137
      %v7370 = vpack.c.b16 %v7140, %v7138
      %v7371 = vpack.c.b16 %v7143, %v7141
      %v7372 = vpack.c.b16 %v7144, %v7142
      %v7373 = vpack.c.b16 %v7147, %v7145
      %v7374 = vpack.c.b16 %v7148, %v7146
      %v7375 = vpack.c.b16 %v7151, %v7149
      %v7376 = vpack.c.b16 %v7152, %v7150
      %v7377 = vpack.c.b16 %v7155, %v7153
      %v7378 = vpack.c.b16 %v7156, %v7154
      %v7379 = vpack.c.b16 %v7159, %v7157
      %v7380 = vpack.c.b16 %v7160, %v7158
      %v7381 = vpack.c.b16 %v7163, %v7161
      %v7382 = vpack.c.b16 %v7164, %v7162
      %v7383 = vpack.c.b16 %v7167, %v7165
      %v7384 = vpack.c.b16 %v7168, %v7166
      %v7385 = vpack.c.b16 %v7171, %v7169
      %v7386 = vpack.c.b16 %v7172, %v7170
      %v7387 = vpack.c.b16 %v7175, %v7173
      %v7388 = vpack.c.b16 %v7176, %v7174
      %v7389 = vpack.c.b16 %v7179, %v7177
      %v7390 = vpack.c.b16 %v7180, %v7178
      %v7391 = vpack.c.b16 %v7183, %v7181
      %v7392 = vpack.c.b16 %v7184, %v7182
      %v7393 = vpack.c.b16 %v7187, %v7185
      %v7394 = vpack.c.b16 %v7188, %v7186
      %v7395 = vpack.c.b16 %v7191, %v7189
      %v7396 = vpack.c.b16 %v7192, %v7190
      %v7397 = vpack.c.b16 %v7195, %v7193
      %v7398 = vpack.c.b16 %v7196, %v7194
      %v7399 = vpack.c.b16 %v7199, %v7197
      %v7400 = vpack.c.b16 %v7200, %v7198
      %v7401 = vpack.c.b16 %v7203, %v7201
      %v7402 = vpack.c.b16 %v7204, %v7202
      %v7403 = vpack.c.b16 %v7207, %v7205
      %v7404 = vpack.c.b16 %v7208, %v7206
      %v7405 = vpack.c.b16 %v7211, %v7209
      %v7406 = vpack.c.b16 %v7212, %v7210
      %v7407 = vpack.c.b16 %v7215, %v7213
      %v7408 = vpack.c.b16 %v7216, %v7214
      %v7409 = vpack.c.b16 %v7219, %v7217
      %v7410 = vpack.c.b16 %v7220, %v7218
      %v7411 = vpack.c.b16 %v7223, %v7221
      %v7412 = vpack.c.b16 %v7224, %v7222
      %v7413 = vpack.c.b16 %v7227, %v7225
      %v7414 = vpack.c.b16 %v7228, %v7226
      %v7415 = vpack.c.b16 %v7231, %v7229
      %v7416 = vpack.c.b16 %v7232, %v7230
      %v7417 = vpack.c.b16 %v7235, %v7233
      %v7418 = vpack.c.b16 %v7236, %v7234
      %v7419 = vpack.c.b16 %v7239, %v7237
      %v7420 = vpack.c.b16 %v7240, %v7238
      %v7421 = vpack.c.b16 %v7243, %v7241
      %v7422 = vpack.c.b16 %v7244, %v7242
      %v7423 = vpack.c.b16 %v7247, %v7245
      %v7424 = vpack.c.b16 %v7248, %v7246
      %v7425 = vpack.c.b16 %v7251, %v7249
      %v7426 = vpack.c.b16 %v7252, %v7250
      %v7427 = vpack.c.b16 %v7255, %v7253
      %v7428 = vpack.c.b16 %v7256, %v7254
      %v7429 = vpack.c.b16 %v7259, %v7257
      %v7430 = vpack.c.b16 %v7260, %v7258
      %v7431 = vpack.c.b16 %v7263, %v7261
      %v7432 = vpack.c.b16 %v7264, %v7262
      %v7433 = vpack.c.b16 %v7267, %v7265
      %v7434 = vpack.c.b16 %v7268, %v7266
      %v7435 = vpack.c.b16 %v7271, %v7269
      %v7436 = vpack.c.b16 %v7272, %v7270
      %v7437 = vpack.c.b16 %v7275, %v7273
      %v7438 = vpack.c.b16 %v7276, %v7274
      %v7439 = vpack.c.b16 %v7279, %v7277
      %v7440 = vpack.c.b16 %v7280, %v7278
      %v7441 = vpack.c.b16 %v7283, %v7281
      %v7442 = vpack.c.b16 %v7284, %v7282
      %v7443 = vpack.c.b16 %v7287, %v7285
      %v7444 = vpack.c.b16 %v7288, %v7286
      %v7445 = vpack.c.b16 %v7291, %v7289
      %v7446 = vpack.c.b16 %v7292, %v7290
      %v7447 = vpack.c.b16 %v7295, %v7293
      %v7448 = vpack.c.b16 %v7296, %v7294
      %v7449 = vpack.c.b16 %v7299, %v7297
      %v7450 = vpack.c.b16 %v7300, %v7298
      %v7451 = vpack.c.b16 %v7303, %v7301
      %v7452 = vpack.c.b16 %v7304, %v7302
      %v7453 = vpack.c.b16 %v7307, %v7305
      %v7454 = vpack.c.b16 %v7308, %v7306
      %v7455 = vpack.c.b16 %v7311, %v7309
      %v7456 = vpack.c.b16 %v7312, %v7310
      %7601 = vmatprep.subr.bf16.mxu0 %v7314
      %7602 = vmatpush1.bf16.msra.mxu0 %v7313
      %7603 = vmatprep.subr.bf16.mxu0 %v7316
      %7604 = vmatpush1.bf16.msra.mxu0 %v7315
      %7605 = vmatprep.subr.bf16.mxu0 %v7318
      %7606 = vmatpush1.bf16.msra.mxu0 %v7317
      %7607 = vmatprep.subr.bf16.mxu0 %v7320
      %7608 = vmatpush1.bf16.msra.mxu0 %v7319
      %7609 = vmatprep.subr.bf16.mxu0 %v7322
      %7610 = vmatpush1.bf16.msra.mxu0 %v7321
      %7611 = vmatprep.subr.bf16.mxu0 %v7324
      %7612 = vmatpush1.bf16.msra.mxu0 %v7323
      %7613 = vmatprep.subr.bf16.mxu0 %v7326
      %7614 = vmatpush1.bf16.msra.mxu0 %v7325
      %7615 = vmatprep.subr.bf16.mxu0 %v7328
      %7616 = vmatpush1.bf16.msra.mxu0 %v7327
      %7617 = vmatprep.subr.bf16.mxu0 %v7330
      %7618 = vmatpush1.bf16.msra.mxu0 %v7329
      %7619 = vmatprep.subr.bf16.mxu0 %v7332
      %7620 = vmatpush1.bf16.msra.mxu0 %v7331
      %7621 = vmatprep.subr.bf16.mxu0 %v7334
      %7622 = vmatpush1.bf16.msra.mxu0 %v7333
      %7623 = vmatprep.subr.bf16.mxu0 %v7336
      %7624 = vmatpush1.bf16.msra.mxu0 %v7335
      %7625 = vmatprep.subr.bf16.mxu0 %v7338
      %7626 = vmatpush1.bf16.msra.mxu0 %v7337
      %7627 = vmatprep.subr.bf16.mxu0 %v7340
      %7628 = vmatpush1.bf16.msra.mxu0 %v7339
      %7629 = vmatprep.subr.bf16.mxu0 %v7342
      %7630 = vmatpush1.bf16.msra.mxu0 %v7341
      %7631 = vmatprep.subr.bf16.mxu0 %v7344
      %7632 = vmatpush1.bf16.msra.mxu0 %v7343
      %7633 = vmatprep.mubr.bf16.mxu0 %v6846
      %7634 = vmatmul.mubr.bf16.gmra.mrb[0].mxu0 %v6832
      %v7635 = vpop.f32.mrb[0].mxu0
      %v7636 = vadd.f32 %v6800, %v7635
      %v7637 = vpop.f32.mrb[0].mxu0
      %v7638 = vadd.f32 %v6804, %v7637
      %v7639 = vpop.f32.mrb[0].mxu0
      %v7640 = vpop.f32.mrb[0].mxu0
      %7641 = vdwg.mxu0
      %7642 = vmatprep.subr.bf16.mxu0 %v7346
      %7643 = vmatpush1.bf16.msra.mxu0 %v7345
      %7644 = vmatprep.subr.bf16.mxu0 %v7348
      %7645 = vmatpush1.bf16.msra.mxu0 %v7347
      %7646 = vmatprep.subr.bf16.mxu0 %v7350
      %7647 = vmatpush1.bf16.msra.mxu0 %v7349
      %7648 = vmatprep.subr.bf16.mxu0 %v7352
      %7649 = vmatpush1.bf16.msra.mxu0 %v7351
      %7650 = vmatprep.subr.bf16.mxu0 %v7354
      %7651 = vmatpush1.bf16.msra.mxu0 %v7353
      %7652 = vmatprep.subr.bf16.mxu0 %v7356
      %7653 = vmatpush1.bf16.msra.mxu0 %v7355
      %7654 = vmatprep.subr.bf16.mxu0 %v7358
      %7655 = vmatpush1.bf16.msra.mxu0 %v7357
      %7656 = vmatprep.subr.bf16.mxu0 %v7360
      %7657 = vmatpush1.bf16.msra.mxu0 %v7359
      %7658 = vmatprep.subr.bf16.mxu0 %v7362
      %7659 = vmatpush1.bf16.msra.mxu0 %v7361
      %7660 = vmatprep.subr.bf16.mxu0 %v7364
      %7661 = vmatpush1.bf16.msra.mxu0 %v7363
      %7662 = vmatprep.subr.bf16.mxu0 %v7366
      %7663 = vmatpush1.bf16.msra.mxu0 %v7365
      %7664 = vmatprep.subr.bf16.mxu0 %v7368
      %7665 = vmatpush1.bf16.msra.mxu0 %v7367
      %7666 = vmatprep.subr.bf16.mxu0 %v7370
      %7667 = vmatpush1.bf16.msra.mxu0 %v7369
      %7668 = vmatprep.subr.bf16.mxu0 %v7372
      %7669 = vmatpush1.bf16.msra.mxu0 %v7371
      %7670 = vmatprep.subr.bf16.mxu0 %v7374
      %7671 = vmatpush1.bf16.msra.mxu0 %v7373
      %7672 = vmatprep.subr.bf16.mxu0 %v7376
      %7673 = vmatpush1.bf16.msra.mxu0 %v7375
      %7674 = vmatprep.mubr.bf16.mxu0 %v6856
      %7675 = vmatmul.mubr.bf16.gmra.mrb[0].mxu0 %v6854
      %v7676 = vpop.f32.mrb[0].mxu0
      %v7677 = vadd.f32 %v7636, %v7676
      %v7678 = vpop.f32.mrb[0].mxu0
      %v7679 = vadd.f32 %v7638, %v7678
      %v7680 = vpop.f32.mrb[0].mxu0
      %v7681 = vpop.f32.mrb[0].mxu0
      %7682 = vdwg.mxu0
      %7683 = vmatprep.subr.bf16.mxu0 %v7378
      %7684 = vmatpush1.bf16.msra.mxu0 %v7377
      %7685 = vmatprep.subr.bf16.mxu0 %v7380
      %7686 = vmatpush1.bf16.msra.mxu0 %v7379
      %7687 = vmatprep.subr.bf16.mxu0 %v7382
      %7688 = vmatpush1.bf16.msra.mxu0 %v7381
      %7689 = vmatprep.subr.bf16.mxu0 %v7384
      %7690 = vmatpush1.bf16.msra.mxu0 %v7383
      %7691 = vmatprep.subr.bf16.mxu0 %v7386
      %7692 = vmatpush1.bf16.msra.mxu0 %v7385
      %7693 = vmatprep.subr.bf16.mxu0 %v7388
      %7694 = vmatpush1.bf16.msra.mxu0 %v7387
      %7695 = vmatprep.subr.bf16.mxu0 %v7390
      %7696 = vmatpush1.bf16.msra.mxu0 %v7389
      %7697 = vmatprep.subr.bf16.mxu0 %v7392
      %7698 = vmatpush1.bf16.msra.mxu0 %v7391
      %7699 = vmatprep.subr.bf16.mxu0 %v7394
      %7700 = vmatpush1.bf16.msra.mxu0 %v7393
      %7701 = vmatprep.subr.bf16.mxu0 %v7396
      %7702 = vmatpush1.bf16.msra.mxu0 %v7395
      %7703 = vmatprep.subr.bf16.mxu0 %v7398
      %7704 = vmatpush1.bf16.msra.mxu0 %v7397
      %7705 = vmatprep.subr.bf16.mxu0 %v7400
      %7706 = vmatpush1.bf16.msra.mxu0 %v7399
      %7707 = vmatprep.subr.bf16.mxu0 %v7402
      %7708 = vmatpush1.bf16.msra.mxu0 %v7401
      %7709 = vmatprep.subr.bf16.mxu0 %v7404
      %7710 = vmatpush1.bf16.msra.mxu0 %v7403
      %7711 = vmatprep.subr.bf16.mxu0 %v7406
      %7712 = vmatpush1.bf16.msra.mxu0 %v7405
      %7713 = vmatprep.subr.bf16.mxu0 %v7408
      %7714 = vmatpush1.bf16.msra.mxu0 %v7407
      %7715 = vmatprep.mubr.bf16.mxu0 %v6853
      %7716 = vmatmul.mubr.bf16.gmra.mrb[0].mxu0 %v6839
      %v7717 = vpop.f32.mrb[0].mxu0
      %v7718 = vadd.f32 %v7677, %v7717
      %v7719 = vpop.f32.mrb[0].mxu0
      %v7720 = vadd.f32 %v7679, %v7719
      %v7721 = vpop.f32.mrb[0].mxu0
      %v7722 = vpop.f32.mrb[0].mxu0
      %7723 = vdwg.mxu0
      %7724 = vmatprep.subr.bf16.mxu0 %v7410
      %7725 = vmatpush1.bf16.msra.mxu0 %v7409
      %7726 = vmatprep.subr.bf16.mxu0 %v7412
      %7727 = vmatpush1.bf16.msra.mxu0 %v7411
      %7728 = vmatprep.subr.bf16.mxu0 %v7414
      %7729 = vmatpush1.bf16.msra.mxu0 %v7413
      %7730 = vmatprep.subr.bf16.mxu0 %v7416
      %7731 = vmatpush1.bf16.msra.mxu0 %v7415
      %7732 = vmatprep.subr.bf16.mxu0 %v7418
      %7733 = vmatpush1.bf16.msra.mxu0 %v7417
      %7734 = vmatprep.subr.bf16.mxu0 %v7420
      %7735 = vmatpush1.bf16.msra.mxu0 %v7419
      %7736 = vmatprep.subr.bf16.mxu0 %v7422
      %7737 = vmatpush1.bf16.msra.mxu0 %v7421
      %7738 = vmatprep.subr.bf16.mxu0 %v7424
      %7739 = vmatpush1.bf16.msra.mxu0 %v7423
      %7740 = vmatprep.subr.bf16.mxu0 %v7426
      %7741 = vmatpush1.bf16.msra.mxu0 %v7425
      %7742 = vmatprep.subr.bf16.mxu0 %v7428
      %7743 = vmatpush1.bf16.msra.mxu0 %v7427
      %7744 = vmatprep.subr.bf16.mxu0 %v7430
      %7745 = vmatpush1.bf16.msra.mxu0 %v7429
      %7746 = vmatprep.subr.bf16.mxu0 %v7432
      %7747 = vmatpush1.bf16.msra.mxu0 %v7431
      %7748 = vmatprep.subr.bf16.mxu0 %v7434
      %7749 = vmatpush1.bf16.msra.mxu0 %v7433
      %7750 = vmatprep.subr.bf16.mxu0 %v7436
      %7751 = vmatpush1.bf16.msra.mxu0 %v7435
      %7752 = vmatprep.subr.bf16.mxu0 %v7438
      %7753 = vmatpush1.bf16.msra.mxu0 %v7437
      %7754 = vmatprep.subr.bf16.mxu0 %v7440
      %7755 = vmatpush1.bf16.msra.mxu0 %v7439
      %7756 = vmatprep.mubr.bf16.mxu0 %v6857
      %7757 = vmatmul.mubr.bf16.gmra.mrb[0].mxu0 %v6855
      %v7758 = vpop.f32.mrb[0].mxu0
      %v7759 = vadd.f32 %v7718, %v7758
      %v7760 = vpop.f32.mrb[0].mxu0
      %v7761 = vadd.f32 %v7720, %v7760
      %v7762 = vpop.f32.mrb[0].mxu0
      %v7763 = vpop.f32.mrb[0].mxu0
      %7764 = vdwg.mxu0
      %7765 = vmatprep.subr.bf16.mxu0 %v7442
      %7766 = vmatpush1.bf16.msra.mxu0 %v7441
      %7767 = vmatprep.subr.bf16.mxu0 %v7444
      %7768 = vmatpush1.bf16.msra.mxu0 %v7443
      %7769 = vmatprep.subr.bf16.mxu0 %v7446
      %7770 = vmatpush1.bf16.msra.mxu0 %v7445
      %7771 = vmatprep.subr.bf16.mxu0 %v7448
      %7772 = vmatpush1.bf16.msra.mxu0 %v7447
      %7773 = vmatprep.subr.bf16.mxu0 %v7450
      %7774 = vmatpush1.bf16.msra.mxu0 %v7449
      %7775 = vmatprep.subr.bf16.mxu0 %v7452
      %7776 = vmatpush1.bf16.msra.mxu0 %v7451
      %7777 = vmatprep.subr.bf16.mxu0 %v7454
      %7778 = vmatpush1.bf16.msra.mxu0 %v7453
      %7779 = vmatprep.subr.bf16.mxu0 %v7456
      %7780 = vmatpush1.bf16.msra.mxu0 %v7455
      %7781 = vmatprep.subr.bf16.mxu0 0
      %7782 = vmatpush1.bf16.msra.mxu0 0
      %7783 = vmatprep.subr.bf16.mxu0 0
      %7784 = vmatpush1.bf16.msra.mxu0 0
      %7785 = vmatprep.subr.bf16.mxu0 0
      %7786 = vmatpush1.bf16.msra.mxu0 0
      %7787 = vmatprep.subr.bf16.mxu0 0
      %7788 = vmatpush1.bf16.msra.mxu0 0
      %7789 = vmatprep.subr.bf16.mxu0 0
      %7790 = vmatpush1.bf16.msra.mxu0 0
      %7791 = vmatprep.subr.bf16.mxu0 0
      %7792 = vmatpush1.bf16.msra.mxu0 0
      %7793 = vmatprep.subr.bf16.mxu0 0
      %7794 = vmatpush1.bf16.msra.mxu0 0
      %7795 = vmatprep.subr.bf16.mxu0 0
      %7796 = vmatpush1.bf16.msra.mxu0 0
      %7797 = vmatprep.mubr.bf16.mxu0 0
      %7798 = vmatmul.mubr.bf16.gmra.mrb[0].mxu0 %v6871
      %v7799 = vpop.f32.mrb[0].mxu0
      %v7800 = vadd.f32 %v7759, %v7799
      %v7801 = vpop.f32.mrb[0].mxu0
      %v7802 = vadd.f32 %v7761, %v7801
      %v7803 = vpop.f32.mrb[0].mxu0
      %v7804 = vpop.f32.mrb[0].mxu0
      %7805 = vdwg.mxu0
      %v7806 = vmax.f32 %v7800, 0.0
      %v7807 = vmax.f32 %v7802, 0.0
      %v7808 = vadd.f32 %v7806, 0.0
      %v7809 = vadd.f32 %v7807, 0.0
      %v7810 = vadd.f32 %v7808, 0.0
      %v7811 = vadd.f32 %v7809, 0.0
      %v7814 = vcombine.low %v7810, %v7811
      %v7816 = vunpack.c.l.s4 1966171168
      %v7817 = vunpack.c.0.s8 %v7816
      %v7818 = vlaneseq
      %v7819 = vshrl.u32 %v7818, 7
      %v7820 = vsub.s32 %v7817, %v7819
      %v7821 = vrot.slane %v7814, %v7820
      %v7823 = vunpack.c.l.s4 1966171168
      %v7824 = vunpack.c.0.s8 %v7823
      %v7825 = vlaneseq
      %v7826 = vshrl.u32 %v7825, 7
      %v7827 = vsub.s32 %v7824, %v7826
      %v7828 = vrot.slane %v7821, %v7827
      %v7830 = vlaneseq
      %vm7831 = vcmp.ge.s32.totalorder %v7830, 0
      %vm7832 = vcmp.lt.s32.totalorder %v7830, 256
      %vm7833 = vmand %vm7831, %vm7832
      %7834 = vst.msk [vmem:[%s384] sm:$0x3] %vm7833, %v7828
      %p7835 = scmp.lt.s32.totalorder %s22, 1
      %s7836 = scalar_select %p7835, %s22, 1
      %s7837 = smul.addr %s7836, 2
      %s7838 = scalar_lea.vmem %s11, %s7837
      // Predicated region
      $region65: #{cnn_planner_forward.2} parent=63 // pred_check
        %p7839 = pneg %p276
      $region66: #{cnn_planner_forward.2} parent=63 // pred_check_branch
        %7841 = sbr.rel (%p7839) target = $region68
      $region67: #{cnn_planner_forward.2} parent=63 // pred_region
        _
      $region68: #{cnn_planner_forward.2} parent=63 // pred_fallthru
        _
    $region64: #{cnn_planner_forward.2} parent=5 // pred_fallthru
      _
    %p7842 = scmp.le.s32.totalorder 2, %s17
    // Predicated region
    $region69: #{cnn_planner_forward.2} parent=5 // pred_check
      %p7843 = pneg %p7842
    $region70: #{cnn_planner_forward.2} parent=5 // pred_check_branch
      %7845 = sbr.rel (%p7843) target = $region72
    $region71: #{cnn_planner_forward.2} parent=5 // pred_region
      %s7846 = ssub.s32 %s17, 2
      // Predicated region
      $region73: #{cnn_planner_forward.2} parent=71 // pred_check
        %p7847 = pneg %p282
      $region74: #{cnn_planner_forward.2} parent=71 // pred_check_branch
        %7849 = sbr.rel (%p7847) target = $region76
      $region75: #{cnn_planner_forward.2} parent=71 // pred_region
        %p7850 = scmp.lt.s32.totalorder %s23, 1
        %s7851 = scalar_select %p7850, %s23, 1
        %s7852 = smul.addr %s7851, 2
        %s7853 = scalar_lea.vmem %s11, %s7852
      $region76: #{cnn_planner_forward.2} parent=71 // pred_fallthru
        _
    $region72: #{cnn_planner_forward.2} parent=5 // pred_fallthru
      _
  $region6: #{cnn_planner_forward.2} parent=0 // loop_footer
    %s21 = sadd.s32 1, %s17
  $region7: #{cnn_planner_forward.2} parent=0 // loop_footer_branch
    %16 = sbr.rel target = $region3
  $region8: #{cnn_planner_forward.2} parent=0 // loop_exit
    _

</llo_original>
